<compile_context>
chip_gen: v5e
topology: v5e:2x2
jax: 0.10.0
libtpu: 0.0.40
codegen_flags: <defaults>
</compile_context>

<pallas_src>
import functools

import jax
import jax.numpy as jnp
from jax.experimental import pallas as pl
from jax.experimental.pallas import tpu as pltpu


# ------------------------------ Pallas kernel ------------------------------ #

def _aspp_fused_kernel(xm_ref, c2_ref, c3_ref, c4_ref,
                       w1_ref, w2_ref, w3_ref, w4_ref,
                       shifts_ref, wr_ref, bias5_ref, o_ref):
    """One grid step == one image (tm = H*W rows).

    out = relu( concat(x1..x4) @ Wr[0:1024] + bias5 ), with
    x_b = relu( X_b @ W_b + shift_b ) computed in-kernel and kept in VMEM.
    bias5 already contains the pooled branch's contribution + reduce BN shift.
    """
    def branch(x, w, k):
        acc = jnp.dot(x, w, preferred_element_type=jnp.float32)
        return jnp.maximum(acc + shifts_ref[k:k + 1, :], 0.0).astype(jnp.bfloat16)

    x1 = branch(xm_ref[...], w1_ref[...], 0)     # 1x1 branch
    x2 = branch(c2_ref[...], w2_ref[...], 1)     # 3x3, dilation d1
    x3 = branch(c3_ref[...], w3_ref[...], 2)     # 3x3, dilation d2
    x4 = branch(c4_ref[...], w4_ref[...], 3)     # 3x3, dilation d3

    xcat = jnp.concatenate([x1, x2, x3, x4], axis=-1)          # (tm, 1024) bf16
    acc = jnp.dot(xcat, wr_ref[...], preferred_element_type=jnp.float32)
    o_ref[...] = jnp.maximum(acc + bias5_ref[0], 0.0).astype(o_ref.dtype)


def aspp_fused(xm, c2, c3, c4, w1, w2, w3, w4, shifts, wr, bias5, *, tm,
               out_dtype=jnp.float32):
    """Single pallas_call for the whole ASPP trunk. tm must equal H*W."""
    M, Cin = xm.shape
    K3 = c2.shape[1]
    Nc = wr.shape[1]
    assert M % tm == 0 and tm % 8 == 0 and Nc % 128 == 0
    n_tiles = M // tm

    return pl.pallas_call(
        _aspp_fused_kernel,
        out_shape=jax.ShapeDtypeStruct((M, Nc), out_dtype),
        grid_spec=pltpu.PrefetchScalarGridSpec(
            num_scalar_prefetch=0,
            grid=(n_tiles,),
            in_specs=[
                pl.BlockSpec((tm, Cin), lambda i: (i, 0)),        # X (1x1 branch)
                pl.BlockSpec((tm, K3), lambda i: (i, 0)),         # im2col, d1
                pl.BlockSpec((tm, K3), lambda i: (i, 0)),         # im2col, d2
                pl.BlockSpec((tm, K3), lambda i: (i, 0)),         # im2col, d3
                pl.BlockSpec((Cin, Nc), lambda i: (0, 0)),        # W1 (folded BN)
                pl.BlockSpec((K3, Nc), lambda i: (0, 0)),         # W2
                pl.BlockSpec((K3, Nc), lambda i: (0, 0)),         # W3
                pl.BlockSpec((K3, Nc), lambda i: (0, 0)),         # W4
                pl.BlockSpec((4, Nc), lambda i: (0, 0)),          # branch BN shifts
                pl.BlockSpec((4 * Nc, Nc), lambda i: (0, 0)),     # reduce weight
                pl.BlockSpec((1, 1, Nc), lambda i: (i, 0, 0)),    # per-image bias5
            ],
            out_specs=pl.BlockSpec((tm, Nc), lambda i: (i, 0)),
        ),
        compiler_params=pltpu.CompilerParams(
            dimension_semantics=("parallel",)),
    )(xm, c2, c3, c4, w1, w2, w3, w4, shifts, wr, bias5)


# --------------------------- Glue (plain JAX) ------------------------------ #

def im2col_3x3(x_nhwc, dilation):
    """3x3 dilated conv im2col (padding=dilation, stride=1); rows = (kh,kw,c)."""
    # TODO(synk): at production channel counts, replace this wrapper-side
    # im2col with in-kernel shifted-window accumulation (9x HBM expansion).
    N, H, W, C = x_nhwc.shape
    d = dilation
    xp = jnp.pad(x_nhwc, ((0, 0), (d, d), (d, d), (0, 0)))
    patches = []
    for kh in range(3):
        for kw in range(3):
            patches.append(xp[:, kh * d:kh * d + H, kw * d:kw * d + W, :])
    return jnp.stack(patches, axis=3).reshape(N * H * W, 9 * C)


def aspp_forward(x_nchw, params, dilations):
    N, Cin, H, W = x_nchw.shape
    M = N * H * W
    planes = params["wr_cat"].shape[1]

    x_nhwc = jnp.transpose(x_nchw, (0, 2, 3, 1))                # f32 NHWC
    x_bf16 = x_nhwc.astype(jnp.bfloat16)
    xm = x_bf16.reshape(M, Cin)

    c2 = im2col_3x3(x_bf16, dilations[1])
    c3 = im2col_3x3(x_bf16, dilations[2])
    c4 = im2col_3x3(x_bf16, dilations[3])

    # Global-average-pool branch: tiny ((N,Cin)@(Cin,256)), stays in plain JAX
    # in f32.  Its bilinearly "upsampled" 1x1 map is constant per image, so it
    # enters the reduce conv purely as a per-image bias.
    pooled = jnp.mean(x_nhwc, axis=(1, 2))                      # (N, Cin) f32
    x5_small = jnp.maximum(pooled @ params["w5m"] + params["b5"][None, :], 0.0)
    bias5 = (x5_small @ params["wr5"] + params["br"][None, :])  # (N, 256) f32
    bias5 = bias5.reshape(N, 1, planes)

    out = aspp_fused(xm, c2, c3, c4,
                     params["w1m"], params["w2m"], params["w3m"], params["w4m"],
                     params["shifts"], params["wr_cat"], bias5,
                     tm=H * W, out_dtype=jnp.float32)
    return jnp.transpose(out.reshape(N, H, W, planes), (0, 3, 1, 2))   # NCHW


def prepare_params(raw, bn, planes=256, eps=1e-5):
    """One-time weight layout + per-layer eval-mode BatchNorm folding."""
    scales, shifts = {}, {}
    for k in ("bn1", "bn2", "bn3", "bn4", "bn5", "bnr"):
        gamma, beta, mean, var = bn[k]
        s = gamma / jnp.sqrt(var + eps)
        scales[k] = s
        shifts[k] = beta - mean * s

    def fold1x1(w_oihw, s, dtype=jnp.bfloat16):        # (O,I,1,1) -> (I,O)
        return (w_oihw[:, :, 0, 0].T * s[None, :]).astype(dtype)

    def fold3x3(w_oihw, s):                            # (O,I,3,3) -> (9I,O)
        o = w_oihw.shape[0]
        w2 = jnp.transpose(w_oihw, (2, 3, 1, 0)).reshape(-1, o)   # rows (kh,kw,i)
        return (w2 * s[None, :]).astype(jnp.bfloat16)

    wr_full = raw["wr"][:, :, 0, 0].T * scales["bnr"][None, :]    # (1280,256) f32

    return {
        "w1m": fold1x1(raw["w1"], scales["bn1"]),
        "w2m": fold3x3(raw["w2"], scales["bn2"]),
        "w3m": fold3x3(raw["w3"], scales["bn3"]),
        "w4m": fold3x3(raw["w4"], scales["bn4"]),
        "w5m": fold1x1(raw["w5"], scales["bn5"], dtype=jnp.float32),   # jnp path
        "b5": shifts["bn5"],
        "wr_cat": wr_full[:4 * planes].astype(jnp.bfloat16),           # (1024,256)
        "wr5": wr_full[4 * planes:],                                   # (256,256) f32
        "br": shifts["bnr"],
        "shifts": jnp.stack([shifts["bn1"], shifts["bn2"],
                             shifts["bn3"], shifts["bn4"]]),           # (4,256) f32
    }


# ------------------------- Pure-JAX f32 reference --------------------------- #

def aspp_reference_f32(x_nchw, raw, bn, dilations, eps=1e-5):
    def bn_relu(y, key):
        gamma, beta, mean, var = bn[key]
        s = gamma / jnp.sqrt(var + eps)
        y = y * s[None, :, None, None] + (beta - mean * s)[None, :, None, None]
        return jnp.maximum(y, 0.0)

    def conv(x, w, d, pad):
        return jax.lax.conv_general_dilated(
            x, w, window_strides=(1, 1), padding=((pad, pad), (pad, pad)),
            rhs_dilation=(d, d), dimension_numbers=("NCHW", "OIHW", "NCHW"))

    x1 = bn_relu(conv(x_nchw, raw["w1"], 1, 0), "bn1")
    x2 = bn_relu(conv(x_nchw, raw["w2"], dilations[1], dilations[1]), "bn2")
    x3 = bn_relu(conv(x_nchw, raw["w3"], dilations[2], dilations[2]), "bn3")
    x4 = bn_relu(conv(x_nchw, raw["w4"], dilations[3], dilations[3]), "bn4")
    pooled = jnp.mean(x_nchw, axis=(2, 3), keepdims=True)
    x5 = bn_relu(conv(pooled, raw["w5"], 1, 0), "bn5")
    x5 = jnp.broadcast_to(x5, x4.shape)
    xc = jnp.concatenate([x1, x2, x3, x4, x5], axis=1)
    return bn_relu(conv(xc, raw["wr"], 1, 0), "bnr")


# --------------------------------- main ------------------------------------ #

if __name__ == "__main__":
    N, Cin, H, W = 2, 32, 16, 16
    output_stride = 16
    dilations = (1, 6, 12, 18) if output_stride == 16 else (1, 12, 24, 36)
    planes = 256

    key = jax.random.PRNGKey(0)
    keys = jax.random.split(key, 7)
    x_nchw = jax.random.normal(keys[0], (N, Cin, H, W), jnp.float32)

    def kaiming(k, shape, fan_in):
        return jax.random.normal(k, shape, jnp.float32) * jnp.sqrt(2.0 / fan_in)

    raw = {
        "w1": kaiming(keys[1], (planes, Cin, 1, 1), Cin),
        "w2": kaiming(keys[2], (planes, Cin, 3, 3), Cin * 9),
        "w3": kaiming(keys[3], (planes, Cin, 3, 3), Cin * 9),
        "w4": kaiming(keys[4], (planes, Cin, 3, 3), Cin * 9),
        "w5": kaiming(keys[5], (planes, Cin, 1, 1), Cin),
        "wr": kaiming(keys[6], (planes, 5 * planes, 1, 1), 5 * planes),
    }

    # Per-layer BatchNorm params at _init_weight() values (gamma=1, beta=0,
    # running_mean=0, running_var=1), folded in eval mode.
    def identity_bn(p):
        return (jnp.ones((p,), jnp.float32), jnp.zeros((p,), jnp.float32),
                jnp.zeros((p,), jnp.float32), jnp.ones((p,), jnp.float32))

    bn = {k: identity_bn(planes) for k in ("bn1", "bn2", "bn3", "bn4", "bn5", "bnr")}
    params = prepare_params(raw, bn, planes=planes)

    fwd = jax.jit(functools.partial(aspp_forward, dilations=dilations))
    out = fwd(x_nchw, params)
    jax.block_until_ready(out)

    assert out.shape == (N, planes, H, W), out.shape
    assert bool(jnp.all(jnp.isfinite(out)))

    # Tolerance check against a pure-JAX f32 reference (bf16 MXU path).
    ref = jax.jit(functools.partial(aspp_reference_f32, dilations=dilations))(
        x_nchw, raw, bn)
    max_err = float(jnp.max(jnp.abs(out - ref)))
    assert max_err < 0.2, f"max abs err vs f32 reference: {max_err}"

    print("KERNEL_OK")
</pallas_src>

<mosaic_0001>
module attributes {stable_mosaic.version = 11 : i64} {
  func.func @_aspp_fused_kernel(%arg0: i32, %arg1: memref<256x32xbf16, #tpu.memory_space<vmem>>, %arg2: memref<256x288xbf16, #tpu.memory_space<vmem>>, %arg3: memref<256x288xbf16, #tpu.memory_space<vmem>>, %arg4: memref<256x288xbf16, #tpu.memory_space<vmem>>, %arg5: memref<32x256xbf16, #tpu.memory_space<vmem>>, %arg6: memref<288x256xbf16, #tpu.memory_space<vmem>>, %arg7: memref<288x256xbf16, #tpu.memory_space<vmem>>, %arg8: memref<288x256xbf16, #tpu.memory_space<vmem>>, %arg9: memref<4x256xf32, #tpu.memory_space<vmem>>, %arg10: memref<1024x256xbf16, #tpu.memory_space<vmem>>, %arg11: memref<1x1x256xf32, #tpu.memory_space<vmem>>, %arg12: memref<256x256xf32, #tpu.memory_space<vmem>>) attributes {dimension_semantics = [#tpu.dimension_semantics<parallel>], iteration_bounds = array<i64: 2>, scalar_prefetch = 0 : i64, scratch_operands = 0 : i64, tpu.core_type = #tpu.core_type<tc>, window_params = [{transform_indices = @transform_0, window_bounds = array<i64: 256, 32>}, {transform_indices = @transform_1, window_bounds = array<i64: 256, 288>}, {transform_indices = @transform_2, window_bounds = array<i64: 256, 288>}, {transform_indices = @transform_3, window_bounds = array<i64: 256, 288>}, {pipeline_mode = #tpu.pipeline_mode<synchronous>, transform_indices = @transform_4, window_bounds = array<i64: 32, 256>}, {pipeline_mode = #tpu.pipeline_mode<synchronous>, transform_indices = @transform_5, window_bounds = array<i64: 288, 256>}, {pipeline_mode = #tpu.pipeline_mode<synchronous>, transform_indices = @transform_6, window_bounds = array<i64: 288, 256>}, {pipeline_mode = #tpu.pipeline_mode<synchronous>, transform_indices = @transform_7, window_bounds = array<i64: 288, 256>}, {pipeline_mode = #tpu.pipeline_mode<synchronous>, transform_indices = @transform_8, window_bounds = array<i64: 4, 256>}, {pipeline_mode = #tpu.pipeline_mode<synchronous>, transform_indices = @transform_9, window_bounds = array<i64: 1024, 256>}, {transform_indices = @transform_10, window_bounds = array<i64: 1, 1, 256>}, {transform_indices = @transform_11, window_bounds = array<i64: 256, 256>}]} {
    %c0 = arith.constant 0 : index
    %c0_0 = arith.constant 0 : index
    %0 = vector.load %arg1[%c0, %c0_0] : memref<256x32xbf16, #tpu.memory_space<vmem>>, vector<256x32xbf16>
    %c0_1 = arith.constant 0 : index
    %c0_2 = arith.constant 0 : index
    %1 = vector.load %arg5[%c0_1, %c0_2] : memref<32x256xbf16, #tpu.memory_space<vmem>>, vector<32x256xbf16>
    %cst = arith.constant dense<0.000000e+00> : vector<256x256xf32>
    %2 = tpu.matmul %0, %1, %cst {dimension_numbers = #tpu.dot_dimension_numbers<[1], [0], [0], [1], [0, 0, 1, 1], [], []>} : vector<256x32xbf16>, vector<32x256xbf16>, vector<256x256xf32> -> vector<256x256xf32>
    %c0_3 = arith.constant 0 : index
    %c0_4 = arith.constant 0 : index
    %3 = vector.load %arg9[%c0_3, %c0_4] : memref<4x256xf32, #tpu.memory_space<vmem>>, vector<1x256xf32>
    %4 = vector.broadcast %3 : vector<1x256xf32> to vector<256x256xf32>
    %5 = arith.addf %2, %4 : vector<256x256xf32>
    %cst_5 = arith.constant 0.000000e+00 : f32
    %6 = vector.broadcast %cst_5 : f32 to vector<256x256xf32>
    %7 = arith.maximumf %5, %6 : vector<256x256xf32>
    %8 = arith.truncf %7 : vector<256x256xf32> to vector<256x256xbf16>
    %c0_6 = arith.constant 0 : index
    %c0_7 = arith.constant 0 : index
    %9 = vector.load %arg2[%c0_6, %c0_7] : memref<256x288xbf16, #tpu.memory_space<vmem>>, vector<256x288xbf16>
    %c0_8 = arith.constant 0 : index
    %c0_9 = arith.constant 0 : index
    %10 = vector.load %arg6[%c0_8, %c0_9] : memref<288x256xbf16, #tpu.memory_space<vmem>>, vector<288x256xbf16>
    %cst_10 = arith.constant dense<0.000000e+00> : vector<256x256xf32>
    %11 = tpu.matmul %9, %10, %cst_10 {dimension_numbers = #tpu.dot_dimension_numbers<[1], [0], [0], [1], [0, 0, 1, 1], [], []>} : vector<256x288xbf16>, vector<288x256xbf16>, vector<256x256xf32> -> vector<256x256xf32>
    %c1 = arith.constant 1 : index
    %c0_11 = arith.constant 0 : index
    %12 = vector.load %arg9[%c1, %c0_11] : memref<4x256xf32, #tpu.memory_space<vmem>>, vector<1x256xf32>
    %13 = vector.broadcast %12 : vector<1x256xf32> to vector<256x256xf32>
    %14 = arith.addf %11, %13 : vector<256x256xf32>
    %cst_12 = arith.constant 0.000000e+00 : f32
    %15 = vector.broadcast %cst_12 : f32 to vector<256x256xf32>
    %16 = arith.maximumf %14, %15 : vector<256x256xf32>
    %17 = arith.truncf %16 : vector<256x256xf32> to vector<256x256xbf16>
    %c0_13 = arith.constant 0 : index
    %c0_14 = arith.constant 0 : index
    %18 = vector.load %arg3[%c0_13, %c0_14] : memref<256x288xbf16, #tpu.memory_space<vmem>>, vector<256x288xbf16>
    %c0_15 = arith.constant 0 : index
    %c0_16 = arith.constant 0 : index
    %19 = vector.load %arg7[%c0_15, %c0_16] : memref<288x256xbf16, #tpu.memory_space<vmem>>, vector<288x256xbf16>
    %cst_17 = arith.constant dense<0.000000e+00> : vector<256x256xf32>
    %20 = tpu.matmul %18, %19, %cst_17 {dimension_numbers = #tpu.dot_dimension_numbers<[1], [0], [0], [1], [0, 0, 1, 1], [], []>} : vector<256x288xbf16>, vector<288x256xbf16>, vector<256x256xf32> -> vector<256x256xf32>
    %c2 = arith.constant 2 : index
    %c0_18 = arith.constant 0 : index
    %21 = vector.load %arg9[%c2, %c0_18] : memref<4x256xf32, #tpu.memory_space<vmem>>, vector<1x256xf32>
    %22 = vector.broadcast %21 : vector<1x256xf32> to vector<256x256xf32>
    %23 = arith.addf %20, %22 : vector<256x256xf32>
    %cst_19 = arith.constant 0.000000e+00 : f32
    %24 = vector.broadcast %cst_19 : f32 to vector<256x256xf32>
    %25 = arith.maximumf %23, %24 : vector<256x256xf32>
    %26 = arith.truncf %25 : vector<256x256xf32> to vector<256x256xbf16>
    %c0_20 = arith.constant 0 : index
    %c0_21 = arith.constant 0 : index
    %27 = vector.load %arg4[%c0_20, %c0_21] : memref<256x288xbf16, #tpu.memory_space<vmem>>, vector<256x288xbf16>
    %c0_22 = arith.constant 0 : index
    %c0_23 = arith.constant 0 : index
    %28 = vector.load %arg8[%c0_22, %c0_23] : memref<288x256xbf16, #tpu.memory_space<vmem>>, vector<288x256xbf16>
    %cst_24 = arith.constant dense<0.000000e+00> : vector<256x256xf32>
    %29 = tpu.matmul %27, %28, %cst_24 {dimension_numbers = #tpu.dot_dimension_numbers<[1], [0], [0], [1], [0, 0, 1, 1], [], []>} : vector<256x288xbf16>, vector<288x256xbf16>, vector<256x256xf32> -> vector<256x256xf32>
    %c3 = arith.constant 3 : index
    %c0_25 = arith.constant 0 : index
    %30 = vector.load %arg9[%c3, %c0_25] : memref<4x256xf32, #tpu.memory_space<vmem>>, vector<1x256xf32>
    %31 = vector.broadcast %30 : vector<1x256xf32> to vector<256x256xf32>
    %32 = arith.addf %29, %31 : vector<256x256xf32>
    %cst_26 = arith.constant 0.000000e+00 : f32
    %33 = vector.broadcast %cst_26 : f32 to vector<256x256xf32>
    %34 = arith.maximumf %32, %33 : vector<256x256xf32>
    %35 = arith.truncf %34 : vector<256x256xf32> to vector<256x256xbf16>
    %36 = tpu.concatenate %8, %17, %26, %35 in 1 : vector<256x256xbf16>, vector<256x256xbf16>, vector<256x256xbf16>, vector<256x256xbf16> -> vector<256x1024xbf16>
    %c0_27 = arith.constant 0 : index
    %c0_28 = arith.constant 0 : index
    %37 = vector.load %arg10[%c0_27, %c0_28] : memref<1024x256xbf16, #tpu.memory_space<vmem>>, vector<1024x256xbf16>
    %cst_29 = arith.constant dense<0.000000e+00> : vector<256x256xf32>
    %38 = tpu.matmul %36, %37, %cst_29 {dimension_numbers = #tpu.dot_dimension_numbers<[1], [0], [0], [1], [0, 0, 1, 1], [], []>} : vector<256x1024xbf16>, vector<1024x256xbf16>, vector<256x256xf32> -> vector<256x256xf32>
    %c0_30 = arith.constant 0 : index
    %c0_31 = arith.constant 0 : index
    %c0_32 = arith.constant 0 : index
    %39 = vector.load %arg11[%c0_30, %c0_31, %c0_32] : memref<1x1x256xf32, #tpu.memory_space<vmem>>, vector<1x1x256xf32>
    %40 = vector.shape_cast %39 : vector<1x1x256xf32> to vector<1x256xf32>
    %41 = vector.broadcast %40 : vector<1x256xf32> to vector<256x256xf32>
    %42 = arith.addf %38, %41 : vector<256x256xf32>
    %cst_33 = arith.constant 0.000000e+00 : f32
    %43 = vector.broadcast %cst_33 : f32 to vector<256x256xf32>
    %44 = arith.maximumf %42, %43 : vector<256x256xf32>
    %c0_34 = arith.constant 0 : index
    %c0_35 = arith.constant 0 : index
    %45 = vector.load %arg12[%c0_34, %c0_35] : memref<256x256xf32, #tpu.memory_space<vmem>>, vector<256x256xf32>
    tpu.vector_store %arg12[%c0_34, %c0_35], %44 {strides = array<i32>} : memref<256x256xf32, #tpu.memory_space<vmem>>, vector<256x256xf32>,
    return
  }
  func.func @transform_0(%arg0: i32) -> (i32, i32) {
    %c0_i32 = arith.constant 0 : i32
    %c0_i32_0 = arith.constant 0 : i32
    return %arg0, %c0_i32 : i32, i32
  }
  func.func @transform_1(%arg0: i32) -> (i32, i32) {
    %c0_i32 = arith.constant 0 : i32
    %c0_i32_0 = arith.constant 0 : i32
    return %arg0, %c0_i32 : i32, i32
  }
  func.func @transform_2(%arg0: i32) -> (i32, i32) {
    %c0_i32 = arith.constant 0 : i32
    %c0_i32_0 = arith.constant 0 : i32
    return %arg0, %c0_i32 : i32, i32
  }
  func.func @transform_3(%arg0: i32) -> (i32, i32) {
    %c0_i32 = arith.constant 0 : i32
    %c0_i32_0 = arith.constant 0 : i32
    return %arg0, %c0_i32 : i32, i32
  }
  func.func @transform_4(%arg0: i32) -> (i32, i32) {
    %c0_i32 = arith.constant 0 : i32
    %c0_i32_0 = arith.constant 0 : i32
    %c0_i32_1 = arith.constant 0 : i32
    return %c0_i32, %c0_i32_0 : i32, i32
  }
  func.func @transform_5(%arg0: i32) -> (i32, i32) {
    %c0_i32 = arith.constant 0 : i32
    %c0_i32_0 = arith.constant 0 : i32
    %c0_i32_1 = arith.constant 0 : i32
    return %c0_i32, %c0_i32_0 : i32, i32
  }
  func.func @transform_6(%arg0: i32) -> (i32, i32) {
    %c0_i32 = arith.constant 0 : i32
    %c0_i32_0 = arith.constant 0 : i32
    %c0_i32_1 = arith.constant 0 : i32
    return %c0_i32, %c0_i32_0 : i32, i32
  }
  func.func @transform_7(%arg0: i32) -> (i32, i32) {
    %c0_i32 = arith.constant 0 : i32
    %c0_i32_0 = arith.constant 0 : i32
    %c0_i32_1 = arith.constant 0 : i32
    return %c0_i32, %c0_i32_0 : i32, i32
  }
  func.func @transform_8(%arg0: i32) -> (i32, i32) {
    %c0_i32 = arith.constant 0 : i32
    %c0_i32_0 = arith.constant 0 : i32
    %c0_i32_1 = arith.constant 0 : i32
    return %c0_i32, %c0_i32_0 : i32, i32
  }
  func.func @transform_9(%arg0: i32) -> (i32, i32) {
    %c0_i32 = arith.constant 0 : i32
    %c0_i32_0 = arith.constant 0 : i32
    %c0_i32_1 = arith.constant 0 : i32
    return %c0_i32, %c0_i32_0 : i32, i32
  }
  func.func @transform_10(%arg0: i32) -> (i32, i32, i32) {
    %c0_i32 = arith.constant 0 : i32
    %c0_i32_0 = arith.constant 0 : i32
    %c0_i32_1 = arith.constant 0 : i32
    return %arg0, %c0_i32, %c0_i32_0 : i32, i32, i32
  }
  func.func @transform_11(%arg0: i32) -> (i32, i32) {
    %c0_i32 = arith.constant 0 : i32
    %c0_i32_0 = arith.constant 0 : i32
    return %arg0, %c0_i32 : i32, i32
  }
}

</mosaic_0001>

<llo_original>
// kernel: aspp_forward.1
$region0: #{aspp_forward.1}
  #allocation0 [shape = 'u32[]', space=smem, size = 0x4, offset = 0x4, fixed_abs, tag = 'smem constant byte address 0x4 - core index']
  #allocation1 [shape = 'u32[72,128]{1,0:T(1,128)}', space=vmem, size = 0x9000, scoped, tag = 'internal scratch']
  %s0 = inlined_call_operand.vmem [shape: bf16[512,32], index: 0, kind: input, shape index: {}]
  %s1 = inlined_call_operand.vmem [shape: bf16[512,288], index: 1, kind: input, shape index: {}]
  %s2 = inlined_call_operand.vmem [shape: bf16[512,288], index: 2, kind: input, shape index: {}]
  %s3 = inlined_call_operand.vmem [shape: bf16[512,288], index: 3, kind: input, shape index: {}]
  %s4 = inlined_call_operand.vmem [shape: bf16[32,256], index: 4, kind: input, shape index: {}]
  %s5 = inlined_call_operand.vmem [shape: bf16[288,256], index: 5, kind: input, shape index: {}]
  %s6 = inlined_call_operand.vmem [shape: bf16[288,256], index: 6, kind: input, shape index: {}]
  %s7 = inlined_call_operand.vmem [shape: bf16[288,256], index: 7, kind: input, shape index: {}]
  %s8 = inlined_call_operand.vmem [shape: f32[4,256], index: 8, kind: input, shape index: {}]
  %s9 = inlined_call_operand.vmem [shape: bf16[1024,256], index: 9, kind: input, shape index: {}]
  %s10 = inlined_call_operand.vmem [shape: f32[2,1,256], index: 10, kind: input, shape index: {}]
  %s11 = inlined_call_operand.hbm [shape: f32[512,256], index: 11, kind: output, shape index: {}]
  %s12 = sld [smem:[#allocation0]]
  $region77: #{aspp_forward.1} parent=0
    _
  %s14 = ssub.s32 1, %s12
  %s15 = scalar_select 0, %s14, %s12
  $region1: #{aspp_forward.1} parent=0
    #allocation2 [shape = 'u8[524288]{0}', space=vmem, size = 0x80000, scoped, tag = 'output window, operand 0']
    #allocation3 [shape = 's32[2]{0}', space=sflag, size = 0x8, scoped, tag = 'scoped memory for aspp_forward.1']
    %16 = vsyncpa [#allocation3], 0
    %s17 = scalar_lea.sflag [#allocation3], 1
    %18 = vsyncpa %s17, 0
    loop: start=0, step=1, limit=4
    $region2: #{aspp_forward.1} parent=1 // loop_pre_header
      _
    $region3: #{aspp_forward.1} parent=1 // loop_header
      %s20 = sphi 0, %s24
      %p21 = scmp.ge.s32.totalorder %s20, 4
      %s30 = sphi 0, %s32
      %s33 = sphi 0, %s30
      %s34 = sphi 0, %s33
      %s50 = sphi 0, %s34
      %s56 = sphi 0, %s58
      %s59 = sphi 0, %s56
      %s60 = sphi 0, %s59
      %s76 = sphi 0, %s60
      %s82 = sphi 0, %s84
      %s85 = sphi 0, %s82
      %s86 = sphi 0, %s85
      %s102 = sphi 0, %s86
      %s108 = sphi 0, %s110
      %s111 = sphi 0, %s108
      %s112 = sphi 0, %s111
      %s128 = sphi 0, %s112
      %s132 = sphi 0, %s132
      %s134 = sphi 0, %s132
      %s135 = sphi 0, %s134
      %s149 = sphi 0, %s135
      %s153 = sphi 0, %s153
      %s155 = sphi 0, %s153
      %s156 = sphi 0, %s155
      %s170 = sphi 0, %s156
      %s174 = sphi 0, %s174
      %s176 = sphi 0, %s174
      %s177 = sphi 0, %s176
      %s191 = sphi 0, %s177
      %s195 = sphi 0, %s195
      %s197 = sphi 0, %s195
      %s198 = sphi 0, %s197
      %s212 = sphi 0, %s198
      %s216 = sphi 0, %s216
      %s218 = sphi 0, %s216
      %s219 = sphi 0, %s218
      %s233 = sphi 0, %s219
      %s237 = sphi 0, %s237
      %s239 = sphi 0, %s237
      %s240 = sphi 0, %s239
      %s254 = sphi 0, %s240
      %s260 = sphi 0, %s262
      %s263 = sphi 0, %s260
      %s264 = sphi 0, %s263
      %s280 = sphi 0, %s264
      %s286 = sphi 0, %s288
      %s289 = sphi 0, %s286
      %s290 = sphi 0, %s289
      %s306 = sphi 0, %s290
    $region4: #{aspp_forward.1} parent=1 // loop_header_branch
      %23 = sbr.rel (%p21) target = $region8
    $region5: #{aspp_forward.1} parent=1 // loop_body
      %s25 = ssub.s32 %s20, 1
      %s26 = ssub.s32 %s20, 2
      %s27 = sadd.s32 %s20, 1
      %s28 = ssub.s32 %s20, %s27
      %p29 = scmp.eq.s32.totalorder %s28, 0
      %s31 = sadd.s32 %s30, 1
      %s32 = scalar_select %p29, %s30, %s31
      %p35 = pneg %p29
      %p36 = scmp.eq.s32.totalorder %s20, 1
      %p37 = por %p35, %p36
      %p38 = scmp.ne.s32.totalorder %s30, %s33
      %p39 = scmp.eq.s32.totalorder %s20, 0
      %p40 = por %p38, %p39
      %p41 = scmp.ne.s32.totalorder %s30, %s33
      %p42 = scmp.eq.s32.totalorder %s25, 1
      %p43 = por %p41, %p42
      %p44 = scmp.ne.s32.totalorder %s33, %s34
      %p45 = scmp.eq.s32.totalorder %s25, 0
      %p46 = por %p44, %p45
      %p47 = scmp.ne.s32.totalorder %s33, %s34
      %p48 = scmp.eq.s32.totalorder %s26, 1
      %p49 = por %p47, %p48
      %p51 = scmp.ne.s32.totalorder %s34, %s50
      %p52 = scmp.eq.s32.totalorder %s26, 0
      %p53 = por %p51, %p52
      %s54 = ssub.s32 %s20, %s27
      %p55 = scmp.eq.s32.totalorder %s54, 0
      %s57 = sadd.s32 %s56, 1
      %s58 = scalar_select %p55, %s56, %s57
      %p61 = pneg %p55
      %p62 = scmp.eq.s32.totalorder %s20, 1
      %p63 = por %p61, %p62
      %p64 = scmp.ne.s32.totalorder %s56, %s59
      %p65 = scmp.eq.s32.totalorder %s20, 0
      %p66 = por %p64, %p65
      %p67 = scmp.ne.s32.totalorder %s56, %s59
      %p68 = scmp.eq.s32.totalorder %s25, 1
      %p69 = por %p67, %p68
      %p70 = scmp.ne.s32.totalorder %s59, %s60
      %p71 = scmp.eq.s32.totalorder %s25, 0
      %p72 = por %p70, %p71
      %p73 = scmp.ne.s32.totalorder %s59, %s60
      %p74 = scmp.eq.s32.totalorder %s26, 1
      %p75 = por %p73, %p74
      %p77 = scmp.ne.s32.totalorder %s60, %s76
      %p78 = scmp.eq.s32.totalorder %s26, 0
      %p79 = por %p77, %p78
      %s80 = ssub.s32 %s20, %s27
      %p81 = scmp.eq.s32.totalorder %s80, 0
      %s83 = sadd.s32 %s82, 1
      %s84 = scalar_select %p81, %s82, %s83
      %p87 = pneg %p81
      %p88 = scmp.eq.s32.totalorder %s20, 1
      %p89 = por %p87, %p88
      %p90 = scmp.ne.s32.totalorder %s82, %s85
      %p91 = scmp.eq.s32.totalorder %s20, 0
      %p92 = por %p90, %p91
      %p93 = scmp.ne.s32.totalorder %s82, %s85
      %p94 = scmp.eq.s32.totalorder %s25, 1
      %p95 = por %p93, %p94
      %p96 = scmp.ne.s32.totalorder %s85, %s86
      %p97 = scmp.eq.s32.totalorder %s25, 0
      %p98 = por %p96, %p97
      %p99 = scmp.ne.s32.totalorder %s85, %s86
      %p100 = scmp.eq.s32.totalorder %s26, 1
      %p101 = por %p99, %p100
      %p103 = scmp.ne.s32.totalorder %s86, %s102
      %p104 = scmp.eq.s32.totalorder %s26, 0
      %p105 = por %p103, %p104
      %s106 = ssub.s32 %s20, %s27
      %p107 = scmp.eq.s32.totalorder %s106, 0
      %s109 = sadd.s32 %s108, 1
      %s110 = scalar_select %p107, %s108, %s109
      %p113 = pneg %p107
      %p114 = scmp.eq.s32.totalorder %s20, 1
      %p115 = por %p113, %p114
      %p116 = scmp.ne.s32.totalorder %s108, %s111
      %p117 = scmp.eq.s32.totalorder %s20, 0
      %p118 = por %p116, %p117
      %p119 = scmp.ne.s32.totalorder %s108, %s111
      %p120 = scmp.eq.s32.totalorder %s25, 1
      %p121 = por %p119, %p120
      %p122 = scmp.ne.s32.totalorder %s111, %s112
      %p123 = scmp.eq.s32.totalorder %s25, 0
      %p124 = por %p122, %p123
      %p125 = scmp.ne.s32.totalorder %s111, %s112
      %p126 = scmp.eq.s32.totalorder %s26, 1
      %p127 = por %p125, %p126
      %p129 = scmp.ne.s32.totalorder %s112, %s128
      %p130 = scmp.eq.s32.totalorder %s26, 0
      %p131 = por %p129, %p130
      %s133 = sadd.s32 %s132, 1
      %p136 = scmp.eq.s32.totalorder %s20, 1
      %p137 = scmp.ne.s32.totalorder %s132, %s134
      %p138 = scmp.eq.s32.totalorder %s20, 0
      %p139 = por %p137, %p138
      %p140 = scmp.ne.s32.totalorder %s132, %s134
      %p141 = scmp.eq.s32.totalorder %s25, 1
      %p142 = por %p140, %p141
      %p143 = scmp.ne.s32.totalorder %s134, %s135
      %p144 = scmp.eq.s32.totalorder %s25, 0
      %p145 = por %p143, %p144
      %p146 = scmp.ne.s32.totalorder %s134, %s135
      %p147 = scmp.eq.s32.totalorder %s26, 1
      %p148 = por %p146, %p147
      %p150 = scmp.ne.s32.totalorder %s135, %s149
      %p151 = scmp.eq.s32.totalorder %s26, 0
      %p152 = por %p150, %p151
      %s154 = sadd.s32 %s153, 1
      %p157 = scmp.eq.s32.totalorder %s20, 1
      %p158 = scmp.ne.s32.totalorder %s153, %s155
      %p159 = scmp.eq.s32.totalorder %s20, 0
      %p160 = por %p158, %p159
      %p161 = scmp.ne.s32.totalorder %s153, %s155
      %p162 = scmp.eq.s32.totalorder %s25, 1
      %p163 = por %p161, %p162
      %p164 = scmp.ne.s32.totalorder %s155, %s156
      %p165 = scmp.eq.s32.totalorder %s25, 0
      %p166 = por %p164, %p165
      %p167 = scmp.ne.s32.totalorder %s155, %s156
      %p168 = scmp.eq.s32.totalorder %s26, 1
      %p169 = por %p167, %p168
      %p171 = scmp.ne.s32.totalorder %s156, %s170
      %p172 = scmp.eq.s32.totalorder %s26, 0
      %p173 = por %p171, %p172
      %s175 = sadd.s32 %s174, 1
      %p178 = scmp.eq.s32.totalorder %s20, 1
      %p179 = scmp.ne.s32.totalorder %s174, %s176
      %p180 = scmp.eq.s32.totalorder %s20, 0
      %p181 = por %p179, %p180
      %p182 = scmp.ne.s32.totalorder %s174, %s176
      %p183 = scmp.eq.s32.totalorder %s25, 1
      %p184 = por %p182, %p183
      %p185 = scmp.ne.s32.totalorder %s176, %s177
      %p186 = scmp.eq.s32.totalorder %s25, 0
      %p187 = por %p185, %p186
      %p188 = scmp.ne.s32.totalorder %s176, %s177
      %p189 = scmp.eq.s32.totalorder %s26, 1
      %p190 = por %p188, %p189
      %p192 = scmp.ne.s32.totalorder %s177, %s191
      %p193 = scmp.eq.s32.totalorder %s26, 0
      %p194 = por %p192, %p193
      %s196 = sadd.s32 %s195, 1
      %p199 = scmp.eq.s32.totalorder %s20, 1
      %p200 = scmp.ne.s32.totalorder %s195, %s197
      %p201 = scmp.eq.s32.totalorder %s20, 0
      %p202 = por %p200, %p201
      %p203 = scmp.ne.s32.totalorder %s195, %s197
      %p204 = scmp.eq.s32.totalorder %s25, 1
      %p205 = por %p203, %p204
      %p206 = scmp.ne.s32.totalorder %s197, %s198
      %p207 = scmp.eq.s32.totalorder %s25, 0
      %p208 = por %p206, %p207
      %p209 = scmp.ne.s32.totalorder %s197, %s198
      %p210 = scmp.eq.s32.totalorder %s26, 1
      %p211 = por %p209, %p210
      %p213 = scmp.ne.s32.totalorder %s198, %s212
      %p214 = scmp.eq.s32.totalorder %s26, 0
      %p215 = por %p213, %p214
      %s217 = sadd.s32 %s216, 1
      %p220 = scmp.eq.s32.totalorder %s20, 1
      %p221 = scmp.ne.s32.totalorder %s216, %s218
      %p222 = scmp.eq.s32.totalorder %s20, 0
      %p223 = por %p221, %p222
      %p224 = scmp.ne.s32.totalorder %s216, %s218
      %p225 = scmp.eq.s32.totalorder %s25, 1
      %p226 = por %p224, %p225
      %p227 = scmp.ne.s32.totalorder %s218, %s219
      %p228 = scmp.eq.s32.totalorder %s25, 0
      %p229 = por %p227, %p228
      %p230 = scmp.ne.s32.totalorder %s218, %s219
      %p231 = scmp.eq.s32.totalorder %s26, 1
      %p232 = por %p230, %p231
      %p234 = scmp.ne.s32.totalorder %s219, %s233
      %p235 = scmp.eq.s32.totalorder %s26, 0
      %p236 = por %p234, %p235
      %s238 = sadd.s32 %s237, 1
      %p241 = scmp.eq.s32.totalorder %s20, 1
      %p242 = scmp.ne.s32.totalorder %s237, %s239
      %p243 = scmp.eq.s32.totalorder %s20, 0
      %p244 = por %p242, %p243
      %p245 = scmp.ne.s32.totalorder %s237, %s239
      %p246 = scmp.eq.s32.totalorder %s25, 1
      %p247 = por %p245, %p246
      %p248 = scmp.ne.s32.totalorder %s239, %s240
      %p249 = scmp.eq.s32.totalorder %s25, 0
      %p250 = por %p248, %p249
      %p251 = scmp.ne.s32.totalorder %s239, %s240
      %p252 = scmp.eq.s32.totalorder %s26, 1
      %p253 = por %p251, %p252
      %p255 = scmp.ne.s32.totalorder %s240, %s254
      %p256 = scmp.eq.s32.totalorder %s26, 0
      %p257 = por %p255, %p256
      %s258 = ssub.s32 %s20, %s27
      %p259 = scmp.eq.s32.totalorder %s258, 0
      %s261 = sadd.s32 %s260, 1
      %s262 = scalar_select %p259, %s260, %s261
      %p265 = pneg %p259
      %p266 = scmp.eq.s32.totalorder %s20, 1
      %p267 = por %p265, %p266
      %p268 = scmp.ne.s32.totalorder %s260, %s263
      %p269 = scmp.eq.s32.totalorder %s20, 0
      %p270 = por %p268, %p269
      %p271 = scmp.ne.s32.totalorder %s260, %s263
      %p272 = scmp.eq.s32.totalorder %s25, 1
      %p273 = por %p271, %p272
      %p274 = scmp.ne.s32.totalorder %s263, %s264
      %p275 = scmp.eq.s32.totalorder %s25, 0
      %p276 = por %p274, %p275
      %p277 = scmp.ne.s32.totalorder %s263, %s264
      %p278 = scmp.eq.s32.totalorder %s26, 1
      %p279 = por %p277, %p278
      %p281 = scmp.ne.s32.totalorder %s264, %s280
      %p282 = scmp.eq.s32.totalorder %s26, 0
      %p283 = por %p281, %p282
      %s284 = ssub.s32 %s20, %s27
      %p285 = scmp.eq.s32.totalorder %s284, 0
      %s287 = sadd.s32 %s286, 1
      %s288 = scalar_select %p285, %s286, %s287
      %p291 = pneg %p285
      %p292 = scmp.eq.s32.totalorder %s20, 1
      %p293 = por %p291, %p292
      %p294 = scmp.ne.s32.totalorder %s286, %s289
      %p295 = scmp.eq.s32.totalorder %s20, 0
      %p296 = por %p294, %p295
      %p297 = scmp.ne.s32.totalorder %s286, %s289
      %p298 = scmp.eq.s32.totalorder %s25, 1
      %p299 = por %p297, %p298
      %p300 = scmp.ne.s32.totalorder %s289, %s290
      %p301 = scmp.eq.s32.totalorder %s25, 0
      %p302 = por %p300, %p301
      %p303 = scmp.ne.s32.totalorder %s289, %s290
      %p304 = scmp.eq.s32.totalorder %s26, 1
      %p305 = por %p303, %p304
      %p307 = scmp.ne.s32.totalorder %s290, %s306
      %p308 = scmp.eq.s32.totalorder %s26, 0
      %p309 = por %p307, %p308
      %p310 = scmp.le.s32.totalorder 1, %s20
      %p311 = scmp.lt.s32.totalorder %s20, 3
      %p312 = pnand %p310, %p311
      %p313 = pneg %p312
      // Predicated region
      $region9: #{aspp_forward.1} parent=5 // pred_check
        _
      $region10: #{aspp_forward.1} parent=5 // pred_check_branch
        %315 = sbr.rel (%p312) target = $region12
      $region11: #{aspp_forward.1} parent=5 // pred_region
        %s316 = ssub.s32 %s20, 1
        // Predicated region
        $region13: #{aspp_forward.1} parent=11 // pred_check
          %p317 = pneg %p145
        $region14: #{aspp_forward.1} parent=11 // pred_check_branch
          %319 = sbr.rel (%p317) target = $region16
        $region15: #{aspp_forward.1} parent=11 // pred_region
          _
        $region16: #{aspp_forward.1} parent=11 // pred_fallthru
          _
        // Predicated region
        $region17: #{aspp_forward.1} parent=11 // pred_check
          %p320 = pneg %p166
        $region18: #{aspp_forward.1} parent=11 // pred_check_branch
          %322 = sbr.rel (%p320) target = $region20
        $region19: #{aspp_forward.1} parent=11 // pred_region
          _
        $region20: #{aspp_forward.1} parent=11 // pred_fallthru
          _
        // Predicated region
        $region21: #{aspp_forward.1} parent=11 // pred_check
          %p323 = pneg %p187
        $region22: #{aspp_forward.1} parent=11 // pred_check_branch
          %325 = sbr.rel (%p323) target = $region24
        $region23: #{aspp_forward.1} parent=11 // pred_region
          _
        $region24: #{aspp_forward.1} parent=11 // pred_fallthru
          _
        // Predicated region
        $region25: #{aspp_forward.1} parent=11 // pred_check
          %p326 = pneg %p208
        $region26: #{aspp_forward.1} parent=11 // pred_check_branch
          %328 = sbr.rel (%p326) target = $region28
        $region27: #{aspp_forward.1} parent=11 // pred_region
          _
        $region28: #{aspp_forward.1} parent=11 // pred_fallthru
          _
        // Predicated region
        $region29: #{aspp_forward.1} parent=11 // pred_check
          %p329 = pneg %p229
        $region30: #{aspp_forward.1} parent=11 // pred_check_branch
          %331 = sbr.rel (%p329) target = $region32
        $region31: #{aspp_forward.1} parent=11 // pred_region
          _
        $region32: #{aspp_forward.1} parent=11 // pred_fallthru
          _
        // Predicated region
        $region33: #{aspp_forward.1} parent=11 // pred_check
          %p332 = pneg %p250
        $region34: #{aspp_forward.1} parent=11 // pred_check_branch
          %334 = sbr.rel (%p332) target = $region36
        $region35: #{aspp_forward.1} parent=11 // pred_region
          _
        $region36: #{aspp_forward.1} parent=11 // pred_fallthru
          _
      $region12: #{aspp_forward.1} parent=5 // pred_fallthru
        _
      %p335 = scmp.lt.s32.totalorder %s20, 2
      // Predicated region
      $region37: #{aspp_forward.1} parent=5 // pred_check
        %p336 = pneg %p335
      $region38: #{aspp_forward.1} parent=5 // pred_check_branch
        %338 = sbr.rel (%p336) target = $region40
      $region39: #{aspp_forward.1} parent=5 // pred_region
        // Predicated region
        $region41: #{aspp_forward.1} parent=39 // pred_check
          %p339 = pneg %p40
        $region42: #{aspp_forward.1} parent=39 // pred_check_branch
          %341 = sbr.rel (%p339) target = $region44
        $region43: #{aspp_forward.1} parent=39 // pred_region
          %s342 = smul.u32 32, %s20
          %p343 = scmp.lt.s32.totalorder %s342, 63
          %s344 = scalar_select %p343, %s342, 63
          %s345 = smul.addr %s344, 4
          %s346 = scalar_lea.vmem %s0, %s345
          %s347 = smul.u32 32, %s20
        $region44: #{aspp_forward.1} parent=39 // pred_fallthru
          _
        // Predicated region
        $region45: #{aspp_forward.1} parent=39 // pred_check
          %p348 = pneg %p66
        $region46: #{aspp_forward.1} parent=39 // pred_check_branch
          %350 = sbr.rel (%p348) target = $region48
        $region47: #{aspp_forward.1} parent=39 // pred_region
          %s351 = smul.u32 32, %s20
          %p352 = scmp.lt.s32.totalorder %s351, 63
          %s353 = scalar_select %p352, %s351, 63
          %s354 = smul.addr %s353, 3
          %s355 = smul.addr %s354, 4
          %s356 = scalar_lea.vmem %s1, %s355
          %s357 = smul.u32 32, %s20
        $region48: #{aspp_forward.1} parent=39 // pred_fallthru
          _
        // Predicated region
        $region49: #{aspp_forward.1} parent=39 // pred_check
          %p358 = pneg %p92
        $region50: #{aspp_forward.1} parent=39 // pred_check_branch
          %360 = sbr.rel (%p358) target = $region52
        $region51: #{aspp_forward.1} parent=39 // pred_region
          %s361 = smul.u32 32, %s20
          %p362 = scmp.lt.s32.totalorder %s361, 63
          %s363 = scalar_select %p362, %s361, 63
          %s364 = smul.addr %s363, 3
          %s365 = smul.addr %s364, 4
          %s366 = scalar_lea.vmem %s2, %s365
          %s367 = smul.u32 32, %s20
        $region52: #{aspp_forward.1} parent=39 // pred_fallthru
          _
        // Predicated region
        $region53: #{aspp_forward.1} parent=39 // pred_check
          %p368 = pneg %p118
        $region54: #{aspp_forward.1} parent=39 // pred_check_branch
          %370 = sbr.rel (%p368) target = $region56
        $region55: #{aspp_forward.1} parent=39 // pred_region
          %s371 = smul.u32 32, %s20
          %p372 = scmp.lt.s32.totalorder %s371, 63
          %s373 = scalar_select %p372, %s371, 63
          %s374 = smul.addr %s373, 3
          %s375 = smul.addr %s374, 4
          %s376 = scalar_lea.vmem %s3, %s375
          %s377 = smul.u32 32, %s20
        $region56: #{aspp_forward.1} parent=39 // pred_fallthru
          _
        // Predicated region
        $region57: #{aspp_forward.1} parent=39 // pred_check
          %p378 = pneg %p270
        $region58: #{aspp_forward.1} parent=39 // pred_check_branch
          %380 = sbr.rel (%p378) target = $region60
        $region59: #{aspp_forward.1} parent=39 // pred_region
          %p381 = scmp.lt.s32.totalorder %s20, 1
          %s382 = scalar_select %p381, %s20, 1
          %s383 = smul.addr %s382, 2
          %s384 = scalar_lea.vmem %s10, %s383
        $region60: #{aspp_forward.1} parent=39 // pred_fallthru
          _
      $region40: #{aspp_forward.1} parent=5 // pred_fallthru
        _
      %p385 = scmp.le.s32.totalorder 1, %s20
      %p386 = scmp.lt.s32.totalorder %s20, 3
      %p387 = pnand %p385, %p386
      %p388 = pneg %p387
      // Predicated region
      $region61: #{aspp_forward.1} parent=5 // pred_check
        _
      $region62: #{aspp_forward.1} parent=5 // pred_check_branch
        %390 = sbr.rel (%p387) target = $region64
      $region63: #{aspp_forward.1} parent=5 // pred_region
        %s391 = ssub.s32 %s20, 1
        %s392 = smul.u32 32, %s25
        %p393 = scmp.lt.s32.totalorder %s392, 63
        %s394 = scalar_select %p393, %s392, 63
        %s395 = smul.addr %s394, 4
        %s396 = scalar_lea.vmem %s0, %s395
        %p397 = pneg %p46
        %p398 = pneg %p43
        %s399 = smul.u32 32, %s25
        %p400 = scmp.lt.s32.totalorder %s399, 63
        %s401 = scalar_select %p400, %s399, 63
        %s402 = smul.addr %s401, 3
        %s403 = smul.addr %s402, 4
        %s404 = scalar_lea.vmem %s1, %s403
        %p405 = pneg %p72
        %p406 = pneg %p69
        %s407 = smul.u32 32, %s25
        %p408 = scmp.lt.s32.totalorder %s407, 63
        %s409 = scalar_select %p408, %s407, 63
        %s410 = smul.addr %s409, 3
        %s411 = smul.addr %s410, 4
        %s412 = scalar_lea.vmem %s2, %s411
        %p413 = pneg %p98
        %p414 = pneg %p95
        %s415 = smul.u32 32, %s25
        %p416 = scmp.lt.s32.totalorder %s415, 63
        %s417 = scalar_select %p416, %s415, 63
        %s418 = smul.addr %s417, 3
        %s419 = smul.addr %s418, 4
        %s420 = scalar_lea.vmem %s3, %s419
        %p421 = pneg %p124
        %p422 = pneg %p121
        %p423 = pneg %p145
        %p424 = pneg %p142
        %p425 = pneg %p166
        %p426 = pneg %p163
        %p427 = pneg %p187
        %p428 = pneg %p184
        %p429 = pneg %p208
        %p430 = pneg %p205
        %p431 = pneg %p229
        %p432 = pneg %p226
        %p433 = pneg %p250
        %p434 = pneg %p247
        %p435 = scmp.lt.s32.totalorder %s25, 1
        %s436 = scalar_select %p435, %s25, 1
        %s437 = smul.addr %s436, 2
        %s438 = scalar_lea.vmem %s10, %s437
        %p439 = pneg %p276
        %p440 = pneg %p273
        %p441 = pneg %p302
        %p442 = pneg %p299
        %s443 = sand.u32 %s289, 1
        %s444 = scalar_lea.sflag [#allocation3], %s443
        %s445 = sand.u32 %s289, 1
        %s446 = smul.addr %s445, 512
        %s447 = scalar_lea.vmem [#allocation2], %s446
        %s448 = smul.u32 32, %s25
        %p449 = scmp.lt.s32.totalorder %s448, 63
        %s450 = scalar_select %p449, %s448, 63
        %s451 = smul.addr %s450, 4
        %s452 = scalar_lea.vmem %s0, %s451
        %s453 = smul.u32 32, %s25
        %s454 = smul.u32 32, %s25
        %p455 = scmp.lt.s32.totalorder %s454, 63
        %s456 = scalar_select %p455, %s454, 63
        %s457 = smul.addr %s456, 3
        %s458 = smul.addr %s457, 4
        %s459 = scalar_lea.vmem %s1, %s458
        %s460 = smul.u32 32, %s25
        %s461 = smul.u32 32, %s25
        %p462 = scmp.lt.s32.totalorder %s461, 63
        %s463 = scalar_select %p462, %s461, 63
        %s464 = smul.addr %s463, 3
        %s465 = smul.addr %s464, 4
        %s466 = scalar_lea.vmem %s2, %s465
        %s467 = smul.u32 32, %s25
        %s468 = smul.u32 32, %s25
        %p469 = scmp.lt.s32.totalorder %s468, 63
        %s470 = scalar_select %p469, %s468, 63
        %s471 = smul.addr %s470, 3
        %s472 = smul.addr %s471, 4
        %s473 = scalar_lea.vmem %s3, %s472
        %s474 = smul.u32 32, %s25
        %p475 = scmp.lt.s32.totalorder %s25, 1
        %s476 = scalar_select %p475, %s25, 1
        %s477 = smul.addr %s476, 2
        %s478 = scalar_lea.vmem %s10, %s477
        %s479 = smul.u32 32, %s25
        %v481 = vld [vmem:[%s452] sm:$0xf]
        %v482 = vld [vmem:[%s452 + $0x4] sm:$0xf]
        %v483 = vld [vmem:[%s452 + $0x8] sm:$0xf]
        %v484 = vld [vmem:[%s452 + $0xc] sm:$0xf]
        %v485 = vld [vmem:[%s452 + $0x10] sm:$0xf]
        %v486 = vld [vmem:[%s452 + $0x14] sm:$0xf]
        %v487 = vld [vmem:[%s452 + $0x18] sm:$0xf]
        %v488 = vld [vmem:[%s452 + $0x1c] sm:$0xf]
        %v489 = vld [vmem:[%s452 + $0x20] sm:$0xf]
        %v490 = vld [vmem:[%s452 + $0x24] sm:$0xf]
        %v491 = vld [vmem:[%s452 + $0x28] sm:$0xf]
        %v492 = vld [vmem:[%s452 + $0x2c] sm:$0xf]
        %v493 = vld [vmem:[%s452 + $0x30] sm:$0xf]
        %v494 = vld [vmem:[%s452 + $0x34] sm:$0xf]
        %v495 = vld [vmem:[%s452 + $0x38] sm:$0xf]
        %v496 = vld [vmem:[%s452 + $0x3c] sm:$0xf]
        %v497 = vld [vmem:[%s452 + $0x40] sm:$0xf]
        %v498 = vld [vmem:[%s452 + $0x44] sm:$0xf]
        %v499 = vld [vmem:[%s452 + $0x48] sm:$0xf]
        %v500 = vld [vmem:[%s452 + $0x4c] sm:$0xf]
        %v501 = vld [vmem:[%s452 + $0x50] sm:$0xf]
        %v502 = vld [vmem:[%s452 + $0x54] sm:$0xf]
        %v503 = vld [vmem:[%s452 + $0x58] sm:$0xf]
        %v504 = vld [vmem:[%s452 + $0x5c] sm:$0xf]
        %v505 = vld [vmem:[%s452 + $0x60] sm:$0xf]
        %v506 = vld [vmem:[%s452 + $0x64] sm:$0xf]
        %v507 = vld [vmem:[%s452 + $0x68] sm:$0xf]
        %v508 = vld [vmem:[%s452 + $0x6c] sm:$0xf]
        %v509 = vld [vmem:[%s452 + $0x70] sm:$0xf]
        %v510 = vld [vmem:[%s452 + $0x74] sm:$0xf]
        %v511 = vld [vmem:[%s452 + $0x78] sm:$0xf]
        %v512 = vld [vmem:[%s452 + $0x7c] sm:$0xf]
        %v513 = vld [vmem:[%s4] sm:$0xff]
        %v514 = vld [vmem:[%s4 + $0x8] sm:$0xff]
        %v515 = vld [vmem:[%s4 + $0x10] sm:$0xff]
        %v516 = vld [vmem:[%s4 + $0x18] sm:$0xff]
        %v517 = vld [vmem:[%s8] ss:$4 sm:$0x3]
        %v519 = vperm.slane %v517, 0
        %v520 = vperm.slane %v517, 1
        %v555 = vunpack.c.l.b16 %v481
        %v556 = vunpack.c.l.b16 %v482
        %v557 = vunpack.c.l.b16 %v483
        %v558 = vunpack.c.l.b16 %v484
        %v559 = vunpack.c.l.b16 %v485
        %v560 = vunpack.c.l.b16 %v486
        %v561 = vunpack.c.l.b16 %v487
        %v562 = vunpack.c.l.b16 %v488
        %v563 = vunpack.c.l.b16 %v489
        %v564 = vunpack.c.l.b16 %v490
        %v565 = vunpack.c.l.b16 %v491
        %v566 = vunpack.c.l.b16 %v492
        %v567 = vunpack.c.l.b16 %v493
        %v568 = vunpack.c.l.b16 %v494
        %v569 = vunpack.c.l.b16 %v495
        %v570 = vunpack.c.l.b16 %v496
        %v571 = vunpack.c.l.b16 %v497
        %v572 = vunpack.c.l.b16 %v498
        %v573 = vunpack.c.l.b16 %v499
        %v574 = vunpack.c.l.b16 %v500
        %v575 = vunpack.c.l.b16 %v501
        %v576 = vunpack.c.l.b16 %v502
        %v577 = vunpack.c.l.b16 %v503
        %v578 = vunpack.c.l.b16 %v504
        %v579 = vunpack.c.l.b16 %v505
        %v580 = vunpack.c.l.b16 %v506
        %v581 = vunpack.c.l.b16 %v507
        %v582 = vunpack.c.l.b16 %v508
        %v583 = vunpack.c.l.b16 %v509
        %v584 = vunpack.c.l.b16 %v510
        %v585 = vunpack.c.l.b16 %v511
        %v586 = vunpack.c.l.b16 %v512
        %v587 = vpack.c.b16 %v556, %v555
        %v588 = vpack.c.b16 %v558, %v557
        %v589 = vpack.c.b16 %v560, %v559
        %v590 = vpack.c.b16 %v562, %v561
        %v591 = vpack.c.b16 %v564, %v563
        %v592 = vpack.c.b16 %v566, %v565
        %v593 = vpack.c.b16 %v568, %v567
        %v594 = vpack.c.b16 %v570, %v569
        %v595 = vpack.c.b16 %v572, %v571
        %v596 = vpack.c.b16 %v574, %v573
        %v597 = vpack.c.b16 %v576, %v575
        %v598 = vpack.c.b16 %v578, %v577
        %v599 = vpack.c.b16 %v580, %v579
        %v600 = vpack.c.b16 %v582, %v581
        %v601 = vpack.c.b16 %v584, %v583
        %v602 = vpack.c.b16 %v586, %v585
        %v607 = vunpack.c.l.b16 %v513
        %v608 = vunpack.c.h.b16 %v513
        %v609 = vunpack.c.l.b16 %v514
        %v610 = vunpack.c.h.b16 %v514
        %v611 = vunpack.c.l.b16 %v515
        %v612 = vunpack.c.h.b16 %v515
        %v613 = vunpack.c.l.b16 %v516
        %v614 = vunpack.c.h.b16 %v516
        %v615 = vpack.c.b16 %v609, %v607
        %v616 = vpack.c.b16 %v610, %v608
        %v617 = vpack.c.b16 %v613, %v611
        %v618 = vpack.c.b16 %v614, %v612
        %vm623 = vcmask 261120
        %v625 = vsel %vm623, %v587, 0
        %v628 = vsel %vm623, %v588, 0
        %v631 = vsel %vm623, %v589, 0
        %v634 = vsel %vm623, %v590, 0
        %v637 = vsel %vm623, %v591, 0
        %v640 = vsel %vm623, %v592, 0
        %v643 = vsel %vm623, %v593, 0
        %v646 = vsel %vm623, %v594, 0
        %v649 = vsel %vm623, %v595, 0
        %v652 = vsel %vm623, %v596, 0
        %v655 = vsel %vm623, %v597, 0
        %v658 = vsel %vm623, %v598, 0
        %v661 = vsel %vm623, %v599, 0
        %v664 = vsel %vm623, %v600, 0
        %v667 = vsel %vm623, %v601, 0
        %v670 = vsel %vm623, %v602, 0
        %672 = vmatpush.bf16.msra.mxu0 0
        %673 = vmatpush.bf16.msra.mxu0 0
        %674 = vmatpush.bf16.msra.mxu0 0
        %675 = vmatpush.bf16.msra.mxu0 0
        %676 = vmatpush.bf16.msra.mxu0 0
        %677 = vmatpush.bf16.msra.mxu0 0
        %678 = vmatpush.bf16.msra.mxu0 %v617
        %679 = vmatpush.bf16.msra.mxu0 %v615
        %680 = vmatmul.bf16.gmra.mxu0 %v625
        %v681 = vpop.f32.mrf.mxu0
        %v682 = vadd.f32 %v519, %v681
        %v683 = vpop.f32.mrf.mxu0
        %v684 = vadd.f32 %v519, %v683
        %685 = vmatmul.bf16.gmra.mxu0 %v628
        %v686 = vpop.f32.mrf.mxu0
        %v687 = vadd.f32 %v519, %v686
        %v688 = vpop.f32.mrf.mxu0
        %v689 = vadd.f32 %v519, %v688
        %690 = vmatmul.bf16.gmra.mxu0 %v631
        %v691 = vpop.f32.mrf.mxu0
        %v692 = vadd.f32 %v519, %v691
        %v693 = vpop.f32.mrf.mxu0
        %v694 = vadd.f32 %v519, %v693
        %695 = vmatmul.bf16.gmra.mxu0 %v634
        %v696 = vpop.f32.mrf.mxu0
        %v697 = vadd.f32 %v519, %v696
        %v698 = vpop.f32.mrf.mxu0
        %v699 = vadd.f32 %v519, %v698
        %700 = vmatmul.bf16.gmra.mxu0 %v637
        %v701 = vpop.f32.mrf.mxu0
        %v702 = vadd.f32 %v519, %v701
        %v703 = vpop.f32.mrf.mxu0
        %v704 = vadd.f32 %v519, %v703
        %705 = vmatmul.bf16.gmra.mxu0 %v640
        %v706 = vpop.f32.mrf.mxu0
        %v707 = vadd.f32 %v519, %v706
        %v708 = vpop.f32.mrf.mxu0
        %v709 = vadd.f32 %v519, %v708
        %710 = vmatmul.bf16.gmra.mxu0 %v643
        %v711 = vpop.f32.mrf.mxu0
        %v712 = vadd.f32 %v519, %v711
        %v713 = vpop.f32.mrf.mxu0
        %v714 = vadd.f32 %v519, %v713
        %715 = vmatmul.bf16.gmra.mxu0 %v646
        %v716 = vpop.f32.mrf.mxu0
        %v717 = vadd.f32 %v519, %v716
        %v718 = vpop.f32.mrf.mxu0
        %v719 = vadd.f32 %v519, %v718
        %720 = vmatmul.bf16.gmra.mxu0 %v649
        %v721 = vpop.f32.mrf.mxu0
        %v722 = vadd.f32 %v519, %v721
        %v723 = vpop.f32.mrf.mxu0
        %v724 = vadd.f32 %v519, %v723
        %725 = vmatmul.bf16.gmra.mxu0 %v652
        %v726 = vpop.f32.mrf.mxu0
        %v727 = vadd.f32 %v519, %v726
        %v728 = vpop.f32.mrf.mxu0
        %v729 = vadd.f32 %v519, %v728
        %730 = vmatmul.bf16.gmra.mxu0 %v655
        %v731 = vpop.f32.mrf.mxu0
        %v732 = vadd.f32 %v519, %v731
        %v733 = vpop.f32.mrf.mxu0
        %v734 = vadd.f32 %v519, %v733
        %735 = vmatmul.bf16.gmra.mxu0 %v658
        %v736 = vpop.f32.mrf.mxu0
        %v737 = vadd.f32 %v519, %v736
        %v738 = vpop.f32.mrf.mxu0
        %v739 = vadd.f32 %v519, %v738
        %740 = vmatmul.bf16.gmra.mxu0 %v661
        %v741 = vpop.f32.mrf.mxu0
        %v742 = vadd.f32 %v519, %v741
        %v743 = vpop.f32.mrf.mxu0
        %v744 = vadd.f32 %v519, %v743
        %745 = vmatmul.bf16.gmra.mxu0 %v664
        %v746 = vpop.f32.mrf.mxu0
        %v747 = vadd.f32 %v519, %v746
        %v748 = vpop.f32.mrf.mxu0
        %v749 = vadd.f32 %v519, %v748
        %750 = vmatmul.bf16.gmra.mxu0 %v667
        %v751 = vpop.f32.mrf.mxu0
        %v752 = vadd.f32 %v519, %v751
        %v753 = vpop.f32.mrf.mxu0
        %v754 = vadd.f32 %v519, %v753
        %755 = vmatmul.bf16.gmra.mxu0 %v670
        %v756 = vpop.f32.mrf.mxu0
        %v757 = vadd.f32 %v519, %v756
        %v758 = vpop.f32.mrf.mxu0
        %v759 = vadd.f32 %v519, %v758
        %760 = vdwg.mxu0
        %761 = vmatpush.bf16.msra.mxu0 0
        %762 = vmatpush.bf16.msra.mxu0 0
        %763 = vmatpush.bf16.msra.mxu0 0
        %764 = vmatpush.bf16.msra.mxu0 0
        %765 = vmatpush.bf16.msra.mxu0 0
        %766 = vmatpush.bf16.msra.mxu0 0
        %767 = vmatpush.bf16.msra.mxu0 %v618
        %768 = vmatpush.bf16.msra.mxu0 %v616
        %769 = vmatmul.bf16.gmra.mxu0 %v625
        %v770 = vpop.f32.mrf.mxu0
        %v771 = vadd.f32 %v520, %v770
        %v772 = vpop.f32.mrf.mxu0
        %v773 = vadd.f32 %v520, %v772
        %774 = vmatmul.bf16.gmra.mxu0 %v628
        %v775 = vpop.f32.mrf.mxu0
        %v776 = vadd.f32 %v520, %v775
        %v777 = vpop.f32.mrf.mxu0
        %v778 = vadd.f32 %v520, %v777
        %779 = vmatmul.bf16.gmra.mxu0 %v631
        %v780 = vpop.f32.mrf.mxu0
        %v781 = vadd.f32 %v520, %v780
        %v782 = vpop.f32.mrf.mxu0
        %v783 = vadd.f32 %v520, %v782
        %784 = vmatmul.bf16.gmra.mxu0 %v634
        %v785 = vpop.f32.mrf.mxu0
        %v786 = vadd.f32 %v520, %v785
        %v787 = vpop.f32.mrf.mxu0
        %v788 = vadd.f32 %v520, %v787
        %789 = vmatmul.bf16.gmra.mxu0 %v637
        %v790 = vpop.f32.mrf.mxu0
        %v791 = vadd.f32 %v520, %v790
        %v792 = vpop.f32.mrf.mxu0
        %v793 = vadd.f32 %v520, %v792
        %794 = vmatmul.bf16.gmra.mxu0 %v640
        %v795 = vpop.f32.mrf.mxu0
        %v796 = vadd.f32 %v520, %v795
        %v797 = vpop.f32.mrf.mxu0
        %v798 = vadd.f32 %v520, %v797
        %799 = vmatmul.bf16.gmra.mxu0 %v643
        %v800 = vpop.f32.mrf.mxu0
        %v801 = vadd.f32 %v520, %v800
        %v802 = vpop.f32.mrf.mxu0
        %v803 = vadd.f32 %v520, %v802
        %804 = vmatmul.bf16.gmra.mxu0 %v646
        %v805 = vpop.f32.mrf.mxu0
        %v806 = vadd.f32 %v520, %v805
        %v807 = vpop.f32.mrf.mxu0
        %v808 = vadd.f32 %v520, %v807
        %809 = vmatmul.bf16.gmra.mxu0 %v649
        %v810 = vpop.f32.mrf.mxu0
        %v811 = vadd.f32 %v520, %v810
        %v812 = vpop.f32.mrf.mxu0
        %v813 = vadd.f32 %v520, %v812
        %814 = vmatmul.bf16.gmra.mxu0 %v652
        %v815 = vpop.f32.mrf.mxu0
        %v816 = vadd.f32 %v520, %v815
        %v817 = vpop.f32.mrf.mxu0
        %v818 = vadd.f32 %v520, %v817
        %819 = vmatmul.bf16.gmra.mxu0 %v655
        %v820 = vpop.f32.mrf.mxu0
        %v821 = vadd.f32 %v520, %v820
        %v822 = vpop.f32.mrf.mxu0
        %v823 = vadd.f32 %v520, %v822
        %824 = vmatmul.bf16.gmra.mxu0 %v658
        %v825 = vpop.f32.mrf.mxu0
        %v826 = vadd.f32 %v520, %v825
        %v827 = vpop.f32.mrf.mxu0
        %v828 = vadd.f32 %v520, %v827
        %829 = vmatmul.bf16.gmra.mxu0 %v661
        %v830 = vpop.f32.mrf.mxu0
        %v831 = vadd.f32 %v520, %v830
        %v832 = vpop.f32.mrf.mxu0
        %v833 = vadd.f32 %v520, %v832
        %834 = vmatmul.bf16.gmra.mxu0 %v664
        %v835 = vpop.f32.mrf.mxu0
        %v836 = vadd.f32 %v520, %v835
        %v837 = vpop.f32.mrf.mxu0
        %v838 = vadd.f32 %v520, %v837
        %839 = vmatmul.bf16.gmra.mxu0 %v667
        %v840 = vpop.f32.mrf.mxu0
        %v841 = vadd.f32 %v520, %v840
        %v842 = vpop.f32.mrf.mxu0
        %v843 = vadd.f32 %v520, %v842
        %844 = vmatmul.bf16.gmra.mxu0 %v670
        %v845 = vpop.f32.mrf.mxu0
        %v846 = vadd.f32 %v520, %v845
        %v847 = vpop.f32.mrf.mxu0
        %v848 = vadd.f32 %v520, %v847
        %849 = vdwg.mxu0
        %v850 = vmax.f32 %v682, 0.0
        %v851 = vmax.f32 %v771, 0.0
        %v852 = vmax.f32 %v684, 0.0
        %v853 = vmax.f32 %v773, 0.0
        %v854 = vmax.f32 %v687, 0.0
        %v855 = vmax.f32 %v776, 0.0
        %v856 = vmax.f32 %v689, 0.0
        %v857 = vmax.f32 %v778, 0.0
        %v858 = vmax.f32 %v692, 0.0
        %v859 = vmax.f32 %v781, 0.0
        %v860 = vmax.f32 %v694, 0.0
        %v861 = vmax.f32 %v783, 0.0
        %v862 = vmax.f32 %v697, 0.0
        %v863 = vmax.f32 %v786, 0.0
        %v864 = vmax.f32 %v699, 0.0
        %v865 = vmax.f32 %v788, 0.0
        %v866 = vmax.f32 %v702, 0.0
        %v867 = vmax.f32 %v791, 0.0
        %v868 = vmax.f32 %v704, 0.0
        %v869 = vmax.f32 %v793, 0.0
        %v870 = vmax.f32 %v707, 0.0
        %v871 = vmax.f32 %v796, 0.0
        %v872 = vmax.f32 %v709, 0.0
        %v873 = vmax.f32 %v798, 0.0
        %v874 = vmax.f32 %v712, 0.0
        %v875 = vmax.f32 %v801, 0.0
        %v876 = vmax.f32 %v714, 0.0
        %v877 = vmax.f32 %v803, 0.0
        %v878 = vmax.f32 %v717, 0.0
        %v879 = vmax.f32 %v806, 0.0
        %v880 = vmax.f32 %v719, 0.0
        %v881 = vmax.f32 %v808, 0.0
        %v882 = vmax.f32 %v722, 0.0
        %v883 = vmax.f32 %v811, 0.0
        %v884 = vmax.f32 %v724, 0.0
        %v885 = vmax.f32 %v813, 0.0
        %v886 = vmax.f32 %v727, 0.0
        %v887 = vmax.f32 %v816, 0.0
        %v888 = vmax.f32 %v729, 0.0
        %v889 = vmax.f32 %v818, 0.0
        %v890 = vmax.f32 %v732, 0.0
        %v891 = vmax.f32 %v821, 0.0
        %v892 = vmax.f32 %v734, 0.0
        %v893 = vmax.f32 %v823, 0.0
        %v894 = vmax.f32 %v737, 0.0
        %v895 = vmax.f32 %v826, 0.0
        %v896 = vmax.f32 %v739, 0.0
        %v897 = vmax.f32 %v828, 0.0
        %v898 = vmax.f32 %v742, 0.0
        %v899 = vmax.f32 %v831, 0.0
        %v900 = vmax.f32 %v744, 0.0
        %v901 = vmax.f32 %v833, 0.0
        %v902 = vmax.f32 %v747, 0.0
        %v903 = vmax.f32 %v836, 0.0
        %v904 = vmax.f32 %v749, 0.0
        %v905 = vmax.f32 %v838, 0.0
        %v906 = vmax.f32 %v752, 0.0
        %v907 = vmax.f32 %v841, 0.0
        %v908 = vmax.f32 %v754, 0.0
        %v909 = vmax.f32 %v843, 0.0
        %v910 = vmax.f32 %v757, 0.0
        %v911 = vmax.f32 %v846, 0.0
        %v912 = vmax.f32 %v759, 0.0
        %v913 = vmax.f32 %v848, 0.0
        %v914 = vpack.c.bf16 %v851, %v850
        %v915 = vpack.c.bf16 %v853, %v852
        %v916 = vpack.c.bf16 %v855, %v854
        %v917 = vpack.c.bf16 %v857, %v856
        %v918 = vpack.c.bf16 %v859, %v858
        %v919 = vpack.c.bf16 %v861, %v860
        %v920 = vpack.c.bf16 %v863, %v862
        %v921 = vpack.c.bf16 %v865, %v864
        %v922 = vpack.c.bf16 %v867, %v866
        %v923 = vpack.c.bf16 %v869, %v868
        %v924 = vpack.c.bf16 %v871, %v870
        %v925 = vpack.c.bf16 %v873, %v872
        %v926 = vpack.c.bf16 %v875, %v874
        %v927 = vpack.c.bf16 %v877, %v876
        %v928 = vpack.c.bf16 %v879, %v878
        %v929 = vpack.c.bf16 %v881, %v880
        %v930 = vpack.c.bf16 %v883, %v882
        %v931 = vpack.c.bf16 %v885, %v884
        %v932 = vpack.c.bf16 %v887, %v886
        %v933 = vpack.c.bf16 %v889, %v888
        %v934 = vpack.c.bf16 %v891, %v890
        %v935 = vpack.c.bf16 %v893, %v892
        %v936 = vpack.c.bf16 %v895, %v894
        %v937 = vpack.c.bf16 %v897, %v896
        %v938 = vpack.c.bf16 %v899, %v898
        %v939 = vpack.c.bf16 %v901, %v900
        %v940 = vpack.c.bf16 %v903, %v902
        %v941 = vpack.c.bf16 %v905, %v904
        %v942 = vpack.c.bf16 %v907, %v906
        %v943 = vpack.c.bf16 %v909, %v908
        %v944 = vpack.c.bf16 %v911, %v910
        %v945 = vpack.c.bf16 %v913, %v912
        %v946 = vld [vmem:[%s459] sm:$0xff]
        %v947 = vld [vmem:[%s459 + $0x8] sm:$0xf]
        %v948 = vld [vmem:[%s459 + $0xc] sm:$0xff]
        %v949 = vld [vmem:[%s459 + $0x14] sm:$0xf]
        %v950 = vld [vmem:[%s459 + $0x18] sm:$0xff]
        %v951 = vld [vmem:[%s459 + $0x20] sm:$0xf]
        %v952 = vld [vmem:[%s459 + $0x24] sm:$0xff]
        %v953 = vld [vmem:[%s459 + $0x2c] sm:$0xf]
        %v954 = vld [vmem:[%s459 + $0x30] sm:$0xff]
        %v955 = vld [vmem:[%s459 + $0x38] sm:$0xf]
        %v956 = vld [vmem:[%s459 + $0x3c] sm:$0xff]
        %v957 = vld [vmem:[%s459 + $0x44] sm:$0xf]
        %v958 = vld [vmem:[%s459 + $0x48] sm:$0xff]
        %v959 = vld [vmem:[%s459 + $0x50] sm:$0xf]
        %v960 = vld [vmem:[%s459 + $0x54] sm:$0xff]
        %v961 = vld [vmem:[%s459 + $0x5c] sm:$0xf]
        %v962 = vld [vmem:[%s459 + $0x60] sm:$0xff]
        %v963 = vld [vmem:[%s459 + $0x68] sm:$0xf]
        %v964 = vld [vmem:[%s459 + $0x6c] sm:$0xff]
        %v965 = vld [vmem:[%s459 + $0x74] sm:$0xf]
        %v966 = vld [vmem:[%s459 + $0x78] sm:$0xff]
        %v967 = vld [vmem:[%s459 + $0x80] sm:$0xf]
        %v968 = vld [vmem:[%s459 + $0x84] sm:$0xff]
        %v969 = vld [vmem:[%s459 + $0x8c] sm:$0xf]
        %v970 = vld [vmem:[%s459 + $0x90] sm:$0xff]
        %v971 = vld [vmem:[%s459 + $0x98] sm:$0xf]
        %v972 = vld [vmem:[%s459 + $0x9c] sm:$0xff]
        %v973 = vld [vmem:[%s459 + $0xa4] sm:$0xf]
        %v974 = vld [vmem:[%s459 + $0xa8] sm:$0xff]
        %v975 = vld [vmem:[%s459 + $0xb0] sm:$0xf]
        %v976 = vld [vmem:[%s459 + $0xb4] sm:$0xff]
        %v977 = vld [vmem:[%s459 + $0xbc] sm:$0xf]
        %v978 = vld [vmem:[%s459 + $0xc0] sm:$0xff]
        %v979 = vld [vmem:[%s459 + $0xc8] sm:$0xf]
        %v980 = vld [vmem:[%s459 + $0xcc] sm:$0xff]
        %v981 = vld [vmem:[%s459 + $0xd4] sm:$0xf]
        %v982 = vld [vmem:[%s459 + $0xd8] sm:$0xff]
        %v983 = vld [vmem:[%s459 + $0xe0] sm:$0xf]
        %v984 = vld [vmem:[%s459 + $0xe4] sm:$0xff]
        %v985 = vld [vmem:[%s459 + $0xec] sm:$0xf]
        %v986 = vld [vmem:[%s459 + $0xf0] sm:$0xff]
        %v987 = vld [vmem:[%s459 + $0xf8] sm:$0xf]
        %v988 = vld [vmem:[%s459 + $0xfc] sm:$0xff]
        %v989 = vld [vmem:[%s459 + $0x104] sm:$0xf]
        %v990 = vld [vmem:[%s459 + $0x108] sm:$0xff]
        %v991 = vld [vmem:[%s459 + $0x110] sm:$0xf]
        %v992 = vld [vmem:[%s459 + $0x114] sm:$0xff]
        %v993 = vld [vmem:[%s459 + $0x11c] sm:$0xf]
        %v994 = vld [vmem:[%s459 + $0x120] sm:$0xff]
        %v995 = vld [vmem:[%s459 + $0x128] sm:$0xf]
        %v996 = vld [vmem:[%s459 + $0x12c] sm:$0xff]
        %v997 = vld [vmem:[%s459 + $0x134] sm:$0xf]
        %v998 = vld [vmem:[%s459 + $0x138] sm:$0xff]
        %v999 = vld [vmem:[%s459 + $0x140] sm:$0xf]
        %v1000 = vld [vmem:[%s459 + $0x144] sm:$0xff]
        %v1001 = vld [vmem:[%s459 + $0x14c] sm:$0xf]
        %v1002 = vld [vmem:[%s459 + $0x150] sm:$0xff]
        %v1003 = vld [vmem:[%s459 + $0x158] sm:$0xf]
        %v1004 = vld [vmem:[%s459 + $0x15c] sm:$0xff]
        %v1005 = vld [vmem:[%s459 + $0x164] sm:$0xf]
        %v1006 = vld [vmem:[%s459 + $0x168] sm:$0xff]
        %v1007 = vld [vmem:[%s459 + $0x170] sm:$0xf]
        %v1008 = vld [vmem:[%s459 + $0x174] sm:$0xff]
        %v1009 = vld [vmem:[%s459 + $0x17c] sm:$0xf]
        %v1010 = vld [vmem:[%s5] sm:$0xff]
        %v1011 = vld [vmem:[%s5 + $0x8] sm:$0xff]
        %v1012 = vld [vmem:[%s5 + $0x10] sm:$0xff]
        %v1013 = vld [vmem:[%s5 + $0x18] sm:$0xff]
        %v1014 = vld [vmem:[%s5 + $0x20] sm:$0xff]
        %v1015 = vld [vmem:[%s5 + $0x28] sm:$0xff]
        %v1016 = vld [vmem:[%s5 + $0x30] sm:$0xff]
        %v1017 = vld [vmem:[%s5 + $0x38] sm:$0xff]
        %v1018 = vld [vmem:[%s5 + $0x40] sm:$0xff]
        %v1019 = vld [vmem:[%s5 + $0x48] sm:$0xff]
        %v1020 = vld [vmem:[%s5 + $0x50] sm:$0xff]
        %v1021 = vld [vmem:[%s5 + $0x58] sm:$0xff]
        %v1022 = vld [vmem:[%s5 + $0x60] sm:$0xff]
        %v1023 = vld [vmem:[%s5 + $0x68] sm:$0xff]
        %v1024 = vld [vmem:[%s5 + $0x70] sm:$0xff]
        %v1025 = vld [vmem:[%s5 + $0x78] sm:$0xff]
        %v1026 = vld [vmem:[%s5 + $0x80] sm:$0xff]
        %v1027 = vld [vmem:[%s5 + $0x88] sm:$0xff]
        %v1028 = vld [vmem:[%s5 + $0x90] sm:$0xff]
        %v1029 = vld [vmem:[%s5 + $0x98] sm:$0xff]
        %v1030 = vld [vmem:[%s5 + $0xa0] sm:$0xff]
        %v1031 = vld [vmem:[%s5 + $0xa8] sm:$0xff]
        %v1032 = vld [vmem:[%s5 + $0xb0] sm:$0xff]
        %v1033 = vld [vmem:[%s5 + $0xb8] sm:$0xff]
        %v1034 = vld [vmem:[%s5 + $0xc0] sm:$0xff]
        %v1035 = vld [vmem:[%s5 + $0xc8] sm:$0xff]
        %v1036 = vld [vmem:[%s5 + $0xd0] sm:$0xff]
        %v1037 = vld [vmem:[%s5 + $0xd8] sm:$0xff]
        %v1038 = vld [vmem:[%s5 + $0xe0] sm:$0xff]
        %v1039 = vld [vmem:[%s5 + $0xe8] sm:$0xff]
        %v1040 = vld [vmem:[%s5 + $0xf0] sm:$0xff]
        %v1041 = vld [vmem:[%s5 + $0xf8] sm:$0xff]
        %v1042 = vld [vmem:[%s5 + $0x100] sm:$0xff]
        %v1043 = vld [vmem:[%s5 + $0x108] sm:$0xff]
        %v1044 = vld [vmem:[%s5 + $0x110] sm:$0xff]
        %v1045 = vld [vmem:[%s5 + $0x118] sm:$0xff]
        %s1046 = scalar_lea.vmem %s8, 1
        %v1047 = vld [vmem:[%s1046] ss:$4 sm:$0x3]
        %v1049 = vperm.slane %v1047, 0
        %v1050 = vperm.slane %v1047, 1
        %v1117 = vunpack.c.l.b16 %v946
        %v1118 = vunpack.c.h.b16 %v946
        %v1119 = vunpack.c.l.b16 %v947
        %v1120 = vunpack.c.l.b16 %v948
        %v1121 = vunpack.c.h.b16 %v948
        %v1122 = vunpack.c.l.b16 %v949
        %v1123 = vunpack.c.l.b16 %v950
        %v1124 = vunpack.c.h.b16 %v950
        %v1125 = vunpack.c.l.b16 %v951
        %v1126 = vunpack.c.l.b16 %v952
        %v1127 = vunpack.c.h.b16 %v952
        %v1128 = vunpack.c.l.b16 %v953
        %v1129 = vunpack.c.l.b16 %v954
        %v1130 = vunpack.c.h.b16 %v954
        %v1131 = vunpack.c.l.b16 %v955
        %v1132 = vunpack.c.l.b16 %v956
        %v1133 = vunpack.c.h.b16 %v956
        %v1134 = vunpack.c.l.b16 %v957
        %v1135 = vunpack.c.l.b16 %v958
        %v1136 = vunpack.c.h.b16 %v958
        %v1137 = vunpack.c.l.b16 %v959
        %v1138 = vunpack.c.l.b16 %v960
        %v1139 = vunpack.c.h.b16 %v960
        %v1140 = vunpack.c.l.b16 %v961
        %v1141 = vunpack.c.l.b16 %v962
        %v1142 = vunpack.c.h.b16 %v962
        %v1143 = vunpack.c.l.b16 %v963
        %v1144 = vunpack.c.l.b16 %v964
        %v1145 = vunpack.c.h.b16 %v964
        %v1146 = vunpack.c.l.b16 %v965
        %v1147 = vunpack.c.l.b16 %v966
        %v1148 = vunpack.c.h.b16 %v966
        %v1149 = vunpack.c.l.b16 %v967
        %v1150 = vunpack.c.l.b16 %v968
        %v1151 = vunpack.c.h.b16 %v968
        %v1152 = vunpack.c.l.b16 %v969
        %v1153 = vunpack.c.l.b16 %v970
        %v1154 = vunpack.c.h.b16 %v970
        %v1155 = vunpack.c.l.b16 %v971
        %v1156 = vunpack.c.l.b16 %v972
        %v1157 = vunpack.c.h.b16 %v972
        %v1158 = vunpack.c.l.b16 %v973
        %v1159 = vunpack.c.l.b16 %v974
        %v1160 = vunpack.c.h.b16 %v974
        %v1161 = vunpack.c.l.b16 %v975
        %v1162 = vunpack.c.l.b16 %v976
        %v1163 = vunpack.c.h.b16 %v976
        %v1164 = vunpack.c.l.b16 %v977
        %v1165 = vunpack.c.l.b16 %v978
        %v1166 = vunpack.c.h.b16 %v978
        %v1167 = vunpack.c.l.b16 %v979
        %v1168 = vunpack.c.l.b16 %v980
        %v1169 = vunpack.c.h.b16 %v980
        %v1170 = vunpack.c.l.b16 %v981
        %v1171 = vunpack.c.l.b16 %v982
        %v1172 = vunpack.c.h.b16 %v982
        %v1173 = vunpack.c.l.b16 %v983
        %v1174 = vunpack.c.l.b16 %v984
        %v1175 = vunpack.c.h.b16 %v984
        %v1176 = vunpack.c.l.b16 %v985
        %v1177 = vunpack.c.l.b16 %v986
        %v1178 = vunpack.c.h.b16 %v986
        %v1179 = vunpack.c.l.b16 %v987
        %v1180 = vunpack.c.l.b16 %v988
        %v1181 = vunpack.c.h.b16 %v988
        %v1182 = vunpack.c.l.b16 %v989
        %v1183 = vunpack.c.l.b16 %v990
        %v1184 = vunpack.c.h.b16 %v990
        %v1185 = vunpack.c.l.b16 %v991
        %v1186 = vunpack.c.l.b16 %v992
        %v1187 = vunpack.c.h.b16 %v992
        %v1188 = vunpack.c.l.b16 %v993
        %v1189 = vunpack.c.l.b16 %v994
        %v1190 = vunpack.c.h.b16 %v994
        %v1191 = vunpack.c.l.b16 %v995
        %v1192 = vunpack.c.l.b16 %v996
        %v1193 = vunpack.c.h.b16 %v996
        %v1194 = vunpack.c.l.b16 %v997
        %v1195 = vunpack.c.l.b16 %v998
        %v1196 = vunpack.c.h.b16 %v998
        %v1197 = vunpack.c.l.b16 %v999
        %v1198 = vunpack.c.l.b16 %v1000
        %v1199 = vunpack.c.h.b16 %v1000
        %v1200 = vunpack.c.l.b16 %v1001
        %v1201 = vunpack.c.l.b16 %v1002
        %v1202 = vunpack.c.h.b16 %v1002
        %v1203 = vunpack.c.l.b16 %v1003
        %v1204 = vunpack.c.l.b16 %v1004
        %v1205 = vunpack.c.h.b16 %v1004
        %v1206 = vunpack.c.l.b16 %v1005
        %v1207 = vunpack.c.l.b16 %v1006
        %v1208 = vunpack.c.h.b16 %v1006
        %v1209 = vunpack.c.l.b16 %v1007
        %v1210 = vunpack.c.l.b16 %v1008
        %v1211 = vunpack.c.h.b16 %v1008
        %v1212 = vunpack.c.l.b16 %v1009
        %v1213 = vpack.c.b16 %v1120, %v1117
        %v1214 = vpack.c.b16 %v1121, %v1118
        %v1215 = vpack.c.b16 %v1122, %v1119
        %v1216 = vpack.c.b16 %v1126, %v1123
        %v1217 = vpack.c.b16 %v1127, %v1124
        %v1218 = vpack.c.b16 %v1128, %v1125
        %v1219 = vpack.c.b16 %v1132, %v1129
        %v1220 = vpack.c.b16 %v1133, %v1130
        %v1221 = vpack.c.b16 %v1134, %v1131
        %v1222 = vpack.c.b16 %v1138, %v1135
        %v1223 = vpack.c.b16 %v1139, %v1136
        %v1224 = vpack.c.b16 %v1140, %v1137
        %v1225 = vpack.c.b16 %v1144, %v1141
        %v1226 = vpack.c.b16 %v1145, %v1142
        %v1227 = vpack.c.b16 %v1146, %v1143
        %v1228 = vpack.c.b16 %v1150, %v1147
        %v1229 = vpack.c.b16 %v1151, %v1148
        %v1230 = vpack.c.b16 %v1152, %v1149
        %v1231 = vpack.c.b16 %v1156, %v1153
        %v1232 = vpack.c.b16 %v1157, %v1154
        %v1233 = vpack.c.b16 %v1158, %v1155
        %v1234 = vpack.c.b16 %v1162, %v1159
        %v1235 = vpack.c.b16 %v1163, %v1160
        %v1236 = vpack.c.b16 %v1164, %v1161
        %v1237 = vpack.c.b16 %v1168, %v1165
        %v1238 = vpack.c.b16 %v1169, %v1166
        %v1239 = vpack.c.b16 %v1170, %v1167
        %v1240 = vpack.c.b16 %v1174, %v1171
        %v1241 = vpack.c.b16 %v1175, %v1172
        %v1242 = vpack.c.b16 %v1176, %v1173
        %v1243 = vpack.c.b16 %v1180, %v1177
        %v1244 = vpack.c.b16 %v1181, %v1178
        %v1245 = vpack.c.b16 %v1182, %v1179
        %v1246 = vpack.c.b16 %v1186, %v1183
        %v1247 = vpack.c.b16 %v1187, %v1184
        %v1248 = vpack.c.b16 %v1188, %v1185
        %v1249 = vpack.c.b16 %v1192, %v1189
        %v1250 = vpack.c.b16 %v1193, %v1190
        %v1251 = vpack.c.b16 %v1194, %v1191
        %v1252 = vpack.c.b16 %v1198, %v1195
        %v1253 = vpack.c.b16 %v1199, %v1196
        %v1254 = vpack.c.b16 %v1200, %v1197
        %v1255 = vpack.c.b16 %v1204, %v1201
        %v1256 = vpack.c.b16 %v1205, %v1202
        %v1257 = vpack.c.b16 %v1206, %v1203
        %v1258 = vpack.c.b16 %v1210, %v1207
        %v1259 = vpack.c.b16 %v1211, %v1208
        %v1260 = vpack.c.b16 %v1212, %v1209
        %v1329 = vunpack.c.l.b16 %v1010
        %v1330 = vunpack.c.h.b16 %v1010
        %v1331 = vunpack.c.l.b16 %v1011
        %v1332 = vunpack.c.h.b16 %v1011
        %v1333 = vunpack.c.l.b16 %v1012
        %v1334 = vunpack.c.h.b16 %v1012
        %v1335 = vunpack.c.l.b16 %v1013
        %v1336 = vunpack.c.h.b16 %v1013
        %v1337 = vunpack.c.l.b16 %v1014
        %v1338 = vunpack.c.h.b16 %v1014
        %v1339 = vunpack.c.l.b16 %v1015
        %v1340 = vunpack.c.h.b16 %v1015
        %v1341 = vunpack.c.l.b16 %v1016
        %v1342 = vunpack.c.h.b16 %v1016
        %v1343 = vunpack.c.l.b16 %v1017
        %v1344 = vunpack.c.h.b16 %v1017
        %v1345 = vunpack.c.l.b16 %v1018
        %v1346 = vunpack.c.h.b16 %v1018
        %v1347 = vunpack.c.l.b16 %v1019
        %v1348 = vunpack.c.h.b16 %v1019
        %v1349 = vunpack.c.l.b16 %v1020
        %v1350 = vunpack.c.h.b16 %v1020
        %v1351 = vunpack.c.l.b16 %v1021
        %v1352 = vunpack.c.h.b16 %v1021
        %v1353 = vunpack.c.l.b16 %v1022
        %v1354 = vunpack.c.h.b16 %v1022
        %v1355 = vunpack.c.l.b16 %v1023
        %v1356 = vunpack.c.h.b16 %v1023
        %v1357 = vunpack.c.l.b16 %v1024
        %v1358 = vunpack.c.h.b16 %v1024
        %v1359 = vunpack.c.l.b16 %v1025
        %v1360 = vunpack.c.h.b16 %v1025
        %v1361 = vunpack.c.l.b16 %v1026
        %v1362 = vunpack.c.h.b16 %v1026
        %v1363 = vunpack.c.l.b16 %v1027
        %v1364 = vunpack.c.h.b16 %v1027
        %v1365 = vunpack.c.l.b16 %v1028
        %v1366 = vunpack.c.h.b16 %v1028
        %v1367 = vunpack.c.l.b16 %v1029
        %v1368 = vunpack.c.h.b16 %v1029
        %v1369 = vunpack.c.l.b16 %v1030
        %v1370 = vunpack.c.h.b16 %v1030
        %v1371 = vunpack.c.l.b16 %v1031
        %v1372 = vunpack.c.h.b16 %v1031
        %v1373 = vunpack.c.l.b16 %v1032
        %v1374 = vunpack.c.h.b16 %v1032
        %v1375 = vunpack.c.l.b16 %v1033
        %v1376 = vunpack.c.h.b16 %v1033
        %v1377 = vunpack.c.l.b16 %v1034
        %v1378 = vunpack.c.h.b16 %v1034
        %v1379 = vunpack.c.l.b16 %v1035
        %v1380 = vunpack.c.h.b16 %v1035
        %v1381 = vunpack.c.l.b16 %v1036
        %v1382 = vunpack.c.h.b16 %v1036
        %v1383 = vunpack.c.l.b16 %v1037
        %v1384 = vunpack.c.h.b16 %v1037
        %v1385 = vunpack.c.l.b16 %v1038
        %v1386 = vunpack.c.h.b16 %v1038
        %v1387 = vunpack.c.l.b16 %v1039
        %v1388 = vunpack.c.h.b16 %v1039
        %v1389 = vunpack.c.l.b16 %v1040
        %v1390 = vunpack.c.h.b16 %v1040
        %v1391 = vunpack.c.l.b16 %v1041
        %v1392 = vunpack.c.h.b16 %v1041
        %v1393 = vunpack.c.l.b16 %v1042
        %v1394 = vunpack.c.h.b16 %v1042
        %v1395 = vunpack.c.l.b16 %v1043
        %v1396 = vunpack.c.h.b16 %v1043
        %v1397 = vunpack.c.l.b16 %v1044
        %v1398 = vunpack.c.h.b16 %v1044
        %v1399 = vunpack.c.l.b16 %v1045
        %v1400 = vunpack.c.h.b16 %v1045
        %v1401 = vpack.c.b16 %v1331, %v1329
        %v1402 = vpack.c.b16 %v1332, %v1330
        %v1403 = vpack.c.b16 %v1335, %v1333
        %v1404 = vpack.c.b16 %v1336, %v1334
        %v1405 = vpack.c.b16 %v1339, %v1337
        %v1406 = vpack.c.b16 %v1340, %v1338
        %v1407 = vpack.c.b16 %v1343, %v1341
        %v1408 = vpack.c.b16 %v1344, %v1342
        %v1409 = vpack.c.b16 %v1347, %v1345
        %v1410 = vpack.c.b16 %v1348, %v1346
        %v1411 = vpack.c.b16 %v1351, %v1349
        %v1412 = vpack.c.b16 %v1352, %v1350
        %v1413 = vpack.c.b16 %v1355, %v1353
        %v1414 = vpack.c.b16 %v1356, %v1354
        %v1415 = vpack.c.b16 %v1359, %v1357
        %v1416 = vpack.c.b16 %v1360, %v1358
        %v1417 = vpack.c.b16 %v1363, %v1361
        %v1418 = vpack.c.b16 %v1364, %v1362
        %v1419 = vpack.c.b16 %v1367, %v1365
        %v1420 = vpack.c.b16 %v1368, %v1366
        %v1421 = vpack.c.b16 %v1371, %v1369
        %v1422 = vpack.c.b16 %v1372, %v1370
        %v1423 = vpack.c.b16 %v1375, %v1373
        %v1424 = vpack.c.b16 %v1376, %v1374
        %v1425 = vpack.c.b16 %v1379, %v1377
        %v1426 = vpack.c.b16 %v1380, %v1378
        %v1427 = vpack.c.b16 %v1383, %v1381
        %v1428 = vpack.c.b16 %v1384, %v1382
        %v1429 = vpack.c.b16 %v1387, %v1385
        %v1430 = vpack.c.b16 %v1388, %v1386
        %v1431 = vpack.c.b16 %v1391, %v1389
        %v1432 = vpack.c.b16 %v1392, %v1390
        %v1433 = vpack.c.b16 %v1395, %v1393
        %v1434 = vpack.c.b16 %v1396, %v1394
        %v1435 = vpack.c.b16 %v1399, %v1397
        %v1436 = vpack.c.b16 %v1400, %v1398
        %v1474 = vsel %vm623, %v1215, 0
        %v1477 = vsel %vm623, %v1218, 0
        %v1480 = vsel %vm623, %v1221, 0
        %v1483 = vsel %vm623, %v1224, 0
        %v1486 = vsel %vm623, %v1227, 0
        %v1489 = vsel %vm623, %v1230, 0
        %v1492 = vsel %vm623, %v1233, 0
        %v1495 = vsel %vm623, %v1236, 0
        %v1498 = vsel %vm623, %v1239, 0
        %v1501 = vsel %vm623, %v1242, 0
        %v1504 = vsel %vm623, %v1245, 0
        %v1507 = vsel %vm623, %v1248, 0
        %v1510 = vsel %vm623, %v1251, 0
        %v1513 = vsel %vm623, %v1254, 0
        %v1516 = vsel %vm623, %v1257, 0
        %v1519 = vsel %vm623, %v1260, 0
        %1521 = vmatpush.bf16.msra.mxu0 %v1415
        %1522 = vmatpush.bf16.msra.mxu0 %v1413
        %1523 = vmatpush.bf16.msra.mxu0 %v1411
        %1524 = vmatpush.bf16.msra.mxu0 %v1409
        %1525 = vmatpush.bf16.msra.mxu0 %v1407
        %1526 = vmatpush.bf16.msra.mxu0 %v1405
        %1527 = vmatpush.bf16.msra.mxu0 %v1403
        %1528 = vmatpush.bf16.msra.mxu0 %v1401
        %1529 = vmatmul.bf16.gmra.mxu0 %v1213
        %v1530 = vpop.f32.mrf.mxu0
        %v1531 = vadd.f32 %v1049, %v1530
        %v1532 = vpop.f32.mrf.mxu0
        %v1533 = vadd.f32 %v1049, %v1532
        %1534 = vmatmul.bf16.gmra.mxu0 %v1216
        %v1535 = vpop.f32.mrf.mxu0
        %v1536 = vadd.f32 %v1049, %v1535
        %v1537 = vpop.f32.mrf.mxu0
        %v1538 = vadd.f32 %v1049, %v1537
        %1539 = vmatmul.bf16.gmra.mxu0 %v1219
        %v1540 = vpop.f32.mrf.mxu0
        %v1541 = vadd.f32 %v1049, %v1540
        %v1542 = vpop.f32.mrf.mxu0
        %v1543 = vadd.f32 %v1049, %v1542
        %1544 = vmatmul.bf16.gmra.mxu0 %v1222
        %v1545 = vpop.f32.mrf.mxu0
        %v1546 = vadd.f32 %v1049, %v1545
        %v1547 = vpop.f32.mrf.mxu0
        %v1548 = vadd.f32 %v1049, %v1547
        %1549 = vmatmul.bf16.gmra.mxu0 %v1225
        %v1550 = vpop.f32.mrf.mxu0
        %v1551 = vadd.f32 %v1049, %v1550
        %v1552 = vpop.f32.mrf.mxu0
        %v1553 = vadd.f32 %v1049, %v1552
        %1554 = vmatmul.bf16.gmra.mxu0 %v1228
        %v1555 = vpop.f32.mrf.mxu0
        %v1556 = vadd.f32 %v1049, %v1555
        %v1557 = vpop.f32.mrf.mxu0
        %v1558 = vadd.f32 %v1049, %v1557
        %1559 = vmatmul.bf16.gmra.mxu0 %v1231
        %v1560 = vpop.f32.mrf.mxu0
        %v1561 = vadd.f32 %v1049, %v1560
        %v1562 = vpop.f32.mrf.mxu0
        %v1563 = vadd.f32 %v1049, %v1562
        %1564 = vmatmul.bf16.gmra.mxu0 %v1234
        %v1565 = vpop.f32.mrf.mxu0
        %v1566 = vadd.f32 %v1049, %v1565
        %v1567 = vpop.f32.mrf.mxu0
        %v1568 = vadd.f32 %v1049, %v1567
        %1569 = vmatmul.bf16.gmra.mxu0 %v1237
        %v1570 = vpop.f32.mrf.mxu0
        %v1571 = vadd.f32 %v1049, %v1570
        %v1572 = vpop.f32.mrf.mxu0
        %v1573 = vadd.f32 %v1049, %v1572
        %1574 = vmatmul.bf16.gmra.mxu0 %v1240
        %v1575 = vpop.f32.mrf.mxu0
        %v1576 = vadd.f32 %v1049, %v1575
        %v1577 = vpop.f32.mrf.mxu0
        %v1578 = vadd.f32 %v1049, %v1577
        %1579 = vmatmul.bf16.gmra.mxu0 %v1243
        %v1580 = vpop.f32.mrf.mxu0
        %v1581 = vadd.f32 %v1049, %v1580
        %v1582 = vpop.f32.mrf.mxu0
        %v1583 = vadd.f32 %v1049, %v1582
        %1584 = vmatmul.bf16.gmra.mxu0 %v1246
        %v1585 = vpop.f32.mrf.mxu0
        %v1586 = vadd.f32 %v1049, %v1585
        %v1587 = vpop.f32.mrf.mxu0
        %v1588 = vadd.f32 %v1049, %v1587
        %1589 = vmatmul.bf16.gmra.mxu0 %v1249
        %v1590 = vpop.f32.mrf.mxu0
        %v1591 = vadd.f32 %v1049, %v1590
        %v1592 = vpop.f32.mrf.mxu0
        %v1593 = vadd.f32 %v1049, %v1592
        %1594 = vmatmul.bf16.gmra.mxu0 %v1252
        %v1595 = vpop.f32.mrf.mxu0
        %v1596 = vadd.f32 %v1049, %v1595
        %v1597 = vpop.f32.mrf.mxu0
        %v1598 = vadd.f32 %v1049, %v1597
        %1599 = vmatmul.bf16.gmra.mxu0 %v1255
        %v1600 = vpop.f32.mrf.mxu0
        %v1601 = vadd.f32 %v1049, %v1600
        %v1602 = vpop.f32.mrf.mxu0
        %v1603 = vadd.f32 %v1049, %v1602
        %1604 = vmatmul.bf16.gmra.mxu0 %v1258
        %v1605 = vpop.f32.mrf.mxu0
        %v1606 = vadd.f32 %v1049, %v1605
        %v1607 = vpop.f32.mrf.mxu0
        %v1608 = vadd.f32 %v1049, %v1607
        %1609 = vdwg.mxu0
        %1610 = vmatpush.bf16.msra.mxu0 %v1431
        %1611 = vmatpush.bf16.msra.mxu0 %v1429
        %1612 = vmatpush.bf16.msra.mxu0 %v1427
        %1613 = vmatpush.bf16.msra.mxu0 %v1425
        %1614 = vmatpush.bf16.msra.mxu0 %v1423
        %1615 = vmatpush.bf16.msra.mxu0 %v1421
        %1616 = vmatpush.bf16.msra.mxu0 %v1419
        %1617 = vmatpush.bf16.msra.mxu0 %v1417
        %1618 = vmatmul.bf16.gmra.mxu0 %v1214
        %v1619 = vpop.f32.mrf.mxu0
        %v1620 = vadd.f32 %v1531, %v1619
        %v1621 = vpop.f32.mrf.mxu0
        %v1622 = vadd.f32 %v1533, %v1621
        %1623 = vmatmul.bf16.gmra.mxu0 %v1217
        %v1624 = vpop.f32.mrf.mxu0
        %v1625 = vadd.f32 %v1536, %v1624
        %v1626 = vpop.f32.mrf.mxu0
        %v1627 = vadd.f32 %v1538, %v1626
        %1628 = vmatmul.bf16.gmra.mxu0 %v1220
        %v1629 = vpop.f32.mrf.mxu0
        %v1630 = vadd.f32 %v1541, %v1629
        %v1631 = vpop.f32.mrf.mxu0
        %v1632 = vadd.f32 %v1543, %v1631
        %1633 = vmatmul.bf16.gmra.mxu0 %v1223
        %v1634 = vpop.f32.mrf.mxu0
        %v1635 = vadd.f32 %v1546, %v1634
        %v1636 = vpop.f32.mrf.mxu0
        %v1637 = vadd.f32 %v1548, %v1636
        %1638 = vmatmul.bf16.gmra.mxu0 %v1226
        %v1639 = vpop.f32.mrf.mxu0
        %v1640 = vadd.f32 %v1551, %v1639
        %v1641 = vpop.f32.mrf.mxu0
        %v1642 = vadd.f32 %v1553, %v1641
        %1643 = vmatmul.bf16.gmra.mxu0 %v1229
        %v1644 = vpop.f32.mrf.mxu0
        %v1645 = vadd.f32 %v1556, %v1644
        %v1646 = vpop.f32.mrf.mxu0
        %v1647 = vadd.f32 %v1558, %v1646
        %1648 = vmatmul.bf16.gmra.mxu0 %v1232
        %v1649 = vpop.f32.mrf.mxu0
        %v1650 = vadd.f32 %v1561, %v1649
        %v1651 = vpop.f32.mrf.mxu0
        %v1652 = vadd.f32 %v1563, %v1651
        %1653 = vmatmul.bf16.gmra.mxu0 %v1235
        %v1654 = vpop.f32.mrf.mxu0
        %v1655 = vadd.f32 %v1566, %v1654
        %v1656 = vpop.f32.mrf.mxu0
        %v1657 = vadd.f32 %v1568, %v1656
        %1658 = vmatmul.bf16.gmra.mxu0 %v1238
        %v1659 = vpop.f32.mrf.mxu0
        %v1660 = vadd.f32 %v1571, %v1659
        %v1661 = vpop.f32.mrf.mxu0
        %v1662 = vadd.f32 %v1573, %v1661
        %1663 = vmatmul.bf16.gmra.mxu0 %v1241
        %v1664 = vpop.f32.mrf.mxu0
        %v1665 = vadd.f32 %v1576, %v1664
        %v1666 = vpop.f32.mrf.mxu0
        %v1667 = vadd.f32 %v1578, %v1666
        %1668 = vmatmul.bf16.gmra.mxu0 %v1244
        %v1669 = vpop.f32.mrf.mxu0
        %v1670 = vadd.f32 %v1581, %v1669
        %v1671 = vpop.f32.mrf.mxu0
        %v1672 = vadd.f32 %v1583, %v1671
        %1673 = vmatmul.bf16.gmra.mxu0 %v1247
        %v1674 = vpop.f32.mrf.mxu0
        %v1675 = vadd.f32 %v1586, %v1674
        %v1676 = vpop.f32.mrf.mxu0
        %v1677 = vadd.f32 %v1588, %v1676
        %1678 = vmatmul.bf16.gmra.mxu0 %v1250
        %v1679 = vpop.f32.mrf.mxu0
        %v1680 = vadd.f32 %v1591, %v1679
        %v1681 = vpop.f32.mrf.mxu0
        %v1682 = vadd.f32 %v1593, %v1681
        %1683 = vmatmul.bf16.gmra.mxu0 %v1253
        %v1684 = vpop.f32.mrf.mxu0
        %v1685 = vadd.f32 %v1596, %v1684
        %v1686 = vpop.f32.mrf.mxu0
        %v1687 = vadd.f32 %v1598, %v1686
        %1688 = vmatmul.bf16.gmra.mxu0 %v1256
        %v1689 = vpop.f32.mrf.mxu0
        %v1690 = vadd.f32 %v1601, %v1689
        %v1691 = vpop.f32.mrf.mxu0
        %v1692 = vadd.f32 %v1603, %v1691
        %1693 = vmatmul.bf16.gmra.mxu0 %v1259
        %v1694 = vpop.f32.mrf.mxu0
        %v1695 = vadd.f32 %v1606, %v1694
        %v1696 = vpop.f32.mrf.mxu0
        %v1697 = vadd.f32 %v1608, %v1696
        %1698 = vdwg.mxu0
        %1699 = vmatpush.bf16.msra.mxu0 0
        %1700 = vmatpush.bf16.msra.mxu0 0
        %1701 = vmatpush.bf16.msra.mxu0 0
        %1702 = vmatpush.bf16.msra.mxu0 0
        %1703 = vmatpush.bf16.msra.mxu0 0
        %1704 = vmatpush.bf16.msra.mxu0 0
        %1705 = vmatpush.bf16.msra.mxu0 %v1435
        %1706 = vmatpush.bf16.msra.mxu0 %v1433
        %1707 = vmatmul.bf16.gmra.mxu0 %v1474
        %v1708 = vpop.f32.mrf.mxu0
        %v1709 = vadd.f32 %v1620, %v1708
        %v1710 = vpop.f32.mrf.mxu0
        %v1711 = vadd.f32 %v1622, %v1710
        %1712 = vmatmul.bf16.gmra.mxu0 %v1477
        %v1713 = vpop.f32.mrf.mxu0
        %v1714 = vadd.f32 %v1625, %v1713
        %v1715 = vpop.f32.mrf.mxu0
        %v1716 = vadd.f32 %v1627, %v1715
        %1717 = vmatmul.bf16.gmra.mxu0 %v1480
        %v1718 = vpop.f32.mrf.mxu0
        %v1719 = vadd.f32 %v1630, %v1718
        %v1720 = vpop.f32.mrf.mxu0
        %v1721 = vadd.f32 %v1632, %v1720
        %1722 = vmatmul.bf16.gmra.mxu0 %v1483
        %v1723 = vpop.f32.mrf.mxu0
        %v1724 = vadd.f32 %v1635, %v1723
        %v1725 = vpop.f32.mrf.mxu0
        %v1726 = vadd.f32 %v1637, %v1725
        %1727 = vmatmul.bf16.gmra.mxu0 %v1486
        %v1728 = vpop.f32.mrf.mxu0
        %v1729 = vadd.f32 %v1640, %v1728
        %v1730 = vpop.f32.mrf.mxu0
        %v1731 = vadd.f32 %v1642, %v1730
        %1732 = vmatmul.bf16.gmra.mxu0 %v1489
        %v1733 = vpop.f32.mrf.mxu0
        %v1734 = vadd.f32 %v1645, %v1733
        %v1735 = vpop.f32.mrf.mxu0
        %v1736 = vadd.f32 %v1647, %v1735
        %1737 = vmatmul.bf16.gmra.mxu0 %v1492
        %v1738 = vpop.f32.mrf.mxu0
        %v1739 = vadd.f32 %v1650, %v1738
        %v1740 = vpop.f32.mrf.mxu0
        %v1741 = vadd.f32 %v1652, %v1740
        %1742 = vmatmul.bf16.gmra.mxu0 %v1495
        %v1743 = vpop.f32.mrf.mxu0
        %v1744 = vadd.f32 %v1655, %v1743
        %v1745 = vpop.f32.mrf.mxu0
        %v1746 = vadd.f32 %v1657, %v1745
        %1747 = vmatmul.bf16.gmra.mxu0 %v1498
        %v1748 = vpop.f32.mrf.mxu0
        %v1749 = vadd.f32 %v1660, %v1748
        %v1750 = vpop.f32.mrf.mxu0
        %v1751 = vadd.f32 %v1662, %v1750
        %1752 = vmatmul.bf16.gmra.mxu0 %v1501
        %v1753 = vpop.f32.mrf.mxu0
        %v1754 = vadd.f32 %v1665, %v1753
        %v1755 = vpop.f32.mrf.mxu0
        %v1756 = vadd.f32 %v1667, %v1755
        %1757 = vmatmul.bf16.gmra.mxu0 %v1504
        %v1758 = vpop.f32.mrf.mxu0
        %v1759 = vadd.f32 %v1670, %v1758
        %v1760 = vpop.f32.mrf.mxu0
        %v1761 = vadd.f32 %v1672, %v1760
        %1762 = vmatmul.bf16.gmra.mxu0 %v1507
        %v1763 = vpop.f32.mrf.mxu0
        %v1764 = vadd.f32 %v1675, %v1763
        %v1765 = vpop.f32.mrf.mxu0
        %v1766 = vadd.f32 %v1677, %v1765
        %1767 = vmatmul.bf16.gmra.mxu0 %v1510
        %v1768 = vpop.f32.mrf.mxu0
        %v1769 = vadd.f32 %v1680, %v1768
        %v1770 = vpop.f32.mrf.mxu0
        %v1771 = vadd.f32 %v1682, %v1770
        %1772 = vmatmul.bf16.gmra.mxu0 %v1513
        %v1773 = vpop.f32.mrf.mxu0
        %v1774 = vadd.f32 %v1685, %v1773
        %v1775 = vpop.f32.mrf.mxu0
        %v1776 = vadd.f32 %v1687, %v1775
        %1777 = vmatmul.bf16.gmra.mxu0 %v1516
        %v1778 = vpop.f32.mrf.mxu0
        %v1779 = vadd.f32 %v1690, %v1778
        %v1780 = vpop.f32.mrf.mxu0
        %v1781 = vadd.f32 %v1692, %v1780
        %1782 = vmatmul.bf16.gmra.mxu0 %v1519
        %v1783 = vpop.f32.mrf.mxu0
        %v1784 = vadd.f32 %v1695, %v1783
        %v1785 = vpop.f32.mrf.mxu0
        %v1786 = vadd.f32 %v1697, %v1785
        %1787 = vdwg.mxu0
        %1788 = vmatpush.bf16.msra.mxu0 %v1416
        %1789 = vmatpush.bf16.msra.mxu0 %v1414
        %1790 = vmatpush.bf16.msra.mxu0 %v1412
        %1791 = vmatpush.bf16.msra.mxu0 %v1410
        %1792 = vmatpush.bf16.msra.mxu0 %v1408
        %1793 = vmatpush.bf16.msra.mxu0 %v1406
        %1794 = vmatpush.bf16.msra.mxu0 %v1404
        %1795 = vmatpush.bf16.msra.mxu0 %v1402
        %1796 = vmatmul.bf16.gmra.mxu0 %v1213
        %v1797 = vpop.f32.mrf.mxu0
        %v1798 = vadd.f32 %v1050, %v1797
        %v1799 = vpop.f32.mrf.mxu0
        %v1800 = vadd.f32 %v1050, %v1799
        %1801 = vmatmul.bf16.gmra.mxu0 %v1216
        %v1802 = vpop.f32.mrf.mxu0
        %v1803 = vadd.f32 %v1050, %v1802
        %v1804 = vpop.f32.mrf.mxu0
        %v1805 = vadd.f32 %v1050, %v1804
        %1806 = vmatmul.bf16.gmra.mxu0 %v1219
        %v1807 = vpop.f32.mrf.mxu0
        %v1808 = vadd.f32 %v1050, %v1807
        %v1809 = vpop.f32.mrf.mxu0
        %v1810 = vadd.f32 %v1050, %v1809
        %1811 = vmatmul.bf16.gmra.mxu0 %v1222
        %v1812 = vpop.f32.mrf.mxu0
        %v1813 = vadd.f32 %v1050, %v1812
        %v1814 = vpop.f32.mrf.mxu0
        %v1815 = vadd.f32 %v1050, %v1814
        %1816 = vmatmul.bf16.gmra.mxu0 %v1225
        %v1817 = vpop.f32.mrf.mxu0
        %v1818 = vadd.f32 %v1050, %v1817
        %v1819 = vpop.f32.mrf.mxu0
        %v1820 = vadd.f32 %v1050, %v1819
        %1821 = vmatmul.bf16.gmra.mxu0 %v1228
        %v1822 = vpop.f32.mrf.mxu0
        %v1823 = vadd.f32 %v1050, %v1822
        %v1824 = vpop.f32.mrf.mxu0
        %v1825 = vadd.f32 %v1050, %v1824
        %1826 = vmatmul.bf16.gmra.mxu0 %v1231
        %v1827 = vpop.f32.mrf.mxu0
        %v1828 = vadd.f32 %v1050, %v1827
        %v1829 = vpop.f32.mrf.mxu0
        %v1830 = vadd.f32 %v1050, %v1829
        %1831 = vmatmul.bf16.gmra.mxu0 %v1234
        %v1832 = vpop.f32.mrf.mxu0
        %v1833 = vadd.f32 %v1050, %v1832
        %v1834 = vpop.f32.mrf.mxu0
        %v1835 = vadd.f32 %v1050, %v1834
        %1836 = vmatmul.bf16.gmra.mxu0 %v1237
        %v1837 = vpop.f32.mrf.mxu0
        %v1838 = vadd.f32 %v1050, %v1837
        %v1839 = vpop.f32.mrf.mxu0
        %v1840 = vadd.f32 %v1050, %v1839
        %1841 = vmatmul.bf16.gmra.mxu0 %v1240
        %v1842 = vpop.f32.mrf.mxu0
        %v1843 = vadd.f32 %v1050, %v1842
        %v1844 = vpop.f32.mrf.mxu0
        %v1845 = vadd.f32 %v1050, %v1844
        %1846 = vmatmul.bf16.gmra.mxu0 %v1243
        %v1847 = vpop.f32.mrf.mxu0
        %v1848 = vadd.f32 %v1050, %v1847
        %v1849 = vpop.f32.mrf.mxu0
        %v1850 = vadd.f32 %v1050, %v1849
        %1851 = vmatmul.bf16.gmra.mxu0 %v1246
        %v1852 = vpop.f32.mrf.mxu0
        %v1853 = vadd.f32 %v1050, %v1852
        %v1854 = vpop.f32.mrf.mxu0
        %v1855 = vadd.f32 %v1050, %v1854
        %1856 = vmatmul.bf16.gmra.mxu0 %v1249
        %v1857 = vpop.f32.mrf.mxu0
        %v1858 = vadd.f32 %v1050, %v1857
        %v1859 = vpop.f32.mrf.mxu0
        %v1860 = vadd.f32 %v1050, %v1859
        %1861 = vmatmul.bf16.gmra.mxu0 %v1252
        %v1862 = vpop.f32.mrf.mxu0
        %v1863 = vadd.f32 %v1050, %v1862
        %v1864 = vpop.f32.mrf.mxu0
        %v1865 = vadd.f32 %v1050, %v1864
        %1866 = vmatmul.bf16.gmra.mxu0 %v1255
        %v1867 = vpop.f32.mrf.mxu0
        %v1868 = vadd.f32 %v1050, %v1867
        %v1869 = vpop.f32.mrf.mxu0
        %v1870 = vadd.f32 %v1050, %v1869
        %1871 = vmatmul.bf16.gmra.mxu0 %v1258
        %v1872 = vpop.f32.mrf.mxu0
        %v1873 = vadd.f32 %v1050, %v1872
        %v1874 = vpop.f32.mrf.mxu0
        %v1875 = vadd.f32 %v1050, %v1874
        %1876 = vdwg.mxu0
        %1877 = vmatpush.bf16.msra.mxu0 %v1432
        %1878 = vmatpush.bf16.msra.mxu0 %v1430
        %1879 = vmatpush.bf16.msra.mxu0 %v1428
        %1880 = vmatpush.bf16.msra.mxu0 %v1426
        %1881 = vmatpush.bf16.msra.mxu0 %v1424
        %1882 = vmatpush.bf16.msra.mxu0 %v1422
        %1883 = vmatpush.bf16.msra.mxu0 %v1420
        %1884 = vmatpush.bf16.msra.mxu0 %v1418
        %1885 = vmatmul.bf16.gmra.mxu0 %v1214
        %v1886 = vpop.f32.mrf.mxu0
        %v1887 = vadd.f32 %v1798, %v1886
        %v1888 = vpop.f32.mrf.mxu0
        %v1889 = vadd.f32 %v1800, %v1888
        %1890 = vmatmul.bf16.gmra.mxu0 %v1217
        %v1891 = vpop.f32.mrf.mxu0
        %v1892 = vadd.f32 %v1803, %v1891
        %v1893 = vpop.f32.mrf.mxu0
        %v1894 = vadd.f32 %v1805, %v1893
        %1895 = vmatmul.bf16.gmra.mxu0 %v1220
        %v1896 = vpop.f32.mrf.mxu0
        %v1897 = vadd.f32 %v1808, %v1896
        %v1898 = vpop.f32.mrf.mxu0
        %v1899 = vadd.f32 %v1810, %v1898
        %1900 = vmatmul.bf16.gmra.mxu0 %v1223
        %v1901 = vpop.f32.mrf.mxu0
        %v1902 = vadd.f32 %v1813, %v1901
        %v1903 = vpop.f32.mrf.mxu0
        %v1904 = vadd.f32 %v1815, %v1903
        %1905 = vmatmul.bf16.gmra.mxu0 %v1226
        %v1906 = vpop.f32.mrf.mxu0
        %v1907 = vadd.f32 %v1818, %v1906
        %v1908 = vpop.f32.mrf.mxu0
        %v1909 = vadd.f32 %v1820, %v1908
        %1910 = vmatmul.bf16.gmra.mxu0 %v1229
        %v1911 = vpop.f32.mrf.mxu0
        %v1912 = vadd.f32 %v1823, %v1911
        %v1913 = vpop.f32.mrf.mxu0
        %v1914 = vadd.f32 %v1825, %v1913
        %1915 = vmatmul.bf16.gmra.mxu0 %v1232
        %v1916 = vpop.f32.mrf.mxu0
        %v1917 = vadd.f32 %v1828, %v1916
        %v1918 = vpop.f32.mrf.mxu0
        %v1919 = vadd.f32 %v1830, %v1918
        %1920 = vmatmul.bf16.gmra.mxu0 %v1235
        %v1921 = vpop.f32.mrf.mxu0
        %v1922 = vadd.f32 %v1833, %v1921
        %v1923 = vpop.f32.mrf.mxu0
        %v1924 = vadd.f32 %v1835, %v1923
        %1925 = vmatmul.bf16.gmra.mxu0 %v1238
        %v1926 = vpop.f32.mrf.mxu0
        %v1927 = vadd.f32 %v1838, %v1926
        %v1928 = vpop.f32.mrf.mxu0
        %v1929 = vadd.f32 %v1840, %v1928
        %1930 = vmatmul.bf16.gmra.mxu0 %v1241
        %v1931 = vpop.f32.mrf.mxu0
        %v1932 = vadd.f32 %v1843, %v1931
        %v1933 = vpop.f32.mrf.mxu0
        %v1934 = vadd.f32 %v1845, %v1933
        %1935 = vmatmul.bf16.gmra.mxu0 %v1244
        %v1936 = vpop.f32.mrf.mxu0
        %v1937 = vadd.f32 %v1848, %v1936
        %v1938 = vpop.f32.mrf.mxu0
        %v1939 = vadd.f32 %v1850, %v1938
        %1940 = vmatmul.bf16.gmra.mxu0 %v1247
        %v1941 = vpop.f32.mrf.mxu0
        %v1942 = vadd.f32 %v1853, %v1941
        %v1943 = vpop.f32.mrf.mxu0
        %v1944 = vadd.f32 %v1855, %v1943
        %1945 = vmatmul.bf16.gmra.mxu0 %v1250
        %v1946 = vpop.f32.mrf.mxu0
        %v1947 = vadd.f32 %v1858, %v1946
        %v1948 = vpop.f32.mrf.mxu0
        %v1949 = vadd.f32 %v1860, %v1948
        %1950 = vmatmul.bf16.gmra.mxu0 %v1253
        %v1951 = vpop.f32.mrf.mxu0
        %v1952 = vadd.f32 %v1863, %v1951
        %v1953 = vpop.f32.mrf.mxu0
        %v1954 = vadd.f32 %v1865, %v1953
        %1955 = vmatmul.bf16.gmra.mxu0 %v1256
        %v1956 = vpop.f32.mrf.mxu0
        %v1957 = vadd.f32 %v1868, %v1956
        %v1958 = vpop.f32.mrf.mxu0
        %v1959 = vadd.f32 %v1870, %v1958
        %1960 = vmatmul.bf16.gmra.mxu0 %v1259
        %v1961 = vpop.f32.mrf.mxu0
        %v1962 = vadd.f32 %v1873, %v1961
        %v1963 = vpop.f32.mrf.mxu0
        %v1964 = vadd.f32 %v1875, %v1963
        %1965 = vdwg.mxu0
        %1966 = vmatpush.bf16.msra.mxu0 0
        %1967 = vmatpush.bf16.msra.mxu0 0
        %1968 = vmatpush.bf16.msra.mxu0 0
        %1969 = vmatpush.bf16.msra.mxu0 0
        %1970 = vmatpush.bf16.msra.mxu0 0
        %1971 = vmatpush.bf16.msra.mxu0 0
        %1972 = vmatpush.bf16.msra.mxu0 %v1436
        %1973 = vmatpush.bf16.msra.mxu0 %v1434
        %1974 = vmatmul.bf16.gmra.mxu0 %v1474
        %v1975 = vpop.f32.mrf.mxu0
        %v1976 = vadd.f32 %v1887, %v1975
        %v1977 = vpop.f32.mrf.mxu0
        %v1978 = vadd.f32 %v1889, %v1977
        %1979 = vmatmul.bf16.gmra.mxu0 %v1477
        %v1980 = vpop.f32.mrf.mxu0
        %v1981 = vadd.f32 %v1892, %v1980
        %v1982 = vpop.f32.mrf.mxu0
        %v1983 = vadd.f32 %v1894, %v1982
        %1984 = vmatmul.bf16.gmra.mxu0 %v1480
        %v1985 = vpop.f32.mrf.mxu0
        %v1986 = vadd.f32 %v1897, %v1985
        %v1987 = vpop.f32.mrf.mxu0
        %v1988 = vadd.f32 %v1899, %v1987
        %1989 = vmatmul.bf16.gmra.mxu0 %v1483
        %v1990 = vpop.f32.mrf.mxu0
        %v1991 = vadd.f32 %v1902, %v1990
        %v1992 = vpop.f32.mrf.mxu0
        %v1993 = vadd.f32 %v1904, %v1992
        %1994 = vmatmul.bf16.gmra.mxu0 %v1486
        %v1995 = vpop.f32.mrf.mxu0
        %v1996 = vadd.f32 %v1907, %v1995
        %v1997 = vpop.f32.mrf.mxu0
        %v1998 = vadd.f32 %v1909, %v1997
        %1999 = vmatmul.bf16.gmra.mxu0 %v1489
        %v2000 = vpop.f32.mrf.mxu0
        %v2001 = vadd.f32 %v1912, %v2000
        %v2002 = vpop.f32.mrf.mxu0
        %v2003 = vadd.f32 %v1914, %v2002
        %2004 = vmatmul.bf16.gmra.mxu0 %v1492
        %v2005 = vpop.f32.mrf.mxu0
        %v2006 = vadd.f32 %v1917, %v2005
        %v2007 = vpop.f32.mrf.mxu0
        %v2008 = vadd.f32 %v1919, %v2007
        %2009 = vmatmul.bf16.gmra.mxu0 %v1495
        %v2010 = vpop.f32.mrf.mxu0
        %v2011 = vadd.f32 %v1922, %v2010
        %v2012 = vpop.f32.mrf.mxu0
        %v2013 = vadd.f32 %v1924, %v2012
        %2014 = vmatmul.bf16.gmra.mxu0 %v1498
        %v2015 = vpop.f32.mrf.mxu0
        %v2016 = vadd.f32 %v1927, %v2015
        %v2017 = vpop.f32.mrf.mxu0
        %v2018 = vadd.f32 %v1929, %v2017
        %2019 = vmatmul.bf16.gmra.mxu0 %v1501
        %v2020 = vpop.f32.mrf.mxu0
        %v2021 = vadd.f32 %v1932, %v2020
        %v2022 = vpop.f32.mrf.mxu0
        %v2023 = vadd.f32 %v1934, %v2022
        %2024 = vmatmul.bf16.gmra.mxu0 %v1504
        %v2025 = vpop.f32.mrf.mxu0
        %v2026 = vadd.f32 %v1937, %v2025
        %v2027 = vpop.f32.mrf.mxu0
        %v2028 = vadd.f32 %v1939, %v2027
        %2029 = vmatmul.bf16.gmra.mxu0 %v1507
        %v2030 = vpop.f32.mrf.mxu0
        %v2031 = vadd.f32 %v1942, %v2030
        %v2032 = vpop.f32.mrf.mxu0
        %v2033 = vadd.f32 %v1944, %v2032
        %2034 = vmatmul.bf16.gmra.mxu0 %v1510
        %v2035 = vpop.f32.mrf.mxu0
        %v2036 = vadd.f32 %v1947, %v2035
        %v2037 = vpop.f32.mrf.mxu0
        %v2038 = vadd.f32 %v1949, %v2037
        %2039 = vmatmul.bf16.gmra.mxu0 %v1513
        %v2040 = vpop.f32.mrf.mxu0
        %v2041 = vadd.f32 %v1952, %v2040
        %v2042 = vpop.f32.mrf.mxu0
        %v2043 = vadd.f32 %v1954, %v2042
        %2044 = vmatmul.bf16.gmra.mxu0 %v1516
        %v2045 = vpop.f32.mrf.mxu0
        %v2046 = vadd.f32 %v1957, %v2045
        %v2047 = vpop.f32.mrf.mxu0
        %v2048 = vadd.f32 %v1959, %v2047
        %2049 = vmatmul.bf16.gmra.mxu0 %v1519
        %v2050 = vpop.f32.mrf.mxu0
        %v2051 = vadd.f32 %v1962, %v2050
        %v2052 = vpop.f32.mrf.mxu0
        %v2053 = vadd.f32 %v1964, %v2052
        %2054 = vdwg.mxu0
        %v2055 = vmax.f32 %v1709, 0.0
        %v2056 = vmax.f32 %v1976, 0.0
        %v2057 = vmax.f32 %v1711, 0.0
        %v2058 = vmax.f32 %v1978, 0.0
        %v2059 = vmax.f32 %v1714, 0.0
        %v2060 = vmax.f32 %v1981, 0.0
        %v2061 = vmax.f32 %v1716, 0.0
        %v2062 = vmax.f32 %v1983, 0.0
        %v2063 = vmax.f32 %v1719, 0.0
        %v2064 = vmax.f32 %v1986, 0.0
        %v2065 = vmax.f32 %v1721, 0.0
        %v2066 = vmax.f32 %v1988, 0.0
        %v2067 = vmax.f32 %v1724, 0.0
        %v2068 = vmax.f32 %v1991, 0.0
        %v2069 = vmax.f32 %v1726, 0.0
        %v2070 = vmax.f32 %v1993, 0.0
        %v2071 = vmax.f32 %v1729, 0.0
        %v2072 = vmax.f32 %v1996, 0.0
        %v2073 = vmax.f32 %v1731, 0.0
        %v2074 = vmax.f32 %v1998, 0.0
        %v2075 = vmax.f32 %v1734, 0.0
        %v2076 = vmax.f32 %v2001, 0.0
        %v2077 = vmax.f32 %v1736, 0.0
        %v2078 = vmax.f32 %v2003, 0.0
        %v2079 = vmax.f32 %v1739, 0.0
        %v2080 = vmax.f32 %v2006, 0.0
        %v2081 = vmax.f32 %v1741, 0.0
        %v2082 = vmax.f32 %v2008, 0.0
        %v2083 = vmax.f32 %v1744, 0.0
        %v2084 = vmax.f32 %v2011, 0.0
        %v2085 = vmax.f32 %v1746, 0.0
        %v2086 = vmax.f32 %v2013, 0.0
        %v2087 = vmax.f32 %v1749, 0.0
        %v2088 = vmax.f32 %v2016, 0.0
        %v2089 = vmax.f32 %v1751, 0.0
        %v2090 = vmax.f32 %v2018, 0.0
        %v2091 = vmax.f32 %v1754, 0.0
        %v2092 = vmax.f32 %v2021, 0.0
        %v2093 = vmax.f32 %v1756, 0.0
        %v2094 = vmax.f32 %v2023, 0.0
        %v2095 = vmax.f32 %v1759, 0.0
        %v2096 = vmax.f32 %v2026, 0.0
        %v2097 = vmax.f32 %v1761, 0.0
        %v2098 = vmax.f32 %v2028, 0.0
        %v2099 = vmax.f32 %v1764, 0.0
        %v2100 = vmax.f32 %v2031, 0.0
        %v2101 = vmax.f32 %v1766, 0.0
        %v2102 = vmax.f32 %v2033, 0.0
        %v2103 = vmax.f32 %v1769, 0.0
        %v2104 = vmax.f32 %v2036, 0.0
        %v2105 = vmax.f32 %v1771, 0.0
        %v2106 = vmax.f32 %v2038, 0.0
        %v2107 = vmax.f32 %v1774, 0.0
        %v2108 = vmax.f32 %v2041, 0.0
        %v2109 = vmax.f32 %v1776, 0.0
        %v2110 = vmax.f32 %v2043, 0.0
        %v2111 = vmax.f32 %v1779, 0.0
        %v2112 = vmax.f32 %v2046, 0.0
        %v2113 = vmax.f32 %v1781, 0.0
        %v2114 = vmax.f32 %v2048, 0.0
        %v2115 = vmax.f32 %v1784, 0.0
        %v2116 = vmax.f32 %v2051, 0.0
        %v2117 = vmax.f32 %v1786, 0.0
        %v2118 = vmax.f32 %v2053, 0.0
        %v2119 = vpack.c.bf16 %v2056, %v2055
        %v2120 = vpack.c.bf16 %v2058, %v2057
        %v2121 = vpack.c.bf16 %v2060, %v2059
        %v2122 = vpack.c.bf16 %v2062, %v2061
        %v2123 = vpack.c.bf16 %v2064, %v2063
        %v2124 = vpack.c.bf16 %v2066, %v2065
        %v2125 = vpack.c.bf16 %v2068, %v2067
        %v2126 = vpack.c.bf16 %v2070, %v2069
        %v2127 = vpack.c.bf16 %v2072, %v2071
        %v2128 = vpack.c.bf16 %v2074, %v2073
        %v2129 = vpack.c.bf16 %v2076, %v2075
        %v2130 = vpack.c.bf16 %v2078, %v2077
        %v2131 = vpack.c.bf16 %v2080, %v2079
        %v2132 = vpack.c.bf16 %v2082, %v2081
        %v2133 = vpack.c.bf16 %v2084, %v2083
        %v2134 = vpack.c.bf16 %v2086, %v2085
        %v2135 = vpack.c.bf16 %v2088, %v2087
        %v2136 = vpack.c.bf16 %v2090, %v2089
        %v2137 = vpack.c.bf16 %v2092, %v2091
        %v2138 = vpack.c.bf16 %v2094, %v2093
        %v2139 = vpack.c.bf16 %v2096, %v2095
        %v2140 = vpack.c.bf16 %v2098, %v2097
        %v2141 = vpack.c.bf16 %v2100, %v2099
        %v2142 = vpack.c.bf16 %v2102, %v2101
        %v2143 = vpack.c.bf16 %v2104, %v2103
        %v2144 = vpack.c.bf16 %v2106, %v2105
        %v2145 = vpack.c.bf16 %v2108, %v2107
        %v2146 = vpack.c.bf16 %v2110, %v2109
        %v2147 = vpack.c.bf16 %v2112, %v2111
        %v2148 = vpack.c.bf16 %v2114, %v2113
        %v2149 = vpack.c.bf16 %v2116, %v2115
        %v2150 = vpack.c.bf16 %v2118, %v2117
        %v2151 = vld [vmem:[%s466] sm:$0xff]
        %v2152 = vld [vmem:[%s466 + $0x8] sm:$0xf]
        %v2153 = vld [vmem:[%s466 + $0xc] sm:$0xff]
        %v2154 = vld [vmem:[%s466 + $0x14] sm:$0xf]
        %v2155 = vld [vmem:[%s466 + $0x18] sm:$0xff]
        %v2156 = vld [vmem:[%s466 + $0x20] sm:$0xf]
        %v2157 = vld [vmem:[%s466 + $0x24] sm:$0xff]
        %v2158 = vld [vmem:[%s466 + $0x2c] sm:$0xf]
        %v2159 = vld [vmem:[%s466 + $0x30] sm:$0xff]
        %v2160 = vld [vmem:[%s466 + $0x38] sm:$0xf]
        %v2161 = vld [vmem:[%s466 + $0x3c] sm:$0xff]
        %v2162 = vld [vmem:[%s466 + $0x44] sm:$0xf]
        %v2163 = vld [vmem:[%s466 + $0x48] sm:$0xff]
        %v2164 = vld [vmem:[%s466 + $0x50] sm:$0xf]
        %v2165 = vld [vmem:[%s466 + $0x54] sm:$0xff]
        %v2166 = vld [vmem:[%s466 + $0x5c] sm:$0xf]
        %v2167 = vld [vmem:[%s466 + $0x60] sm:$0xff]
        %v2168 = vld [vmem:[%s466 + $0x68] sm:$0xf]
        %v2169 = vld [vmem:[%s466 + $0x6c] sm:$0xff]
        %v2170 = vld [vmem:[%s466 + $0x74] sm:$0xf]
        %v2171 = vld [vmem:[%s466 + $0x78] sm:$0xff]
        %v2172 = vld [vmem:[%s466 + $0x80] sm:$0xf]
        %v2173 = vld [vmem:[%s466 + $0x84] sm:$0xff]
        %v2174 = vld [vmem:[%s466 + $0x8c] sm:$0xf]
        %v2175 = vld [vmem:[%s466 + $0x90] sm:$0xff]
        %v2176 = vld [vmem:[%s466 + $0x98] sm:$0xf]
        %v2177 = vld [vmem:[%s466 + $0x9c] sm:$0xff]
        %v2178 = vld [vmem:[%s466 + $0xa4] sm:$0xf]
        %v2179 = vld [vmem:[%s466 + $0xa8] sm:$0xff]
        %v2180 = vld [vmem:[%s466 + $0xb0] sm:$0xf]
        %v2181 = vld [vmem:[%s466 + $0xb4] sm:$0xff]
        %v2182 = vld [vmem:[%s466 + $0xbc] sm:$0xf]
        %v2183 = vld [vmem:[%s466 + $0xc0] sm:$0xff]
        %v2184 = vld [vmem:[%s466 + $0xc8] sm:$0xf]
        %v2185 = vld [vmem:[%s466 + $0xcc] sm:$0xff]
        %v2186 = vld [vmem:[%s466 + $0xd4] sm:$0xf]
        %v2187 = vld [vmem:[%s466 + $0xd8] sm:$0xff]
        %v2188 = vld [vmem:[%s466 + $0xe0] sm:$0xf]
        %v2189 = vld [vmem:[%s466 + $0xe4] sm:$0xff]
        %v2190 = vld [vmem:[%s466 + $0xec] sm:$0xf]
        %v2191 = vld [vmem:[%s466 + $0xf0] sm:$0xff]
        %v2192 = vld [vmem:[%s466 + $0xf8] sm:$0xf]
        %v2193 = vld [vmem:[%s466 + $0xfc] sm:$0xff]
        %v2194 = vld [vmem:[%s466 + $0x104] sm:$0xf]
        %v2195 = vld [vmem:[%s466 + $0x108] sm:$0xff]
        %v2196 = vld [vmem:[%s466 + $0x110] sm:$0xf]
        %v2197 = vld [vmem:[%s466 + $0x114] sm:$0xff]
        %v2198 = vld [vmem:[%s466 + $0x11c] sm:$0xf]
        %v2199 = vld [vmem:[%s466 + $0x120] sm:$0xff]
        %v2200 = vld [vmem:[%s466 + $0x128] sm:$0xf]
        %v2201 = vld [vmem:[%s466 + $0x12c] sm:$0xff]
        %v2202 = vld [vmem:[%s466 + $0x134] sm:$0xf]
        %v2203 = vld [vmem:[%s466 + $0x138] sm:$0xff]
        %v2204 = vld [vmem:[%s466 + $0x140] sm:$0xf]
        %v2205 = vld [vmem:[%s466 + $0x144] sm:$0xff]
        %v2206 = vld [vmem:[%s466 + $0x14c] sm:$0xf]
        %v2207 = vld [vmem:[%s466 + $0x150] sm:$0xff]
        %v2208 = vld [vmem:[%s466 + $0x158] sm:$0xf]
        %v2209 = vld [vmem:[%s466 + $0x15c] sm:$0xff]
        %v2210 = vld [vmem:[%s466 + $0x164] sm:$0xf]
        %v2211 = vld [vmem:[%s466 + $0x168] sm:$0xff]
        %v2212 = vld [vmem:[%s466 + $0x170] sm:$0xf]
        %v2213 = vld [vmem:[%s466 + $0x174] sm:$0xff]
        %v2214 = vld [vmem:[%s466 + $0x17c] sm:$0xf]
        %v2215 = vld [vmem:[%s6] sm:$0xff]
        %v2216 = vld [vmem:[%s6 + $0x8] sm:$0xff]
        %v2217 = vld [vmem:[%s6 + $0x10] sm:$0xff]
        %v2218 = vld [vmem:[%s6 + $0x18] sm:$0xff]
        %v2219 = vld [vmem:[%s6 + $0x20] sm:$0xff]
        %v2220 = vld [vmem:[%s6 + $0x28] sm:$0xff]
        %v2221 = vld [vmem:[%s6 + $0x30] sm:$0xff]
        %v2222 = vld [vmem:[%s6 + $0x38] sm:$0xff]
        %v2223 = vld [vmem:[%s6 + $0x40] sm:$0xff]
        %v2224 = vld [vmem:[%s6 + $0x48] sm:$0xff]
        %v2225 = vld [vmem:[%s6 + $0x50] sm:$0xff]
        %v2226 = vld [vmem:[%s6 + $0x58] sm:$0xff]
        %v2227 = vld [vmem:[%s6 + $0x60] sm:$0xff]
        %v2228 = vld [vmem:[%s6 + $0x68] sm:$0xff]
        %v2229 = vld [vmem:[%s6 + $0x70] sm:$0xff]
        %v2230 = vld [vmem:[%s6 + $0x78] sm:$0xff]
        %v2231 = vld [vmem:[%s6 + $0x80] sm:$0xff]
        %v2232 = vld [vmem:[%s6 + $0x88] sm:$0xff]
        %v2233 = vld [vmem:[%s6 + $0x90] sm:$0xff]
        %v2234 = vld [vmem:[%s6 + $0x98] sm:$0xff]
        %v2235 = vld [vmem:[%s6 + $0xa0] sm:$0xff]
        %v2236 = vld [vmem:[%s6 + $0xa8] sm:$0xff]
        %v2237 = vld [vmem:[%s6 + $0xb0] sm:$0xff]
        %v2238 = vld [vmem:[%s6 + $0xb8] sm:$0xff]
        %v2239 = vld [vmem:[%s6 + $0xc0] sm:$0xff]
        %v2240 = vld [vmem:[%s6 + $0xc8] sm:$0xff]
        %v2241 = vld [vmem:[%s6 + $0xd0] sm:$0xff]
        %v2242 = vld [vmem:[%s6 + $0xd8] sm:$0xff]
        %v2243 = vld [vmem:[%s6 + $0xe0] sm:$0xff]
        %v2244 = vld [vmem:[%s6 + $0xe8] sm:$0xff]
        %v2245 = vld [vmem:[%s6 + $0xf0] sm:$0xff]
        %v2246 = vld [vmem:[%s6 + $0xf8] sm:$0xff]
        %v2247 = vld [vmem:[%s6 + $0x100] sm:$0xff]
        %v2248 = vld [vmem:[%s6 + $0x108] sm:$0xff]
        %v2249 = vld [vmem:[%s6 + $0x110] sm:$0xff]
        %v2250 = vld [vmem:[%s6 + $0x118] sm:$0xff]
        %s2251 = scalar_lea.vmem %s8, 2
        %v2252 = vld [vmem:[%s2251] ss:$4 sm:$0x3]
        %v2254 = vperm.slane %v2252, 0
        %v2255 = vperm.slane %v2252, 1
        %v2322 = vunpack.c.l.b16 %v2151
        %v2323 = vunpack.c.h.b16 %v2151
        %v2324 = vunpack.c.l.b16 %v2152
        %v2325 = vunpack.c.l.b16 %v2153
        %v2326 = vunpack.c.h.b16 %v2153
        %v2327 = vunpack.c.l.b16 %v2154
        %v2328 = vunpack.c.l.b16 %v2155
        %v2329 = vunpack.c.h.b16 %v2155
        %v2330 = vunpack.c.l.b16 %v2156
        %v2331 = vunpack.c.l.b16 %v2157
        %v2332 = vunpack.c.h.b16 %v2157
        %v2333 = vunpack.c.l.b16 %v2158
        %v2334 = vunpack.c.l.b16 %v2159
        %v2335 = vunpack.c.h.b16 %v2159
        %v2336 = vunpack.c.l.b16 %v2160
        %v2337 = vunpack.c.l.b16 %v2161
        %v2338 = vunpack.c.h.b16 %v2161
        %v2339 = vunpack.c.l.b16 %v2162
        %v2340 = vunpack.c.l.b16 %v2163
        %v2341 = vunpack.c.h.b16 %v2163
        %v2342 = vunpack.c.l.b16 %v2164
        %v2343 = vunpack.c.l.b16 %v2165
        %v2344 = vunpack.c.h.b16 %v2165
        %v2345 = vunpack.c.l.b16 %v2166
        %v2346 = vunpack.c.l.b16 %v2167
        %v2347 = vunpack.c.h.b16 %v2167
        %v2348 = vunpack.c.l.b16 %v2168
        %v2349 = vunpack.c.l.b16 %v2169
        %v2350 = vunpack.c.h.b16 %v2169
        %v2351 = vunpack.c.l.b16 %v2170
        %v2352 = vunpack.c.l.b16 %v2171
        %v2353 = vunpack.c.h.b16 %v2171
        %v2354 = vunpack.c.l.b16 %v2172
        %v2355 = vunpack.c.l.b16 %v2173
        %v2356 = vunpack.c.h.b16 %v2173
        %v2357 = vunpack.c.l.b16 %v2174
        %v2358 = vunpack.c.l.b16 %v2175
        %v2359 = vunpack.c.h.b16 %v2175
        %v2360 = vunpack.c.l.b16 %v2176
        %v2361 = vunpack.c.l.b16 %v2177
        %v2362 = vunpack.c.h.b16 %v2177
        %v2363 = vunpack.c.l.b16 %v2178
        %v2364 = vunpack.c.l.b16 %v2179
        %v2365 = vunpack.c.h.b16 %v2179
        %v2366 = vunpack.c.l.b16 %v2180
        %v2367 = vunpack.c.l.b16 %v2181
        %v2368 = vunpack.c.h.b16 %v2181
        %v2369 = vunpack.c.l.b16 %v2182
        %v2370 = vunpack.c.l.b16 %v2183
        %v2371 = vunpack.c.h.b16 %v2183
        %v2372 = vunpack.c.l.b16 %v2184
        %v2373 = vunpack.c.l.b16 %v2185
        %v2374 = vunpack.c.h.b16 %v2185
        %v2375 = vunpack.c.l.b16 %v2186
        %v2376 = vunpack.c.l.b16 %v2187
        %v2377 = vunpack.c.h.b16 %v2187
        %v2378 = vunpack.c.l.b16 %v2188
        %v2379 = vunpack.c.l.b16 %v2189
        %v2380 = vunpack.c.h.b16 %v2189
        %v2381 = vunpack.c.l.b16 %v2190
        %v2382 = vunpack.c.l.b16 %v2191
        %v2383 = vunpack.c.h.b16 %v2191
        %v2384 = vunpack.c.l.b16 %v2192
        %v2385 = vunpack.c.l.b16 %v2193
        %v2386 = vunpack.c.h.b16 %v2193
        %v2387 = vunpack.c.l.b16 %v2194
        %v2388 = vunpack.c.l.b16 %v2195
        %v2389 = vunpack.c.h.b16 %v2195
        %v2390 = vunpack.c.l.b16 %v2196
        %v2391 = vunpack.c.l.b16 %v2197
        %v2392 = vunpack.c.h.b16 %v2197
        %v2393 = vunpack.c.l.b16 %v2198
        %v2394 = vunpack.c.l.b16 %v2199
        %v2395 = vunpack.c.h.b16 %v2199
        %v2396 = vunpack.c.l.b16 %v2200
        %v2397 = vunpack.c.l.b16 %v2201
        %v2398 = vunpack.c.h.b16 %v2201
        %v2399 = vunpack.c.l.b16 %v2202
        %v2400 = vunpack.c.l.b16 %v2203
        %v2401 = vunpack.c.h.b16 %v2203
        %v2402 = vunpack.c.l.b16 %v2204
        %v2403 = vunpack.c.l.b16 %v2205
        %v2404 = vunpack.c.h.b16 %v2205
        %v2405 = vunpack.c.l.b16 %v2206
        %v2406 = vunpack.c.l.b16 %v2207
        %v2407 = vunpack.c.h.b16 %v2207
        %v2408 = vunpack.c.l.b16 %v2208
        %v2409 = vunpack.c.l.b16 %v2209
        %v2410 = vunpack.c.h.b16 %v2209
        %v2411 = vunpack.c.l.b16 %v2210
        %v2412 = vunpack.c.l.b16 %v2211
        %v2413 = vunpack.c.h.b16 %v2211
        %v2414 = vunpack.c.l.b16 %v2212
        %v2415 = vunpack.c.l.b16 %v2213
        %v2416 = vunpack.c.h.b16 %v2213
        %v2417 = vunpack.c.l.b16 %v2214
        %v2418 = vpack.c.b16 %v2325, %v2322
        %v2419 = vpack.c.b16 %v2326, %v2323
        %v2420 = vpack.c.b16 %v2327, %v2324
        %v2421 = vpack.c.b16 %v2331, %v2328
        %v2422 = vpack.c.b16 %v2332, %v2329
        %v2423 = vpack.c.b16 %v2333, %v2330
        %v2424 = vpack.c.b16 %v2337, %v2334
        %v2425 = vpack.c.b16 %v2338, %v2335
        %v2426 = vpack.c.b16 %v2339, %v2336
        %v2427 = vpack.c.b16 %v2343, %v2340
        %v2428 = vpack.c.b16 %v2344, %v2341
        %v2429 = vpack.c.b16 %v2345, %v2342
        %v2430 = vpack.c.b16 %v2349, %v2346
        %v2431 = vpack.c.b16 %v2350, %v2347
        %v2432 = vpack.c.b16 %v2351, %v2348
        %v2433 = vpack.c.b16 %v2355, %v2352
        %v2434 = vpack.c.b16 %v2356, %v2353
        %v2435 = vpack.c.b16 %v2357, %v2354
        %v2436 = vpack.c.b16 %v2361, %v2358
        %v2437 = vpack.c.b16 %v2362, %v2359
        %v2438 = vpack.c.b16 %v2363, %v2360
        %v2439 = vpack.c.b16 %v2367, %v2364
        %v2440 = vpack.c.b16 %v2368, %v2365
        %v2441 = vpack.c.b16 %v2369, %v2366
        %v2442 = vpack.c.b16 %v2373, %v2370
        %v2443 = vpack.c.b16 %v2374, %v2371
        %v2444 = vpack.c.b16 %v2375, %v2372
        %v2445 = vpack.c.b16 %v2379, %v2376
        %v2446 = vpack.c.b16 %v2380, %v2377
        %v2447 = vpack.c.b16 %v2381, %v2378
        %v2448 = vpack.c.b16 %v2385, %v2382
        %v2449 = vpack.c.b16 %v2386, %v2383
        %v2450 = vpack.c.b16 %v2387, %v2384
        %v2451 = vpack.c.b16 %v2391, %v2388
        %v2452 = vpack.c.b16 %v2392, %v2389
        %v2453 = vpack.c.b16 %v2393, %v2390
        %v2454 = vpack.c.b16 %v2397, %v2394
        %v2455 = vpack.c.b16 %v2398, %v2395
        %v2456 = vpack.c.b16 %v2399, %v2396
        %v2457 = vpack.c.b16 %v2403, %v2400
        %v2458 = vpack.c.b16 %v2404, %v2401
        %v2459 = vpack.c.b16 %v2405, %v2402
        %v2460 = vpack.c.b16 %v2409, %v2406
        %v2461 = vpack.c.b16 %v2410, %v2407
        %v2462 = vpack.c.b16 %v2411, %v2408
        %v2463 = vpack.c.b16 %v2415, %v2412
        %v2464 = vpack.c.b16 %v2416, %v2413
        %v2465 = vpack.c.b16 %v2417, %v2414
        %v2534 = vunpack.c.l.b16 %v2215
        %v2535 = vunpack.c.h.b16 %v2215
        %v2536 = vunpack.c.l.b16 %v2216
        %v2537 = vunpack.c.h.b16 %v2216
        %v2538 = vunpack.c.l.b16 %v2217
        %v2539 = vunpack.c.h.b16 %v2217
        %v2540 = vunpack.c.l.b16 %v2218
        %v2541 = vunpack.c.h.b16 %v2218
        %v2542 = vunpack.c.l.b16 %v2219
        %v2543 = vunpack.c.h.b16 %v2219
        %v2544 = vunpack.c.l.b16 %v2220
        %v2545 = vunpack.c.h.b16 %v2220
        %v2546 = vunpack.c.l.b16 %v2221
        %v2547 = vunpack.c.h.b16 %v2221
        %v2548 = vunpack.c.l.b16 %v2222
        %v2549 = vunpack.c.h.b16 %v2222
        %v2550 = vunpack.c.l.b16 %v2223
        %v2551 = vunpack.c.h.b16 %v2223
        %v2552 = vunpack.c.l.b16 %v2224
        %v2553 = vunpack.c.h.b16 %v2224
        %v2554 = vunpack.c.l.b16 %v2225
        %v2555 = vunpack.c.h.b16 %v2225
        %v2556 = vunpack.c.l.b16 %v2226
        %v2557 = vunpack.c.h.b16 %v2226
        %v2558 = vunpack.c.l.b16 %v2227
        %v2559 = vunpack.c.h.b16 %v2227
        %v2560 = vunpack.c.l.b16 %v2228
        %v2561 = vunpack.c.h.b16 %v2228
        %v2562 = vunpack.c.l.b16 %v2229
        %v2563 = vunpack.c.h.b16 %v2229
        %v2564 = vunpack.c.l.b16 %v2230
        %v2565 = vunpack.c.h.b16 %v2230
        %v2566 = vunpack.c.l.b16 %v2231
        %v2567 = vunpack.c.h.b16 %v2231
        %v2568 = vunpack.c.l.b16 %v2232
        %v2569 = vunpack.c.h.b16 %v2232
        %v2570 = vunpack.c.l.b16 %v2233
        %v2571 = vunpack.c.h.b16 %v2233
        %v2572 = vunpack.c.l.b16 %v2234
        %v2573 = vunpack.c.h.b16 %v2234
        %v2574 = vunpack.c.l.b16 %v2235
        %v2575 = vunpack.c.h.b16 %v2235
        %v2576 = vunpack.c.l.b16 %v2236
        %v2577 = vunpack.c.h.b16 %v2236
        %v2578 = vunpack.c.l.b16 %v2237
        %v2579 = vunpack.c.h.b16 %v2237
        %v2580 = vunpack.c.l.b16 %v2238
        %v2581 = vunpack.c.h.b16 %v2238
        %v2582 = vunpack.c.l.b16 %v2239
        %v2583 = vunpack.c.h.b16 %v2239
        %v2584 = vunpack.c.l.b16 %v2240
        %v2585 = vunpack.c.h.b16 %v2240
        %v2586 = vunpack.c.l.b16 %v2241
        %v2587 = vunpack.c.h.b16 %v2241
        %v2588 = vunpack.c.l.b16 %v2242
        %v2589 = vunpack.c.h.b16 %v2242
        %v2590 = vunpack.c.l.b16 %v2243
        %v2591 = vunpack.c.h.b16 %v2243
        %v2592 = vunpack.c.l.b16 %v2244
        %v2593 = vunpack.c.h.b16 %v2244
        %v2594 = vunpack.c.l.b16 %v2245
        %v2595 = vunpack.c.h.b16 %v2245
        %v2596 = vunpack.c.l.b16 %v2246
        %v2597 = vunpack.c.h.b16 %v2246
        %v2598 = vunpack.c.l.b16 %v2247
        %v2599 = vunpack.c.h.b16 %v2247
        %v2600 = vunpack.c.l.b16 %v2248
        %v2601 = vunpack.c.h.b16 %v2248
        %v2602 = vunpack.c.l.b16 %v2249
        %v2603 = vunpack.c.h.b16 %v2249
        %v2604 = vunpack.c.l.b16 %v2250
        %v2605 = vunpack.c.h.b16 %v2250
        %v2606 = vpack.c.b16 %v2536, %v2534
        %v2607 = vpack.c.b16 %v2537, %v2535
        %v2608 = vpack.c.b16 %v2540, %v2538
        %v2609 = vpack.c.b16 %v2541, %v2539
        %v2610 = vpack.c.b16 %v2544, %v2542
        %v2611 = vpack.c.b16 %v2545, %v2543
        %v2612 = vpack.c.b16 %v2548, %v2546
        %v2613 = vpack.c.b16 %v2549, %v2547
        %v2614 = vpack.c.b16 %v2552, %v2550
        %v2615 = vpack.c.b16 %v2553, %v2551
        %v2616 = vpack.c.b16 %v2556, %v2554
        %v2617 = vpack.c.b16 %v2557, %v2555
        %v2618 = vpack.c.b16 %v2560, %v2558
        %v2619 = vpack.c.b16 %v2561, %v2559
        %v2620 = vpack.c.b16 %v2564, %v2562
        %v2621 = vpack.c.b16 %v2565, %v2563
        %v2622 = vpack.c.b16 %v2568, %v2566
        %v2623 = vpack.c.b16 %v2569, %v2567
        %v2624 = vpack.c.b16 %v2572, %v2570
        %v2625 = vpack.c.b16 %v2573, %v2571
        %v2626 = vpack.c.b16 %v2576, %v2574
        %v2627 = vpack.c.b16 %v2577, %v2575
        %v2628 = vpack.c.b16 %v2580, %v2578
        %v2629 = vpack.c.b16 %v2581, %v2579
        %v2630 = vpack.c.b16 %v2584, %v2582
        %v2631 = vpack.c.b16 %v2585, %v2583
        %v2632 = vpack.c.b16 %v2588, %v2586
        %v2633 = vpack.c.b16 %v2589, %v2587
        %v2634 = vpack.c.b16 %v2592, %v2590
        %v2635 = vpack.c.b16 %v2593, %v2591
        %v2636 = vpack.c.b16 %v2596, %v2594
        %v2637 = vpack.c.b16 %v2597, %v2595
        %v2638 = vpack.c.b16 %v2600, %v2598
        %v2639 = vpack.c.b16 %v2601, %v2599
        %v2640 = vpack.c.b16 %v2604, %v2602
        %v2641 = vpack.c.b16 %v2605, %v2603
        %v2679 = vsel %vm623, %v2420, 0
        %v2682 = vsel %vm623, %v2423, 0
        %v2685 = vsel %vm623, %v2426, 0
        %v2688 = vsel %vm623, %v2429, 0
        %v2691 = vsel %vm623, %v2432, 0
        %v2694 = vsel %vm623, %v2435, 0
        %v2697 = vsel %vm623, %v2438, 0
        %v2700 = vsel %vm623, %v2441, 0
        %v2703 = vsel %vm623, %v2444, 0
        %v2706 = vsel %vm623, %v2447, 0
        %v2709 = vsel %vm623, %v2450, 0
        %v2712 = vsel %vm623, %v2453, 0
        %v2715 = vsel %vm623, %v2456, 0
        %v2718 = vsel %vm623, %v2459, 0
        %v2721 = vsel %vm623, %v2462, 0
        %v2724 = vsel %vm623, %v2465, 0
        %2726 = vmatpush.bf16.msra.mxu0 %v2620
        %2727 = vmatpush.bf16.msra.mxu0 %v2618
        %2728 = vmatpush.bf16.msra.mxu0 %v2616
        %2729 = vmatpush.bf16.msra.mxu0 %v2614
        %2730 = vmatpush.bf16.msra.mxu0 %v2612
        %2731 = vmatpush.bf16.msra.mxu0 %v2610
        %2732 = vmatpush.bf16.msra.mxu0 %v2608
        %2733 = vmatpush.bf16.msra.mxu0 %v2606
        %2734 = vmatmul.bf16.gmra.mxu0 %v2418
        %v2735 = vpop.f32.mrf.mxu0
        %v2736 = vadd.f32 %v2254, %v2735
        %v2737 = vpop.f32.mrf.mxu0
        %v2738 = vadd.f32 %v2254, %v2737
        %2739 = vmatmul.bf16.gmra.mxu0 %v2421
        %v2740 = vpop.f32.mrf.mxu0
        %v2741 = vadd.f32 %v2254, %v2740
        %v2742 = vpop.f32.mrf.mxu0
        %v2743 = vadd.f32 %v2254, %v2742
        %2744 = vmatmul.bf16.gmra.mxu0 %v2424
        %v2745 = vpop.f32.mrf.mxu0
        %v2746 = vadd.f32 %v2254, %v2745
        %v2747 = vpop.f32.mrf.mxu0
        %v2748 = vadd.f32 %v2254, %v2747
        %2749 = vmatmul.bf16.gmra.mxu0 %v2427
        %v2750 = vpop.f32.mrf.mxu0
        %v2751 = vadd.f32 %v2254, %v2750
        %v2752 = vpop.f32.mrf.mxu0
        %v2753 = vadd.f32 %v2254, %v2752
        %2754 = vmatmul.bf16.gmra.mxu0 %v2430
        %v2755 = vpop.f32.mrf.mxu0
        %v2756 = vadd.f32 %v2254, %v2755
        %v2757 = vpop.f32.mrf.mxu0
        %v2758 = vadd.f32 %v2254, %v2757
        %2759 = vmatmul.bf16.gmra.mxu0 %v2433
        %v2760 = vpop.f32.mrf.mxu0
        %v2761 = vadd.f32 %v2254, %v2760
        %v2762 = vpop.f32.mrf.mxu0
        %v2763 = vadd.f32 %v2254, %v2762
        %2764 = vmatmul.bf16.gmra.mxu0 %v2436
        %v2765 = vpop.f32.mrf.mxu0
        %v2766 = vadd.f32 %v2254, %v2765
        %v2767 = vpop.f32.mrf.mxu0
        %v2768 = vadd.f32 %v2254, %v2767
        %2769 = vmatmul.bf16.gmra.mxu0 %v2439
        %v2770 = vpop.f32.mrf.mxu0
        %v2771 = vadd.f32 %v2254, %v2770
        %v2772 = vpop.f32.mrf.mxu0
        %v2773 = vadd.f32 %v2254, %v2772
        %2774 = vmatmul.bf16.gmra.mxu0 %v2442
        %v2775 = vpop.f32.mrf.mxu0
        %v2776 = vadd.f32 %v2254, %v2775
        %v2777 = vpop.f32.mrf.mxu0
        %v2778 = vadd.f32 %v2254, %v2777
        %2779 = vmatmul.bf16.gmra.mxu0 %v2445
        %v2780 = vpop.f32.mrf.mxu0
        %v2781 = vadd.f32 %v2254, %v2780
        %v2782 = vpop.f32.mrf.mxu0
        %v2783 = vadd.f32 %v2254, %v2782
        %2784 = vmatmul.bf16.gmra.mxu0 %v2448
        %v2785 = vpop.f32.mrf.mxu0
        %v2786 = vadd.f32 %v2254, %v2785
        %v2787 = vpop.f32.mrf.mxu0
        %v2788 = vadd.f32 %v2254, %v2787
        %2789 = vmatmul.bf16.gmra.mxu0 %v2451
        %v2790 = vpop.f32.mrf.mxu0
        %v2791 = vadd.f32 %v2254, %v2790
        %v2792 = vpop.f32.mrf.mxu0
        %v2793 = vadd.f32 %v2254, %v2792
        %2794 = vmatmul.bf16.gmra.mxu0 %v2454
        %v2795 = vpop.f32.mrf.mxu0
        %v2796 = vadd.f32 %v2254, %v2795
        %v2797 = vpop.f32.mrf.mxu0
        %v2798 = vadd.f32 %v2254, %v2797
        %2799 = vmatmul.bf16.gmra.mxu0 %v2457
        %v2800 = vpop.f32.mrf.mxu0
        %v2801 = vadd.f32 %v2254, %v2800
        %v2802 = vpop.f32.mrf.mxu0
        %v2803 = vadd.f32 %v2254, %v2802
        %2804 = vmatmul.bf16.gmra.mxu0 %v2460
        %v2805 = vpop.f32.mrf.mxu0
        %v2806 = vadd.f32 %v2254, %v2805
        %v2807 = vpop.f32.mrf.mxu0
        %v2808 = vadd.f32 %v2254, %v2807
        %2809 = vmatmul.bf16.gmra.mxu0 %v2463
        %v2810 = vpop.f32.mrf.mxu0
        %v2811 = vadd.f32 %v2254, %v2810
        %v2812 = vpop.f32.mrf.mxu0
        %v2813 = vadd.f32 %v2254, %v2812
        %2814 = vdwg.mxu0
        %2815 = vmatpush.bf16.msra.mxu0 %v2636
        %2816 = vmatpush.bf16.msra.mxu0 %v2634
        %2817 = vmatpush.bf16.msra.mxu0 %v2632
        %2818 = vmatpush.bf16.msra.mxu0 %v2630
        %2819 = vmatpush.bf16.msra.mxu0 %v2628
        %2820 = vmatpush.bf16.msra.mxu0 %v2626
        %2821 = vmatpush.bf16.msra.mxu0 %v2624
        %2822 = vmatpush.bf16.msra.mxu0 %v2622
        %2823 = vmatmul.bf16.gmra.mxu0 %v2419
        %v2824 = vpop.f32.mrf.mxu0
        %v2825 = vadd.f32 %v2736, %v2824
        %v2826 = vpop.f32.mrf.mxu0
        %v2827 = vadd.f32 %v2738, %v2826
        %2828 = vmatmul.bf16.gmra.mxu0 %v2422
        %v2829 = vpop.f32.mrf.mxu0
        %v2830 = vadd.f32 %v2741, %v2829
        %v2831 = vpop.f32.mrf.mxu0
        %v2832 = vadd.f32 %v2743, %v2831
        %2833 = vmatmul.bf16.gmra.mxu0 %v2425
        %v2834 = vpop.f32.mrf.mxu0
        %v2835 = vadd.f32 %v2746, %v2834
        %v2836 = vpop.f32.mrf.mxu0
        %v2837 = vadd.f32 %v2748, %v2836
        %2838 = vmatmul.bf16.gmra.mxu0 %v2428
        %v2839 = vpop.f32.mrf.mxu0
        %v2840 = vadd.f32 %v2751, %v2839
        %v2841 = vpop.f32.mrf.mxu0
        %v2842 = vadd.f32 %v2753, %v2841
        %2843 = vmatmul.bf16.gmra.mxu0 %v2431
        %v2844 = vpop.f32.mrf.mxu0
        %v2845 = vadd.f32 %v2756, %v2844
        %v2846 = vpop.f32.mrf.mxu0
        %v2847 = vadd.f32 %v2758, %v2846
        %2848 = vmatmul.bf16.gmra.mxu0 %v2434
        %v2849 = vpop.f32.mrf.mxu0
        %v2850 = vadd.f32 %v2761, %v2849
        %v2851 = vpop.f32.mrf.mxu0
        %v2852 = vadd.f32 %v2763, %v2851
        %2853 = vmatmul.bf16.gmra.mxu0 %v2437
        %v2854 = vpop.f32.mrf.mxu0
        %v2855 = vadd.f32 %v2766, %v2854
        %v2856 = vpop.f32.mrf.mxu0
        %v2857 = vadd.f32 %v2768, %v2856
        %2858 = vmatmul.bf16.gmra.mxu0 %v2440
        %v2859 = vpop.f32.mrf.mxu0
        %v2860 = vadd.f32 %v2771, %v2859
        %v2861 = vpop.f32.mrf.mxu0
        %v2862 = vadd.f32 %v2773, %v2861
        %2863 = vmatmul.bf16.gmra.mxu0 %v2443
        %v2864 = vpop.f32.mrf.mxu0
        %v2865 = vadd.f32 %v2776, %v2864
        %v2866 = vpop.f32.mrf.mxu0
        %v2867 = vadd.f32 %v2778, %v2866
        %2868 = vmatmul.bf16.gmra.mxu0 %v2446
        %v2869 = vpop.f32.mrf.mxu0
        %v2870 = vadd.f32 %v2781, %v2869
        %v2871 = vpop.f32.mrf.mxu0
        %v2872 = vadd.f32 %v2783, %v2871
        %2873 = vmatmul.bf16.gmra.mxu0 %v2449
        %v2874 = vpop.f32.mrf.mxu0
        %v2875 = vadd.f32 %v2786, %v2874
        %v2876 = vpop.f32.mrf.mxu0
        %v2877 = vadd.f32 %v2788, %v2876
        %2878 = vmatmul.bf16.gmra.mxu0 %v2452
        %v2879 = vpop.f32.mrf.mxu0
        %v2880 = vadd.f32 %v2791, %v2879
        %v2881 = vpop.f32.mrf.mxu0
        %v2882 = vadd.f32 %v2793, %v2881
        %2883 = vmatmul.bf16.gmra.mxu0 %v2455
        %v2884 = vpop.f32.mrf.mxu0
        %v2885 = vadd.f32 %v2796, %v2884
        %v2886 = vpop.f32.mrf.mxu0
        %v2887 = vadd.f32 %v2798, %v2886
        %2888 = vmatmul.bf16.gmra.mxu0 %v2458
        %v2889 = vpop.f32.mrf.mxu0
        %v2890 = vadd.f32 %v2801, %v2889
        %v2891 = vpop.f32.mrf.mxu0
        %v2892 = vadd.f32 %v2803, %v2891
        %2893 = vmatmul.bf16.gmra.mxu0 %v2461
        %v2894 = vpop.f32.mrf.mxu0
        %v2895 = vadd.f32 %v2806, %v2894
        %v2896 = vpop.f32.mrf.mxu0
        %v2897 = vadd.f32 %v2808, %v2896
        %2898 = vmatmul.bf16.gmra.mxu0 %v2464
        %v2899 = vpop.f32.mrf.mxu0
        %v2900 = vadd.f32 %v2811, %v2899
        %v2901 = vpop.f32.mrf.mxu0
        %v2902 = vadd.f32 %v2813, %v2901
        %2903 = vdwg.mxu0
        %2904 = vmatpush.bf16.msra.mxu0 0
        %2905 = vmatpush.bf16.msra.mxu0 0
        %2906 = vmatpush.bf16.msra.mxu0 0
        %2907 = vmatpush.bf16.msra.mxu0 0
        %2908 = vmatpush.bf16.msra.mxu0 0
        %2909 = vmatpush.bf16.msra.mxu0 0
        %2910 = vmatpush.bf16.msra.mxu0 %v2640
        %2911 = vmatpush.bf16.msra.mxu0 %v2638
        %2912 = vmatmul.bf16.gmra.mxu0 %v2679
        %v2913 = vpop.f32.mrf.mxu0
        %v2914 = vadd.f32 %v2825, %v2913
        %v2915 = vpop.f32.mrf.mxu0
        %v2916 = vadd.f32 %v2827, %v2915
        %2917 = vmatmul.bf16.gmra.mxu0 %v2682
        %v2918 = vpop.f32.mrf.mxu0
        %v2919 = vadd.f32 %v2830, %v2918
        %v2920 = vpop.f32.mrf.mxu0
        %v2921 = vadd.f32 %v2832, %v2920
        %2922 = vmatmul.bf16.gmra.mxu0 %v2685
        %v2923 = vpop.f32.mrf.mxu0
        %v2924 = vadd.f32 %v2835, %v2923
        %v2925 = vpop.f32.mrf.mxu0
        %v2926 = vadd.f32 %v2837, %v2925
        %2927 = vmatmul.bf16.gmra.mxu0 %v2688
        %v2928 = vpop.f32.mrf.mxu0
        %v2929 = vadd.f32 %v2840, %v2928
        %v2930 = vpop.f32.mrf.mxu0
        %v2931 = vadd.f32 %v2842, %v2930
        %2932 = vmatmul.bf16.gmra.mxu0 %v2691
        %v2933 = vpop.f32.mrf.mxu0
        %v2934 = vadd.f32 %v2845, %v2933
        %v2935 = vpop.f32.mrf.mxu0
        %v2936 = vadd.f32 %v2847, %v2935
        %2937 = vmatmul.bf16.gmra.mxu0 %v2694
        %v2938 = vpop.f32.mrf.mxu0
        %v2939 = vadd.f32 %v2850, %v2938
        %v2940 = vpop.f32.mrf.mxu0
        %v2941 = vadd.f32 %v2852, %v2940
        %2942 = vmatmul.bf16.gmra.mxu0 %v2697
        %v2943 = vpop.f32.mrf.mxu0
        %v2944 = vadd.f32 %v2855, %v2943
        %v2945 = vpop.f32.mrf.mxu0
        %v2946 = vadd.f32 %v2857, %v2945
        %2947 = vmatmul.bf16.gmra.mxu0 %v2700
        %v2948 = vpop.f32.mrf.mxu0
        %v2949 = vadd.f32 %v2860, %v2948
        %v2950 = vpop.f32.mrf.mxu0
        %v2951 = vadd.f32 %v2862, %v2950
        %2952 = vmatmul.bf16.gmra.mxu0 %v2703
        %v2953 = vpop.f32.mrf.mxu0
        %v2954 = vadd.f32 %v2865, %v2953
        %v2955 = vpop.f32.mrf.mxu0
        %v2956 = vadd.f32 %v2867, %v2955
        %2957 = vmatmul.bf16.gmra.mxu0 %v2706
        %v2958 = vpop.f32.mrf.mxu0
        %v2959 = vadd.f32 %v2870, %v2958
        %v2960 = vpop.f32.mrf.mxu0
        %v2961 = vadd.f32 %v2872, %v2960
        %2962 = vmatmul.bf16.gmra.mxu0 %v2709
        %v2963 = vpop.f32.mrf.mxu0
        %v2964 = vadd.f32 %v2875, %v2963
        %v2965 = vpop.f32.mrf.mxu0
        %v2966 = vadd.f32 %v2877, %v2965
        %2967 = vmatmul.bf16.gmra.mxu0 %v2712
        %v2968 = vpop.f32.mrf.mxu0
        %v2969 = vadd.f32 %v2880, %v2968
        %v2970 = vpop.f32.mrf.mxu0
        %v2971 = vadd.f32 %v2882, %v2970
        %2972 = vmatmul.bf16.gmra.mxu0 %v2715
        %v2973 = vpop.f32.mrf.mxu0
        %v2974 = vadd.f32 %v2885, %v2973
        %v2975 = vpop.f32.mrf.mxu0
        %v2976 = vadd.f32 %v2887, %v2975
        %2977 = vmatmul.bf16.gmra.mxu0 %v2718
        %v2978 = vpop.f32.mrf.mxu0
        %v2979 = vadd.f32 %v2890, %v2978
        %v2980 = vpop.f32.mrf.mxu0
        %v2981 = vadd.f32 %v2892, %v2980
        %2982 = vmatmul.bf16.gmra.mxu0 %v2721
        %v2983 = vpop.f32.mrf.mxu0
        %v2984 = vadd.f32 %v2895, %v2983
        %v2985 = vpop.f32.mrf.mxu0
        %v2986 = vadd.f32 %v2897, %v2985
        %2987 = vmatmul.bf16.gmra.mxu0 %v2724
        %v2988 = vpop.f32.mrf.mxu0
        %v2989 = vadd.f32 %v2900, %v2988
        %v2990 = vpop.f32.mrf.mxu0
        %v2991 = vadd.f32 %v2902, %v2990
        %2992 = vdwg.mxu0
        %2993 = vmatpush.bf16.msra.mxu0 %v2621
        %2994 = vmatpush.bf16.msra.mxu0 %v2619
        %2995 = vmatpush.bf16.msra.mxu0 %v2617
        %2996 = vmatpush.bf16.msra.mxu0 %v2615
        %2997 = vmatpush.bf16.msra.mxu0 %v2613
        %2998 = vmatpush.bf16.msra.mxu0 %v2611
        %2999 = vmatpush.bf16.msra.mxu0 %v2609
        %3000 = vmatpush.bf16.msra.mxu0 %v2607
        %3001 = vmatmul.bf16.gmra.mxu0 %v2418
        %v3002 = vpop.f32.mrf.mxu0
        %v3003 = vadd.f32 %v2255, %v3002
        %v3004 = vpop.f32.mrf.mxu0
        %v3005 = vadd.f32 %v2255, %v3004
        %3006 = vmatmul.bf16.gmra.mxu0 %v2421
        %v3007 = vpop.f32.mrf.mxu0
        %v3008 = vadd.f32 %v2255, %v3007
        %v3009 = vpop.f32.mrf.mxu0
        %v3010 = vadd.f32 %v2255, %v3009
        %3011 = vmatmul.bf16.gmra.mxu0 %v2424
        %v3012 = vpop.f32.mrf.mxu0
        %v3013 = vadd.f32 %v2255, %v3012
        %v3014 = vpop.f32.mrf.mxu0
        %v3015 = vadd.f32 %v2255, %v3014
        %3016 = vmatmul.bf16.gmra.mxu0 %v2427
        %v3017 = vpop.f32.mrf.mxu0
        %v3018 = vadd.f32 %v2255, %v3017
        %v3019 = vpop.f32.mrf.mxu0
        %v3020 = vadd.f32 %v2255, %v3019
        %3021 = vmatmul.bf16.gmra.mxu0 %v2430
        %v3022 = vpop.f32.mrf.mxu0
        %v3023 = vadd.f32 %v2255, %v3022
        %v3024 = vpop.f32.mrf.mxu0
        %v3025 = vadd.f32 %v2255, %v3024
        %3026 = vmatmul.bf16.gmra.mxu0 %v2433
        %v3027 = vpop.f32.mrf.mxu0
        %v3028 = vadd.f32 %v2255, %v3027
        %v3029 = vpop.f32.mrf.mxu0
        %v3030 = vadd.f32 %v2255, %v3029
        %3031 = vmatmul.bf16.gmra.mxu0 %v2436
        %v3032 = vpop.f32.mrf.mxu0
        %v3033 = vadd.f32 %v2255, %v3032
        %v3034 = vpop.f32.mrf.mxu0
        %v3035 = vadd.f32 %v2255, %v3034
        %3036 = vmatmul.bf16.gmra.mxu0 %v2439
        %v3037 = vpop.f32.mrf.mxu0
        %v3038 = vadd.f32 %v2255, %v3037
        %v3039 = vpop.f32.mrf.mxu0
        %v3040 = vadd.f32 %v2255, %v3039
        %3041 = vmatmul.bf16.gmra.mxu0 %v2442
        %v3042 = vpop.f32.mrf.mxu0
        %v3043 = vadd.f32 %v2255, %v3042
        %v3044 = vpop.f32.mrf.mxu0
        %v3045 = vadd.f32 %v2255, %v3044
        %3046 = vmatmul.bf16.gmra.mxu0 %v2445
        %v3047 = vpop.f32.mrf.mxu0
        %v3048 = vadd.f32 %v2255, %v3047
        %v3049 = vpop.f32.mrf.mxu0
        %v3050 = vadd.f32 %v2255, %v3049
        %3051 = vmatmul.bf16.gmra.mxu0 %v2448
        %v3052 = vpop.f32.mrf.mxu0
        %v3053 = vadd.f32 %v2255, %v3052
        %v3054 = vpop.f32.mrf.mxu0
        %v3055 = vadd.f32 %v2255, %v3054
        %3056 = vmatmul.bf16.gmra.mxu0 %v2451
        %v3057 = vpop.f32.mrf.mxu0
        %v3058 = vadd.f32 %v2255, %v3057
        %v3059 = vpop.f32.mrf.mxu0
        %v3060 = vadd.f32 %v2255, %v3059
        %3061 = vmatmul.bf16.gmra.mxu0 %v2454
        %v3062 = vpop.f32.mrf.mxu0
        %v3063 = vadd.f32 %v2255, %v3062
        %v3064 = vpop.f32.mrf.mxu0
        %v3065 = vadd.f32 %v2255, %v3064
        %3066 = vmatmul.bf16.gmra.mxu0 %v2457
        %v3067 = vpop.f32.mrf.mxu0
        %v3068 = vadd.f32 %v2255, %v3067
        %v3069 = vpop.f32.mrf.mxu0
        %v3070 = vadd.f32 %v2255, %v3069
        %3071 = vmatmul.bf16.gmra.mxu0 %v2460
        %v3072 = vpop.f32.mrf.mxu0
        %v3073 = vadd.f32 %v2255, %v3072
        %v3074 = vpop.f32.mrf.mxu0
        %v3075 = vadd.f32 %v2255, %v3074
        %3076 = vmatmul.bf16.gmra.mxu0 %v2463
        %v3077 = vpop.f32.mrf.mxu0
        %v3078 = vadd.f32 %v2255, %v3077
        %v3079 = vpop.f32.mrf.mxu0
        %v3080 = vadd.f32 %v2255, %v3079
        %3081 = vdwg.mxu0
        %3082 = vmatpush.bf16.msra.mxu0 %v2637
        %3083 = vmatpush.bf16.msra.mxu0 %v2635
        %3084 = vmatpush.bf16.msra.mxu0 %v2633
        %3085 = vmatpush.bf16.msra.mxu0 %v2631
        %3086 = vmatpush.bf16.msra.mxu0 %v2629
        %3087 = vmatpush.bf16.msra.mxu0 %v2627
        %3088 = vmatpush.bf16.msra.mxu0 %v2625
        %3089 = vmatpush.bf16.msra.mxu0 %v2623
        %3090 = vmatmul.bf16.gmra.mxu0 %v2419
        %v3091 = vpop.f32.mrf.mxu0
        %v3092 = vadd.f32 %v3003, %v3091
        %v3093 = vpop.f32.mrf.mxu0
        %v3094 = vadd.f32 %v3005, %v3093
        %3095 = vmatmul.bf16.gmra.mxu0 %v2422
        %v3096 = vpop.f32.mrf.mxu0
        %v3097 = vadd.f32 %v3008, %v3096
        %v3098 = vpop.f32.mrf.mxu0
        %v3099 = vadd.f32 %v3010, %v3098
        %3100 = vmatmul.bf16.gmra.mxu0 %v2425
        %v3101 = vpop.f32.mrf.mxu0
        %v3102 = vadd.f32 %v3013, %v3101
        %v3103 = vpop.f32.mrf.mxu0
        %v3104 = vadd.f32 %v3015, %v3103
        %3105 = vmatmul.bf16.gmra.mxu0 %v2428
        %v3106 = vpop.f32.mrf.mxu0
        %v3107 = vadd.f32 %v3018, %v3106
        %v3108 = vpop.f32.mrf.mxu0
        %v3109 = vadd.f32 %v3020, %v3108
        %3110 = vmatmul.bf16.gmra.mxu0 %v2431
        %v3111 = vpop.f32.mrf.mxu0
        %v3112 = vadd.f32 %v3023, %v3111
        %v3113 = vpop.f32.mrf.mxu0
        %v3114 = vadd.f32 %v3025, %v3113
        %3115 = vmatmul.bf16.gmra.mxu0 %v2434
        %v3116 = vpop.f32.mrf.mxu0
        %v3117 = vadd.f32 %v3028, %v3116
        %v3118 = vpop.f32.mrf.mxu0
        %v3119 = vadd.f32 %v3030, %v3118
        %3120 = vmatmul.bf16.gmra.mxu0 %v2437
        %v3121 = vpop.f32.mrf.mxu0
        %v3122 = vadd.f32 %v3033, %v3121
        %v3123 = vpop.f32.mrf.mxu0
        %v3124 = vadd.f32 %v3035, %v3123
        %3125 = vmatmul.bf16.gmra.mxu0 %v2440
        %v3126 = vpop.f32.mrf.mxu0
        %v3127 = vadd.f32 %v3038, %v3126
        %v3128 = vpop.f32.mrf.mxu0
        %v3129 = vadd.f32 %v3040, %v3128
        %3130 = vmatmul.bf16.gmra.mxu0 %v2443
        %v3131 = vpop.f32.mrf.mxu0
        %v3132 = vadd.f32 %v3043, %v3131
        %v3133 = vpop.f32.mrf.mxu0
        %v3134 = vadd.f32 %v3045, %v3133
        %3135 = vmatmul.bf16.gmra.mxu0 %v2446
        %v3136 = vpop.f32.mrf.mxu0
        %v3137 = vadd.f32 %v3048, %v3136
        %v3138 = vpop.f32.mrf.mxu0
        %v3139 = vadd.f32 %v3050, %v3138
        %3140 = vmatmul.bf16.gmra.mxu0 %v2449
        %v3141 = vpop.f32.mrf.mxu0
        %v3142 = vadd.f32 %v3053, %v3141
        %v3143 = vpop.f32.mrf.mxu0
        %v3144 = vadd.f32 %v3055, %v3143
        %3145 = vmatmul.bf16.gmra.mxu0 %v2452
        %v3146 = vpop.f32.mrf.mxu0
        %v3147 = vadd.f32 %v3058, %v3146
        %v3148 = vpop.f32.mrf.mxu0
        %v3149 = vadd.f32 %v3060, %v3148
        %3150 = vmatmul.bf16.gmra.mxu0 %v2455
        %v3151 = vpop.f32.mrf.mxu0
        %v3152 = vadd.f32 %v3063, %v3151
        %v3153 = vpop.f32.mrf.mxu0
        %v3154 = vadd.f32 %v3065, %v3153
        %3155 = vmatmul.bf16.gmra.mxu0 %v2458
        %v3156 = vpop.f32.mrf.mxu0
        %v3157 = vadd.f32 %v3068, %v3156
        %v3158 = vpop.f32.mrf.mxu0
        %v3159 = vadd.f32 %v3070, %v3158
        %3160 = vmatmul.bf16.gmra.mxu0 %v2461
        %v3161 = vpop.f32.mrf.mxu0
        %v3162 = vadd.f32 %v3073, %v3161
        %v3163 = vpop.f32.mrf.mxu0
        %v3164 = vadd.f32 %v3075, %v3163
        %3165 = vmatmul.bf16.gmra.mxu0 %v2464
        %v3166 = vpop.f32.mrf.mxu0
        %v3167 = vadd.f32 %v3078, %v3166
        %v3168 = vpop.f32.mrf.mxu0
        %v3169 = vadd.f32 %v3080, %v3168
        %3170 = vdwg.mxu0
        %3171 = vmatpush.bf16.msra.mxu0 0
        %3172 = vmatpush.bf16.msra.mxu0 0
        %3173 = vmatpush.bf16.msra.mxu0 0
        %3174 = vmatpush.bf16.msra.mxu0 0
        %3175 = vmatpush.bf16.msra.mxu0 0
        %3176 = vmatpush.bf16.msra.mxu0 0
        %3177 = vmatpush.bf16.msra.mxu0 %v2641
        %3178 = vmatpush.bf16.msra.mxu0 %v2639
        %3179 = vmatmul.bf16.gmra.mxu0 %v2679
        %v3180 = vpop.f32.mrf.mxu0
        %v3181 = vadd.f32 %v3092, %v3180
        %v3182 = vpop.f32.mrf.mxu0
        %v3183 = vadd.f32 %v3094, %v3182
        %3184 = vmatmul.bf16.gmra.mxu0 %v2682
        %v3185 = vpop.f32.mrf.mxu0
        %v3186 = vadd.f32 %v3097, %v3185
        %v3187 = vpop.f32.mrf.mxu0
        %v3188 = vadd.f32 %v3099, %v3187
        %3189 = vmatmul.bf16.gmra.mxu0 %v2685
        %v3190 = vpop.f32.mrf.mxu0
        %v3191 = vadd.f32 %v3102, %v3190
        %v3192 = vpop.f32.mrf.mxu0
        %v3193 = vadd.f32 %v3104, %v3192
        %3194 = vmatmul.bf16.gmra.mxu0 %v2688
        %v3195 = vpop.f32.mrf.mxu0
        %v3196 = vadd.f32 %v3107, %v3195
        %v3197 = vpop.f32.mrf.mxu0
        %v3198 = vadd.f32 %v3109, %v3197
        %3199 = vmatmul.bf16.gmra.mxu0 %v2691
        %v3200 = vpop.f32.mrf.mxu0
        %v3201 = vadd.f32 %v3112, %v3200
        %v3202 = vpop.f32.mrf.mxu0
        %v3203 = vadd.f32 %v3114, %v3202
        %3204 = vmatmul.bf16.gmra.mxu0 %v2694
        %v3205 = vpop.f32.mrf.mxu0
        %v3206 = vadd.f32 %v3117, %v3205
        %v3207 = vpop.f32.mrf.mxu0
        %v3208 = vadd.f32 %v3119, %v3207
        %3209 = vmatmul.bf16.gmra.mxu0 %v2697
        %v3210 = vpop.f32.mrf.mxu0
        %v3211 = vadd.f32 %v3122, %v3210
        %v3212 = vpop.f32.mrf.mxu0
        %v3213 = vadd.f32 %v3124, %v3212
        %3214 = vmatmul.bf16.gmra.mxu0 %v2700
        %v3215 = vpop.f32.mrf.mxu0
        %v3216 = vadd.f32 %v3127, %v3215
        %v3217 = vpop.f32.mrf.mxu0
        %v3218 = vadd.f32 %v3129, %v3217
        %3219 = vmatmul.bf16.gmra.mxu0 %v2703
        %v3220 = vpop.f32.mrf.mxu0
        %v3221 = vadd.f32 %v3132, %v3220
        %v3222 = vpop.f32.mrf.mxu0
        %v3223 = vadd.f32 %v3134, %v3222
        %3224 = vmatmul.bf16.gmra.mxu0 %v2706
        %v3225 = vpop.f32.mrf.mxu0
        %v3226 = vadd.f32 %v3137, %v3225
        %v3227 = vpop.f32.mrf.mxu0
        %v3228 = vadd.f32 %v3139, %v3227
        %3229 = vmatmul.bf16.gmra.mxu0 %v2709
        %v3230 = vpop.f32.mrf.mxu0
        %v3231 = vadd.f32 %v3142, %v3230
        %v3232 = vpop.f32.mrf.mxu0
        %v3233 = vadd.f32 %v3144, %v3232
        %3234 = vmatmul.bf16.gmra.mxu0 %v2712
        %v3235 = vpop.f32.mrf.mxu0
        %v3236 = vadd.f32 %v3147, %v3235
        %v3237 = vpop.f32.mrf.mxu0
        %v3238 = vadd.f32 %v3149, %v3237
        %3239 = vmatmul.bf16.gmra.mxu0 %v2715
        %v3240 = vpop.f32.mrf.mxu0
        %v3241 = vadd.f32 %v3152, %v3240
        %v3242 = vpop.f32.mrf.mxu0
        %v3243 = vadd.f32 %v3154, %v3242
        %3244 = vmatmul.bf16.gmra.mxu0 %v2718
        %v3245 = vpop.f32.mrf.mxu0
        %v3246 = vadd.f32 %v3157, %v3245
        %v3247 = vpop.f32.mrf.mxu0
        %v3248 = vadd.f32 %v3159, %v3247
        %3249 = vmatmul.bf16.gmra.mxu0 %v2721
        %v3250 = vpop.f32.mrf.mxu0
        %v3251 = vadd.f32 %v3162, %v3250
        %v3252 = vpop.f32.mrf.mxu0
        %v3253 = vadd.f32 %v3164, %v3252
        %3254 = vmatmul.bf16.gmra.mxu0 %v2724
        %v3255 = vpop.f32.mrf.mxu0
        %v3256 = vadd.f32 %v3167, %v3255
        %v3257 = vpop.f32.mrf.mxu0
        %v3258 = vadd.f32 %v3169, %v3257
        %3259 = vdwg.mxu0
        %v3260 = vmax.f32 %v2914, 0.0
        %v3261 = vmax.f32 %v3181, 0.0
        %v3262 = vmax.f32 %v2916, 0.0
        %v3263 = vmax.f32 %v3183, 0.0
        %v3264 = vmax.f32 %v2919, 0.0
        %v3265 = vmax.f32 %v3186, 0.0
        %v3266 = vmax.f32 %v2921, 0.0
        %v3267 = vmax.f32 %v3188, 0.0
        %v3268 = vmax.f32 %v2924, 0.0
        %v3269 = vmax.f32 %v3191, 0.0
        %v3270 = vmax.f32 %v2926, 0.0
        %v3271 = vmax.f32 %v3193, 0.0
        %v3272 = vmax.f32 %v2929, 0.0
        %v3273 = vmax.f32 %v3196, 0.0
        %v3274 = vmax.f32 %v2931, 0.0
        %v3275 = vmax.f32 %v3198, 0.0
        %v3276 = vmax.f32 %v2934, 0.0
        %v3277 = vmax.f32 %v3201, 0.0
        %v3278 = vmax.f32 %v2936, 0.0
        %v3279 = vmax.f32 %v3203, 0.0
        %v3280 = vmax.f32 %v2939, 0.0
        %v3281 = vmax.f32 %v3206, 0.0
        %v3282 = vmax.f32 %v2941, 0.0
        %v3283 = vmax.f32 %v3208, 0.0
        %v3284 = vmax.f32 %v2944, 0.0
        %v3285 = vmax.f32 %v3211, 0.0
        %v3286 = vmax.f32 %v2946, 0.0
        %v3287 = vmax.f32 %v3213, 0.0
        %v3288 = vmax.f32 %v2949, 0.0
        %v3289 = vmax.f32 %v3216, 0.0
        %v3290 = vmax.f32 %v2951, 0.0
        %v3291 = vmax.f32 %v3218, 0.0
        %v3292 = vmax.f32 %v2954, 0.0
        %v3293 = vmax.f32 %v3221, 0.0
        %v3294 = vmax.f32 %v2956, 0.0
        %v3295 = vmax.f32 %v3223, 0.0
        %v3296 = vmax.f32 %v2959, 0.0
        %v3297 = vmax.f32 %v3226, 0.0
        %v3298 = vmax.f32 %v2961, 0.0
        %v3299 = vmax.f32 %v3228, 0.0
        %v3300 = vmax.f32 %v2964, 0.0
        %v3301 = vmax.f32 %v3231, 0.0
        %v3302 = vmax.f32 %v2966, 0.0
        %v3303 = vmax.f32 %v3233, 0.0
        %v3304 = vmax.f32 %v2969, 0.0
        %v3305 = vmax.f32 %v3236, 0.0
        %v3306 = vmax.f32 %v2971, 0.0
        %v3307 = vmax.f32 %v3238, 0.0
        %v3308 = vmax.f32 %v2974, 0.0
        %v3309 = vmax.f32 %v3241, 0.0
        %v3310 = vmax.f32 %v2976, 0.0
        %v3311 = vmax.f32 %v3243, 0.0
        %v3312 = vmax.f32 %v2979, 0.0
        %v3313 = vmax.f32 %v3246, 0.0
        %v3314 = vmax.f32 %v2981, 0.0
        %v3315 = vmax.f32 %v3248, 0.0
        %v3316 = vmax.f32 %v2984, 0.0
        %v3317 = vmax.f32 %v3251, 0.0
        %v3318 = vmax.f32 %v2986, 0.0
        %v3319 = vmax.f32 %v3253, 0.0
        %v3320 = vmax.f32 %v2989, 0.0
        %v3321 = vmax.f32 %v3256, 0.0
        %v3322 = vmax.f32 %v2991, 0.0
        %v3323 = vmax.f32 %v3258, 0.0
        %v3324 = vpack.c.bf16 %v3261, %v3260
        %v3325 = vpack.c.bf16 %v3263, %v3262
        %v3326 = vpack.c.bf16 %v3265, %v3264
        %v3327 = vpack.c.bf16 %v3267, %v3266
        %v3328 = vpack.c.bf16 %v3269, %v3268
        %v3329 = vpack.c.bf16 %v3271, %v3270
        %v3330 = vpack.c.bf16 %v3273, %v3272
        %v3331 = vpack.c.bf16 %v3275, %v3274
        %v3332 = vpack.c.bf16 %v3277, %v3276
        %v3333 = vpack.c.bf16 %v3279, %v3278
        %v3334 = vpack.c.bf16 %v3281, %v3280
        %v3335 = vpack.c.bf16 %v3283, %v3282
        %v3336 = vpack.c.bf16 %v3285, %v3284
        %v3337 = vpack.c.bf16 %v3287, %v3286
        %v3338 = vpack.c.bf16 %v3289, %v3288
        %v3339 = vpack.c.bf16 %v3291, %v3290
        %v3340 = vpack.c.bf16 %v3293, %v3292
        %v3341 = vpack.c.bf16 %v3295, %v3294
        %v3342 = vpack.c.bf16 %v3297, %v3296
        %v3343 = vpack.c.bf16 %v3299, %v3298
        %v3344 = vpack.c.bf16 %v3301, %v3300
        %v3345 = vpack.c.bf16 %v3303, %v3302
        %v3346 = vpack.c.bf16 %v3305, %v3304
        %v3347 = vpack.c.bf16 %v3307, %v3306
        %v3348 = vpack.c.bf16 %v3309, %v3308
        %v3349 = vpack.c.bf16 %v3311, %v3310
        %v3350 = vpack.c.bf16 %v3313, %v3312
        %v3351 = vpack.c.bf16 %v3315, %v3314
        %v3352 = vpack.c.bf16 %v3317, %v3316
        %v3353 = vpack.c.bf16 %v3319, %v3318
        %v3354 = vpack.c.bf16 %v3321, %v3320
        %v3355 = vpack.c.bf16 %v3323, %v3322
        %v3356 = vld [vmem:[%s473] sm:$0xff]
        %v3357 = vld [vmem:[%s473 + $0x8] sm:$0xf]
        %v3358 = vld [vmem:[%s473 + $0xc] sm:$0xff]
        %v3359 = vld [vmem:[%s473 + $0x14] sm:$0xf]
        %v3360 = vld [vmem:[%s473 + $0x18] sm:$0xff]
        %v3361 = vld [vmem:[%s473 + $0x20] sm:$0xf]
        %v3362 = vld [vmem:[%s473 + $0x24] sm:$0xff]
        %v3363 = vld [vmem:[%s473 + $0x2c] sm:$0xf]
        %v3364 = vld [vmem:[%s473 + $0x30] sm:$0xff]
        %v3365 = vld [vmem:[%s473 + $0x38] sm:$0xf]
        %v3366 = vld [vmem:[%s473 + $0x3c] sm:$0xff]
        %v3367 = vld [vmem:[%s473 + $0x44] sm:$0xf]
        %v3368 = vld [vmem:[%s473 + $0x48] sm:$0xff]
        %v3369 = vld [vmem:[%s473 + $0x50] sm:$0xf]
        %v3370 = vld [vmem:[%s473 + $0x54] sm:$0xff]
        %v3371 = vld [vmem:[%s473 + $0x5c] sm:$0xf]
        %v3372 = vld [vmem:[%s473 + $0x60] sm:$0xff]
        %v3373 = vld [vmem:[%s473 + $0x68] sm:$0xf]
        %v3374 = vld [vmem:[%s473 + $0x6c] sm:$0xff]
        %v3375 = vld [vmem:[%s473 + $0x74] sm:$0xf]
        %v3376 = vld [vmem:[%s473 + $0x78] sm:$0xff]
        %v3377 = vld [vmem:[%s473 + $0x80] sm:$0xf]
        %v3378 = vld [vmem:[%s473 + $0x84] sm:$0xff]
        %v3379 = vld [vmem:[%s473 + $0x8c] sm:$0xf]
        %v3380 = vld [vmem:[%s473 + $0x90] sm:$0xff]
        %v3381 = vld [vmem:[%s473 + $0x98] sm:$0xf]
        %v3382 = vld [vmem:[%s473 + $0x9c] sm:$0xff]
        %v3383 = vld [vmem:[%s473 + $0xa4] sm:$0xf]
        %v3384 = vld [vmem:[%s473 + $0xa8] sm:$0xff]
        %v3385 = vld [vmem:[%s473 + $0xb0] sm:$0xf]
        %v3386 = vld [vmem:[%s473 + $0xb4] sm:$0xff]
        %v3387 = vld [vmem:[%s473 + $0xbc] sm:$0xf]
        %v3388 = vld [vmem:[%s473 + $0xc0] sm:$0xff]
        %v3389 = vld [vmem:[%s473 + $0xc8] sm:$0xf]
        %v3390 = vld [vmem:[%s473 + $0xcc] sm:$0xff]
        %v3391 = vld [vmem:[%s473 + $0xd4] sm:$0xf]
        %v3392 = vld [vmem:[%s473 + $0xd8] sm:$0xff]
        %v3393 = vld [vmem:[%s473 + $0xe0] sm:$0xf]
        %v3394 = vld [vmem:[%s473 + $0xe4] sm:$0xff]
        %v3395 = vld [vmem:[%s473 + $0xec] sm:$0xf]
        %v3396 = vld [vmem:[%s473 + $0xf0] sm:$0xff]
        %v3397 = vld [vmem:[%s473 + $0xf8] sm:$0xf]
        %v3398 = vld [vmem:[%s473 + $0xfc] sm:$0xff]
        %v3399 = vld [vmem:[%s473 + $0x104] sm:$0xf]
        %v3400 = vld [vmem:[%s473 + $0x108] sm:$0xff]
        %v3401 = vld [vmem:[%s473 + $0x110] sm:$0xf]
        %v3402 = vld [vmem:[%s473 + $0x114] sm:$0xff]
        %v3403 = vld [vmem:[%s473 + $0x11c] sm:$0xf]
        %v3404 = vld [vmem:[%s473 + $0x120] sm:$0xff]
        %v3405 = vld [vmem:[%s473 + $0x128] sm:$0xf]
        %v3406 = vld [vmem:[%s473 + $0x12c] sm:$0xff]
        %v3407 = vld [vmem:[%s473 + $0x134] sm:$0xf]
        %v3408 = vld [vmem:[%s473 + $0x138] sm:$0xff]
        %v3409 = vld [vmem:[%s473 + $0x140] sm:$0xf]
        %v3410 = vld [vmem:[%s473 + $0x144] sm:$0xff]
        %v3411 = vld [vmem:[%s473 + $0x14c] sm:$0xf]
        %v3412 = vld [vmem:[%s473 + $0x150] sm:$0xff]
        %v3413 = vld [vmem:[%s473 + $0x158] sm:$0xf]
        %v3414 = vld [vmem:[%s473 + $0x15c] sm:$0xff]
        %v3415 = vld [vmem:[%s473 + $0x164] sm:$0xf]
        %v3416 = vld [vmem:[%s473 + $0x168] sm:$0xff]
        %v3417 = vld [vmem:[%s473 + $0x170] sm:$0xf]
        %v3418 = vld [vmem:[%s473 + $0x174] sm:$0xff]
        %v3419 = vld [vmem:[%s473 + $0x17c] sm:$0xf]
        %v3420 = vld [vmem:[%s7] sm:$0xff]
        %v3421 = vld [vmem:[%s7 + $0x8] sm:$0xff]
        %v3422 = vld [vmem:[%s7 + $0x10] sm:$0xff]
        %v3423 = vld [vmem:[%s7 + $0x18] sm:$0xff]
        %v3424 = vld [vmem:[%s7 + $0x20] sm:$0xff]
        %v3425 = vld [vmem:[%s7 + $0x28] sm:$0xff]
        %v3426 = vld [vmem:[%s7 + $0x30] sm:$0xff]
        %v3427 = vld [vmem:[%s7 + $0x38] sm:$0xff]
        %v3428 = vld [vmem:[%s7 + $0x40] sm:$0xff]
        %v3429 = vld [vmem:[%s7 + $0x48] sm:$0xff]
        %v3430 = vld [vmem:[%s7 + $0x50] sm:$0xff]
        %v3431 = vld [vmem:[%s7 + $0x58] sm:$0xff]
        %v3432 = vld [vmem:[%s7 + $0x60] sm:$0xff]
        %v3433 = vld [vmem:[%s7 + $0x68] sm:$0xff]
        %v3434 = vld [vmem:[%s7 + $0x70] sm:$0xff]
        %v3435 = vld [vmem:[%s7 + $0x78] sm:$0xff]
        %v3436 = vld [vmem:[%s7 + $0x80] sm:$0xff]
        %v3437 = vld [vmem:[%s7 + $0x88] sm:$0xff]
        %v3438 = vld [vmem:[%s7 + $0x90] sm:$0xff]
        %v3439 = vld [vmem:[%s7 + $0x98] sm:$0xff]
        %v3440 = vld [vmem:[%s7 + $0xa0] sm:$0xff]
        %v3441 = vld [vmem:[%s7 + $0xa8] sm:$0xff]
        %v3442 = vld [vmem:[%s7 + $0xb0] sm:$0xff]
        %v3443 = vld [vmem:[%s7 + $0xb8] sm:$0xff]
        %v3444 = vld [vmem:[%s7 + $0xc0] sm:$0xff]
        %v3445 = vld [vmem:[%s7 + $0xc8] sm:$0xff]
        %v3446 = vld [vmem:[%s7 + $0xd0] sm:$0xff]
        %v3447 = vld [vmem:[%s7 + $0xd8] sm:$0xff]
        %v3448 = vld [vmem:[%s7 + $0xe0] sm:$0xff]
        %v3449 = vld [vmem:[%s7 + $0xe8] sm:$0xff]
        %v3450 = vld [vmem:[%s7 + $0xf0] sm:$0xff]
        %v3451 = vld [vmem:[%s7 + $0xf8] sm:$0xff]
        %v3452 = vld [vmem:[%s7 + $0x100] sm:$0xff]
        %v3453 = vld [vmem:[%s7 + $0x108] sm:$0xff]
        %v3454 = vld [vmem:[%s7 + $0x110] sm:$0xff]
        %v3455 = vld [vmem:[%s7 + $0x118] sm:$0xff]
        %s3456 = scalar_lea.vmem %s8, 3
        %v3457 = vld [vmem:[%s3456] ss:$4 sm:$0x3]
        %v3459 = vperm.slane %v3457, 0
        %v3460 = vperm.slane %v3457, 1
        %v3527 = vunpack.c.l.b16 %v3356
        %v3528 = vunpack.c.h.b16 %v3356
        %v3529 = vunpack.c.l.b16 %v3357
        %v3530 = vunpack.c.l.b16 %v3358
        %v3531 = vunpack.c.h.b16 %v3358
        %v3532 = vunpack.c.l.b16 %v3359
        %v3533 = vunpack.c.l.b16 %v3360
        %v3534 = vunpack.c.h.b16 %v3360
        %v3535 = vunpack.c.l.b16 %v3361
        %v3536 = vunpack.c.l.b16 %v3362
        %v3537 = vunpack.c.h.b16 %v3362
        %v3538 = vunpack.c.l.b16 %v3363
        %v3539 = vunpack.c.l.b16 %v3364
        %v3540 = vunpack.c.h.b16 %v3364
        %v3541 = vunpack.c.l.b16 %v3365
        %v3542 = vunpack.c.l.b16 %v3366
        %v3543 = vunpack.c.h.b16 %v3366
        %v3544 = vunpack.c.l.b16 %v3367
        %v3545 = vunpack.c.l.b16 %v3368
        %v3546 = vunpack.c.h.b16 %v3368
        %v3547 = vunpack.c.l.b16 %v3369
        %v3548 = vunpack.c.l.b16 %v3370
        %v3549 = vunpack.c.h.b16 %v3370
        %v3550 = vunpack.c.l.b16 %v3371
        %v3551 = vunpack.c.l.b16 %v3372
        %v3552 = vunpack.c.h.b16 %v3372
        %v3553 = vunpack.c.l.b16 %v3373
        %v3554 = vunpack.c.l.b16 %v3374
        %v3555 = vunpack.c.h.b16 %v3374
        %v3556 = vunpack.c.l.b16 %v3375
        %v3557 = vunpack.c.l.b16 %v3376
        %v3558 = vunpack.c.h.b16 %v3376
        %v3559 = vunpack.c.l.b16 %v3377
        %v3560 = vunpack.c.l.b16 %v3378
        %v3561 = vunpack.c.h.b16 %v3378
        %v3562 = vunpack.c.l.b16 %v3379
        %v3563 = vunpack.c.l.b16 %v3380
        %v3564 = vunpack.c.h.b16 %v3380
        %v3565 = vunpack.c.l.b16 %v3381
        %v3566 = vunpack.c.l.b16 %v3382
        %v3567 = vunpack.c.h.b16 %v3382
        %v3568 = vunpack.c.l.b16 %v3383
        %v3569 = vunpack.c.l.b16 %v3384
        %v3570 = vunpack.c.h.b16 %v3384
        %v3571 = vunpack.c.l.b16 %v3385
        %v3572 = vunpack.c.l.b16 %v3386
        %v3573 = vunpack.c.h.b16 %v3386
        %v3574 = vunpack.c.l.b16 %v3387
        %v3575 = vunpack.c.l.b16 %v3388
        %v3576 = vunpack.c.h.b16 %v3388
        %v3577 = vunpack.c.l.b16 %v3389
        %v3578 = vunpack.c.l.b16 %v3390
        %v3579 = vunpack.c.h.b16 %v3390
        %v3580 = vunpack.c.l.b16 %v3391
        %v3581 = vunpack.c.l.b16 %v3392
        %v3582 = vunpack.c.h.b16 %v3392
        %v3583 = vunpack.c.l.b16 %v3393
        %v3584 = vunpack.c.l.b16 %v3394
        %v3585 = vunpack.c.h.b16 %v3394
        %v3586 = vunpack.c.l.b16 %v3395
        %v3587 = vunpack.c.l.b16 %v3396
        %v3588 = vunpack.c.h.b16 %v3396
        %v3589 = vunpack.c.l.b16 %v3397
        %v3590 = vunpack.c.l.b16 %v3398
        %v3591 = vunpack.c.h.b16 %v3398
        %v3592 = vunpack.c.l.b16 %v3399
        %v3593 = vunpack.c.l.b16 %v3400
        %v3594 = vunpack.c.h.b16 %v3400
        %v3595 = vunpack.c.l.b16 %v3401
        %v3596 = vunpack.c.l.b16 %v3402
        %v3597 = vunpack.c.h.b16 %v3402
        %v3598 = vunpack.c.l.b16 %v3403
        %v3599 = vunpack.c.l.b16 %v3404
        %v3600 = vunpack.c.h.b16 %v3404
        %v3601 = vunpack.c.l.b16 %v3405
        %v3602 = vunpack.c.l.b16 %v3406
        %v3603 = vunpack.c.h.b16 %v3406
        %v3604 = vunpack.c.l.b16 %v3407
        %v3605 = vunpack.c.l.b16 %v3408
        %v3606 = vunpack.c.h.b16 %v3408
        %v3607 = vunpack.c.l.b16 %v3409
        %v3608 = vunpack.c.l.b16 %v3410
        %v3609 = vunpack.c.h.b16 %v3410
        %v3610 = vunpack.c.l.b16 %v3411
        %v3611 = vunpack.c.l.b16 %v3412
        %v3612 = vunpack.c.h.b16 %v3412
        %v3613 = vunpack.c.l.b16 %v3413
        %v3614 = vunpack.c.l.b16 %v3414
        %v3615 = vunpack.c.h.b16 %v3414
        %v3616 = vunpack.c.l.b16 %v3415
        %v3617 = vunpack.c.l.b16 %v3416
        %v3618 = vunpack.c.h.b16 %v3416
        %v3619 = vunpack.c.l.b16 %v3417
        %v3620 = vunpack.c.l.b16 %v3418
        %v3621 = vunpack.c.h.b16 %v3418
        %v3622 = vunpack.c.l.b16 %v3419
        %v3623 = vpack.c.b16 %v3530, %v3527
        %v3624 = vpack.c.b16 %v3531, %v3528
        %v3625 = vpack.c.b16 %v3532, %v3529
        %v3626 = vpack.c.b16 %v3536, %v3533
        %v3627 = vpack.c.b16 %v3537, %v3534
        %v3628 = vpack.c.b16 %v3538, %v3535
        %v3629 = vpack.c.b16 %v3542, %v3539
        %v3630 = vpack.c.b16 %v3543, %v3540
        %v3631 = vpack.c.b16 %v3544, %v3541
        %v3632 = vpack.c.b16 %v3548, %v3545
        %v3633 = vpack.c.b16 %v3549, %v3546
        %v3634 = vpack.c.b16 %v3550, %v3547
        %v3635 = vpack.c.b16 %v3554, %v3551
        %v3636 = vpack.c.b16 %v3555, %v3552
        %v3637 = vpack.c.b16 %v3556, %v3553
        %v3638 = vpack.c.b16 %v3560, %v3557
        %v3639 = vpack.c.b16 %v3561, %v3558
        %v3640 = vpack.c.b16 %v3562, %v3559
        %v3641 = vpack.c.b16 %v3566, %v3563
        %v3642 = vpack.c.b16 %v3567, %v3564
        %v3643 = vpack.c.b16 %v3568, %v3565
        %v3644 = vpack.c.b16 %v3572, %v3569
        %v3645 = vpack.c.b16 %v3573, %v3570
        %v3646 = vpack.c.b16 %v3574, %v3571
        %v3647 = vpack.c.b16 %v3578, %v3575
        %v3648 = vpack.c.b16 %v3579, %v3576
        %v3649 = vpack.c.b16 %v3580, %v3577
        %v3650 = vpack.c.b16 %v3584, %v3581
        %v3651 = vpack.c.b16 %v3585, %v3582
        %v3652 = vpack.c.b16 %v3586, %v3583
        %v3653 = vpack.c.b16 %v3590, %v3587
        %v3654 = vpack.c.b16 %v3591, %v3588
        %v3655 = vpack.c.b16 %v3592, %v3589
        %v3656 = vpack.c.b16 %v3596, %v3593
        %v3657 = vpack.c.b16 %v3597, %v3594
        %v3658 = vpack.c.b16 %v3598, %v3595
        %v3659 = vpack.c.b16 %v3602, %v3599
        %v3660 = vpack.c.b16 %v3603, %v3600
        %v3661 = vpack.c.b16 %v3604, %v3601
        %v3662 = vpack.c.b16 %v3608, %v3605
        %v3663 = vpack.c.b16 %v3609, %v3606
        %v3664 = vpack.c.b16 %v3610, %v3607
        %v3665 = vpack.c.b16 %v3614, %v3611
        %v3666 = vpack.c.b16 %v3615, %v3612
        %v3667 = vpack.c.b16 %v3616, %v3613
        %v3668 = vpack.c.b16 %v3620, %v3617
        %v3669 = vpack.c.b16 %v3621, %v3618
        %v3670 = vpack.c.b16 %v3622, %v3619
        %v3739 = vunpack.c.l.b16 %v3420
        %v3740 = vunpack.c.h.b16 %v3420
        %v3741 = vunpack.c.l.b16 %v3421
        %v3742 = vunpack.c.h.b16 %v3421
        %v3743 = vunpack.c.l.b16 %v3422
        %v3744 = vunpack.c.h.b16 %v3422
        %v3745 = vunpack.c.l.b16 %v3423
        %v3746 = vunpack.c.h.b16 %v3423
        %v3747 = vunpack.c.l.b16 %v3424
        %v3748 = vunpack.c.h.b16 %v3424
        %v3749 = vunpack.c.l.b16 %v3425
        %v3750 = vunpack.c.h.b16 %v3425
        %v3751 = vunpack.c.l.b16 %v3426
        %v3752 = vunpack.c.h.b16 %v3426
        %v3753 = vunpack.c.l.b16 %v3427
        %v3754 = vunpack.c.h.b16 %v3427
        %v3755 = vunpack.c.l.b16 %v3428
        %v3756 = vunpack.c.h.b16 %v3428
        %v3757 = vunpack.c.l.b16 %v3429
        %v3758 = vunpack.c.h.b16 %v3429
        %v3759 = vunpack.c.l.b16 %v3430
        %v3760 = vunpack.c.h.b16 %v3430
        %v3761 = vunpack.c.l.b16 %v3431
        %v3762 = vunpack.c.h.b16 %v3431
        %v3763 = vunpack.c.l.b16 %v3432
        %v3764 = vunpack.c.h.b16 %v3432
        %v3765 = vunpack.c.l.b16 %v3433
        %v3766 = vunpack.c.h.b16 %v3433
        %v3767 = vunpack.c.l.b16 %v3434
        %v3768 = vunpack.c.h.b16 %v3434
        %v3769 = vunpack.c.l.b16 %v3435
        %v3770 = vunpack.c.h.b16 %v3435
        %v3771 = vunpack.c.l.b16 %v3436
        %v3772 = vunpack.c.h.b16 %v3436
        %v3773 = vunpack.c.l.b16 %v3437
        %v3774 = vunpack.c.h.b16 %v3437
        %v3775 = vunpack.c.l.b16 %v3438
        %v3776 = vunpack.c.h.b16 %v3438
        %v3777 = vunpack.c.l.b16 %v3439
        %v3778 = vunpack.c.h.b16 %v3439
        %v3779 = vunpack.c.l.b16 %v3440
        %v3780 = vunpack.c.h.b16 %v3440
        %v3781 = vunpack.c.l.b16 %v3441
        %v3782 = vunpack.c.h.b16 %v3441
        %v3783 = vunpack.c.l.b16 %v3442
        %v3784 = vunpack.c.h.b16 %v3442
        %v3785 = vunpack.c.l.b16 %v3443
        %v3786 = vunpack.c.h.b16 %v3443
        %v3787 = vunpack.c.l.b16 %v3444
        %v3788 = vunpack.c.h.b16 %v3444
        %v3789 = vunpack.c.l.b16 %v3445
        %v3790 = vunpack.c.h.b16 %v3445
        %v3791 = vunpack.c.l.b16 %v3446
        %v3792 = vunpack.c.h.b16 %v3446
        %v3793 = vunpack.c.l.b16 %v3447
        %v3794 = vunpack.c.h.b16 %v3447
        %v3795 = vunpack.c.l.b16 %v3448
        %v3796 = vunpack.c.h.b16 %v3448
        %v3797 = vunpack.c.l.b16 %v3449
        %v3798 = vunpack.c.h.b16 %v3449
        %v3799 = vunpack.c.l.b16 %v3450
        %v3800 = vunpack.c.h.b16 %v3450
        %v3801 = vunpack.c.l.b16 %v3451
        %v3802 = vunpack.c.h.b16 %v3451
        %v3803 = vunpack.c.l.b16 %v3452
        %v3804 = vunpack.c.h.b16 %v3452
        %v3805 = vunpack.c.l.b16 %v3453
        %v3806 = vunpack.c.h.b16 %v3453
        %v3807 = vunpack.c.l.b16 %v3454
        %v3808 = vunpack.c.h.b16 %v3454
        %v3809 = vunpack.c.l.b16 %v3455
        %v3810 = vunpack.c.h.b16 %v3455
        %v3811 = vpack.c.b16 %v3741, %v3739
        %v3812 = vpack.c.b16 %v3742, %v3740
        %v3813 = vpack.c.b16 %v3745, %v3743
        %v3814 = vpack.c.b16 %v3746, %v3744
        %v3815 = vpack.c.b16 %v3749, %v3747
        %v3816 = vpack.c.b16 %v3750, %v3748
        %v3817 = vpack.c.b16 %v3753, %v3751
        %v3818 = vpack.c.b16 %v3754, %v3752
        %v3819 = vpack.c.b16 %v3757, %v3755
        %v3820 = vpack.c.b16 %v3758, %v3756
        %v3821 = vpack.c.b16 %v3761, %v3759
        %v3822 = vpack.c.b16 %v3762, %v3760
        %v3823 = vpack.c.b16 %v3765, %v3763
        %v3824 = vpack.c.b16 %v3766, %v3764
        %v3825 = vpack.c.b16 %v3769, %v3767
        %v3826 = vpack.c.b16 %v3770, %v3768
        %v3827 = vpack.c.b16 %v3773, %v3771
        %v3828 = vpack.c.b16 %v3774, %v3772
        %v3829 = vpack.c.b16 %v3777, %v3775
        %v3830 = vpack.c.b16 %v3778, %v3776
        %v3831 = vpack.c.b16 %v3781, %v3779
        %v3832 = vpack.c.b16 %v3782, %v3780
        %v3833 = vpack.c.b16 %v3785, %v3783
        %v3834 = vpack.c.b16 %v3786, %v3784
        %v3835 = vpack.c.b16 %v3789, %v3787
        %v3836 = vpack.c.b16 %v3790, %v3788
        %v3837 = vpack.c.b16 %v3793, %v3791
        %v3838 = vpack.c.b16 %v3794, %v3792
        %v3839 = vpack.c.b16 %v3797, %v3795
        %v3840 = vpack.c.b16 %v3798, %v3796
        %v3841 = vpack.c.b16 %v3801, %v3799
        %v3842 = vpack.c.b16 %v3802, %v3800
        %v3843 = vpack.c.b16 %v3805, %v3803
        %v3844 = vpack.c.b16 %v3806, %v3804
        %v3845 = vpack.c.b16 %v3809, %v3807
        %v3846 = vpack.c.b16 %v3810, %v3808
        %v3884 = vsel %vm623, %v3625, 0
        %v3887 = vsel %vm623, %v3628, 0
        %v3890 = vsel %vm623, %v3631, 0
        %v3893 = vsel %vm623, %v3634, 0
        %v3896 = vsel %vm623, %v3637, 0
        %v3899 = vsel %vm623, %v3640, 0
        %v3902 = vsel %vm623, %v3643, 0
        %v3905 = vsel %vm623, %v3646, 0
        %v3908 = vsel %vm623, %v3649, 0
        %v3911 = vsel %vm623, %v3652, 0
        %v3914 = vsel %vm623, %v3655, 0
        %v3917 = vsel %vm623, %v3658, 0
        %v3920 = vsel %vm623, %v3661, 0
        %v3923 = vsel %vm623, %v3664, 0
        %v3926 = vsel %vm623, %v3667, 0
        %v3929 = vsel %vm623, %v3670, 0
        %3931 = vmatpush.bf16.msra.mxu0 %v3825
        %3932 = vmatpush.bf16.msra.mxu0 %v3823
        %3933 = vmatpush.bf16.msra.mxu0 %v3821
        %3934 = vmatpush.bf16.msra.mxu0 %v3819
        %3935 = vmatpush.bf16.msra.mxu0 %v3817
        %3936 = vmatpush.bf16.msra.mxu0 %v3815
        %3937 = vmatpush.bf16.msra.mxu0 %v3813
        %3938 = vmatpush.bf16.msra.mxu0 %v3811
        %3939 = vmatmul.bf16.gmra.mxu0 %v3623
        %v3940 = vpop.f32.mrf.mxu0
        %v3941 = vadd.f32 %v3459, %v3940
        %v3942 = vpop.f32.mrf.mxu0
        %v3943 = vadd.f32 %v3459, %v3942
        %3944 = vmatmul.bf16.gmra.mxu0 %v3626
        %v3945 = vpop.f32.mrf.mxu0
        %v3946 = vadd.f32 %v3459, %v3945
        %v3947 = vpop.f32.mrf.mxu0
        %v3948 = vadd.f32 %v3459, %v3947
        %3949 = vmatmul.bf16.gmra.mxu0 %v3629
        %v3950 = vpop.f32.mrf.mxu0
        %v3951 = vadd.f32 %v3459, %v3950
        %v3952 = vpop.f32.mrf.mxu0
        %v3953 = vadd.f32 %v3459, %v3952
        %3954 = vmatmul.bf16.gmra.mxu0 %v3632
        %v3955 = vpop.f32.mrf.mxu0
        %v3956 = vadd.f32 %v3459, %v3955
        %v3957 = vpop.f32.mrf.mxu0
        %v3958 = vadd.f32 %v3459, %v3957
        %3959 = vmatmul.bf16.gmra.mxu0 %v3635
        %v3960 = vpop.f32.mrf.mxu0
        %v3961 = vadd.f32 %v3459, %v3960
        %v3962 = vpop.f32.mrf.mxu0
        %v3963 = vadd.f32 %v3459, %v3962
        %3964 = vmatmul.bf16.gmra.mxu0 %v3638
        %v3965 = vpop.f32.mrf.mxu0
        %v3966 = vadd.f32 %v3459, %v3965
        %v3967 = vpop.f32.mrf.mxu0
        %v3968 = vadd.f32 %v3459, %v3967
        %3969 = vmatmul.bf16.gmra.mxu0 %v3641
        %v3970 = vpop.f32.mrf.mxu0
        %v3971 = vadd.f32 %v3459, %v3970
        %v3972 = vpop.f32.mrf.mxu0
        %v3973 = vadd.f32 %v3459, %v3972
        %3974 = vmatmul.bf16.gmra.mxu0 %v3644
        %v3975 = vpop.f32.mrf.mxu0
        %v3976 = vadd.f32 %v3459, %v3975
        %v3977 = vpop.f32.mrf.mxu0
        %v3978 = vadd.f32 %v3459, %v3977
        %3979 = vmatmul.bf16.gmra.mxu0 %v3647
        %v3980 = vpop.f32.mrf.mxu0
        %v3981 = vadd.f32 %v3459, %v3980
        %v3982 = vpop.f32.mrf.mxu0
        %v3983 = vadd.f32 %v3459, %v3982
        %3984 = vmatmul.bf16.gmra.mxu0 %v3650
        %v3985 = vpop.f32.mrf.mxu0
        %v3986 = vadd.f32 %v3459, %v3985
        %v3987 = vpop.f32.mrf.mxu0
        %v3988 = vadd.f32 %v3459, %v3987
        %3989 = vmatmul.bf16.gmra.mxu0 %v3653
        %v3990 = vpop.f32.mrf.mxu0
        %v3991 = vadd.f32 %v3459, %v3990
        %v3992 = vpop.f32.mrf.mxu0
        %v3993 = vadd.f32 %v3459, %v3992
        %3994 = vmatmul.bf16.gmra.mxu0 %v3656
        %v3995 = vpop.f32.mrf.mxu0
        %v3996 = vadd.f32 %v3459, %v3995
        %v3997 = vpop.f32.mrf.mxu0
        %v3998 = vadd.f32 %v3459, %v3997
        %3999 = vmatmul.bf16.gmra.mxu0 %v3659
        %v4000 = vpop.f32.mrf.mxu0
        %v4001 = vadd.f32 %v3459, %v4000
        %v4002 = vpop.f32.mrf.mxu0
        %v4003 = vadd.f32 %v3459, %v4002
        %4004 = vmatmul.bf16.gmra.mxu0 %v3662
        %v4005 = vpop.f32.mrf.mxu0
        %v4006 = vadd.f32 %v3459, %v4005
        %v4007 = vpop.f32.mrf.mxu0
        %v4008 = vadd.f32 %v3459, %v4007
        %4009 = vmatmul.bf16.gmra.mxu0 %v3665
        %v4010 = vpop.f32.mrf.mxu0
        %v4011 = vadd.f32 %v3459, %v4010
        %v4012 = vpop.f32.mrf.mxu0
        %v4013 = vadd.f32 %v3459, %v4012
        %4014 = vmatmul.bf16.gmra.mxu0 %v3668
        %v4015 = vpop.f32.mrf.mxu0
        %v4016 = vadd.f32 %v3459, %v4015
        %v4017 = vpop.f32.mrf.mxu0
        %v4018 = vadd.f32 %v3459, %v4017
        %4019 = vdwg.mxu0
        %4020 = vmatpush.bf16.msra.mxu0 %v3841
        %4021 = vmatpush.bf16.msra.mxu0 %v3839
        %4022 = vmatpush.bf16.msra.mxu0 %v3837
        %4023 = vmatpush.bf16.msra.mxu0 %v3835
        %4024 = vmatpush.bf16.msra.mxu0 %v3833
        %4025 = vmatpush.bf16.msra.mxu0 %v3831
        %4026 = vmatpush.bf16.msra.mxu0 %v3829
        %4027 = vmatpush.bf16.msra.mxu0 %v3827
        %4028 = vmatmul.bf16.gmra.mxu0 %v3624
        %v4029 = vpop.f32.mrf.mxu0
        %v4030 = vadd.f32 %v3941, %v4029
        %v4031 = vpop.f32.mrf.mxu0
        %v4032 = vadd.f32 %v3943, %v4031
        %4033 = vmatmul.bf16.gmra.mxu0 %v3627
        %v4034 = vpop.f32.mrf.mxu0
        %v4035 = vadd.f32 %v3946, %v4034
        %v4036 = vpop.f32.mrf.mxu0
        %v4037 = vadd.f32 %v3948, %v4036
        %4038 = vmatmul.bf16.gmra.mxu0 %v3630
        %v4039 = vpop.f32.mrf.mxu0
        %v4040 = vadd.f32 %v3951, %v4039
        %v4041 = vpop.f32.mrf.mxu0
        %v4042 = vadd.f32 %v3953, %v4041
        %4043 = vmatmul.bf16.gmra.mxu0 %v3633
        %v4044 = vpop.f32.mrf.mxu0
        %v4045 = vadd.f32 %v3956, %v4044
        %v4046 = vpop.f32.mrf.mxu0
        %v4047 = vadd.f32 %v3958, %v4046
        %4048 = vmatmul.bf16.gmra.mxu0 %v3636
        %v4049 = vpop.f32.mrf.mxu0
        %v4050 = vadd.f32 %v3961, %v4049
        %v4051 = vpop.f32.mrf.mxu0
        %v4052 = vadd.f32 %v3963, %v4051
        %4053 = vmatmul.bf16.gmra.mxu0 %v3639
        %v4054 = vpop.f32.mrf.mxu0
        %v4055 = vadd.f32 %v3966, %v4054
        %v4056 = vpop.f32.mrf.mxu0
        %v4057 = vadd.f32 %v3968, %v4056
        %4058 = vmatmul.bf16.gmra.mxu0 %v3642
        %v4059 = vpop.f32.mrf.mxu0
        %v4060 = vadd.f32 %v3971, %v4059
        %v4061 = vpop.f32.mrf.mxu0
        %v4062 = vadd.f32 %v3973, %v4061
        %4063 = vmatmul.bf16.gmra.mxu0 %v3645
        %v4064 = vpop.f32.mrf.mxu0
        %v4065 = vadd.f32 %v3976, %v4064
        %v4066 = vpop.f32.mrf.mxu0
        %v4067 = vadd.f32 %v3978, %v4066
        %4068 = vmatmul.bf16.gmra.mxu0 %v3648
        %v4069 = vpop.f32.mrf.mxu0
        %v4070 = vadd.f32 %v3981, %v4069
        %v4071 = vpop.f32.mrf.mxu0
        %v4072 = vadd.f32 %v3983, %v4071
        %4073 = vmatmul.bf16.gmra.mxu0 %v3651
        %v4074 = vpop.f32.mrf.mxu0
        %v4075 = vadd.f32 %v3986, %v4074
        %v4076 = vpop.f32.mrf.mxu0
        %v4077 = vadd.f32 %v3988, %v4076
        %4078 = vmatmul.bf16.gmra.mxu0 %v3654
        %v4079 = vpop.f32.mrf.mxu0
        %v4080 = vadd.f32 %v3991, %v4079
        %v4081 = vpop.f32.mrf.mxu0
        %v4082 = vadd.f32 %v3993, %v4081
        %4083 = vmatmul.bf16.gmra.mxu0 %v3657
        %v4084 = vpop.f32.mrf.mxu0
        %v4085 = vadd.f32 %v3996, %v4084
        %v4086 = vpop.f32.mrf.mxu0
        %v4087 = vadd.f32 %v3998, %v4086
        %4088 = vmatmul.bf16.gmra.mxu0 %v3660
        %v4089 = vpop.f32.mrf.mxu0
        %v4090 = vadd.f32 %v4001, %v4089
        %v4091 = vpop.f32.mrf.mxu0
        %v4092 = vadd.f32 %v4003, %v4091
        %4093 = vmatmul.bf16.gmra.mxu0 %v3663
        %v4094 = vpop.f32.mrf.mxu0
        %v4095 = vadd.f32 %v4006, %v4094
        %v4096 = vpop.f32.mrf.mxu0
        %v4097 = vadd.f32 %v4008, %v4096
        %4098 = vmatmul.bf16.gmra.mxu0 %v3666
        %v4099 = vpop.f32.mrf.mxu0
        %v4100 = vadd.f32 %v4011, %v4099
        %v4101 = vpop.f32.mrf.mxu0
        %v4102 = vadd.f32 %v4013, %v4101
        %4103 = vmatmul.bf16.gmra.mxu0 %v3669
        %v4104 = vpop.f32.mrf.mxu0
        %v4105 = vadd.f32 %v4016, %v4104
        %v4106 = vpop.f32.mrf.mxu0
        %v4107 = vadd.f32 %v4018, %v4106
        %4108 = vdwg.mxu0
        %4109 = vmatpush.bf16.msra.mxu0 0
        %4110 = vmatpush.bf16.msra.mxu0 0
        %4111 = vmatpush.bf16.msra.mxu0 0
        %4112 = vmatpush.bf16.msra.mxu0 0
        %4113 = vmatpush.bf16.msra.mxu0 0
        %4114 = vmatpush.bf16.msra.mxu0 0
        %4115 = vmatpush.bf16.msra.mxu0 %v3845
        %4116 = vmatpush.bf16.msra.mxu0 %v3843
        %4117 = vmatmul.bf16.gmra.mxu0 %v3884
        %v4118 = vpop.f32.mrf.mxu0
        %v4119 = vadd.f32 %v4030, %v4118
        %v4120 = vpop.f32.mrf.mxu0
        %v4121 = vadd.f32 %v4032, %v4120
        %4122 = vmatmul.bf16.gmra.mxu0 %v3887
        %v4123 = vpop.f32.mrf.mxu0
        %v4124 = vadd.f32 %v4035, %v4123
        %v4125 = vpop.f32.mrf.mxu0
        %v4126 = vadd.f32 %v4037, %v4125
        %4127 = vmatmul.bf16.gmra.mxu0 %v3890
        %v4128 = vpop.f32.mrf.mxu0
        %v4129 = vadd.f32 %v4040, %v4128
        %v4130 = vpop.f32.mrf.mxu0
        %v4131 = vadd.f32 %v4042, %v4130
        %4132 = vmatmul.bf16.gmra.mxu0 %v3893
        %v4133 = vpop.f32.mrf.mxu0
        %v4134 = vadd.f32 %v4045, %v4133
        %v4135 = vpop.f32.mrf.mxu0
        %v4136 = vadd.f32 %v4047, %v4135
        %4137 = vmatmul.bf16.gmra.mxu0 %v3896
        %v4138 = vpop.f32.mrf.mxu0
        %v4139 = vadd.f32 %v4050, %v4138
        %v4140 = vpop.f32.mrf.mxu0
        %v4141 = vadd.f32 %v4052, %v4140
        %4142 = vmatmul.bf16.gmra.mxu0 %v3899
        %v4143 = vpop.f32.mrf.mxu0
        %v4144 = vadd.f32 %v4055, %v4143
        %v4145 = vpop.f32.mrf.mxu0
        %v4146 = vadd.f32 %v4057, %v4145
        %4147 = vmatmul.bf16.gmra.mxu0 %v3902
        %v4148 = vpop.f32.mrf.mxu0
        %v4149 = vadd.f32 %v4060, %v4148
        %v4150 = vpop.f32.mrf.mxu0
        %v4151 = vadd.f32 %v4062, %v4150
        %4152 = vmatmul.bf16.gmra.mxu0 %v3905
        %v4153 = vpop.f32.mrf.mxu0
        %v4154 = vadd.f32 %v4065, %v4153
        %v4155 = vpop.f32.mrf.mxu0
        %v4156 = vadd.f32 %v4067, %v4155
        %4157 = vmatmul.bf16.gmra.mxu0 %v3908
        %v4158 = vpop.f32.mrf.mxu0
        %v4159 = vadd.f32 %v4070, %v4158
        %v4160 = vpop.f32.mrf.mxu0
        %v4161 = vadd.f32 %v4072, %v4160
        %4162 = vmatmul.bf16.gmra.mxu0 %v3911
        %v4163 = vpop.f32.mrf.mxu0
        %v4164 = vadd.f32 %v4075, %v4163
        %v4165 = vpop.f32.mrf.mxu0
        %v4166 = vadd.f32 %v4077, %v4165
        %4167 = vmatmul.bf16.gmra.mxu0 %v3914
        %v4168 = vpop.f32.mrf.mxu0
        %v4169 = vadd.f32 %v4080, %v4168
        %v4170 = vpop.f32.mrf.mxu0
        %v4171 = vadd.f32 %v4082, %v4170
        %4172 = vmatmul.bf16.gmra.mxu0 %v3917
        %v4173 = vpop.f32.mrf.mxu0
        %v4174 = vadd.f32 %v4085, %v4173
        %v4175 = vpop.f32.mrf.mxu0
        %v4176 = vadd.f32 %v4087, %v4175
        %4177 = vmatmul.bf16.gmra.mxu0 %v3920
        %v4178 = vpop.f32.mrf.mxu0
        %v4179 = vadd.f32 %v4090, %v4178
        %v4180 = vpop.f32.mrf.mxu0
        %v4181 = vadd.f32 %v4092, %v4180
        %4182 = vmatmul.bf16.gmra.mxu0 %v3923
        %v4183 = vpop.f32.mrf.mxu0
        %v4184 = vadd.f32 %v4095, %v4183
        %v4185 = vpop.f32.mrf.mxu0
        %v4186 = vadd.f32 %v4097, %v4185
        %4187 = vmatmul.bf16.gmra.mxu0 %v3926
        %v4188 = vpop.f32.mrf.mxu0
        %v4189 = vadd.f32 %v4100, %v4188
        %v4190 = vpop.f32.mrf.mxu0
        %v4191 = vadd.f32 %v4102, %v4190
        %4192 = vmatmul.bf16.gmra.mxu0 %v3929
        %v4193 = vpop.f32.mrf.mxu0
        %v4194 = vadd.f32 %v4105, %v4193
        %v4195 = vpop.f32.mrf.mxu0
        %v4196 = vadd.f32 %v4107, %v4195
        %4197 = vdwg.mxu0
        %4198 = vmatpush.bf16.msra.mxu0 %v3826
        %4199 = vmatpush.bf16.msra.mxu0 %v3824
        %4200 = vmatpush.bf16.msra.mxu0 %v3822
        %4201 = vmatpush.bf16.msra.mxu0 %v3820
        %4202 = vmatpush.bf16.msra.mxu0 %v3818
        %4203 = vmatpush.bf16.msra.mxu0 %v3816
        %4204 = vmatpush.bf16.msra.mxu0 %v3814
        %4205 = vmatpush.bf16.msra.mxu0 %v3812
        %4206 = vmatmul.bf16.gmra.mxu0 %v3623
        %v4207 = vpop.f32.mrf.mxu0
        %v4208 = vadd.f32 %v3460, %v4207
        %v4209 = vpop.f32.mrf.mxu0
        %v4210 = vadd.f32 %v3460, %v4209
        %4211 = vmatmul.bf16.gmra.mxu0 %v3626
        %v4212 = vpop.f32.mrf.mxu0
        %v4213 = vadd.f32 %v3460, %v4212
        %v4214 = vpop.f32.mrf.mxu0
        %v4215 = vadd.f32 %v3460, %v4214
        %4216 = vmatmul.bf16.gmra.mxu0 %v3629
        %v4217 = vpop.f32.mrf.mxu0
        %v4218 = vadd.f32 %v3460, %v4217
        %v4219 = vpop.f32.mrf.mxu0
        %v4220 = vadd.f32 %v3460, %v4219
        %4221 = vmatmul.bf16.gmra.mxu0 %v3632
        %v4222 = vpop.f32.mrf.mxu0
        %v4223 = vadd.f32 %v3460, %v4222
        %v4224 = vpop.f32.mrf.mxu0
        %v4225 = vadd.f32 %v3460, %v4224
        %4226 = vmatmul.bf16.gmra.mxu0 %v3635
        %v4227 = vpop.f32.mrf.mxu0
        %v4228 = vadd.f32 %v3460, %v4227
        %v4229 = vpop.f32.mrf.mxu0
        %v4230 = vadd.f32 %v3460, %v4229
        %4231 = vmatmul.bf16.gmra.mxu0 %v3638
        %v4232 = vpop.f32.mrf.mxu0
        %v4233 = vadd.f32 %v3460, %v4232
        %v4234 = vpop.f32.mrf.mxu0
        %v4235 = vadd.f32 %v3460, %v4234
        %4236 = vmatmul.bf16.gmra.mxu0 %v3641
        %v4237 = vpop.f32.mrf.mxu0
        %v4238 = vadd.f32 %v3460, %v4237
        %v4239 = vpop.f32.mrf.mxu0
        %v4240 = vadd.f32 %v3460, %v4239
        %4241 = vmatmul.bf16.gmra.mxu0 %v3644
        %v4242 = vpop.f32.mrf.mxu0
        %v4243 = vadd.f32 %v3460, %v4242
        %v4244 = vpop.f32.mrf.mxu0
        %v4245 = vadd.f32 %v3460, %v4244
        %4246 = vmatmul.bf16.gmra.mxu0 %v3647
        %v4247 = vpop.f32.mrf.mxu0
        %v4248 = vadd.f32 %v3460, %v4247
        %v4249 = vpop.f32.mrf.mxu0
        %v4250 = vadd.f32 %v3460, %v4249
        %4251 = vmatmul.bf16.gmra.mxu0 %v3650
        %v4252 = vpop.f32.mrf.mxu0
        %v4253 = vadd.f32 %v3460, %v4252
        %v4254 = vpop.f32.mrf.mxu0
        %v4255 = vadd.f32 %v3460, %v4254
        %4256 = vmatmul.bf16.gmra.mxu0 %v3653
        %v4257 = vpop.f32.mrf.mxu0
        %v4258 = vadd.f32 %v3460, %v4257
        %v4259 = vpop.f32.mrf.mxu0
        %v4260 = vadd.f32 %v3460, %v4259
        %4261 = vmatmul.bf16.gmra.mxu0 %v3656
        %v4262 = vpop.f32.mrf.mxu0
        %v4263 = vadd.f32 %v3460, %v4262
        %v4264 = vpop.f32.mrf.mxu0
        %v4265 = vadd.f32 %v3460, %v4264
        %4266 = vmatmul.bf16.gmra.mxu0 %v3659
        %v4267 = vpop.f32.mrf.mxu0
        %v4268 = vadd.f32 %v3460, %v4267
        %v4269 = vpop.f32.mrf.mxu0
        %v4270 = vadd.f32 %v3460, %v4269
        %4271 = vmatmul.bf16.gmra.mxu0 %v3662
        %v4272 = vpop.f32.mrf.mxu0
        %v4273 = vadd.f32 %v3460, %v4272
        %v4274 = vpop.f32.mrf.mxu0
        %v4275 = vadd.f32 %v3460, %v4274
        %4276 = vmatmul.bf16.gmra.mxu0 %v3665
        %v4277 = vpop.f32.mrf.mxu0
        %v4278 = vadd.f32 %v3460, %v4277
        %v4279 = vpop.f32.mrf.mxu0
        %v4280 = vadd.f32 %v3460, %v4279
        %4281 = vmatmul.bf16.gmra.mxu0 %v3668
        %v4282 = vpop.f32.mrf.mxu0
        %v4283 = vadd.f32 %v3460, %v4282
        %v4284 = vpop.f32.mrf.mxu0
        %v4285 = vadd.f32 %v3460, %v4284
        %4286 = vdwg.mxu0
        %4287 = vmatpush.bf16.msra.mxu0 %v3842
        %4288 = vmatpush.bf16.msra.mxu0 %v3840
        %4289 = vmatpush.bf16.msra.mxu0 %v3838
        %4290 = vmatpush.bf16.msra.mxu0 %v3836
        %4291 = vmatpush.bf16.msra.mxu0 %v3834
        %4292 = vmatpush.bf16.msra.mxu0 %v3832
        %4293 = vmatpush.bf16.msra.mxu0 %v3830
        %4294 = vmatpush.bf16.msra.mxu0 %v3828
        %4295 = vmatmul.bf16.gmra.mxu0 %v3624
        %v4296 = vpop.f32.mrf.mxu0
        %v4297 = vadd.f32 %v4208, %v4296
        %v4298 = vpop.f32.mrf.mxu0
        %v4299 = vadd.f32 %v4210, %v4298
        %4300 = vmatmul.bf16.gmra.mxu0 %v3627
        %v4301 = vpop.f32.mrf.mxu0
        %v4302 = vadd.f32 %v4213, %v4301
        %v4303 = vpop.f32.mrf.mxu0
        %v4304 = vadd.f32 %v4215, %v4303
        %4305 = vmatmul.bf16.gmra.mxu0 %v3630
        %v4306 = vpop.f32.mrf.mxu0
        %v4307 = vadd.f32 %v4218, %v4306
        %v4308 = vpop.f32.mrf.mxu0
        %v4309 = vadd.f32 %v4220, %v4308
        %4310 = vmatmul.bf16.gmra.mxu0 %v3633
        %v4311 = vpop.f32.mrf.mxu0
        %v4312 = vadd.f32 %v4223, %v4311
        %v4313 = vpop.f32.mrf.mxu0
        %v4314 = vadd.f32 %v4225, %v4313
        %4315 = vmatmul.bf16.gmra.mxu0 %v3636
        %v4316 = vpop.f32.mrf.mxu0
        %v4317 = vadd.f32 %v4228, %v4316
        %v4318 = vpop.f32.mrf.mxu0
        %v4319 = vadd.f32 %v4230, %v4318
        %4320 = vmatmul.bf16.gmra.mxu0 %v3639
        %v4321 = vpop.f32.mrf.mxu0
        %v4322 = vadd.f32 %v4233, %v4321
        %v4323 = vpop.f32.mrf.mxu0
        %v4324 = vadd.f32 %v4235, %v4323
        %4325 = vmatmul.bf16.gmra.mxu0 %v3642
        %v4326 = vpop.f32.mrf.mxu0
        %v4327 = vadd.f32 %v4238, %v4326
        %v4328 = vpop.f32.mrf.mxu0
        %v4329 = vadd.f32 %v4240, %v4328
        %4330 = vmatmul.bf16.gmra.mxu0 %v3645
        %v4331 = vpop.f32.mrf.mxu0
        %v4332 = vadd.f32 %v4243, %v4331
        %v4333 = vpop.f32.mrf.mxu0
        %v4334 = vadd.f32 %v4245, %v4333
        %4335 = vmatmul.bf16.gmra.mxu0 %v3648
        %v4336 = vpop.f32.mrf.mxu0
        %v4337 = vadd.f32 %v4248, %v4336
        %v4338 = vpop.f32.mrf.mxu0
        %v4339 = vadd.f32 %v4250, %v4338
        %4340 = vmatmul.bf16.gmra.mxu0 %v3651
        %v4341 = vpop.f32.mrf.mxu0
        %v4342 = vadd.f32 %v4253, %v4341
        %v4343 = vpop.f32.mrf.mxu0
        %v4344 = vadd.f32 %v4255, %v4343
        %4345 = vmatmul.bf16.gmra.mxu0 %v3654
        %v4346 = vpop.f32.mrf.mxu0
        %v4347 = vadd.f32 %v4258, %v4346
        %v4348 = vpop.f32.mrf.mxu0
        %v4349 = vadd.f32 %v4260, %v4348
        %4350 = vmatmul.bf16.gmra.mxu0 %v3657
        %v4351 = vpop.f32.mrf.mxu0
        %v4352 = vadd.f32 %v4263, %v4351
        %v4353 = vpop.f32.mrf.mxu0
        %v4354 = vadd.f32 %v4265, %v4353
        %4355 = vmatmul.bf16.gmra.mxu0 %v3660
        %v4356 = vpop.f32.mrf.mxu0
        %v4357 = vadd.f32 %v4268, %v4356
        %v4358 = vpop.f32.mrf.mxu0
        %v4359 = vadd.f32 %v4270, %v4358
        %4360 = vmatmul.bf16.gmra.mxu0 %v3663
        %v4361 = vpop.f32.mrf.mxu0
        %v4362 = vadd.f32 %v4273, %v4361
        %v4363 = vpop.f32.mrf.mxu0
        %v4364 = vadd.f32 %v4275, %v4363
        %4365 = vmatmul.bf16.gmra.mxu0 %v3666
        %v4366 = vpop.f32.mrf.mxu0
        %v4367 = vadd.f32 %v4278, %v4366
        %v4368 = vpop.f32.mrf.mxu0
        %v4369 = vadd.f32 %v4280, %v4368
        %4370 = vmatmul.bf16.gmra.mxu0 %v3669
        %v4371 = vpop.f32.mrf.mxu0
        %v4372 = vadd.f32 %v4283, %v4371
        %v4373 = vpop.f32.mrf.mxu0
        %v4374 = vadd.f32 %v4285, %v4373
        %4375 = vdwg.mxu0
        %4376 = vmatpush.bf16.msra.mxu0 0
        %4377 = vmatpush.bf16.msra.mxu0 0
        %4378 = vmatpush.bf16.msra.mxu0 0
        %4379 = vmatpush.bf16.msra.mxu0 0
        %4380 = vmatpush.bf16.msra.mxu0 0
        %4381 = vmatpush.bf16.msra.mxu0 0
        %4382 = vmatpush.bf16.msra.mxu0 %v3846
        %4383 = vmatpush.bf16.msra.mxu0 %v3844
        %4384 = vmatmul.bf16.gmra.mxu0 %v3884
        %v4385 = vpop.f32.mrf.mxu0
        %v4386 = vadd.f32 %v4297, %v4385
        %v4387 = vpop.f32.mrf.mxu0
        %v4388 = vadd.f32 %v4299, %v4387
        %4389 = vmatmul.bf16.gmra.mxu0 %v3887
        %v4390 = vpop.f32.mrf.mxu0
        %v4391 = vadd.f32 %v4302, %v4390
        %v4392 = vpop.f32.mrf.mxu0
        %v4393 = vadd.f32 %v4304, %v4392
        %4394 = vmatmul.bf16.gmra.mxu0 %v3890
        %v4395 = vpop.f32.mrf.mxu0
        %v4396 = vadd.f32 %v4307, %v4395
        %v4397 = vpop.f32.mrf.mxu0
        %v4398 = vadd.f32 %v4309, %v4397
        %4399 = vmatmul.bf16.gmra.mxu0 %v3893
        %v4400 = vpop.f32.mrf.mxu0
        %v4401 = vadd.f32 %v4312, %v4400
        %v4402 = vpop.f32.mrf.mxu0
        %v4403 = vadd.f32 %v4314, %v4402
        %4404 = vmatmul.bf16.gmra.mxu0 %v3896
        %v4405 = vpop.f32.mrf.mxu0
        %v4406 = vadd.f32 %v4317, %v4405
        %v4407 = vpop.f32.mrf.mxu0
        %v4408 = vadd.f32 %v4319, %v4407
        %4409 = vmatmul.bf16.gmra.mxu0 %v3899
        %v4410 = vpop.f32.mrf.mxu0
        %v4411 = vadd.f32 %v4322, %v4410
        %v4412 = vpop.f32.mrf.mxu0
        %v4413 = vadd.f32 %v4324, %v4412
        %4414 = vmatmul.bf16.gmra.mxu0 %v3902
        %v4415 = vpop.f32.mrf.mxu0
        %v4416 = vadd.f32 %v4327, %v4415
        %v4417 = vpop.f32.mrf.mxu0
        %v4418 = vadd.f32 %v4329, %v4417
        %4419 = vmatmul.bf16.gmra.mxu0 %v3905
        %v4420 = vpop.f32.mrf.mxu0
        %v4421 = vadd.f32 %v4332, %v4420
        %v4422 = vpop.f32.mrf.mxu0
        %v4423 = vadd.f32 %v4334, %v4422
        %4424 = vmatmul.bf16.gmra.mxu0 %v3908
        %v4425 = vpop.f32.mrf.mxu0
        %v4426 = vadd.f32 %v4337, %v4425
        %v4427 = vpop.f32.mrf.mxu0
        %v4428 = vadd.f32 %v4339, %v4427
        %4429 = vmatmul.bf16.gmra.mxu0 %v3911
        %v4430 = vpop.f32.mrf.mxu0
        %v4431 = vadd.f32 %v4342, %v4430
        %v4432 = vpop.f32.mrf.mxu0
        %v4433 = vadd.f32 %v4344, %v4432
        %4434 = vmatmul.bf16.gmra.mxu0 %v3914
        %v4435 = vpop.f32.mrf.mxu0
        %v4436 = vadd.f32 %v4347, %v4435
        %v4437 = vpop.f32.mrf.mxu0
        %v4438 = vadd.f32 %v4349, %v4437
        %4439 = vmatmul.bf16.gmra.mxu0 %v3917
        %v4440 = vpop.f32.mrf.mxu0
        %v4441 = vadd.f32 %v4352, %v4440
        %v4442 = vpop.f32.mrf.mxu0
        %v4443 = vadd.f32 %v4354, %v4442
        %4444 = vmatmul.bf16.gmra.mxu0 %v3920
        %v4445 = vpop.f32.mrf.mxu0
        %v4446 = vadd.f32 %v4357, %v4445
        %v4447 = vpop.f32.mrf.mxu0
        %v4448 = vadd.f32 %v4359, %v4447
        %4449 = vmatmul.bf16.gmra.mxu0 %v3923
        %v4450 = vpop.f32.mrf.mxu0
        %v4451 = vadd.f32 %v4362, %v4450
        %v4452 = vpop.f32.mrf.mxu0
        %v4453 = vadd.f32 %v4364, %v4452
        %4454 = vmatmul.bf16.gmra.mxu0 %v3926
        %v4455 = vpop.f32.mrf.mxu0
        %v4456 = vadd.f32 %v4367, %v4455
        %v4457 = vpop.f32.mrf.mxu0
        %v4458 = vadd.f32 %v4369, %v4457
        %4459 = vmatmul.bf16.gmra.mxu0 %v3929
        %v4460 = vpop.f32.mrf.mxu0
        %v4461 = vadd.f32 %v4372, %v4460
        %v4462 = vpop.f32.mrf.mxu0
        %v4463 = vadd.f32 %v4374, %v4462
        %4464 = vdwg.mxu0
        %v4465 = vmax.f32 %v4119, 0.0
        %v4466 = vmax.f32 %v4386, 0.0
        %v4467 = vmax.f32 %v4121, 0.0
        %v4468 = vmax.f32 %v4388, 0.0
        %v4469 = vmax.f32 %v4124, 0.0
        %v4470 = vmax.f32 %v4391, 0.0
        %v4471 = vmax.f32 %v4126, 0.0
        %v4472 = vmax.f32 %v4393, 0.0
        %v4473 = vmax.f32 %v4129, 0.0
        %v4474 = vmax.f32 %v4396, 0.0
        %v4475 = vmax.f32 %v4131, 0.0
        %v4476 = vmax.f32 %v4398, 0.0
        %v4477 = vmax.f32 %v4134, 0.0
        %v4478 = vmax.f32 %v4401, 0.0
        %v4479 = vmax.f32 %v4136, 0.0
        %v4480 = vmax.f32 %v4403, 0.0
        %v4481 = vmax.f32 %v4139, 0.0
        %v4482 = vmax.f32 %v4406, 0.0
        %v4483 = vmax.f32 %v4141, 0.0
        %v4484 = vmax.f32 %v4408, 0.0
        %v4485 = vmax.f32 %v4144, 0.0
        %v4486 = vmax.f32 %v4411, 0.0
        %v4487 = vmax.f32 %v4146, 0.0
        %v4488 = vmax.f32 %v4413, 0.0
        %v4489 = vmax.f32 %v4149, 0.0
        %v4490 = vmax.f32 %v4416, 0.0
        %v4491 = vmax.f32 %v4151, 0.0
        %v4492 = vmax.f32 %v4418, 0.0
        %v4493 = vmax.f32 %v4154, 0.0
        %v4494 = vmax.f32 %v4421, 0.0
        %v4495 = vmax.f32 %v4156, 0.0
        %v4496 = vmax.f32 %v4423, 0.0
        %v4497 = vmax.f32 %v4159, 0.0
        %v4498 = vmax.f32 %v4426, 0.0
        %v4499 = vmax.f32 %v4161, 0.0
        %v4500 = vmax.f32 %v4428, 0.0
        %v4501 = vmax.f32 %v4164, 0.0
        %v4502 = vmax.f32 %v4431, 0.0
        %v4503 = vmax.f32 %v4166, 0.0
        %v4504 = vmax.f32 %v4433, 0.0
        %v4505 = vmax.f32 %v4169, 0.0
        %v4506 = vmax.f32 %v4436, 0.0
        %v4507 = vmax.f32 %v4171, 0.0
        %v4508 = vmax.f32 %v4438, 0.0
        %v4509 = vmax.f32 %v4174, 0.0
        %v4510 = vmax.f32 %v4441, 0.0
        %v4511 = vmax.f32 %v4176, 0.0
        %v4512 = vmax.f32 %v4443, 0.0
        %v4513 = vmax.f32 %v4179, 0.0
        %v4514 = vmax.f32 %v4446, 0.0
        %v4515 = vmax.f32 %v4181, 0.0
        %v4516 = vmax.f32 %v4448, 0.0
        %v4517 = vmax.f32 %v4184, 0.0
        %v4518 = vmax.f32 %v4451, 0.0
        %v4519 = vmax.f32 %v4186, 0.0
        %v4520 = vmax.f32 %v4453, 0.0
        %v4521 = vmax.f32 %v4189, 0.0
        %v4522 = vmax.f32 %v4456, 0.0
        %v4523 = vmax.f32 %v4191, 0.0
        %v4524 = vmax.f32 %v4458, 0.0
        %v4525 = vmax.f32 %v4194, 0.0
        %v4526 = vmax.f32 %v4461, 0.0
        %v4527 = vmax.f32 %v4196, 0.0
        %v4528 = vmax.f32 %v4463, 0.0
        %v4529 = vpack.c.bf16 %v4466, %v4465
        %v4530 = vpack.c.bf16 %v4468, %v4467
        %v4531 = vpack.c.bf16 %v4470, %v4469
        %v4532 = vpack.c.bf16 %v4472, %v4471
        %v4533 = vpack.c.bf16 %v4474, %v4473
        %v4534 = vpack.c.bf16 %v4476, %v4475
        %v4535 = vpack.c.bf16 %v4478, %v4477
        %v4536 = vpack.c.bf16 %v4480, %v4479
        %v4537 = vpack.c.bf16 %v4482, %v4481
        %v4538 = vpack.c.bf16 %v4484, %v4483
        %v4539 = vpack.c.bf16 %v4486, %v4485
        %v4540 = vpack.c.bf16 %v4488, %v4487
        %v4541 = vpack.c.bf16 %v4490, %v4489
        %v4542 = vpack.c.bf16 %v4492, %v4491
        %v4543 = vpack.c.bf16 %v4494, %v4493
        %v4544 = vpack.c.bf16 %v4496, %v4495
        %v4545 = vpack.c.bf16 %v4498, %v4497
        %v4546 = vpack.c.bf16 %v4500, %v4499
        %v4547 = vpack.c.bf16 %v4502, %v4501
        %v4548 = vpack.c.bf16 %v4504, %v4503
        %v4549 = vpack.c.bf16 %v4506, %v4505
        %v4550 = vpack.c.bf16 %v4508, %v4507
        %v4551 = vpack.c.bf16 %v4510, %v4509
        %v4552 = vpack.c.bf16 %v4512, %v4511
        %v4553 = vpack.c.bf16 %v4514, %v4513
        %v4554 = vpack.c.bf16 %v4516, %v4515
        %v4555 = vpack.c.bf16 %v4518, %v4517
        %v4556 = vpack.c.bf16 %v4520, %v4519
        %v4557 = vpack.c.bf16 %v4522, %v4521
        %v4558 = vpack.c.bf16 %v4524, %v4523
        %v4559 = vpack.c.bf16 %v4526, %v4525
        %v4560 = vpack.c.bf16 %v4528, %v4527
        %v4593 = vunpack.c.l.b16 %v914
        %v4594 = vunpack.c.h.b16 %v914
        %v4595 = vunpack.c.l.b16 %v915
        %v4596 = vunpack.c.h.b16 %v915
        %v4597 = vunpack.c.l.b16 %v916
        %v4598 = vunpack.c.h.b16 %v916
        %v4599 = vunpack.c.l.b16 %v917
        %v4600 = vunpack.c.h.b16 %v917
        %v4601 = vunpack.c.l.b16 %v918
        %v4602 = vunpack.c.h.b16 %v918
        %v4603 = vunpack.c.l.b16 %v919
        %v4604 = vunpack.c.h.b16 %v919
        %v4605 = vunpack.c.l.b16 %v920
        %v4606 = vunpack.c.h.b16 %v920
        %v4607 = vunpack.c.l.b16 %v921
        %v4608 = vunpack.c.h.b16 %v921
        %v4609 = vunpack.c.l.b16 %v922
        %v4610 = vunpack.c.h.b16 %v922
        %v4611 = vunpack.c.l.b16 %v923
        %v4612 = vunpack.c.h.b16 %v923
        %v4613 = vunpack.c.l.b16 %v924
        %v4614 = vunpack.c.h.b16 %v924
        %v4615 = vunpack.c.l.b16 %v925
        %v4616 = vunpack.c.h.b16 %v925
        %v4617 = vunpack.c.l.b16 %v926
        %v4618 = vunpack.c.h.b16 %v926
        %v4619 = vunpack.c.l.b16 %v927
        %v4620 = vunpack.c.h.b16 %v927
        %v4621 = vunpack.c.l.b16 %v928
        %v4622 = vunpack.c.h.b16 %v928
        %v4623 = vunpack.c.l.b16 %v929
        %v4624 = vunpack.c.h.b16 %v929
        %v4625 = vunpack.c.l.b16 %v930
        %v4626 = vunpack.c.h.b16 %v930
        %v4627 = vunpack.c.l.b16 %v931
        %v4628 = vunpack.c.h.b16 %v931
        %v4629 = vunpack.c.l.b16 %v932
        %v4630 = vunpack.c.h.b16 %v932
        %v4631 = vunpack.c.l.b16 %v933
        %v4632 = vunpack.c.h.b16 %v933
        %v4633 = vunpack.c.l.b16 %v934
        %v4634 = vunpack.c.h.b16 %v934
        %v4635 = vunpack.c.l.b16 %v935
        %v4636 = vunpack.c.h.b16 %v935
        %v4637 = vunpack.c.l.b16 %v936
        %v4638 = vunpack.c.h.b16 %v936
        %v4639 = vunpack.c.l.b16 %v937
        %v4640 = vunpack.c.h.b16 %v937
        %v4641 = vunpack.c.l.b16 %v938
        %v4642 = vunpack.c.h.b16 %v938
        %v4643 = vunpack.c.l.b16 %v939
        %v4644 = vunpack.c.h.b16 %v939
        %v4645 = vunpack.c.l.b16 %v940
        %v4646 = vunpack.c.h.b16 %v940
        %v4647 = vunpack.c.l.b16 %v941
        %v4648 = vunpack.c.h.b16 %v941
        %v4649 = vunpack.c.l.b16 %v942
        %v4650 = vunpack.c.h.b16 %v942
        %v4651 = vunpack.c.l.b16 %v943
        %v4652 = vunpack.c.h.b16 %v943
        %v4653 = vunpack.c.l.b16 %v944
        %v4654 = vunpack.c.h.b16 %v944
        %v4655 = vunpack.c.l.b16 %v945
        %v4656 = vunpack.c.h.b16 %v945
        %v4657 = vpack.c.b16 %v4595, %v4593
        %v4658 = vpack.c.b16 %v4596, %v4594
        %v4659 = vpack.c.b16 %v4599, %v4597
        %v4660 = vpack.c.b16 %v4600, %v4598
        %v4661 = vpack.c.b16 %v4603, %v4601
        %v4662 = vpack.c.b16 %v4604, %v4602
        %v4663 = vpack.c.b16 %v4607, %v4605
        %v4664 = vpack.c.b16 %v4608, %v4606
        %v4665 = vpack.c.b16 %v4611, %v4609
        %v4666 = vpack.c.b16 %v4612, %v4610
        %v4667 = vpack.c.b16 %v4615, %v4613
        %v4668 = vpack.c.b16 %v4616, %v4614
        %v4669 = vpack.c.b16 %v4619, %v4617
        %v4670 = vpack.c.b16 %v4620, %v4618
        %v4671 = vpack.c.b16 %v4623, %v4621
        %v4672 = vpack.c.b16 %v4624, %v4622
        %v4673 = vpack.c.b16 %v4627, %v4625
        %v4674 = vpack.c.b16 %v4628, %v4626
        %v4675 = vpack.c.b16 %v4631, %v4629
        %v4676 = vpack.c.b16 %v4632, %v4630
        %v4677 = vpack.c.b16 %v4635, %v4633
        %v4678 = vpack.c.b16 %v4636, %v4634
        %v4679 = vpack.c.b16 %v4639, %v4637
        %v4680 = vpack.c.b16 %v4640, %v4638
        %v4681 = vpack.c.b16 %v4643, %v4641
        %v4682 = vpack.c.b16 %v4644, %v4642
        %v4683 = vpack.c.b16 %v4647, %v4645
        %v4684 = vpack.c.b16 %v4648, %v4646
        %v4685 = vpack.c.b16 %v4651, %v4649
        %v4686 = vpack.c.b16 %v4652, %v4650
        %v4687 = vpack.c.b16 %v4655, %v4653
        %v4688 = vpack.c.b16 %v4656, %v4654
        %v4753 = vunpack.c.l.b16 %v2119
        %v4754 = vunpack.c.h.b16 %v2119
        %v4755 = vunpack.c.l.b16 %v2120
        %v4756 = vunpack.c.h.b16 %v2120
        %v4757 = vunpack.c.l.b16 %v2121
        %v4758 = vunpack.c.h.b16 %v2121
        %v4759 = vunpack.c.l.b16 %v2122
        %v4760 = vunpack.c.h.b16 %v2122
        %v4761 = vunpack.c.l.b16 %v2123
        %v4762 = vunpack.c.h.b16 %v2123
        %v4763 = vunpack.c.l.b16 %v2124
        %v4764 = vunpack.c.h.b16 %v2124
        %v4765 = vunpack.c.l.b16 %v2125
        %v4766 = vunpack.c.h.b16 %v2125
        %v4767 = vunpack.c.l.b16 %v2126
        %v4768 = vunpack.c.h.b16 %v2126
        %v4769 = vunpack.c.l.b16 %v2127
        %v4770 = vunpack.c.h.b16 %v2127
        %v4771 = vunpack.c.l.b16 %v2128
        %v4772 = vunpack.c.h.b16 %v2128
        %v4773 = vunpack.c.l.b16 %v2129
        %v4774 = vunpack.c.h.b16 %v2129
        %v4775 = vunpack.c.l.b16 %v2130
        %v4776 = vunpack.c.h.b16 %v2130
        %v4777 = vunpack.c.l.b16 %v2131
        %v4778 = vunpack.c.h.b16 %v2131
        %v4779 = vunpack.c.l.b16 %v2132
        %v4780 = vunpack.c.h.b16 %v2132
        %v4781 = vunpack.c.l.b16 %v2133
        %v4782 = vunpack.c.h.b16 %v2133
        %v4783 = vunpack.c.l.b16 %v2134
        %v4784 = vunpack.c.h.b16 %v2134
        %v4785 = vunpack.c.l.b16 %v2135
        %v4786 = vunpack.c.h.b16 %v2135
        %v4787 = vunpack.c.l.b16 %v2136
        %v4788 = vunpack.c.h.b16 %v2136
        %v4789 = vunpack.c.l.b16 %v2137
        %v4790 = vunpack.c.h.b16 %v2137
        %v4791 = vunpack.c.l.b16 %v2138
        %v4792 = vunpack.c.h.b16 %v2138
        %v4793 = vunpack.c.l.b16 %v2139
        %v4794 = vunpack.c.h.b16 %v2139
        %v4795 = vunpack.c.l.b16 %v2140
        %v4796 = vunpack.c.h.b16 %v2140
        %v4797 = vunpack.c.l.b16 %v2141
        %v4798 = vunpack.c.h.b16 %v2141
        %v4799 = vunpack.c.l.b16 %v2142
        %v4800 = vunpack.c.h.b16 %v2142
        %v4801 = vunpack.c.l.b16 %v2143
        %v4802 = vunpack.c.h.b16 %v2143
        %v4803 = vunpack.c.l.b16 %v2144
        %v4804 = vunpack.c.h.b16 %v2144
        %v4805 = vunpack.c.l.b16 %v2145
        %v4806 = vunpack.c.h.b16 %v2145
        %v4807 = vunpack.c.l.b16 %v2146
        %v4808 = vunpack.c.h.b16 %v2146
        %v4809 = vunpack.c.l.b16 %v2147
        %v4810 = vunpack.c.h.b16 %v2147
        %v4811 = vunpack.c.l.b16 %v2148
        %v4812 = vunpack.c.h.b16 %v2148
        %v4813 = vunpack.c.l.b16 %v2149
        %v4814 = vunpack.c.h.b16 %v2149
        %v4815 = vunpack.c.l.b16 %v2150
        %v4816 = vunpack.c.h.b16 %v2150
        %v4817 = vpack.c.b16 %v4755, %v4753
        %v4818 = vpack.c.b16 %v4756, %v4754
        %v4819 = vpack.c.b16 %v4759, %v4757
        %v4820 = vpack.c.b16 %v4760, %v4758
        %v4821 = vpack.c.b16 %v4763, %v4761
        %v4822 = vpack.c.b16 %v4764, %v4762
        %v4823 = vpack.c.b16 %v4767, %v4765
        %v4824 = vpack.c.b16 %v4768, %v4766
        %v4825 = vpack.c.b16 %v4771, %v4769
        %v4826 = vpack.c.b16 %v4772, %v4770
        %v4827 = vpack.c.b16 %v4775, %v4773
        %v4828 = vpack.c.b16 %v4776, %v4774
        %v4829 = vpack.c.b16 %v4779, %v4777
        %v4830 = vpack.c.b16 %v4780, %v4778
        %v4831 = vpack.c.b16 %v4783, %v4781
        %v4832 = vpack.c.b16 %v4784, %v4782
        %v4833 = vpack.c.b16 %v4787, %v4785
        %v4834 = vpack.c.b16 %v4788, %v4786
        %v4835 = vpack.c.b16 %v4791, %v4789
        %v4836 = vpack.c.b16 %v4792, %v4790
        %v4837 = vpack.c.b16 %v4795, %v4793
        %v4838 = vpack.c.b16 %v4796, %v4794
        %v4839 = vpack.c.b16 %v4799, %v4797
        %v4840 = vpack.c.b16 %v4800, %v4798
        %v4841 = vpack.c.b16 %v4803, %v4801
        %v4842 = vpack.c.b16 %v4804, %v4802
        %v4843 = vpack.c.b16 %v4807, %v4805
        %v4844 = vpack.c.b16 %v4808, %v4806
        %v4845 = vpack.c.b16 %v4811, %v4809
        %v4846 = vpack.c.b16 %v4812, %v4810
        %v4847 = vpack.c.b16 %v4815, %v4813
        %v4848 = vpack.c.b16 %v4816, %v4814
        %v4913 = vunpack.c.l.b16 %v3324
        %v4914 = vunpack.c.h.b16 %v3324
        %v4915 = vunpack.c.l.b16 %v3325
        %v4916 = vunpack.c.h.b16 %v3325
        %v4917 = vunpack.c.l.b16 %v3326
        %v4918 = vunpack.c.h.b16 %v3326
        %v4919 = vunpack.c.l.b16 %v3327
        %v4920 = vunpack.c.h.b16 %v3327
        %v4921 = vunpack.c.l.b16 %v3328
        %v4922 = vunpack.c.h.b16 %v3328
        %v4923 = vunpack.c.l.b16 %v3329
        %v4924 = vunpack.c.h.b16 %v3329
        %v4925 = vunpack.c.l.b16 %v3330
        %v4926 = vunpack.c.h.b16 %v3330
        %v4927 = vunpack.c.l.b16 %v3331
        %v4928 = vunpack.c.h.b16 %v3331
        %v4929 = vunpack.c.l.b16 %v3332
        %v4930 = vunpack.c.h.b16 %v3332
        %v4931 = vunpack.c.l.b16 %v3333
        %v4932 = vunpack.c.h.b16 %v3333
        %v4933 = vunpack.c.l.b16 %v3334
        %v4934 = vunpack.c.h.b16 %v3334
        %v4935 = vunpack.c.l.b16 %v3335
        %v4936 = vunpack.c.h.b16 %v3335
        %v4937 = vunpack.c.l.b16 %v3336
        %v4938 = vunpack.c.h.b16 %v3336
        %v4939 = vunpack.c.l.b16 %v3337
        %v4940 = vunpack.c.h.b16 %v3337
        %v4941 = vunpack.c.l.b16 %v3338
        %v4942 = vunpack.c.h.b16 %v3338
        %v4943 = vunpack.c.l.b16 %v3339
        %v4944 = vunpack.c.h.b16 %v3339
        %v4945 = vunpack.c.l.b16 %v3340
        %v4946 = vunpack.c.h.b16 %v3340
        %v4947 = vunpack.c.l.b16 %v3341
        %v4948 = vunpack.c.h.b16 %v3341
        %v4949 = vunpack.c.l.b16 %v3342
        %v4950 = vunpack.c.h.b16 %v3342
        %v4951 = vunpack.c.l.b16 %v3343
        %v4952 = vunpack.c.h.b16 %v3343
        %v4953 = vunpack.c.l.b16 %v3344
        %v4954 = vunpack.c.h.b16 %v3344
        %v4955 = vunpack.c.l.b16 %v3345
        %v4956 = vunpack.c.h.b16 %v3345
        %v4957 = vunpack.c.l.b16 %v3346
        %v4958 = vunpack.c.h.b16 %v3346
        %v4959 = vunpack.c.l.b16 %v3347
        %v4960 = vunpack.c.h.b16 %v3347
        %v4961 = vunpack.c.l.b16 %v3348
        %v4962 = vunpack.c.h.b16 %v3348
        %v4963 = vunpack.c.l.b16 %v3349
        %v4964 = vunpack.c.h.b16 %v3349
        %v4965 = vunpack.c.l.b16 %v3350
        %v4966 = vunpack.c.h.b16 %v3350
        %v4967 = vunpack.c.l.b16 %v3351
        %v4968 = vunpack.c.h.b16 %v3351
        %v4969 = vunpack.c.l.b16 %v3352
        %v4970 = vunpack.c.h.b16 %v3352
        %v4971 = vunpack.c.l.b16 %v3353
        %v4972 = vunpack.c.h.b16 %v3353
        %v4973 = vunpack.c.l.b16 %v3354
        %v4974 = vunpack.c.h.b16 %v3354
        %v4975 = vunpack.c.l.b16 %v3355
        %v4976 = vunpack.c.h.b16 %v3355
        %v4977 = vpack.c.b16 %v4915, %v4913
        %v4978 = vpack.c.b16 %v4916, %v4914
        %v4979 = vpack.c.b16 %v4919, %v4917
        %v4980 = vpack.c.b16 %v4920, %v4918
        %v4981 = vpack.c.b16 %v4923, %v4921
        %v4982 = vpack.c.b16 %v4924, %v4922
        %v4983 = vpack.c.b16 %v4927, %v4925
        %v4984 = vpack.c.b16 %v4928, %v4926
        %v4985 = vpack.c.b16 %v4931, %v4929
        %v4986 = vpack.c.b16 %v4932, %v4930
        %v4987 = vpack.c.b16 %v4935, %v4933
        %v4988 = vpack.c.b16 %v4936, %v4934
        %v4989 = vpack.c.b16 %v4939, %v4937
        %v4990 = vpack.c.b16 %v4940, %v4938
        %v4991 = vpack.c.b16 %v4943, %v4941
        %v4992 = vpack.c.b16 %v4944, %v4942
        %v4993 = vpack.c.b16 %v4947, %v4945
        %v4994 = vpack.c.b16 %v4948, %v4946
        %v4995 = vpack.c.b16 %v4951, %v4949
        %v4996 = vpack.c.b16 %v4952, %v4950
        %v4997 = vpack.c.b16 %v4955, %v4953
        %v4998 = vpack.c.b16 %v4956, %v4954
        %v4999 = vpack.c.b16 %v4959, %v4957
        %v5000 = vpack.c.b16 %v4960, %v4958
        %v5001 = vpack.c.b16 %v4963, %v4961
        %v5002 = vpack.c.b16 %v4964, %v4962
        %v5003 = vpack.c.b16 %v4967, %v4965
        %v5004 = vpack.c.b16 %v4968, %v4966
        %v5005 = vpack.c.b16 %v4971, %v4969
        %v5006 = vpack.c.b16 %v4972, %v4970
        %v5007 = vpack.c.b16 %v4975, %v4973
        %v5008 = vpack.c.b16 %v4976, %v4974
        %v5073 = vunpack.c.l.b16 %v4529
        %v5074 = vunpack.c.h.b16 %v4529
        %v5075 = vunpack.c.l.b16 %v4530
        %v5076 = vunpack.c.h.b16 %v4530
        %v5077 = vunpack.c.l.b16 %v4531
        %v5078 = vunpack.c.h.b16 %v4531
        %v5079 = vunpack.c.l.b16 %v4532
        %v5080 = vunpack.c.h.b16 %v4532
        %v5081 = vunpack.c.l.b16 %v4533
        %v5082 = vunpack.c.h.b16 %v4533
        %v5083 = vunpack.c.l.b16 %v4534
        %v5084 = vunpack.c.h.b16 %v4534
        %v5085 = vunpack.c.l.b16 %v4535
        %v5086 = vunpack.c.h.b16 %v4535
        %v5087 = vunpack.c.l.b16 %v4536
        %v5088 = vunpack.c.h.b16 %v4536
        %v5089 = vunpack.c.l.b16 %v4537
        %v5090 = vunpack.c.h.b16 %v4537
        %v5091 = vunpack.c.l.b16 %v4538
        %v5092 = vunpack.c.h.b16 %v4538
        %v5093 = vunpack.c.l.b16 %v4539
        %v5094 = vunpack.c.h.b16 %v4539
        %v5095 = vunpack.c.l.b16 %v4540
        %v5096 = vunpack.c.h.b16 %v4540
        %v5097 = vunpack.c.l.b16 %v4541
        %v5098 = vunpack.c.h.b16 %v4541
        %v5099 = vunpack.c.l.b16 %v4542
        %v5100 = vunpack.c.h.b16 %v4542
        %v5101 = vunpack.c.l.b16 %v4543
        %v5102 = vunpack.c.h.b16 %v4543
        %v5103 = vunpack.c.l.b16 %v4544
        %v5104 = vunpack.c.h.b16 %v4544
        %v5105 = vunpack.c.l.b16 %v4545
        %v5106 = vunpack.c.h.b16 %v4545
        %v5107 = vunpack.c.l.b16 %v4546
        %v5108 = vunpack.c.h.b16 %v4546
        %v5109 = vunpack.c.l.b16 %v4547
        %v5110 = vunpack.c.h.b16 %v4547
        %v5111 = vunpack.c.l.b16 %v4548
        %v5112 = vunpack.c.h.b16 %v4548
        %v5113 = vunpack.c.l.b16 %v4549
        %v5114 = vunpack.c.h.b16 %v4549
        %v5115 = vunpack.c.l.b16 %v4550
        %v5116 = vunpack.c.h.b16 %v4550
        %v5117 = vunpack.c.l.b16 %v4551
        %v5118 = vunpack.c.h.b16 %v4551
        %v5119 = vunpack.c.l.b16 %v4552
        %v5120 = vunpack.c.h.b16 %v4552
        %v5121 = vunpack.c.l.b16 %v4553
        %v5122 = vunpack.c.h.b16 %v4553
        %v5123 = vunpack.c.l.b16 %v4554
        %v5124 = vunpack.c.h.b16 %v4554
        %v5125 = vunpack.c.l.b16 %v4555
        %v5126 = vunpack.c.h.b16 %v4555
        %v5127 = vunpack.c.l.b16 %v4556
        %v5128 = vunpack.c.h.b16 %v4556
        %v5129 = vunpack.c.l.b16 %v4557
        %v5130 = vunpack.c.h.b16 %v4557
        %v5131 = vunpack.c.l.b16 %v4558
        %v5132 = vunpack.c.h.b16 %v4558
        %v5133 = vunpack.c.l.b16 %v4559
        %v5134 = vunpack.c.h.b16 %v4559
        %v5135 = vunpack.c.l.b16 %v4560
        %v5136 = vunpack.c.h.b16 %v4560
        %v5137 = vpack.c.b16 %v5075, %v5073
        %v5138 = vpack.c.b16 %v5076, %v5074
        %v5139 = vpack.c.b16 %v5079, %v5077
        %v5140 = vpack.c.b16 %v5080, %v5078
        %v5141 = vpack.c.b16 %v5083, %v5081
        %v5142 = vpack.c.b16 %v5084, %v5082
        %v5143 = vpack.c.b16 %v5087, %v5085
        %v5144 = vpack.c.b16 %v5088, %v5086
        %v5145 = vpack.c.b16 %v5091, %v5089
        %v5146 = vpack.c.b16 %v5092, %v5090
        %v5147 = vpack.c.b16 %v5095, %v5093
        %v5148 = vpack.c.b16 %v5096, %v5094
        %v5149 = vpack.c.b16 %v5099, %v5097
        %v5150 = vpack.c.b16 %v5100, %v5098
        %v5151 = vpack.c.b16 %v5103, %v5101
        %v5152 = vpack.c.b16 %v5104, %v5102
        %v5153 = vpack.c.b16 %v5107, %v5105
        %v5154 = vpack.c.b16 %v5108, %v5106
        %v5155 = vpack.c.b16 %v5111, %v5109
        %v5156 = vpack.c.b16 %v5112, %v5110
        %v5157 = vpack.c.b16 %v5115, %v5113
        %v5158 = vpack.c.b16 %v5116, %v5114
        %v5159 = vpack.c.b16 %v5119, %v5117
        %v5160 = vpack.c.b16 %v5120, %v5118
        %v5161 = vpack.c.b16 %v5123, %v5121
        %v5162 = vpack.c.b16 %v5124, %v5122
        %v5163 = vpack.c.b16 %v5127, %v5125
        %v5164 = vpack.c.b16 %v5128, %v5126
        %v5165 = vpack.c.b16 %v5131, %v5129
        %v5166 = vpack.c.b16 %v5132, %v5130
        %v5167 = vpack.c.b16 %v5135, %v5133
        %v5168 = vpack.c.b16 %v5136, %v5134
        %v5201 = vld [vmem:[%s9] sm:$0xff]
        %v5202 = vld [vmem:[%s9 + $0x8] sm:$0xff]
        %v5203 = vld [vmem:[%s9 + $0x10] sm:$0xff]
        %v5204 = vld [vmem:[%s9 + $0x18] sm:$0xff]
        %v5205 = vld [vmem:[%s9 + $0x20] sm:$0xff]
        %v5206 = vld [vmem:[%s9 + $0x28] sm:$0xff]
        %v5207 = vld [vmem:[%s9 + $0x30] sm:$0xff]
        %v5208 = vld [vmem:[%s9 + $0x38] sm:$0xff]
        %v5209 = vld [vmem:[%s9 + $0x40] sm:$0xff]
        %v5210 = vld [vmem:[%s9 + $0x48] sm:$0xff]
        %v5211 = vld [vmem:[%s9 + $0x50] sm:$0xff]
        %v5212 = vld [vmem:[%s9 + $0x58] sm:$0xff]
        %v5213 = vld [vmem:[%s9 + $0x60] sm:$0xff]
        %v5214 = vld [vmem:[%s9 + $0x68] sm:$0xff]
        %v5215 = vld [vmem:[%s9 + $0x70] sm:$0xff]
        %v5216 = vld [vmem:[%s9 + $0x78] sm:$0xff]
        %v5217 = vld [vmem:[%s9 + $0x80] sm:$0xff]
        %v5218 = vld [vmem:[%s9 + $0x88] sm:$0xff]
        %v5219 = vld [vmem:[%s9 + $0x90] sm:$0xff]
        %v5220 = vld [vmem:[%s9 + $0x98] sm:$0xff]
        %v5221 = vld [vmem:[%s9 + $0xa0] sm:$0xff]
        %v5222 = vld [vmem:[%s9 + $0xa8] sm:$0xff]
        %v5223 = vld [vmem:[%s9 + $0xb0] sm:$0xff]
        %v5224 = vld [vmem:[%s9 + $0xb8] sm:$0xff]
        %v5225 = vld [vmem:[%s9 + $0xc0] sm:$0xff]
        %v5226 = vld [vmem:[%s9 + $0xc8] sm:$0xff]
        %v5227 = vld [vmem:[%s9 + $0xd0] sm:$0xff]
        %v5228 = vld [vmem:[%s9 + $0xd8] sm:$0xff]
        %v5229 = vld [vmem:[%s9 + $0xe0] sm:$0xff]
        %v5230 = vld [vmem:[%s9 + $0xe8] sm:$0xff]
        %v5231 = vld [vmem:[%s9 + $0xf0] sm:$0xff]
        %v5232 = vld [vmem:[%s9 + $0xf8] sm:$0xff]
        %v5233 = vld [vmem:[%s9 + $0x100] sm:$0xff]
        %v5234 = vld [vmem:[%s9 + $0x108] sm:$0xff]
        %v5235 = vld [vmem:[%s9 + $0x110] sm:$0xff]
        %v5236 = vld [vmem:[%s9 + $0x118] sm:$0xff]
        %v5237 = vld [vmem:[%s9 + $0x120] sm:$0xff]
        %v5238 = vld [vmem:[%s9 + $0x128] sm:$0xff]
        %v5239 = vld [vmem:[%s9 + $0x130] sm:$0xff]
        %v5240 = vld [vmem:[%s9 + $0x138] sm:$0xff]
        %v5241 = vld [vmem:[%s9 + $0x140] sm:$0xff]
        %v5242 = vld [vmem:[%s9 + $0x148] sm:$0xff]
        %v5243 = vld [vmem:[%s9 + $0x150] sm:$0xff]
        %v5244 = vld [vmem:[%s9 + $0x158] sm:$0xff]
        %v5245 = vld [vmem:[%s9 + $0x160] sm:$0xff]
        %v5246 = vld [vmem:[%s9 + $0x168] sm:$0xff]
        %v5247 = vld [vmem:[%s9 + $0x170] sm:$0xff]
        %v5248 = vld [vmem:[%s9 + $0x178] sm:$0xff]
        %v5249 = vld [vmem:[%s9 + $0x180] sm:$0xff]
        %v5250 = vld [vmem:[%s9 + $0x188] sm:$0xff]
        %v5251 = vld [vmem:[%s9 + $0x190] sm:$0xff]
        %v5252 = vld [vmem:[%s9 + $0x198] sm:$0xff]
        %v5253 = vld [vmem:[%s9 + $0x1a0] sm:$0xff]
        %v5254 = vld [vmem:[%s9 + $0x1a8] sm:$0xff]
        %v5255 = vld [vmem:[%s9 + $0x1b0] sm:$0xff]
        %v5256 = vld [vmem:[%s9 + $0x1b8] sm:$0xff]
        %v5257 = vld [vmem:[%s9 + $0x1c0] sm:$0xff]
        %v5258 = vld [vmem:[%s9 + $0x1c8] sm:$0xff]
        %v5259 = vld [vmem:[%s9 + $0x1d0] sm:$0xff]
        %v5260 = vld [vmem:[%s9 + $0x1d8] sm:$0xff]
        %v5261 = vld [vmem:[%s9 + $0x1e0] sm:$0xff]
        %v5262 = vld [vmem:[%s9 + $0x1e8] sm:$0xff]
        %v5263 = vld [vmem:[%s9 + $0x1f0] sm:$0xff]
        %v5264 = vld [vmem:[%s9 + $0x1f8] sm:$0xff]
        %v5265 = vld [vmem:[%s9 + $0x200] sm:$0xff]
        %v5266 = vld [vmem:[%s9 + $0x208] sm:$0xff]
        %v5267 = vld [vmem:[%s9 + $0x210] sm:$0xff]
        %v5268 = vld [vmem:[%s9 + $0x218] sm:$0xff]
        %v5269 = vld [vmem:[%s9 + $0x220] sm:$0xff]
        %v5270 = vld [vmem:[%s9 + $0x228] sm:$0xff]
        %v5271 = vld [vmem:[%s9 + $0x230] sm:$0xff]
        %v5272 = vld [vmem:[%s9 + $0x238] sm:$0xff]
        %v5273 = vld [vmem:[%s9 + $0x240] sm:$0xff]
        %v5274 = vld [vmem:[%s9 + $0x248] sm:$0xff]
        %v5275 = vld [vmem:[%s9 + $0x250] sm:$0xff]
        %v5276 = vld [vmem:[%s9 + $0x258] sm:$0xff]
        %v5277 = vld [vmem:[%s9 + $0x260] sm:$0xff]
        %v5278 = vld [vmem:[%s9 + $0x268] sm:$0xff]
        %v5279 = vld [vmem:[%s9 + $0x270] sm:$0xff]
        %v5280 = vld [vmem:[%s9 + $0x278] sm:$0xff]
        %v5281 = vld [vmem:[%s9 + $0x280] sm:$0xff]
        %v5282 = vld [vmem:[%s9 + $0x288] sm:$0xff]
        %v5283 = vld [vmem:[%s9 + $0x290] sm:$0xff]
        %v5284 = vld [vmem:[%s9 + $0x298] sm:$0xff]
        %v5285 = vld [vmem:[%s9 + $0x2a0] sm:$0xff]
        %v5286 = vld [vmem:[%s9 + $0x2a8] sm:$0xff]
        %v5287 = vld [vmem:[%s9 + $0x2b0] sm:$0xff]
        %v5288 = vld [vmem:[%s9 + $0x2b8] sm:$0xff]
        %v5289 = vld [vmem:[%s9 + $0x2c0] sm:$0xff]
        %v5290 = vld [vmem:[%s9 + $0x2c8] sm:$0xff]
        %v5291 = vld [vmem:[%s9 + $0x2d0] sm:$0xff]
        %v5292 = vld [vmem:[%s9 + $0x2d8] sm:$0xff]
        %v5293 = vld [vmem:[%s9 + $0x2e0] sm:$0xff]
        %v5294 = vld [vmem:[%s9 + $0x2e8] sm:$0xff]
        %v5295 = vld [vmem:[%s9 + $0x2f0] sm:$0xff]
        %v5296 = vld [vmem:[%s9 + $0x2f8] sm:$0xff]
        %v5297 = vld [vmem:[%s9 + $0x300] sm:$0xff]
        %v5298 = vld [vmem:[%s9 + $0x308] sm:$0xff]
        %v5299 = vld [vmem:[%s9 + $0x310] sm:$0xff]
        %v5300 = vld [vmem:[%s9 + $0x318] sm:$0xff]
        %v5301 = vld [vmem:[%s9 + $0x320] sm:$0xff]
        %v5302 = vld [vmem:[%s9 + $0x328] sm:$0xff]
        %v5303 = vld [vmem:[%s9 + $0x330] sm:$0xff]
        %v5304 = vld [vmem:[%s9 + $0x338] sm:$0xff]
        %v5305 = vld [vmem:[%s9 + $0x340] sm:$0xff]
        %v5306 = vld [vmem:[%s9 + $0x348] sm:$0xff]
        %v5307 = vld [vmem:[%s9 + $0x350] sm:$0xff]
        %v5308 = vld [vmem:[%s9 + $0x358] sm:$0xff]
        %v5309 = vld [vmem:[%s9 + $0x360] sm:$0xff]
        %v5310 = vld [vmem:[%s9 + $0x368] sm:$0xff]
        %v5311 = vld [vmem:[%s9 + $0x370] sm:$0xff]
        %v5312 = vld [vmem:[%s9 + $0x378] sm:$0xff]
        %v5313 = vld [vmem:[%s9 + $0x380] sm:$0xff]
        %v5314 = vld [vmem:[%s9 + $0x388] sm:$0xff]
        %v5315 = vld [vmem:[%s9 + $0x390] sm:$0xff]
        %v5316 = vld [vmem:[%s9 + $0x398] sm:$0xff]
        %v5317 = vld [vmem:[%s9 + $0x3a0] sm:$0xff]
        %v5318 = vld [vmem:[%s9 + $0x3a8] sm:$0xff]
        %v5319 = vld [vmem:[%s9 + $0x3b0] sm:$0xff]
        %v5320 = vld [vmem:[%s9 + $0x3b8] sm:$0xff]
        %v5321 = vld [vmem:[%s9 + $0x3c0] sm:$0xff]
        %v5322 = vld [vmem:[%s9 + $0x3c8] sm:$0xff]
        %v5323 = vld [vmem:[%s9 + $0x3d0] sm:$0xff]
        %v5324 = vld [vmem:[%s9 + $0x3d8] sm:$0xff]
        %v5325 = vld [vmem:[%s9 + $0x3e0] sm:$0xff]
        %v5326 = vld [vmem:[%s9 + $0x3e8] sm:$0xff]
        %v5327 = vld [vmem:[%s9 + $0x3f0] sm:$0xff]
        %v5328 = vld [vmem:[%s9 + $0x3f8] sm:$0xff]
        %v5329 = vld [vmem:[%s478] sm:$0x3]
        %v5331 = vperm.slane %v5329, 0
        %v5332 = vperm.slane %v5329, 1
        %v5463 = vunpack.c.l.b16 %v5201
        %v5464 = vunpack.c.h.b16 %v5201
        %v5465 = vunpack.c.l.b16 %v5202
        %v5466 = vunpack.c.h.b16 %v5202
        %v5467 = vunpack.c.l.b16 %v5203
        %v5468 = vunpack.c.h.b16 %v5203
        %v5469 = vunpack.c.l.b16 %v5204
        %v5470 = vunpack.c.h.b16 %v5204
        %v5471 = vunpack.c.l.b16 %v5205
        %v5472 = vunpack.c.h.b16 %v5205
        %v5473 = vunpack.c.l.b16 %v5206
        %v5474 = vunpack.c.h.b16 %v5206
        %v5475 = vunpack.c.l.b16 %v5207
        %v5476 = vunpack.c.h.b16 %v5207
        %v5477 = vunpack.c.l.b16 %v5208
        %v5478 = vunpack.c.h.b16 %v5208
        %v5479 = vunpack.c.l.b16 %v5209
        %v5480 = vunpack.c.h.b16 %v5209
        %v5481 = vunpack.c.l.b16 %v5210
        %v5482 = vunpack.c.h.b16 %v5210
        %v5483 = vunpack.c.l.b16 %v5211
        %v5484 = vunpack.c.h.b16 %v5211
        %v5485 = vunpack.c.l.b16 %v5212
        %v5486 = vunpack.c.h.b16 %v5212
        %v5487 = vunpack.c.l.b16 %v5213
        %v5488 = vunpack.c.h.b16 %v5213
        %v5489 = vunpack.c.l.b16 %v5214
        %v5490 = vunpack.c.h.b16 %v5214
        %v5491 = vunpack.c.l.b16 %v5215
        %v5492 = vunpack.c.h.b16 %v5215
        %v5493 = vunpack.c.l.b16 %v5216
        %v5494 = vunpack.c.h.b16 %v5216
        %v5495 = vunpack.c.l.b16 %v5217
        %v5496 = vunpack.c.h.b16 %v5217
        %v5497 = vunpack.c.l.b16 %v5218
        %v5498 = vunpack.c.h.b16 %v5218
        %v5499 = vunpack.c.l.b16 %v5219
        %v5500 = vunpack.c.h.b16 %v5219
        %v5501 = vunpack.c.l.b16 %v5220
        %v5502 = vunpack.c.h.b16 %v5220
        %v5503 = vunpack.c.l.b16 %v5221
        %v5504 = vunpack.c.h.b16 %v5221
        %v5505 = vunpack.c.l.b16 %v5222
        %v5506 = vunpack.c.h.b16 %v5222
        %v5507 = vunpack.c.l.b16 %v5223
        %v5508 = vunpack.c.h.b16 %v5223
        %v5509 = vunpack.c.l.b16 %v5224
        %v5510 = vunpack.c.h.b16 %v5224
        %v5511 = vunpack.c.l.b16 %v5225
        %v5512 = vunpack.c.h.b16 %v5225
        %v5513 = vunpack.c.l.b16 %v5226
        %v5514 = vunpack.c.h.b16 %v5226
        %v5515 = vunpack.c.l.b16 %v5227
        %v5516 = vunpack.c.h.b16 %v5227
        %v5517 = vunpack.c.l.b16 %v5228
        %v5518 = vunpack.c.h.b16 %v5228
        %v5519 = vunpack.c.l.b16 %v5229
        %v5520 = vunpack.c.h.b16 %v5229
        %v5521 = vunpack.c.l.b16 %v5230
        %v5522 = vunpack.c.h.b16 %v5230
        %v5523 = vunpack.c.l.b16 %v5231
        %v5524 = vunpack.c.h.b16 %v5231
        %v5525 = vunpack.c.l.b16 %v5232
        %v5526 = vunpack.c.h.b16 %v5232
        %v5527 = vunpack.c.l.b16 %v5233
        %v5528 = vunpack.c.h.b16 %v5233
        %v5529 = vunpack.c.l.b16 %v5234
        %v5530 = vunpack.c.h.b16 %v5234
        %v5531 = vunpack.c.l.b16 %v5235
        %v5532 = vunpack.c.h.b16 %v5235
        %v5533 = vunpack.c.l.b16 %v5236
        %v5534 = vunpack.c.h.b16 %v5236
        %v5535 = vunpack.c.l.b16 %v5237
        %v5536 = vunpack.c.h.b16 %v5237
        %v5537 = vunpack.c.l.b16 %v5238
        %v5538 = vunpack.c.h.b16 %v5238
        %v5539 = vunpack.c.l.b16 %v5239
        %v5540 = vunpack.c.h.b16 %v5239
        %v5541 = vunpack.c.l.b16 %v5240
        %v5542 = vunpack.c.h.b16 %v5240
        %v5543 = vunpack.c.l.b16 %v5241
        %v5544 = vunpack.c.h.b16 %v5241
        %v5545 = vunpack.c.l.b16 %v5242
        %v5546 = vunpack.c.h.b16 %v5242
        %v5547 = vunpack.c.l.b16 %v5243
        %v5548 = vunpack.c.h.b16 %v5243
        %v5549 = vunpack.c.l.b16 %v5244
        %v5550 = vunpack.c.h.b16 %v5244
        %v5551 = vunpack.c.l.b16 %v5245
        %v5552 = vunpack.c.h.b16 %v5245
        %v5553 = vunpack.c.l.b16 %v5246
        %v5554 = vunpack.c.h.b16 %v5246
        %v5555 = vunpack.c.l.b16 %v5247
        %v5556 = vunpack.c.h.b16 %v5247
        %v5557 = vunpack.c.l.b16 %v5248
        %v5558 = vunpack.c.h.b16 %v5248
        %v5559 = vunpack.c.l.b16 %v5249
        %v5560 = vunpack.c.h.b16 %v5249
        %v5561 = vunpack.c.l.b16 %v5250
        %v5562 = vunpack.c.h.b16 %v5250
        %v5563 = vunpack.c.l.b16 %v5251
        %v5564 = vunpack.c.h.b16 %v5251
        %v5565 = vunpack.c.l.b16 %v5252
        %v5566 = vunpack.c.h.b16 %v5252
        %v5567 = vunpack.c.l.b16 %v5253
        %v5568 = vunpack.c.h.b16 %v5253
        %v5569 = vunpack.c.l.b16 %v5254
        %v5570 = vunpack.c.h.b16 %v5254
        %v5571 = vunpack.c.l.b16 %v5255
        %v5572 = vunpack.c.h.b16 %v5255
        %v5573 = vunpack.c.l.b16 %v5256
        %v5574 = vunpack.c.h.b16 %v5256
        %v5575 = vunpack.c.l.b16 %v5257
        %v5576 = vunpack.c.h.b16 %v5257
        %v5577 = vunpack.c.l.b16 %v5258
        %v5578 = vunpack.c.h.b16 %v5258
        %v5579 = vunpack.c.l.b16 %v5259
        %v5580 = vunpack.c.h.b16 %v5259
        %v5581 = vunpack.c.l.b16 %v5260
        %v5582 = vunpack.c.h.b16 %v5260
        %v5583 = vunpack.c.l.b16 %v5261
        %v5584 = vunpack.c.h.b16 %v5261
        %v5585 = vunpack.c.l.b16 %v5262
        %v5586 = vunpack.c.h.b16 %v5262
        %v5587 = vunpack.c.l.b16 %v5263
        %v5588 = vunpack.c.h.b16 %v5263
        %v5589 = vunpack.c.l.b16 %v5264
        %v5590 = vunpack.c.h.b16 %v5264
        %v5591 = vunpack.c.l.b16 %v5265
        %v5592 = vunpack.c.h.b16 %v5265
        %v5593 = vunpack.c.l.b16 %v5266
        %v5594 = vunpack.c.h.b16 %v5266
        %v5595 = vunpack.c.l.b16 %v5267
        %v5596 = vunpack.c.h.b16 %v5267
        %v5597 = vunpack.c.l.b16 %v5268
        %v5598 = vunpack.c.h.b16 %v5268
        %v5599 = vunpack.c.l.b16 %v5269
        %v5600 = vunpack.c.h.b16 %v5269
        %v5601 = vunpack.c.l.b16 %v5270
        %v5602 = vunpack.c.h.b16 %v5270
        %v5603 = vunpack.c.l.b16 %v5271
        %v5604 = vunpack.c.h.b16 %v5271
        %v5605 = vunpack.c.l.b16 %v5272
        %v5606 = vunpack.c.h.b16 %v5272
        %v5607 = vunpack.c.l.b16 %v5273
        %v5608 = vunpack.c.h.b16 %v5273
        %v5609 = vunpack.c.l.b16 %v5274
        %v5610 = vunpack.c.h.b16 %v5274
        %v5611 = vunpack.c.l.b16 %v5275
        %v5612 = vunpack.c.h.b16 %v5275
        %v5613 = vunpack.c.l.b16 %v5276
        %v5614 = vunpack.c.h.b16 %v5276
        %v5615 = vunpack.c.l.b16 %v5277
        %v5616 = vunpack.c.h.b16 %v5277
        %v5617 = vunpack.c.l.b16 %v5278
        %v5618 = vunpack.c.h.b16 %v5278
        %v5619 = vunpack.c.l.b16 %v5279
        %v5620 = vunpack.c.h.b16 %v5279
        %v5621 = vunpack.c.l.b16 %v5280
        %v5622 = vunpack.c.h.b16 %v5280
        %v5623 = vunpack.c.l.b16 %v5281
        %v5624 = vunpack.c.h.b16 %v5281
        %v5625 = vunpack.c.l.b16 %v5282
        %v5626 = vunpack.c.h.b16 %v5282
        %v5627 = vunpack.c.l.b16 %v5283
        %v5628 = vunpack.c.h.b16 %v5283
        %v5629 = vunpack.c.l.b16 %v5284
        %v5630 = vunpack.c.h.b16 %v5284
        %v5631 = vunpack.c.l.b16 %v5285
        %v5632 = vunpack.c.h.b16 %v5285
        %v5633 = vunpack.c.l.b16 %v5286
        %v5634 = vunpack.c.h.b16 %v5286
        %v5635 = vunpack.c.l.b16 %v5287
        %v5636 = vunpack.c.h.b16 %v5287
        %v5637 = vunpack.c.l.b16 %v5288
        %v5638 = vunpack.c.h.b16 %v5288
        %v5639 = vunpack.c.l.b16 %v5289
        %v5640 = vunpack.c.h.b16 %v5289
        %v5641 = vunpack.c.l.b16 %v5290
        %v5642 = vunpack.c.h.b16 %v5290
        %v5643 = vunpack.c.l.b16 %v5291
        %v5644 = vunpack.c.h.b16 %v5291
        %v5645 = vunpack.c.l.b16 %v5292
        %v5646 = vunpack.c.h.b16 %v5292
        %v5647 = vunpack.c.l.b16 %v5293
        %v5648 = vunpack.c.h.b16 %v5293
        %v5649 = vunpack.c.l.b16 %v5294
        %v5650 = vunpack.c.h.b16 %v5294
        %v5651 = vunpack.c.l.b16 %v5295
        %v5652 = vunpack.c.h.b16 %v5295
        %v5653 = vunpack.c.l.b16 %v5296
        %v5654 = vunpack.c.h.b16 %v5296
        %v5655 = vunpack.c.l.b16 %v5297
        %v5656 = vunpack.c.h.b16 %v5297
        %v5657 = vunpack.c.l.b16 %v5298
        %v5658 = vunpack.c.h.b16 %v5298
        %v5659 = vunpack.c.l.b16 %v5299
        %v5660 = vunpack.c.h.b16 %v5299
        %v5661 = vunpack.c.l.b16 %v5300
        %v5662 = vunpack.c.h.b16 %v5300
        %v5663 = vunpack.c.l.b16 %v5301
        %v5664 = vunpack.c.h.b16 %v5301
        %v5665 = vunpack.c.l.b16 %v5302
        %v5666 = vunpack.c.h.b16 %v5302
        %v5667 = vunpack.c.l.b16 %v5303
        %v5668 = vunpack.c.h.b16 %v5303
        %v5669 = vunpack.c.l.b16 %v5304
        %v5670 = vunpack.c.h.b16 %v5304
        %v5671 = vunpack.c.l.b16 %v5305
        %v5672 = vunpack.c.h.b16 %v5305
        %v5673 = vunpack.c.l.b16 %v5306
        %v5674 = vunpack.c.h.b16 %v5306
        %v5675 = vunpack.c.l.b16 %v5307
        %v5676 = vunpack.c.h.b16 %v5307
        %v5677 = vunpack.c.l.b16 %v5308
        %v5678 = vunpack.c.h.b16 %v5308
        %v5679 = vunpack.c.l.b16 %v5309
        %v5680 = vunpack.c.h.b16 %v5309
        %v5681 = vunpack.c.l.b16 %v5310
        %v5682 = vunpack.c.h.b16 %v5310
        %v5683 = vunpack.c.l.b16 %v5311
        %v5684 = vunpack.c.h.b16 %v5311
        %v5685 = vunpack.c.l.b16 %v5312
        %v5686 = vunpack.c.h.b16 %v5312
        %v5687 = vunpack.c.l.b16 %v5313
        %v5688 = vunpack.c.h.b16 %v5313
        %v5689 = vunpack.c.l.b16 %v5314
        %v5690 = vunpack.c.h.b16 %v5314
        %v5691 = vunpack.c.l.b16 %v5315
        %v5692 = vunpack.c.h.b16 %v5315
        %v5693 = vunpack.c.l.b16 %v5316
        %v5694 = vunpack.c.h.b16 %v5316
        %v5695 = vunpack.c.l.b16 %v5317
        %v5696 = vunpack.c.h.b16 %v5317
        %v5697 = vunpack.c.l.b16 %v5318
        %v5698 = vunpack.c.h.b16 %v5318
        %v5699 = vunpack.c.l.b16 %v5319
        %v5700 = vunpack.c.h.b16 %v5319
        %v5701 = vunpack.c.l.b16 %v5320
        %v5702 = vunpack.c.h.b16 %v5320
        %v5703 = vunpack.c.l.b16 %v5321
        %v5704 = vunpack.c.h.b16 %v5321
        %v5705 = vunpack.c.l.b16 %v5322
        %v5706 = vunpack.c.h.b16 %v5322
        %v5707 = vunpack.c.l.b16 %v5323
        %v5708 = vunpack.c.h.b16 %v5323
        %v5709 = vunpack.c.l.b16 %v5324
        %v5710 = vunpack.c.h.b16 %v5324
        %v5711 = vunpack.c.l.b16 %v5325
        %v5712 = vunpack.c.h.b16 %v5325
        %v5713 = vunpack.c.l.b16 %v5326
        %v5714 = vunpack.c.h.b16 %v5326
        %v5715 = vunpack.c.l.b16 %v5327
        %v5716 = vunpack.c.h.b16 %v5327
        %v5717 = vunpack.c.l.b16 %v5328
        %v5718 = vunpack.c.h.b16 %v5328
        %v5719 = vpack.c.b16 %v5465, %v5463
        %v5720 = vpack.c.b16 %v5466, %v5464
        %v5721 = vpack.c.b16 %v5469, %v5467
        %v5722 = vpack.c.b16 %v5470, %v5468
        %v5723 = vpack.c.b16 %v5473, %v5471
        %v5724 = vpack.c.b16 %v5474, %v5472
        %v5725 = vpack.c.b16 %v5477, %v5475
        %v5726 = vpack.c.b16 %v5478, %v5476
        %v5727 = vpack.c.b16 %v5481, %v5479
        %v5728 = vpack.c.b16 %v5482, %v5480
        %v5729 = vpack.c.b16 %v5485, %v5483
        %v5730 = vpack.c.b16 %v5486, %v5484
        %v5731 = vpack.c.b16 %v5489, %v5487
        %v5732 = vpack.c.b16 %v5490, %v5488
        %v5733 = vpack.c.b16 %v5493, %v5491
        %v5734 = vpack.c.b16 %v5494, %v5492
        %v5735 = vpack.c.b16 %v5497, %v5495
        %v5736 = vpack.c.b16 %v5498, %v5496
        %v5737 = vpack.c.b16 %v5501, %v5499
        %v5738 = vpack.c.b16 %v5502, %v5500
        %v5739 = vpack.c.b16 %v5505, %v5503
        %v5740 = vpack.c.b16 %v5506, %v5504
        %v5741 = vpack.c.b16 %v5509, %v5507
        %v5742 = vpack.c.b16 %v5510, %v5508
        %v5743 = vpack.c.b16 %v5513, %v5511
        %v5744 = vpack.c.b16 %v5514, %v5512
        %v5745 = vpack.c.b16 %v5517, %v5515
        %v5746 = vpack.c.b16 %v5518, %v5516
        %v5747 = vpack.c.b16 %v5521, %v5519
        %v5748 = vpack.c.b16 %v5522, %v5520
        %v5749 = vpack.c.b16 %v5525, %v5523
        %v5750 = vpack.c.b16 %v5526, %v5524
        %v5751 = vpack.c.b16 %v5529, %v5527
        %v5752 = vpack.c.b16 %v5530, %v5528
        %v5753 = vpack.c.b16 %v5533, %v5531
        %v5754 = vpack.c.b16 %v5534, %v5532
        %v5755 = vpack.c.b16 %v5537, %v5535
        %v5756 = vpack.c.b16 %v5538, %v5536
        %v5757 = vpack.c.b16 %v5541, %v5539
        %v5758 = vpack.c.b16 %v5542, %v5540
        %v5759 = vpack.c.b16 %v5545, %v5543
        %v5760 = vpack.c.b16 %v5546, %v5544
        %v5761 = vpack.c.b16 %v5549, %v5547
        %v5762 = vpack.c.b16 %v5550, %v5548
        %v5763 = vpack.c.b16 %v5553, %v5551
        %v5764 = vpack.c.b16 %v5554, %v5552
        %v5765 = vpack.c.b16 %v5557, %v5555
        %v5766 = vpack.c.b16 %v5558, %v5556
        %v5767 = vpack.c.b16 %v5561, %v5559
        %v5768 = vpack.c.b16 %v5562, %v5560
        %v5769 = vpack.c.b16 %v5565, %v5563
        %v5770 = vpack.c.b16 %v5566, %v5564
        %v5771 = vpack.c.b16 %v5569, %v5567
        %v5772 = vpack.c.b16 %v5570, %v5568
        %v5773 = vpack.c.b16 %v5573, %v5571
        %v5774 = vpack.c.b16 %v5574, %v5572
        %v5775 = vpack.c.b16 %v5577, %v5575
        %v5776 = vpack.c.b16 %v5578, %v5576
        %v5777 = vpack.c.b16 %v5581, %v5579
        %v5778 = vpack.c.b16 %v5582, %v5580
        %v5779 = vpack.c.b16 %v5585, %v5583
        %v5780 = vpack.c.b16 %v5586, %v5584
        %v5781 = vpack.c.b16 %v5589, %v5587
        %v5782 = vpack.c.b16 %v5590, %v5588
        %v5783 = vpack.c.b16 %v5593, %v5591
        %v5784 = vpack.c.b16 %v5594, %v5592
        %v5785 = vpack.c.b16 %v5597, %v5595
        %v5786 = vpack.c.b16 %v5598, %v5596
        %v5787 = vpack.c.b16 %v5601, %v5599
        %v5788 = vpack.c.b16 %v5602, %v5600
        %v5789 = vpack.c.b16 %v5605, %v5603
        %v5790 = vpack.c.b16 %v5606, %v5604
        %v5791 = vpack.c.b16 %v5609, %v5607
        %v5792 = vpack.c.b16 %v5610, %v5608
        %v5793 = vpack.c.b16 %v5613, %v5611
        %v5794 = vpack.c.b16 %v5614, %v5612
        %v5795 = vpack.c.b16 %v5617, %v5615
        %v5796 = vpack.c.b16 %v5618, %v5616
        %v5797 = vpack.c.b16 %v5621, %v5619
        %v5798 = vpack.c.b16 %v5622, %v5620
        %v5799 = vpack.c.b16 %v5625, %v5623
        %v5800 = vpack.c.b16 %v5626, %v5624
        %v5801 = vpack.c.b16 %v5629, %v5627
        %v5802 = vpack.c.b16 %v5630, %v5628
        %v5803 = vpack.c.b16 %v5633, %v5631
        %v5804 = vpack.c.b16 %v5634, %v5632
        %v5805 = vpack.c.b16 %v5637, %v5635
        %v5806 = vpack.c.b16 %v5638, %v5636
        %v5807 = vpack.c.b16 %v5641, %v5639
        %v5808 = vpack.c.b16 %v5642, %v5640
        %v5809 = vpack.c.b16 %v5645, %v5643
        %v5810 = vpack.c.b16 %v5646, %v5644
        %v5811 = vpack.c.b16 %v5649, %v5647
        %v5812 = vpack.c.b16 %v5650, %v5648
        %v5813 = vpack.c.b16 %v5653, %v5651
        %v5814 = vpack.c.b16 %v5654, %v5652
        %v5815 = vpack.c.b16 %v5657, %v5655
        %v5816 = vpack.c.b16 %v5658, %v5656
        %v5817 = vpack.c.b16 %v5661, %v5659
        %v5818 = vpack.c.b16 %v5662, %v5660
        %v5819 = vpack.c.b16 %v5665, %v5663
        %v5820 = vpack.c.b16 %v5666, %v5664
        %v5821 = vpack.c.b16 %v5669, %v5667
        %v5822 = vpack.c.b16 %v5670, %v5668
        %v5823 = vpack.c.b16 %v5673, %v5671
        %v5824 = vpack.c.b16 %v5674, %v5672
        %v5825 = vpack.c.b16 %v5677, %v5675
        %v5826 = vpack.c.b16 %v5678, %v5676
        %v5827 = vpack.c.b16 %v5681, %v5679
        %v5828 = vpack.c.b16 %v5682, %v5680
        %v5829 = vpack.c.b16 %v5685, %v5683
        %v5830 = vpack.c.b16 %v5686, %v5684
        %v5831 = vpack.c.b16 %v5689, %v5687
        %v5832 = vpack.c.b16 %v5690, %v5688
        %v5833 = vpack.c.b16 %v5693, %v5691
        %v5834 = vpack.c.b16 %v5694, %v5692
        %v5835 = vpack.c.b16 %v5697, %v5695
        %v5836 = vpack.c.b16 %v5698, %v5696
        %v5837 = vpack.c.b16 %v5701, %v5699
        %v5838 = vpack.c.b16 %v5702, %v5700
        %v5839 = vpack.c.b16 %v5705, %v5703
        %v5840 = vpack.c.b16 %v5706, %v5704
        %v5841 = vpack.c.b16 %v5709, %v5707
        %v5842 = vpack.c.b16 %v5710, %v5708
        %v5843 = vpack.c.b16 %v5713, %v5711
        %v5844 = vpack.c.b16 %v5714, %v5712
        %v5845 = vpack.c.b16 %v5717, %v5715
        %v5846 = vpack.c.b16 %v5718, %v5716
        %5975 = vmatpush.bf16.msra.mxu0 %v5733
        %5976 = vmatpush.bf16.msra.mxu0 %v5731
        %5977 = vmatpush.bf16.msra.mxu0 %v5729
        %5978 = vmatpush.bf16.msra.mxu0 %v5727
        %5979 = vmatpush.bf16.msra.mxu0 %v5725
        %5980 = vmatpush.bf16.msra.mxu0 %v5723
        %5981 = vmatpush.bf16.msra.mxu0 %v5721
        %5982 = vmatpush.bf16.msra.mxu0 %v5719
        %5983 = vmatmul.bf16.gmra.mxu0 %v4657
        %v5984 = vpop.f32.mrf.mxu0
        %v5985 = vadd.f32 %v5331, %v5984
        %v5986 = vpop.f32.mrf.mxu0
        %v5987 = vadd.f32 %v5331, %v5986
        %5988 = vmatmul.bf16.gmra.mxu0 %v4659
        %v5989 = vpop.f32.mrf.mxu0
        %v5990 = vadd.f32 %v5331, %v5989
        %v5991 = vpop.f32.mrf.mxu0
        %v5992 = vadd.f32 %v5331, %v5991
        %5993 = vmatmul.bf16.gmra.mxu0 %v4661
        %v5994 = vpop.f32.mrf.mxu0
        %v5995 = vadd.f32 %v5331, %v5994
        %v5996 = vpop.f32.mrf.mxu0
        %v5997 = vadd.f32 %v5331, %v5996
        %5998 = vmatmul.bf16.gmra.mxu0 %v4663
        %v5999 = vpop.f32.mrf.mxu0
        %v6000 = vadd.f32 %v5331, %v5999
        %v6001 = vpop.f32.mrf.mxu0
        %v6002 = vadd.f32 %v5331, %v6001
        %6003 = vmatmul.bf16.gmra.mxu0 %v4665
        %v6004 = vpop.f32.mrf.mxu0
        %v6005 = vadd.f32 %v5331, %v6004
        %v6006 = vpop.f32.mrf.mxu0
        %v6007 = vadd.f32 %v5331, %v6006
        %6008 = vmatmul.bf16.gmra.mxu0 %v4667
        %v6009 = vpop.f32.mrf.mxu0
        %v6010 = vadd.f32 %v5331, %v6009
        %v6011 = vpop.f32.mrf.mxu0
        %v6012 = vadd.f32 %v5331, %v6011
        %6013 = vmatmul.bf16.gmra.mxu0 %v4669
        %v6014 = vpop.f32.mrf.mxu0
        %v6015 = vadd.f32 %v5331, %v6014
        %v6016 = vpop.f32.mrf.mxu0
        %v6017 = vadd.f32 %v5331, %v6016
        %6018 = vmatmul.bf16.gmra.mxu0 %v4671
        %v6019 = vpop.f32.mrf.mxu0
        %v6020 = vadd.f32 %v5331, %v6019
        %v6021 = vpop.f32.mrf.mxu0
        %v6022 = vadd.f32 %v5331, %v6021
        %6023 = vmatmul.bf16.gmra.mxu0 %v4673
        %v6024 = vpop.f32.mrf.mxu0
        %v6025 = vadd.f32 %v5331, %v6024
        %v6026 = vpop.f32.mrf.mxu0
        %v6027 = vadd.f32 %v5331, %v6026
        %6028 = vmatmul.bf16.gmra.mxu0 %v4675
        %v6029 = vpop.f32.mrf.mxu0
        %v6030 = vadd.f32 %v5331, %v6029
        %v6031 = vpop.f32.mrf.mxu0
        %v6032 = vadd.f32 %v5331, %v6031
        %6033 = vmatmul.bf16.gmra.mxu0 %v4677
        %v6034 = vpop.f32.mrf.mxu0
        %v6035 = vadd.f32 %v5331, %v6034
        %v6036 = vpop.f32.mrf.mxu0
        %v6037 = vadd.f32 %v5331, %v6036
        %6038 = vmatmul.bf16.gmra.mxu0 %v4679
        %v6039 = vpop.f32.mrf.mxu0
        %v6040 = vadd.f32 %v5331, %v6039
        %v6041 = vpop.f32.mrf.mxu0
        %v6042 = vadd.f32 %v5331, %v6041
        %6043 = vmatmul.bf16.gmra.mxu0 %v4681
        %v6044 = vpop.f32.mrf.mxu0
        %v6045 = vadd.f32 %v5331, %v6044
        %v6046 = vpop.f32.mrf.mxu0
        %v6047 = vadd.f32 %v5331, %v6046
        %6048 = vmatmul.bf16.gmra.mxu0 %v4683
        %v6049 = vpop.f32.mrf.mxu0
        %v6050 = vadd.f32 %v5331, %v6049
        %v6051 = vpop.f32.mrf.mxu0
        %v6052 = vadd.f32 %v5331, %v6051
        %6053 = vmatmul.bf16.gmra.mxu0 %v4685
        %v6054 = vpop.f32.mrf.mxu0
        %v6055 = vadd.f32 %v5331, %v6054
        %v6056 = vpop.f32.mrf.mxu0
        %v6057 = vadd.f32 %v5331, %v6056
        %6058 = vmatmul.bf16.gmra.mxu0 %v4687
        %v6059 = vpop.f32.mrf.mxu0
        %v6060 = vadd.f32 %v5331, %v6059
        %v6061 = vpop.f32.mrf.mxu0
        %v6062 = vadd.f32 %v5331, %v6061
        %6063 = vdwg.mxu0
        %6064 = vmatpush.bf16.msra.mxu0 %v5749
        %6065 = vmatpush.bf16.msra.mxu0 %v5747
        %6066 = vmatpush.bf16.msra.mxu0 %v5745
        %6067 = vmatpush.bf16.msra.mxu0 %v5743
        %6068 = vmatpush.bf16.msra.mxu0 %v5741
        %6069 = vmatpush.bf16.msra.mxu0 %v5739
        %6070 = vmatpush.bf16.msra.mxu0 %v5737
        %6071 = vmatpush.bf16.msra.mxu0 %v5735
        %6072 = vmatmul.bf16.gmra.mxu0 %v4658
        %v6073 = vpop.f32.mrf.mxu0
        %v6074 = vadd.f32 %v5985, %v6073
        %v6075 = vpop.f32.mrf.mxu0
        %v6076 = vadd.f32 %v5987, %v6075
        %6077 = vmatmul.bf16.gmra.mxu0 %v4660
        %v6078 = vpop.f32.mrf.mxu0
        %v6079 = vadd.f32 %v5990, %v6078
        %v6080 = vpop.f32.mrf.mxu0
        %v6081 = vadd.f32 %v5992, %v6080
        %6082 = vmatmul.bf16.gmra.mxu0 %v4662
        %v6083 = vpop.f32.mrf.mxu0
        %v6084 = vadd.f32 %v5995, %v6083
        %v6085 = vpop.f32.mrf.mxu0
        %v6086 = vadd.f32 %v5997, %v6085
        %6087 = vmatmul.bf16.gmra.mxu0 %v4664
        %v6088 = vpop.f32.mrf.mxu0
        %v6089 = vadd.f32 %v6000, %v6088
        %v6090 = vpop.f32.mrf.mxu0
        %v6091 = vadd.f32 %v6002, %v6090
        %6092 = vmatmul.bf16.gmra.mxu0 %v4666
        %v6093 = vpop.f32.mrf.mxu0
        %v6094 = vadd.f32 %v6005, %v6093
        %v6095 = vpop.f32.mrf.mxu0
        %v6096 = vadd.f32 %v6007, %v6095
        %6097 = vmatmul.bf16.gmra.mxu0 %v4668
        %v6098 = vpop.f32.mrf.mxu0
        %v6099 = vadd.f32 %v6010, %v6098
        %v6100 = vpop.f32.mrf.mxu0
        %v6101 = vadd.f32 %v6012, %v6100
        %6102 = vmatmul.bf16.gmra.mxu0 %v4670
        %v6103 = vpop.f32.mrf.mxu0
        %v6104 = vadd.f32 %v6015, %v6103
        %v6105 = vpop.f32.mrf.mxu0
        %v6106 = vadd.f32 %v6017, %v6105
        %6107 = vmatmul.bf16.gmra.mxu0 %v4672
        %v6108 = vpop.f32.mrf.mxu0
        %v6109 = vadd.f32 %v6020, %v6108
        %v6110 = vpop.f32.mrf.mxu0
        %v6111 = vadd.f32 %v6022, %v6110
        %6112 = vmatmul.bf16.gmra.mxu0 %v4674
        %v6113 = vpop.f32.mrf.mxu0
        %v6114 = vadd.f32 %v6025, %v6113
        %v6115 = vpop.f32.mrf.mxu0
        %v6116 = vadd.f32 %v6027, %v6115
        %6117 = vmatmul.bf16.gmra.mxu0 %v4676
        %v6118 = vpop.f32.mrf.mxu0
        %v6119 = vadd.f32 %v6030, %v6118
        %v6120 = vpop.f32.mrf.mxu0
        %v6121 = vadd.f32 %v6032, %v6120
        %6122 = vmatmul.bf16.gmra.mxu0 %v4678
        %v6123 = vpop.f32.mrf.mxu0
        %v6124 = vadd.f32 %v6035, %v6123
        %v6125 = vpop.f32.mrf.mxu0
        %v6126 = vadd.f32 %v6037, %v6125
        %6127 = vmatmul.bf16.gmra.mxu0 %v4680
        %v6128 = vpop.f32.mrf.mxu0
        %v6129 = vadd.f32 %v6040, %v6128
        %v6130 = vpop.f32.mrf.mxu0
        %v6131 = vadd.f32 %v6042, %v6130
        %6132 = vmatmul.bf16.gmra.mxu0 %v4682
        %v6133 = vpop.f32.mrf.mxu0
        %v6134 = vadd.f32 %v6045, %v6133
        %v6135 = vpop.f32.mrf.mxu0
        %v6136 = vadd.f32 %v6047, %v6135
        %6137 = vmatmul.bf16.gmra.mxu0 %v4684
        %v6138 = vpop.f32.mrf.mxu0
        %v6139 = vadd.f32 %v6050, %v6138
        %v6140 = vpop.f32.mrf.mxu0
        %v6141 = vadd.f32 %v6052, %v6140
        %6142 = vmatmul.bf16.gmra.mxu0 %v4686
        %v6143 = vpop.f32.mrf.mxu0
        %v6144 = vadd.f32 %v6055, %v6143
        %v6145 = vpop.f32.mrf.mxu0
        %v6146 = vadd.f32 %v6057, %v6145
        %6147 = vmatmul.bf16.gmra.mxu0 %v4688
        %v6148 = vpop.f32.mrf.mxu0
        %v6149 = vadd.f32 %v6060, %v6148
        %v6150 = vpop.f32.mrf.mxu0
        %v6151 = vadd.f32 %v6062, %v6150
        %6152 = vdwg.mxu0
        %6153 = vmatpush.bf16.msra.mxu0 %v5765
        %6154 = vmatpush.bf16.msra.mxu0 %v5763
        %6155 = vmatpush.bf16.msra.mxu0 %v5761
        %6156 = vmatpush.bf16.msra.mxu0 %v5759
        %6157 = vmatpush.bf16.msra.mxu0 %v5757
        %6158 = vmatpush.bf16.msra.mxu0 %v5755
        %6159 = vmatpush.bf16.msra.mxu0 %v5753
        %6160 = vmatpush.bf16.msra.mxu0 %v5751
        %6161 = vmatmul.bf16.gmra.mxu0 %v4817
        %v6162 = vpop.f32.mrf.mxu0
        %v6163 = vadd.f32 %v6074, %v6162
        %v6164 = vpop.f32.mrf.mxu0
        %v6165 = vadd.f32 %v6076, %v6164
        %6166 = vmatmul.bf16.gmra.mxu0 %v4819
        %v6167 = vpop.f32.mrf.mxu0
        %v6168 = vadd.f32 %v6079, %v6167
        %v6169 = vpop.f32.mrf.mxu0
        %v6170 = vadd.f32 %v6081, %v6169
        %6171 = vmatmul.bf16.gmra.mxu0 %v4821
        %v6172 = vpop.f32.mrf.mxu0
        %v6173 = vadd.f32 %v6084, %v6172
        %v6174 = vpop.f32.mrf.mxu0
        %v6175 = vadd.f32 %v6086, %v6174
        %6176 = vmatmul.bf16.gmra.mxu0 %v4823
        %v6177 = vpop.f32.mrf.mxu0
        %v6178 = vadd.f32 %v6089, %v6177
        %v6179 = vpop.f32.mrf.mxu0
        %v6180 = vadd.f32 %v6091, %v6179
        %6181 = vmatmul.bf16.gmra.mxu0 %v4825
        %v6182 = vpop.f32.mrf.mxu0
        %v6183 = vadd.f32 %v6094, %v6182
        %v6184 = vpop.f32.mrf.mxu0
        %v6185 = vadd.f32 %v6096, %v6184
        %6186 = vmatmul.bf16.gmra.mxu0 %v4827
        %v6187 = vpop.f32.mrf.mxu0
        %v6188 = vadd.f32 %v6099, %v6187
        %v6189 = vpop.f32.mrf.mxu0
        %v6190 = vadd.f32 %v6101, %v6189
        %6191 = vmatmul.bf16.gmra.mxu0 %v4829
        %v6192 = vpop.f32.mrf.mxu0
        %v6193 = vadd.f32 %v6104, %v6192
        %v6194 = vpop.f32.mrf.mxu0
        %v6195 = vadd.f32 %v6106, %v6194
        %6196 = vmatmul.bf16.gmra.mxu0 %v4831
        %v6197 = vpop.f32.mrf.mxu0
        %v6198 = vadd.f32 %v6109, %v6197
        %v6199 = vpop.f32.mrf.mxu0
        %v6200 = vadd.f32 %v6111, %v6199
        %6201 = vmatmul.bf16.gmra.mxu0 %v4833
        %v6202 = vpop.f32.mrf.mxu0
        %v6203 = vadd.f32 %v6114, %v6202
        %v6204 = vpop.f32.mrf.mxu0
        %v6205 = vadd.f32 %v6116, %v6204
        %6206 = vmatmul.bf16.gmra.mxu0 %v4835
        %v6207 = vpop.f32.mrf.mxu0
        %v6208 = vadd.f32 %v6119, %v6207
        %v6209 = vpop.f32.mrf.mxu0
        %v6210 = vadd.f32 %v6121, %v6209
        %6211 = vmatmul.bf16.gmra.mxu0 %v4837
        %v6212 = vpop.f32.mrf.mxu0
        %v6213 = vadd.f32 %v6124, %v6212
        %v6214 = vpop.f32.mrf.mxu0
        %v6215 = vadd.f32 %v6126, %v6214
        %6216 = vmatmul.bf16.gmra.mxu0 %v4839
        %v6217 = vpop.f32.mrf.mxu0
        %v6218 = vadd.f32 %v6129, %v6217
        %v6219 = vpop.f32.mrf.mxu0
        %v6220 = vadd.f32 %v6131, %v6219
        %6221 = vmatmul.bf16.gmra.mxu0 %v4841
        %v6222 = vpop.f32.mrf.mxu0
        %v6223 = vadd.f32 %v6134, %v6222
        %v6224 = vpop.f32.mrf.mxu0
        %v6225 = vadd.f32 %v6136, %v6224
        %6226 = vmatmul.bf16.gmra.mxu0 %v4843
        %v6227 = vpop.f32.mrf.mxu0
        %v6228 = vadd.f32 %v6139, %v6227
        %v6229 = vpop.f32.mrf.mxu0
        %v6230 = vadd.f32 %v6141, %v6229
        %6231 = vmatmul.bf16.gmra.mxu0 %v4845
        %v6232 = vpop.f32.mrf.mxu0
        %v6233 = vadd.f32 %v6144, %v6232
        %v6234 = vpop.f32.mrf.mxu0
        %v6235 = vadd.f32 %v6146, %v6234
        %6236 = vmatmul.bf16.gmra.mxu0 %v4847
        %v6237 = vpop.f32.mrf.mxu0
        %v6238 = vadd.f32 %v6149, %v6237
        %v6239 = vpop.f32.mrf.mxu0
        %v6240 = vadd.f32 %v6151, %v6239
        %6241 = vdwg.mxu0
        %6242 = vmatpush.bf16.msra.mxu0 %v5781
        %6243 = vmatpush.bf16.msra.mxu0 %v5779
        %6244 = vmatpush.bf16.msra.mxu0 %v5777
        %6245 = vmatpush.bf16.msra.mxu0 %v5775
        %6246 = vmatpush.bf16.msra.mxu0 %v5773
        %6247 = vmatpush.bf16.msra.mxu0 %v5771
        %6248 = vmatpush.bf16.msra.mxu0 %v5769
        %6249 = vmatpush.bf16.msra.mxu0 %v5767
        %6250 = vmatmul.bf16.gmra.mxu0 %v4818
        %v6251 = vpop.f32.mrf.mxu0
        %v6252 = vadd.f32 %v6163, %v6251
        %v6253 = vpop.f32.mrf.mxu0
        %v6254 = vadd.f32 %v6165, %v6253
        %6255 = vmatmul.bf16.gmra.mxu0 %v4820
        %v6256 = vpop.f32.mrf.mxu0
        %v6257 = vadd.f32 %v6168, %v6256
        %v6258 = vpop.f32.mrf.mxu0
        %v6259 = vadd.f32 %v6170, %v6258
        %6260 = vmatmul.bf16.gmra.mxu0 %v4822
        %v6261 = vpop.f32.mrf.mxu0
        %v6262 = vadd.f32 %v6173, %v6261
        %v6263 = vpop.f32.mrf.mxu0
        %v6264 = vadd.f32 %v6175, %v6263
        %6265 = vmatmul.bf16.gmra.mxu0 %v4824
        %v6266 = vpop.f32.mrf.mxu0
        %v6267 = vadd.f32 %v6178, %v6266
        %v6268 = vpop.f32.mrf.mxu0
        %v6269 = vadd.f32 %v6180, %v6268
        %6270 = vmatmul.bf16.gmra.mxu0 %v4826
        %v6271 = vpop.f32.mrf.mxu0
        %v6272 = vadd.f32 %v6183, %v6271
        %v6273 = vpop.f32.mrf.mxu0
        %v6274 = vadd.f32 %v6185, %v6273
        %6275 = vmatmul.bf16.gmra.mxu0 %v4828
        %v6276 = vpop.f32.mrf.mxu0
        %v6277 = vadd.f32 %v6188, %v6276
        %v6278 = vpop.f32.mrf.mxu0
        %v6279 = vadd.f32 %v6190, %v6278
        %6280 = vmatmul.bf16.gmra.mxu0 %v4830
        %v6281 = vpop.f32.mrf.mxu0
        %v6282 = vadd.f32 %v6193, %v6281
        %v6283 = vpop.f32.mrf.mxu0
        %v6284 = vadd.f32 %v6195, %v6283
        %6285 = vmatmul.bf16.gmra.mxu0 %v4832
        %v6286 = vpop.f32.mrf.mxu0
        %v6287 = vadd.f32 %v6198, %v6286
        %v6288 = vpop.f32.mrf.mxu0
        %v6289 = vadd.f32 %v6200, %v6288
        %6290 = vmatmul.bf16.gmra.mxu0 %v4834
        %v6291 = vpop.f32.mrf.mxu0
        %v6292 = vadd.f32 %v6203, %v6291
        %v6293 = vpop.f32.mrf.mxu0
        %v6294 = vadd.f32 %v6205, %v6293
        %6295 = vmatmul.bf16.gmra.mxu0 %v4836
        %v6296 = vpop.f32.mrf.mxu0
        %v6297 = vadd.f32 %v6208, %v6296
        %v6298 = vpop.f32.mrf.mxu0
        %v6299 = vadd.f32 %v6210, %v6298
        %6300 = vmatmul.bf16.gmra.mxu0 %v4838
        %v6301 = vpop.f32.mrf.mxu0
        %v6302 = vadd.f32 %v6213, %v6301
        %v6303 = vpop.f32.mrf.mxu0
        %v6304 = vadd.f32 %v6215, %v6303
        %6305 = vmatmul.bf16.gmra.mxu0 %v4840
        %v6306 = vpop.f32.mrf.mxu0
        %v6307 = vadd.f32 %v6218, %v6306
        %v6308 = vpop.f32.mrf.mxu0
        %v6309 = vadd.f32 %v6220, %v6308
        %6310 = vmatmul.bf16.gmra.mxu0 %v4842
        %v6311 = vpop.f32.mrf.mxu0
        %v6312 = vadd.f32 %v6223, %v6311
        %v6313 = vpop.f32.mrf.mxu0
        %v6314 = vadd.f32 %v6225, %v6313
        %6315 = vmatmul.bf16.gmra.mxu0 %v4844
        %v6316 = vpop.f32.mrf.mxu0
        %v6317 = vadd.f32 %v6228, %v6316
        %v6318 = vpop.f32.mrf.mxu0
        %v6319 = vadd.f32 %v6230, %v6318
        %6320 = vmatmul.bf16.gmra.mxu0 %v4846
        %v6321 = vpop.f32.mrf.mxu0
        %v6322 = vadd.f32 %v6233, %v6321
        %v6323 = vpop.f32.mrf.mxu0
        %v6324 = vadd.f32 %v6235, %v6323
        %6325 = vmatmul.bf16.gmra.mxu0 %v4848
        %v6326 = vpop.f32.mrf.mxu0
        %v6327 = vadd.f32 %v6238, %v6326
        %v6328 = vpop.f32.mrf.mxu0
        %v6329 = vadd.f32 %v6240, %v6328
        %6330 = vdwg.mxu0
        %6331 = vmatpush.bf16.msra.mxu0 %v5797
        %6332 = vmatpush.bf16.msra.mxu0 %v5795
        %6333 = vmatpush.bf16.msra.mxu0 %v5793
        %6334 = vmatpush.bf16.msra.mxu0 %v5791
        %6335 = vmatpush.bf16.msra.mxu0 %v5789
        %6336 = vmatpush.bf16.msra.mxu0 %v5787
        %6337 = vmatpush.bf16.msra.mxu0 %v5785
        %6338 = vmatpush.bf16.msra.mxu0 %v5783
        %6339 = vmatmul.bf16.gmra.mxu0 %v4977
        %v6340 = vpop.f32.mrf.mxu0
        %v6341 = vadd.f32 %v6252, %v6340
        %v6342 = vpop.f32.mrf.mxu0
        %v6343 = vadd.f32 %v6254, %v6342
        %6344 = vmatmul.bf16.gmra.mxu0 %v4979
        %v6345 = vpop.f32.mrf.mxu0
        %v6346 = vadd.f32 %v6257, %v6345
        %v6347 = vpop.f32.mrf.mxu0
        %v6348 = vadd.f32 %v6259, %v6347
        %6349 = vmatmul.bf16.gmra.mxu0 %v4981
        %v6350 = vpop.f32.mrf.mxu0
        %v6351 = vadd.f32 %v6262, %v6350
        %v6352 = vpop.f32.mrf.mxu0
        %v6353 = vadd.f32 %v6264, %v6352
        %6354 = vmatmul.bf16.gmra.mxu0 %v4983
        %v6355 = vpop.f32.mrf.mxu0
        %v6356 = vadd.f32 %v6267, %v6355
        %v6357 = vpop.f32.mrf.mxu0
        %v6358 = vadd.f32 %v6269, %v6357
        %6359 = vmatmul.bf16.gmra.mxu0 %v4985
        %v6360 = vpop.f32.mrf.mxu0
        %v6361 = vadd.f32 %v6272, %v6360
        %v6362 = vpop.f32.mrf.mxu0
        %v6363 = vadd.f32 %v6274, %v6362
        %6364 = vmatmul.bf16.gmra.mxu0 %v4987
        %v6365 = vpop.f32.mrf.mxu0
        %v6366 = vadd.f32 %v6277, %v6365
        %v6367 = vpop.f32.mrf.mxu0
        %v6368 = vadd.f32 %v6279, %v6367
        %6369 = vmatmul.bf16.gmra.mxu0 %v4989
        %v6370 = vpop.f32.mrf.mxu0
        %v6371 = vadd.f32 %v6282, %v6370
        %v6372 = vpop.f32.mrf.mxu0
        %v6373 = vadd.f32 %v6284, %v6372
        %6374 = vmatmul.bf16.gmra.mxu0 %v4991
        %v6375 = vpop.f32.mrf.mxu0
        %v6376 = vadd.f32 %v6287, %v6375
        %v6377 = vpop.f32.mrf.mxu0
        %v6378 = vadd.f32 %v6289, %v6377
        %6379 = vmatmul.bf16.gmra.mxu0 %v4993
        %v6380 = vpop.f32.mrf.mxu0
        %v6381 = vadd.f32 %v6292, %v6380
        %v6382 = vpop.f32.mrf.mxu0
        %v6383 = vadd.f32 %v6294, %v6382
        %6384 = vmatmul.bf16.gmra.mxu0 %v4995
        %v6385 = vpop.f32.mrf.mxu0
        %v6386 = vadd.f32 %v6297, %v6385
        %v6387 = vpop.f32.mrf.mxu0
        %v6388 = vadd.f32 %v6299, %v6387
        %6389 = vmatmul.bf16.gmra.mxu0 %v4997
        %v6390 = vpop.f32.mrf.mxu0
        %v6391 = vadd.f32 %v6302, %v6390
        %v6392 = vpop.f32.mrf.mxu0
        %v6393 = vadd.f32 %v6304, %v6392
        %6394 = vmatmul.bf16.gmra.mxu0 %v4999
        %v6395 = vpop.f32.mrf.mxu0
        %v6396 = vadd.f32 %v6307, %v6395
        %v6397 = vpop.f32.mrf.mxu0
        %v6398 = vadd.f32 %v6309, %v6397
        %6399 = vmatmul.bf16.gmra.mxu0 %v5001
        %v6400 = vpop.f32.mrf.mxu0
        %v6401 = vadd.f32 %v6312, %v6400
        %v6402 = vpop.f32.mrf.mxu0
        %v6403 = vadd.f32 %v6314, %v6402
        %6404 = vmatmul.bf16.gmra.mxu0 %v5003
        %v6405 = vpop.f32.mrf.mxu0
        %v6406 = vadd.f32 %v6317, %v6405
        %v6407 = vpop.f32.mrf.mxu0
        %v6408 = vadd.f32 %v6319, %v6407
        %6409 = vmatmul.bf16.gmra.mxu0 %v5005
        %v6410 = vpop.f32.mrf.mxu0
        %v6411 = vadd.f32 %v6322, %v6410
        %v6412 = vpop.f32.mrf.mxu0
        %v6413 = vadd.f32 %v6324, %v6412
        %6414 = vmatmul.bf16.gmra.mxu0 %v5007
        %v6415 = vpop.f32.mrf.mxu0
        %v6416 = vadd.f32 %v6327, %v6415
        %v6417 = vpop.f32.mrf.mxu0
        %v6418 = vadd.f32 %v6329, %v6417
        %6419 = vdwg.mxu0
        %6420 = vmatpush.bf16.msra.mxu0 %v5813
        %6421 = vmatpush.bf16.msra.mxu0 %v5811
        %6422 = vmatpush.bf16.msra.mxu0 %v5809
        %6423 = vmatpush.bf16.msra.mxu0 %v5807
        %6424 = vmatpush.bf16.msra.mxu0 %v5805
        %6425 = vmatpush.bf16.msra.mxu0 %v5803
        %6426 = vmatpush.bf16.msra.mxu0 %v5801
        %6427 = vmatpush.bf16.msra.mxu0 %v5799
        %6428 = vmatmul.bf16.gmra.mxu0 %v4978
        %v6429 = vpop.f32.mrf.mxu0
        %v6430 = vadd.f32 %v6341, %v6429
        %v6431 = vpop.f32.mrf.mxu0
        %v6432 = vadd.f32 %v6343, %v6431
        %6433 = vmatmul.bf16.gmra.mxu0 %v4980
        %v6434 = vpop.f32.mrf.mxu0
        %v6435 = vadd.f32 %v6346, %v6434
        %v6436 = vpop.f32.mrf.mxu0
        %v6437 = vadd.f32 %v6348, %v6436
        %6438 = vmatmul.bf16.gmra.mxu0 %v4982
        %v6439 = vpop.f32.mrf.mxu0
        %v6440 = vadd.f32 %v6351, %v6439
        %v6441 = vpop.f32.mrf.mxu0
        %v6442 = vadd.f32 %v6353, %v6441
        %6443 = vmatmul.bf16.gmra.mxu0 %v4984
        %v6444 = vpop.f32.mrf.mxu0
        %v6445 = vadd.f32 %v6356, %v6444
        %v6446 = vpop.f32.mrf.mxu0
        %v6447 = vadd.f32 %v6358, %v6446
        %6448 = vmatmul.bf16.gmra.mxu0 %v4986
        %v6449 = vpop.f32.mrf.mxu0
        %v6450 = vadd.f32 %v6361, %v6449
        %v6451 = vpop.f32.mrf.mxu0
        %v6452 = vadd.f32 %v6363, %v6451
        %6453 = vmatmul.bf16.gmra.mxu0 %v4988
        %v6454 = vpop.f32.mrf.mxu0
        %v6455 = vadd.f32 %v6366, %v6454
        %v6456 = vpop.f32.mrf.mxu0
        %v6457 = vadd.f32 %v6368, %v6456
        %6458 = vmatmul.bf16.gmra.mxu0 %v4990
        %v6459 = vpop.f32.mrf.mxu0
        %v6460 = vadd.f32 %v6371, %v6459
        %v6461 = vpop.f32.mrf.mxu0
        %v6462 = vadd.f32 %v6373, %v6461
        %6463 = vmatmul.bf16.gmra.mxu0 %v4992
        %v6464 = vpop.f32.mrf.mxu0
        %v6465 = vadd.f32 %v6376, %v6464
        %v6466 = vpop.f32.mrf.mxu0
        %v6467 = vadd.f32 %v6378, %v6466
        %6468 = vmatmul.bf16.gmra.mxu0 %v4994
        %v6469 = vpop.f32.mrf.mxu0
        %v6470 = vadd.f32 %v6381, %v6469
        %v6471 = vpop.f32.mrf.mxu0
        %v6472 = vadd.f32 %v6383, %v6471
        %6473 = vmatmul.bf16.gmra.mxu0 %v4996
        %v6474 = vpop.f32.mrf.mxu0
        %v6475 = vadd.f32 %v6386, %v6474
        %v6476 = vpop.f32.mrf.mxu0
        %v6477 = vadd.f32 %v6388, %v6476
        %6478 = vmatmul.bf16.gmra.mxu0 %v4998
        %v6479 = vpop.f32.mrf.mxu0
        %v6480 = vadd.f32 %v6391, %v6479
        %v6481 = vpop.f32.mrf.mxu0
        %v6482 = vadd.f32 %v6393, %v6481
        %6483 = vmatmul.bf16.gmra.mxu0 %v5000
        %v6484 = vpop.f32.mrf.mxu0
        %v6485 = vadd.f32 %v6396, %v6484
        %v6486 = vpop.f32.mrf.mxu0
        %v6487 = vadd.f32 %v6398, %v6486
        %6488 = vmatmul.bf16.gmra.mxu0 %v5002
        %v6489 = vpop.f32.mrf.mxu0
        %v6490 = vadd.f32 %v6401, %v6489
        %v6491 = vpop.f32.mrf.mxu0
        %v6492 = vadd.f32 %v6403, %v6491
        %6493 = vmatmul.bf16.gmra.mxu0 %v5004
        %v6494 = vpop.f32.mrf.mxu0
        %v6495 = vadd.f32 %v6406, %v6494
        %v6496 = vpop.f32.mrf.mxu0
        %v6497 = vadd.f32 %v6408, %v6496
        %6498 = vmatmul.bf16.gmra.mxu0 %v5006
        %v6499 = vpop.f32.mrf.mxu0
        %v6500 = vadd.f32 %v6411, %v6499
        %v6501 = vpop.f32.mrf.mxu0
        %v6502 = vadd.f32 %v6413, %v6501
        %6503 = vmatmul.bf16.gmra.mxu0 %v5008
        %v6504 = vpop.f32.mrf.mxu0
        %v6505 = vadd.f32 %v6416, %v6504
        %v6506 = vpop.f32.mrf.mxu0
        %v6507 = vadd.f32 %v6418, %v6506
        %6508 = vdwg.mxu0
        %6509 = vmatpush.bf16.msra.mxu0 %v5829
        %6510 = vmatpush.bf16.msra.mxu0 %v5827
        %6511 = vmatpush.bf16.msra.mxu0 %v5825
        %6512 = vmatpush.bf16.msra.mxu0 %v5823
        %6513 = vmatpush.bf16.msra.mxu0 %v5821
        %6514 = vmatpush.bf16.msra.mxu0 %v5819
        %6515 = vmatpush.bf16.msra.mxu0 %v5817
        %6516 = vmatpush.bf16.msra.mxu0 %v5815
        %6517 = vmatmul.bf16.gmra.mxu0 %v5137
        %v6518 = vpop.f32.mrf.mxu0
        %v6519 = vadd.f32 %v6430, %v6518
        %v6520 = vpop.f32.mrf.mxu0
        %v6521 = vadd.f32 %v6432, %v6520
        %6522 = vmatmul.bf16.gmra.mxu0 %v5139
        %v6523 = vpop.f32.mrf.mxu0
        %v6524 = vadd.f32 %v6435, %v6523
        %v6525 = vpop.f32.mrf.mxu0
        %v6526 = vadd.f32 %v6437, %v6525
        %6527 = vmatmul.bf16.gmra.mxu0 %v5141
        %v6528 = vpop.f32.mrf.mxu0
        %v6529 = vadd.f32 %v6440, %v6528
        %v6530 = vpop.f32.mrf.mxu0
        %v6531 = vadd.f32 %v6442, %v6530
        %6532 = vmatmul.bf16.gmra.mxu0 %v5143
        %v6533 = vpop.f32.mrf.mxu0
        %v6534 = vadd.f32 %v6445, %v6533
        %v6535 = vpop.f32.mrf.mxu0
        %v6536 = vadd.f32 %v6447, %v6535
        %6537 = vmatmul.bf16.gmra.mxu0 %v5145
        %v6538 = vpop.f32.mrf.mxu0
        %v6539 = vadd.f32 %v6450, %v6538
        %v6540 = vpop.f32.mrf.mxu0
        %v6541 = vadd.f32 %v6452, %v6540
        %6542 = vmatmul.bf16.gmra.mxu0 %v5147
        %v6543 = vpop.f32.mrf.mxu0
        %v6544 = vadd.f32 %v6455, %v6543
        %v6545 = vpop.f32.mrf.mxu0
        %v6546 = vadd.f32 %v6457, %v6545
        %6547 = vmatmul.bf16.gmra.mxu0 %v5149
        %v6548 = vpop.f32.mrf.mxu0
        %v6549 = vadd.f32 %v6460, %v6548
        %v6550 = vpop.f32.mrf.mxu0
        %v6551 = vadd.f32 %v6462, %v6550
        %6552 = vmatmul.bf16.gmra.mxu0 %v5151
        %v6553 = vpop.f32.mrf.mxu0
        %v6554 = vadd.f32 %v6465, %v6553
        %v6555 = vpop.f32.mrf.mxu0
        %v6556 = vadd.f32 %v6467, %v6555
        %6557 = vmatmul.bf16.gmra.mxu0 %v5153
        %v6558 = vpop.f32.mrf.mxu0
        %v6559 = vadd.f32 %v6470, %v6558
        %v6560 = vpop.f32.mrf.mxu0
        %v6561 = vadd.f32 %v6472, %v6560
        %6562 = vmatmul.bf16.gmra.mxu0 %v5155
        %v6563 = vpop.f32.mrf.mxu0
        %v6564 = vadd.f32 %v6475, %v6563
        %v6565 = vpop.f32.mrf.mxu0
        %v6566 = vadd.f32 %v6477, %v6565
        %6567 = vmatmul.bf16.gmra.mxu0 %v5157
        %v6568 = vpop.f32.mrf.mxu0
        %v6569 = vadd.f32 %v6480, %v6568
        %v6570 = vpop.f32.mrf.mxu0
        %v6571 = vadd.f32 %v6482, %v6570
        %6572 = vmatmul.bf16.gmra.mxu0 %v5159
        %v6573 = vpop.f32.mrf.mxu0
        %v6574 = vadd.f32 %v6485, %v6573
        %v6575 = vpop.f32.mrf.mxu0
        %v6576 = vadd.f32 %v6487, %v6575
        %6577 = vmatmul.bf16.gmra.mxu0 %v5161
        %v6578 = vpop.f32.mrf.mxu0
        %v6579 = vadd.f32 %v6490, %v6578
        %v6580 = vpop.f32.mrf.mxu0
        %v6581 = vadd.f32 %v6492, %v6580
        %6582 = vmatmul.bf16.gmra.mxu0 %v5163
        %v6583 = vpop.f32.mrf.mxu0
        %v6584 = vadd.f32 %v6495, %v6583
        %v6585 = vpop.f32.mrf.mxu0
        %v6586 = vadd.f32 %v6497, %v6585
        %6587 = vmatmul.bf16.gmra.mxu0 %v5165
        %v6588 = vpop.f32.mrf.mxu0
        %v6589 = vadd.f32 %v6500, %v6588
        %v6590 = vpop.f32.mrf.mxu0
        %v6591 = vadd.f32 %v6502, %v6590
        %6592 = vmatmul.bf16.gmra.mxu0 %v5167
        %v6593 = vpop.f32.mrf.mxu0
        %v6594 = vadd.f32 %v6505, %v6593
        %v6595 = vpop.f32.mrf.mxu0
        %v6596 = vadd.f32 %v6507, %v6595
        %6597 = vdwg.mxu0
        %6598 = vmatpush.bf16.msra.mxu0 %v5845
        %6599 = vmatpush.bf16.msra.mxu0 %v5843
        %6600 = vmatpush.bf16.msra.mxu0 %v5841
        %6601 = vmatpush.bf16.msra.mxu0 %v5839
        %6602 = vmatpush.bf16.msra.mxu0 %v5837
        %6603 = vmatpush.bf16.msra.mxu0 %v5835
        %6604 = vmatpush.bf16.msra.mxu0 %v5833
        %6605 = vmatpush.bf16.msra.mxu0 %v5831
        %6606 = vmatmul.bf16.gmra.mxu0 %v5138
        %v6607 = vpop.f32.mrf.mxu0
        %v6608 = vadd.f32 %v6519, %v6607
        %v6609 = vpop.f32.mrf.mxu0
        %v6610 = vadd.f32 %v6521, %v6609
        %6611 = vmatmul.bf16.gmra.mxu0 %v5140
        %v6612 = vpop.f32.mrf.mxu0
        %v6613 = vadd.f32 %v6524, %v6612
        %v6614 = vpop.f32.mrf.mxu0
        %v6615 = vadd.f32 %v6526, %v6614
        %6616 = vmatmul.bf16.gmra.mxu0 %v5142
        %v6617 = vpop.f32.mrf.mxu0
        %v6618 = vadd.f32 %v6529, %v6617
        %v6619 = vpop.f32.mrf.mxu0
        %v6620 = vadd.f32 %v6531, %v6619
        %6621 = vmatmul.bf16.gmra.mxu0 %v5144
        %v6622 = vpop.f32.mrf.mxu0
        %v6623 = vadd.f32 %v6534, %v6622
        %v6624 = vpop.f32.mrf.mxu0
        %v6625 = vadd.f32 %v6536, %v6624
        %6626 = vmatmul.bf16.gmra.mxu0 %v5146
        %v6627 = vpop.f32.mrf.mxu0
        %v6628 = vadd.f32 %v6539, %v6627
        %v6629 = vpop.f32.mrf.mxu0
        %v6630 = vadd.f32 %v6541, %v6629
        %6631 = vmatmul.bf16.gmra.mxu0 %v5148
        %v6632 = vpop.f32.mrf.mxu0
        %v6633 = vadd.f32 %v6544, %v6632
        %v6634 = vpop.f32.mrf.mxu0
        %v6635 = vadd.f32 %v6546, %v6634
        %6636 = vmatmul.bf16.gmra.mxu0 %v5150
        %v6637 = vpop.f32.mrf.mxu0
        %v6638 = vadd.f32 %v6549, %v6637
        %v6639 = vpop.f32.mrf.mxu0
        %v6640 = vadd.f32 %v6551, %v6639
        %6641 = vmatmul.bf16.gmra.mxu0 %v5152
        %v6642 = vpop.f32.mrf.mxu0
        %v6643 = vadd.f32 %v6554, %v6642
        %v6644 = vpop.f32.mrf.mxu0
        %v6645 = vadd.f32 %v6556, %v6644
        %6646 = vmatmul.bf16.gmra.mxu0 %v5154
        %v6647 = vpop.f32.mrf.mxu0
        %v6648 = vadd.f32 %v6559, %v6647
        %v6649 = vpop.f32.mrf.mxu0
        %v6650 = vadd.f32 %v6561, %v6649
        %6651 = vmatmul.bf16.gmra.mxu0 %v5156
        %v6652 = vpop.f32.mrf.mxu0
        %v6653 = vadd.f32 %v6564, %v6652
        %v6654 = vpop.f32.mrf.mxu0
        %v6655 = vadd.f32 %v6566, %v6654
        %6656 = vmatmul.bf16.gmra.mxu0 %v5158
        %v6657 = vpop.f32.mrf.mxu0
        %v6658 = vadd.f32 %v6569, %v6657
        %v6659 = vpop.f32.mrf.mxu0
        %v6660 = vadd.f32 %v6571, %v6659
        %6661 = vmatmul.bf16.gmra.mxu0 %v5160
        %v6662 = vpop.f32.mrf.mxu0
        %v6663 = vadd.f32 %v6574, %v6662
        %v6664 = vpop.f32.mrf.mxu0
        %v6665 = vadd.f32 %v6576, %v6664
        %6666 = vmatmul.bf16.gmra.mxu0 %v5162
        %v6667 = vpop.f32.mrf.mxu0
        %v6668 = vadd.f32 %v6579, %v6667
        %v6669 = vpop.f32.mrf.mxu0
        %v6670 = vadd.f32 %v6581, %v6669
        %6671 = vmatmul.bf16.gmra.mxu0 %v5164
        %v6672 = vpop.f32.mrf.mxu0
        %v6673 = vadd.f32 %v6584, %v6672
        %v6674 = vpop.f32.mrf.mxu0
        %v6675 = vadd.f32 %v6586, %v6674
        %6676 = vmatmul.bf16.gmra.mxu0 %v5166
        %v6677 = vpop.f32.mrf.mxu0
        %v6678 = vadd.f32 %v6589, %v6677
        %v6679 = vpop.f32.mrf.mxu0
        %v6680 = vadd.f32 %v6591, %v6679
        %6681 = vmatmul.bf16.gmra.mxu0 %v5168
        %v6682 = vpop.f32.mrf.mxu0
        %v6683 = vadd.f32 %v6594, %v6682
        %v6684 = vpop.f32.mrf.mxu0
        %v6685 = vadd.f32 %v6596, %v6684
        %6686 = vdwg.mxu0
        %6687 = vmatpush.bf16.msra.mxu0 %v5734
        %6688 = vmatpush.bf16.msra.mxu0 %v5732
        %6689 = vmatpush.bf16.msra.mxu0 %v5730
        %6690 = vmatpush.bf16.msra.mxu0 %v5728
        %6691 = vmatpush.bf16.msra.mxu0 %v5726
        %6692 = vmatpush.bf16.msra.mxu0 %v5724
        %6693 = vmatpush.bf16.msra.mxu0 %v5722
        %6694 = vmatpush.bf16.msra.mxu0 %v5720
        %6695 = vmatmul.bf16.gmra.mxu0 %v4657
        %v6696 = vpop.f32.mrf.mxu0
        %v6697 = vadd.f32 %v5332, %v6696
        %v6698 = vpop.f32.mrf.mxu0
        %v6699 = vadd.f32 %v5332, %v6698
        %6700 = vmatmul.bf16.gmra.mxu0 %v4659
        %v6701 = vpop.f32.mrf.mxu0
        %v6702 = vadd.f32 %v5332, %v6701
        %v6703 = vpop.f32.mrf.mxu0
        %v6704 = vadd.f32 %v5332, %v6703
        %6705 = vmatmul.bf16.gmra.mxu0 %v4661
        %v6706 = vpop.f32.mrf.mxu0
        %v6707 = vadd.f32 %v5332, %v6706
        %v6708 = vpop.f32.mrf.mxu0
        %v6709 = vadd.f32 %v5332, %v6708
        %6710 = vmatmul.bf16.gmra.mxu0 %v4663
        %v6711 = vpop.f32.mrf.mxu0
        %v6712 = vadd.f32 %v5332, %v6711
        %v6713 = vpop.f32.mrf.mxu0
        %v6714 = vadd.f32 %v5332, %v6713
        %6715 = vmatmul.bf16.gmra.mxu0 %v4665
        %v6716 = vpop.f32.mrf.mxu0
        %v6717 = vadd.f32 %v5332, %v6716
        %v6718 = vpop.f32.mrf.mxu0
        %v6719 = vadd.f32 %v5332, %v6718
        %6720 = vmatmul.bf16.gmra.mxu0 %v4667
        %v6721 = vpop.f32.mrf.mxu0
        %v6722 = vadd.f32 %v5332, %v6721
        %v6723 = vpop.f32.mrf.mxu0
        %v6724 = vadd.f32 %v5332, %v6723
        %6725 = vmatmul.bf16.gmra.mxu0 %v4669
        %v6726 = vpop.f32.mrf.mxu0
        %v6727 = vadd.f32 %v5332, %v6726
        %v6728 = vpop.f32.mrf.mxu0
        %v6729 = vadd.f32 %v5332, %v6728
        %6730 = vmatmul.bf16.gmra.mxu0 %v4671
        %v6731 = vpop.f32.mrf.mxu0
        %v6732 = vadd.f32 %v5332, %v6731
        %v6733 = vpop.f32.mrf.mxu0
        %v6734 = vadd.f32 %v5332, %v6733
        %6735 = vmatmul.bf16.gmra.mxu0 %v4673
        %v6736 = vpop.f32.mrf.mxu0
        %v6737 = vadd.f32 %v5332, %v6736
        %v6738 = vpop.f32.mrf.mxu0
        %v6739 = vadd.f32 %v5332, %v6738
        %6740 = vmatmul.bf16.gmra.mxu0 %v4675
        %v6741 = vpop.f32.mrf.mxu0
        %v6742 = vadd.f32 %v5332, %v6741
        %v6743 = vpop.f32.mrf.mxu0
        %v6744 = vadd.f32 %v5332, %v6743
        %6745 = vmatmul.bf16.gmra.mxu0 %v4677
        %v6746 = vpop.f32.mrf.mxu0
        %v6747 = vadd.f32 %v5332, %v6746
        %v6748 = vpop.f32.mrf.mxu0
        %v6749 = vadd.f32 %v5332, %v6748
        %6750 = vmatmul.bf16.gmra.mxu0 %v4679
        %v6751 = vpop.f32.mrf.mxu0
        %v6752 = vadd.f32 %v5332, %v6751
        %v6753 = vpop.f32.mrf.mxu0
        %v6754 = vadd.f32 %v5332, %v6753
        %6755 = vmatmul.bf16.gmra.mxu0 %v4681
        %v6756 = vpop.f32.mrf.mxu0
        %v6757 = vadd.f32 %v5332, %v6756
        %v6758 = vpop.f32.mrf.mxu0
        %v6759 = vadd.f32 %v5332, %v6758
        %6760 = vmatmul.bf16.gmra.mxu0 %v4683
        %v6761 = vpop.f32.mrf.mxu0
        %v6762 = vadd.f32 %v5332, %v6761
        %v6763 = vpop.f32.mrf.mxu0
        %v6764 = vadd.f32 %v5332, %v6763
        %6765 = vmatmul.bf16.gmra.mxu0 %v4685
        %v6766 = vpop.f32.mrf.mxu0
        %v6767 = vadd.f32 %v5332, %v6766
        %v6768 = vpop.f32.mrf.mxu0
        %v6769 = vadd.f32 %v5332, %v6768
        %6770 = vmatmul.bf16.gmra.mxu0 %v4687
        %v6771 = vpop.f32.mrf.mxu0
        %v6772 = vadd.f32 %v5332, %v6771
        %v6773 = vpop.f32.mrf.mxu0
        %v6774 = vadd.f32 %v5332, %v6773
        %6775 = vdwg.mxu0
        %6776 = vmatpush.bf16.msra.mxu0 %v5750
        %6777 = vmatpush.bf16.msra.mxu0 %v5748
        %6778 = vmatpush.bf16.msra.mxu0 %v5746
        %6779 = vmatpush.bf16.msra.mxu0 %v5744
        %6780 = vmatpush.bf16.msra.mxu0 %v5742
        %6781 = vmatpush.bf16.msra.mxu0 %v5740
        %6782 = vmatpush.bf16.msra.mxu0 %v5738
        %6783 = vmatpush.bf16.msra.mxu0 %v5736
        %6784 = vmatmul.bf16.gmra.mxu0 %v4658
        %v6785 = vpop.f32.mrf.mxu0
        %v6786 = vadd.f32 %v6697, %v6785
        %v6787 = vpop.f32.mrf.mxu0
        %v6788 = vadd.f32 %v6699, %v6787
        %6789 = vmatmul.bf16.gmra.mxu0 %v4660
        %v6790 = vpop.f32.mrf.mxu0
        %v6791 = vadd.f32 %v6702, %v6790
        %v6792 = vpop.f32.mrf.mxu0
        %v6793 = vadd.f32 %v6704, %v6792
        %6794 = vmatmul.bf16.gmra.mxu0 %v4662
        %v6795 = vpop.f32.mrf.mxu0
        %v6796 = vadd.f32 %v6707, %v6795
        %v6797 = vpop.f32.mrf.mxu0
        %v6798 = vadd.f32 %v6709, %v6797
        %6799 = vmatmul.bf16.gmra.mxu0 %v4664
        %v6800 = vpop.f32.mrf.mxu0
        %v6801 = vadd.f32 %v6712, %v6800
        %v6802 = vpop.f32.mrf.mxu0
        %v6803 = vadd.f32 %v6714, %v6802
        %6804 = vmatmul.bf16.gmra.mxu0 %v4666
        %v6805 = vpop.f32.mrf.mxu0
        %v6806 = vadd.f32 %v6717, %v6805
        %v6807 = vpop.f32.mrf.mxu0
        %v6808 = vadd.f32 %v6719, %v6807
        %6809 = vmatmul.bf16.gmra.mxu0 %v4668
        %v6810 = vpop.f32.mrf.mxu0
        %v6811 = vadd.f32 %v6722, %v6810
        %v6812 = vpop.f32.mrf.mxu0
        %v6813 = vadd.f32 %v6724, %v6812
        %6814 = vmatmul.bf16.gmra.mxu0 %v4670
        %v6815 = vpop.f32.mrf.mxu0
        %v6816 = vadd.f32 %v6727, %v6815
        %v6817 = vpop.f32.mrf.mxu0
        %v6818 = vadd.f32 %v6729, %v6817
        %6819 = vmatmul.bf16.gmra.mxu0 %v4672
        %v6820 = vpop.f32.mrf.mxu0
        %v6821 = vadd.f32 %v6732, %v6820
        %v6822 = vpop.f32.mrf.mxu0
        %v6823 = vadd.f32 %v6734, %v6822
        %6824 = vmatmul.bf16.gmra.mxu0 %v4674
        %v6825 = vpop.f32.mrf.mxu0
        %v6826 = vadd.f32 %v6737, %v6825
        %v6827 = vpop.f32.mrf.mxu0
        %v6828 = vadd.f32 %v6739, %v6827
        %6829 = vmatmul.bf16.gmra.mxu0 %v4676
        %v6830 = vpop.f32.mrf.mxu0
        %v6831 = vadd.f32 %v6742, %v6830
        %v6832 = vpop.f32.mrf.mxu0
        %v6833 = vadd.f32 %v6744, %v6832
        %6834 = vmatmul.bf16.gmra.mxu0 %v4678
        %v6835 = vpop.f32.mrf.mxu0
        %v6836 = vadd.f32 %v6747, %v6835
        %v6837 = vpop.f32.mrf.mxu0
        %v6838 = vadd.f32 %v6749, %v6837
        %6839 = vmatmul.bf16.gmra.mxu0 %v4680
        %v6840 = vpop.f32.mrf.mxu0
        %v6841 = vadd.f32 %v6752, %v6840
        %v6842 = vpop.f32.mrf.mxu0
        %v6843 = vadd.f32 %v6754, %v6842
        %6844 = vmatmul.bf16.gmra.mxu0 %v4682
        %v6845 = vpop.f32.mrf.mxu0
        %v6846 = vadd.f32 %v6757, %v6845
        %v6847 = vpop.f32.mrf.mxu0
        %v6848 = vadd.f32 %v6759, %v6847
        %6849 = vmatmul.bf16.gmra.mxu0 %v4684
        %v6850 = vpop.f32.mrf.mxu0
        %v6851 = vadd.f32 %v6762, %v6850
        %v6852 = vpop.f32.mrf.mxu0
        %v6853 = vadd.f32 %v6764, %v6852
        %6854 = vmatmul.bf16.gmra.mxu0 %v4686
        %v6855 = vpop.f32.mrf.mxu0
        %v6856 = vadd.f32 %v6767, %v6855
        %v6857 = vpop.f32.mrf.mxu0
        %v6858 = vadd.f32 %v6769, %v6857
        %6859 = vmatmul.bf16.gmra.mxu0 %v4688
        %v6860 = vpop.f32.mrf.mxu0
        %v6861 = vadd.f32 %v6772, %v6860
        %v6862 = vpop.f32.mrf.mxu0
        %v6863 = vadd.f32 %v6774, %v6862
        %6864 = vdwg.mxu0
        %6865 = vmatpush.bf16.msra.mxu0 %v5766
        %6866 = vmatpush.bf16.msra.mxu0 %v5764
        %6867 = vmatpush.bf16.msra.mxu0 %v5762
        %6868 = vmatpush.bf16.msra.mxu0 %v5760
        %6869 = vmatpush.bf16.msra.mxu0 %v5758
        %6870 = vmatpush.bf16.msra.mxu0 %v5756
        %6871 = vmatpush.bf16.msra.mxu0 %v5754
        %6872 = vmatpush.bf16.msra.mxu0 %v5752
        %6873 = vmatmul.bf16.gmra.mxu0 %v4817
        %v6874 = vpop.f32.mrf.mxu0
        %v6875 = vadd.f32 %v6786, %v6874
        %v6876 = vpop.f32.mrf.mxu0
        %v6877 = vadd.f32 %v6788, %v6876
        %6878 = vmatmul.bf16.gmra.mxu0 %v4819
        %v6879 = vpop.f32.mrf.mxu0
        %v6880 = vadd.f32 %v6791, %v6879
        %v6881 = vpop.f32.mrf.mxu0
        %v6882 = vadd.f32 %v6793, %v6881
        %6883 = vmatmul.bf16.gmra.mxu0 %v4821
        %v6884 = vpop.f32.mrf.mxu0
        %v6885 = vadd.f32 %v6796, %v6884
        %v6886 = vpop.f32.mrf.mxu0
        %v6887 = vadd.f32 %v6798, %v6886
        %6888 = vmatmul.bf16.gmra.mxu0 %v4823
        %v6889 = vpop.f32.mrf.mxu0
        %v6890 = vadd.f32 %v6801, %v6889
        %v6891 = vpop.f32.mrf.mxu0
        %v6892 = vadd.f32 %v6803, %v6891
        %6893 = vmatmul.bf16.gmra.mxu0 %v4825
        %v6894 = vpop.f32.mrf.mxu0
        %v6895 = vadd.f32 %v6806, %v6894
        %v6896 = vpop.f32.mrf.mxu0
        %v6897 = vadd.f32 %v6808, %v6896
        %6898 = vmatmul.bf16.gmra.mxu0 %v4827
        %v6899 = vpop.f32.mrf.mxu0
        %v6900 = vadd.f32 %v6811, %v6899
        %v6901 = vpop.f32.mrf.mxu0
        %v6902 = vadd.f32 %v6813, %v6901
        %6903 = vmatmul.bf16.gmra.mxu0 %v4829
        %v6904 = vpop.f32.mrf.mxu0
        %v6905 = vadd.f32 %v6816, %v6904
        %v6906 = vpop.f32.mrf.mxu0
        %v6907 = vadd.f32 %v6818, %v6906
        %6908 = vmatmul.bf16.gmra.mxu0 %v4831
        %v6909 = vpop.f32.mrf.mxu0
        %v6910 = vadd.f32 %v6821, %v6909
        %v6911 = vpop.f32.mrf.mxu0
        %v6912 = vadd.f32 %v6823, %v6911
        %6913 = vmatmul.bf16.gmra.mxu0 %v4833
        %v6914 = vpop.f32.mrf.mxu0
        %v6915 = vadd.f32 %v6826, %v6914
        %v6916 = vpop.f32.mrf.mxu0
        %v6917 = vadd.f32 %v6828, %v6916
        %6918 = vmatmul.bf16.gmra.mxu0 %v4835
        %v6919 = vpop.f32.mrf.mxu0
        %v6920 = vadd.f32 %v6831, %v6919
        %v6921 = vpop.f32.mrf.mxu0
        %v6922 = vadd.f32 %v6833, %v6921
        %6923 = vmatmul.bf16.gmra.mxu0 %v4837
        %v6924 = vpop.f32.mrf.mxu0
        %v6925 = vadd.f32 %v6836, %v6924
        %v6926 = vpop.f32.mrf.mxu0
        %v6927 = vadd.f32 %v6838, %v6926
        %6928 = vmatmul.bf16.gmra.mxu0 %v4839
        %v6929 = vpop.f32.mrf.mxu0
        %v6930 = vadd.f32 %v6841, %v6929
        %v6931 = vpop.f32.mrf.mxu0
        %v6932 = vadd.f32 %v6843, %v6931
        %6933 = vmatmul.bf16.gmra.mxu0 %v4841
        %v6934 = vpop.f32.mrf.mxu0
        %v6935 = vadd.f32 %v6846, %v6934
        %v6936 = vpop.f32.mrf.mxu0
        %v6937 = vadd.f32 %v6848, %v6936
        %6938 = vmatmul.bf16.gmra.mxu0 %v4843
        %v6939 = vpop.f32.mrf.mxu0
        %v6940 = vadd.f32 %v6851, %v6939
        %v6941 = vpop.f32.mrf.mxu0
        %v6942 = vadd.f32 %v6853, %v6941
        %6943 = vmatmul.bf16.gmra.mxu0 %v4845
        %v6944 = vpop.f32.mrf.mxu0
        %v6945 = vadd.f32 %v6856, %v6944
        %v6946 = vpop.f32.mrf.mxu0
        %v6947 = vadd.f32 %v6858, %v6946
        %6948 = vmatmul.bf16.gmra.mxu0 %v4847
        %v6949 = vpop.f32.mrf.mxu0
        %v6950 = vadd.f32 %v6861, %v6949
        %v6951 = vpop.f32.mrf.mxu0
        %v6952 = vadd.f32 %v6863, %v6951
        %6953 = vdwg.mxu0
        %6954 = vmatpush.bf16.msra.mxu0 %v5782
        %6955 = vmatpush.bf16.msra.mxu0 %v5780
        %6956 = vmatpush.bf16.msra.mxu0 %v5778
        %6957 = vmatpush.bf16.msra.mxu0 %v5776
        %6958 = vmatpush.bf16.msra.mxu0 %v5774
        %6959 = vmatpush.bf16.msra.mxu0 %v5772
        %6960 = vmatpush.bf16.msra.mxu0 %v5770
        %6961 = vmatpush.bf16.msra.mxu0 %v5768
        %6962 = vmatmul.bf16.gmra.mxu0 %v4818
        %v6963 = vpop.f32.mrf.mxu0
        %v6964 = vadd.f32 %v6875, %v6963
        %v6965 = vpop.f32.mrf.mxu0
        %v6966 = vadd.f32 %v6877, %v6965
        %6967 = vmatmul.bf16.gmra.mxu0 %v4820
        %v6968 = vpop.f32.mrf.mxu0
        %v6969 = vadd.f32 %v6880, %v6968
        %v6970 = vpop.f32.mrf.mxu0
        %v6971 = vadd.f32 %v6882, %v6970
        %6972 = vmatmul.bf16.gmra.mxu0 %v4822
        %v6973 = vpop.f32.mrf.mxu0
        %v6974 = vadd.f32 %v6885, %v6973
        %v6975 = vpop.f32.mrf.mxu0
        %v6976 = vadd.f32 %v6887, %v6975
        %6977 = vmatmul.bf16.gmra.mxu0 %v4824
        %v6978 = vpop.f32.mrf.mxu0
        %v6979 = vadd.f32 %v6890, %v6978
        %v6980 = vpop.f32.mrf.mxu0
        %v6981 = vadd.f32 %v6892, %v6980
        %6982 = vmatmul.bf16.gmra.mxu0 %v4826
        %v6983 = vpop.f32.mrf.mxu0
        %v6984 = vadd.f32 %v6895, %v6983
        %v6985 = vpop.f32.mrf.mxu0
        %v6986 = vadd.f32 %v6897, %v6985
        %6987 = vmatmul.bf16.gmra.mxu0 %v4828
        %v6988 = vpop.f32.mrf.mxu0
        %v6989 = vadd.f32 %v6900, %v6988
        %v6990 = vpop.f32.mrf.mxu0
        %v6991 = vadd.f32 %v6902, %v6990
        %6992 = vmatmul.bf16.gmra.mxu0 %v4830
        %v6993 = vpop.f32.mrf.mxu0
        %v6994 = vadd.f32 %v6905, %v6993
        %v6995 = vpop.f32.mrf.mxu0
        %v6996 = vadd.f32 %v6907, %v6995
        %6997 = vmatmul.bf16.gmra.mxu0 %v4832
        %v6998 = vpop.f32.mrf.mxu0
        %v6999 = vadd.f32 %v6910, %v6998
        %v7000 = vpop.f32.mrf.mxu0
        %v7001 = vadd.f32 %v6912, %v7000
        %7002 = vmatmul.bf16.gmra.mxu0 %v4834
        %v7003 = vpop.f32.mrf.mxu0
        %v7004 = vadd.f32 %v6915, %v7003
        %v7005 = vpop.f32.mrf.mxu0
        %v7006 = vadd.f32 %v6917, %v7005
        %7007 = vmatmul.bf16.gmra.mxu0 %v4836
        %v7008 = vpop.f32.mrf.mxu0
        %v7009 = vadd.f32 %v6920, %v7008
        %v7010 = vpop.f32.mrf.mxu0
        %v7011 = vadd.f32 %v6922, %v7010
        %7012 = vmatmul.bf16.gmra.mxu0 %v4838
        %v7013 = vpop.f32.mrf.mxu0
        %v7014 = vadd.f32 %v6925, %v7013
        %v7015 = vpop.f32.mrf.mxu0
        %v7016 = vadd.f32 %v6927, %v7015
        %7017 = vmatmul.bf16.gmra.mxu0 %v4840
        %v7018 = vpop.f32.mrf.mxu0
        %v7019 = vadd.f32 %v6930, %v7018
        %v7020 = vpop.f32.mrf.mxu0
        %v7021 = vadd.f32 %v6932, %v7020
        %7022 = vmatmul.bf16.gmra.mxu0 %v4842
        %v7023 = vpop.f32.mrf.mxu0
        %v7024 = vadd.f32 %v6935, %v7023
        %v7025 = vpop.f32.mrf.mxu0
        %v7026 = vadd.f32 %v6937, %v7025
        %7027 = vmatmul.bf16.gmra.mxu0 %v4844
        %v7028 = vpop.f32.mrf.mxu0
        %v7029 = vadd.f32 %v6940, %v7028
        %v7030 = vpop.f32.mrf.mxu0
        %v7031 = vadd.f32 %v6942, %v7030
        %7032 = vmatmul.bf16.gmra.mxu0 %v4846
        %v7033 = vpop.f32.mrf.mxu0
        %v7034 = vadd.f32 %v6945, %v7033
        %v7035 = vpop.f32.mrf.mxu0
        %v7036 = vadd.f32 %v6947, %v7035
        %7037 = vmatmul.bf16.gmra.mxu0 %v4848
        %v7038 = vpop.f32.mrf.mxu0
        %v7039 = vadd.f32 %v6950, %v7038
        %v7040 = vpop.f32.mrf.mxu0
        %v7041 = vadd.f32 %v6952, %v7040
        %7042 = vdwg.mxu0
        %7043 = vmatpush.bf16.msra.mxu0 %v5798
        %7044 = vmatpush.bf16.msra.mxu0 %v5796
        %7045 = vmatpush.bf16.msra.mxu0 %v5794
        %7046 = vmatpush.bf16.msra.mxu0 %v5792
        %7047 = vmatpush.bf16.msra.mxu0 %v5790
        %7048 = vmatpush.bf16.msra.mxu0 %v5788
        %7049 = vmatpush.bf16.msra.mxu0 %v5786
        %7050 = vmatpush.bf16.msra.mxu0 %v5784
        %7051 = vmatmul.bf16.gmra.mxu0 %v4977
        %v7052 = vpop.f32.mrf.mxu0
        %v7053 = vadd.f32 %v6964, %v7052
        %v7054 = vpop.f32.mrf.mxu0
        %v7055 = vadd.f32 %v6966, %v7054
        %7056 = vmatmul.bf16.gmra.mxu0 %v4979
        %v7057 = vpop.f32.mrf.mxu0
        %v7058 = vadd.f32 %v6969, %v7057
        %v7059 = vpop.f32.mrf.mxu0
        %v7060 = vadd.f32 %v6971, %v7059
        %7061 = vmatmul.bf16.gmra.mxu0 %v4981
        %v7062 = vpop.f32.mrf.mxu0
        %v7063 = vadd.f32 %v6974, %v7062
        %v7064 = vpop.f32.mrf.mxu0
        %v7065 = vadd.f32 %v6976, %v7064
        %7066 = vmatmul.bf16.gmra.mxu0 %v4983
        %v7067 = vpop.f32.mrf.mxu0
        %v7068 = vadd.f32 %v6979, %v7067
        %v7069 = vpop.f32.mrf.mxu0
        %v7070 = vadd.f32 %v6981, %v7069
        %7071 = vmatmul.bf16.gmra.mxu0 %v4985
        %v7072 = vpop.f32.mrf.mxu0
        %v7073 = vadd.f32 %v6984, %v7072
        %v7074 = vpop.f32.mrf.mxu0
        %v7075 = vadd.f32 %v6986, %v7074
        %7076 = vmatmul.bf16.gmra.mxu0 %v4987
        %v7077 = vpop.f32.mrf.mxu0
        %v7078 = vadd.f32 %v6989, %v7077
        %v7079 = vpop.f32.mrf.mxu0
        %v7080 = vadd.f32 %v6991, %v7079
        %7081 = vmatmul.bf16.gmra.mxu0 %v4989
        %v7082 = vpop.f32.mrf.mxu0
        %v7083 = vadd.f32 %v6994, %v7082
        %v7084 = vpop.f32.mrf.mxu0
        %v7085 = vadd.f32 %v6996, %v7084
        %7086 = vmatmul.bf16.gmra.mxu0 %v4991
        %v7087 = vpop.f32.mrf.mxu0
        %v7088 = vadd.f32 %v6999, %v7087
        %v7089 = vpop.f32.mrf.mxu0
        %v7090 = vadd.f32 %v7001, %v7089
        %7091 = vmatmul.bf16.gmra.mxu0 %v4993
        %v7092 = vpop.f32.mrf.mxu0
        %v7093 = vadd.f32 %v7004, %v7092
        %v7094 = vpop.f32.mrf.mxu0
        %v7095 = vadd.f32 %v7006, %v7094
        %7096 = vmatmul.bf16.gmra.mxu0 %v4995
        %v7097 = vpop.f32.mrf.mxu0
        %v7098 = vadd.f32 %v7009, %v7097
        %v7099 = vpop.f32.mrf.mxu0
        %v7100 = vadd.f32 %v7011, %v7099
        %7101 = vmatmul.bf16.gmra.mxu0 %v4997
        %v7102 = vpop.f32.mrf.mxu0
        %v7103 = vadd.f32 %v7014, %v7102
        %v7104 = vpop.f32.mrf.mxu0
        %v7105 = vadd.f32 %v7016, %v7104
        %7106 = vmatmul.bf16.gmra.mxu0 %v4999
        %v7107 = vpop.f32.mrf.mxu0
        %v7108 = vadd.f32 %v7019, %v7107
        %v7109 = vpop.f32.mrf.mxu0
        %v7110 = vadd.f32 %v7021, %v7109
        %7111 = vmatmul.bf16.gmra.mxu0 %v5001
        %v7112 = vpop.f32.mrf.mxu0
        %v7113 = vadd.f32 %v7024, %v7112
        %v7114 = vpop.f32.mrf.mxu0
        %v7115 = vadd.f32 %v7026, %v7114
        %7116 = vmatmul.bf16.gmra.mxu0 %v5003
        %v7117 = vpop.f32.mrf.mxu0
        %v7118 = vadd.f32 %v7029, %v7117
        %v7119 = vpop.f32.mrf.mxu0
        %v7120 = vadd.f32 %v7031, %v7119
        %7121 = vmatmul.bf16.gmra.mxu0 %v5005
        %v7122 = vpop.f32.mrf.mxu0
        %v7123 = vadd.f32 %v7034, %v7122
        %v7124 = vpop.f32.mrf.mxu0
        %v7125 = vadd.f32 %v7036, %v7124
        %7126 = vmatmul.bf16.gmra.mxu0 %v5007
        %v7127 = vpop.f32.mrf.mxu0
        %v7128 = vadd.f32 %v7039, %v7127
        %v7129 = vpop.f32.mrf.mxu0
        %v7130 = vadd.f32 %v7041, %v7129
        %7131 = vdwg.mxu0
        %7132 = vmatpush.bf16.msra.mxu0 %v5814
        %7133 = vmatpush.bf16.msra.mxu0 %v5812
        %7134 = vmatpush.bf16.msra.mxu0 %v5810
        %7135 = vmatpush.bf16.msra.mxu0 %v5808
        %7136 = vmatpush.bf16.msra.mxu0 %v5806
        %7137 = vmatpush.bf16.msra.mxu0 %v5804
        %7138 = vmatpush.bf16.msra.mxu0 %v5802
        %7139 = vmatpush.bf16.msra.mxu0 %v5800
        %7140 = vmatmul.bf16.gmra.mxu0 %v4978
        %v7141 = vpop.f32.mrf.mxu0
        %v7142 = vadd.f32 %v7053, %v7141
        %v7143 = vpop.f32.mrf.mxu0
        %v7144 = vadd.f32 %v7055, %v7143
        %7145 = vmatmul.bf16.gmra.mxu0 %v4980
        %v7146 = vpop.f32.mrf.mxu0
        %v7147 = vadd.f32 %v7058, %v7146
        %v7148 = vpop.f32.mrf.mxu0
        %v7149 = vadd.f32 %v7060, %v7148
        %7150 = vmatmul.bf16.gmra.mxu0 %v4982
        %v7151 = vpop.f32.mrf.mxu0
        %v7152 = vadd.f32 %v7063, %v7151
        %v7153 = vpop.f32.mrf.mxu0
        %v7154 = vadd.f32 %v7065, %v7153
        %7155 = vmatmul.bf16.gmra.mxu0 %v4984
        %v7156 = vpop.f32.mrf.mxu0
        %v7157 = vadd.f32 %v7068, %v7156
        %v7158 = vpop.f32.mrf.mxu0
        %v7159 = vadd.f32 %v7070, %v7158
        %7160 = vmatmul.bf16.gmra.mxu0 %v4986
        %v7161 = vpop.f32.mrf.mxu0
        %v7162 = vadd.f32 %v7073, %v7161
        %v7163 = vpop.f32.mrf.mxu0
        %v7164 = vadd.f32 %v7075, %v7163
        %7165 = vmatmul.bf16.gmra.mxu0 %v4988
        %v7166 = vpop.f32.mrf.mxu0
        %v7167 = vadd.f32 %v7078, %v7166
        %v7168 = vpop.f32.mrf.mxu0
        %v7169 = vadd.f32 %v7080, %v7168
        %7170 = vmatmul.bf16.gmra.mxu0 %v4990
        %v7171 = vpop.f32.mrf.mxu0
        %v7172 = vadd.f32 %v7083, %v7171
        %v7173 = vpop.f32.mrf.mxu0
        %v7174 = vadd.f32 %v7085, %v7173
        %7175 = vmatmul.bf16.gmra.mxu0 %v4992
        %v7176 = vpop.f32.mrf.mxu0
        %v7177 = vadd.f32 %v7088, %v7176
        %v7178 = vpop.f32.mrf.mxu0
        %v7179 = vadd.f32 %v7090, %v7178
        %7180 = vmatmul.bf16.gmra.mxu0 %v4994
        %v7181 = vpop.f32.mrf.mxu0
        %v7182 = vadd.f32 %v7093, %v7181
        %v7183 = vpop.f32.mrf.mxu0
        %v7184 = vadd.f32 %v7095, %v7183
        %7185 = vmatmul.bf16.gmra.mxu0 %v4996
        %v7186 = vpop.f32.mrf.mxu0
        %v7187 = vadd.f32 %v7098, %v7186
        %v7188 = vpop.f32.mrf.mxu0
        %v7189 = vadd.f32 %v7100, %v7188
        %7190 = vmatmul.bf16.gmra.mxu0 %v4998
        %v7191 = vpop.f32.mrf.mxu0
        %v7192 = vadd.f32 %v7103, %v7191
        %v7193 = vpop.f32.mrf.mxu0
        %v7194 = vadd.f32 %v7105, %v7193
        %7195 = vmatmul.bf16.gmra.mxu0 %v5000
        %v7196 = vpop.f32.mrf.mxu0
        %v7197 = vadd.f32 %v7108, %v7196
        %v7198 = vpop.f32.mrf.mxu0
        %v7199 = vadd.f32 %v7110, %v7198
        %7200 = vmatmul.bf16.gmra.mxu0 %v5002
        %v7201 = vpop.f32.mrf.mxu0
        %v7202 = vadd.f32 %v7113, %v7201
        %v7203 = vpop.f32.mrf.mxu0
        %v7204 = vadd.f32 %v7115, %v7203
        %7205 = vmatmul.bf16.gmra.mxu0 %v5004
        %v7206 = vpop.f32.mrf.mxu0
        %v7207 = vadd.f32 %v7118, %v7206
        %v7208 = vpop.f32.mrf.mxu0
        %v7209 = vadd.f32 %v7120, %v7208
        %7210 = vmatmul.bf16.gmra.mxu0 %v5006
        %v7211 = vpop.f32.mrf.mxu0
        %v7212 = vadd.f32 %v7123, %v7211
        %v7213 = vpop.f32.mrf.mxu0
        %v7214 = vadd.f32 %v7125, %v7213
        %7215 = vmatmul.bf16.gmra.mxu0 %v5008
        %v7216 = vpop.f32.mrf.mxu0
        %v7217 = vadd.f32 %v7128, %v7216
        %v7218 = vpop.f32.mrf.mxu0
        %v7219 = vadd.f32 %v7130, %v7218
        %7220 = vdwg.mxu0
        %7221 = vmatpush.bf16.msra.mxu0 %v5830
        %7222 = vmatpush.bf16.msra.mxu0 %v5828
        %7223 = vmatpush.bf16.msra.mxu0 %v5826
        %7224 = vmatpush.bf16.msra.mxu0 %v5824
        %7225 = vmatpush.bf16.msra.mxu0 %v5822
        %7226 = vmatpush.bf16.msra.mxu0 %v5820
        %7227 = vmatpush.bf16.msra.mxu0 %v5818
        %7228 = vmatpush.bf16.msra.mxu0 %v5816
        %7229 = vmatmul.bf16.gmra.mxu0 %v5137
        %v7230 = vpop.f32.mrf.mxu0
        %v7231 = vadd.f32 %v7142, %v7230
        %v7232 = vpop.f32.mrf.mxu0
        %v7233 = vadd.f32 %v7144, %v7232
        %7234 = vmatmul.bf16.gmra.mxu0 %v5139
        %v7235 = vpop.f32.mrf.mxu0
        %v7236 = vadd.f32 %v7147, %v7235
        %v7237 = vpop.f32.mrf.mxu0
        %v7238 = vadd.f32 %v7149, %v7237
        %7239 = vmatmul.bf16.gmra.mxu0 %v5141
        %v7240 = vpop.f32.mrf.mxu0
        %v7241 = vadd.f32 %v7152, %v7240
        %v7242 = vpop.f32.mrf.mxu0
        %v7243 = vadd.f32 %v7154, %v7242
        %7244 = vmatmul.bf16.gmra.mxu0 %v5143
        %v7245 = vpop.f32.mrf.mxu0
        %v7246 = vadd.f32 %v7157, %v7245
        %v7247 = vpop.f32.mrf.mxu0
        %v7248 = vadd.f32 %v7159, %v7247
        %7249 = vmatmul.bf16.gmra.mxu0 %v5145
        %v7250 = vpop.f32.mrf.mxu0
        %v7251 = vadd.f32 %v7162, %v7250
        %v7252 = vpop.f32.mrf.mxu0
        %v7253 = vadd.f32 %v7164, %v7252
        %7254 = vmatmul.bf16.gmra.mxu0 %v5147
        %v7255 = vpop.f32.mrf.mxu0
        %v7256 = vadd.f32 %v7167, %v7255
        %v7257 = vpop.f32.mrf.mxu0
        %v7258 = vadd.f32 %v7169, %v7257
        %7259 = vmatmul.bf16.gmra.mxu0 %v5149
        %v7260 = vpop.f32.mrf.mxu0
        %v7261 = vadd.f32 %v7172, %v7260
        %v7262 = vpop.f32.mrf.mxu0
        %v7263 = vadd.f32 %v7174, %v7262
        %7264 = vmatmul.bf16.gmra.mxu0 %v5151
        %v7265 = vpop.f32.mrf.mxu0
        %v7266 = vadd.f32 %v7177, %v7265
        %v7267 = vpop.f32.mrf.mxu0
        %v7268 = vadd.f32 %v7179, %v7267
        %7269 = vmatmul.bf16.gmra.mxu0 %v5153
        %v7270 = vpop.f32.mrf.mxu0
        %v7271 = vadd.f32 %v7182, %v7270
        %v7272 = vpop.f32.mrf.mxu0
        %v7273 = vadd.f32 %v7184, %v7272
        %7274 = vmatmul.bf16.gmra.mxu0 %v5155
        %v7275 = vpop.f32.mrf.mxu0
        %v7276 = vadd.f32 %v7187, %v7275
        %v7277 = vpop.f32.mrf.mxu0
        %v7278 = vadd.f32 %v7189, %v7277
        %7279 = vmatmul.bf16.gmra.mxu0 %v5157
        %v7280 = vpop.f32.mrf.mxu0
        %v7281 = vadd.f32 %v7192, %v7280
        %v7282 = vpop.f32.mrf.mxu0
        %v7283 = vadd.f32 %v7194, %v7282
        %7284 = vmatmul.bf16.gmra.mxu0 %v5159
        %v7285 = vpop.f32.mrf.mxu0
        %v7286 = vadd.f32 %v7197, %v7285
        %v7287 = vpop.f32.mrf.mxu0
        %v7288 = vadd.f32 %v7199, %v7287
        %7289 = vmatmul.bf16.gmra.mxu0 %v5161
        %v7290 = vpop.f32.mrf.mxu0
        %v7291 = vadd.f32 %v7202, %v7290
        %v7292 = vpop.f32.mrf.mxu0
        %v7293 = vadd.f32 %v7204, %v7292
        %7294 = vmatmul.bf16.gmra.mxu0 %v5163
        %v7295 = vpop.f32.mrf.mxu0
        %v7296 = vadd.f32 %v7207, %v7295
        %v7297 = vpop.f32.mrf.mxu0
        %v7298 = vadd.f32 %v7209, %v7297
        %7299 = vmatmul.bf16.gmra.mxu0 %v5165
        %v7300 = vpop.f32.mrf.mxu0
        %v7301 = vadd.f32 %v7212, %v7300
        %v7302 = vpop.f32.mrf.mxu0
        %v7303 = vadd.f32 %v7214, %v7302
        %7304 = vmatmul.bf16.gmra.mxu0 %v5167
        %v7305 = vpop.f32.mrf.mxu0
        %v7306 = vadd.f32 %v7217, %v7305
        %v7307 = vpop.f32.mrf.mxu0
        %v7308 = vadd.f32 %v7219, %v7307
        %7309 = vdwg.mxu0
        %7310 = vmatpush.bf16.msra.mxu0 %v5846
        %7311 = vmatpush.bf16.msra.mxu0 %v5844
        %7312 = vmatpush.bf16.msra.mxu0 %v5842
        %7313 = vmatpush.bf16.msra.mxu0 %v5840
        %7314 = vmatpush.bf16.msra.mxu0 %v5838
        %7315 = vmatpush.bf16.msra.mxu0 %v5836
        %7316 = vmatpush.bf16.msra.mxu0 %v5834
        %7317 = vmatpush.bf16.msra.mxu0 %v5832
        %7318 = vmatmul.bf16.gmra.mxu0 %v5138
        %v7319 = vpop.f32.mrf.mxu0
        %v7320 = vadd.f32 %v7231, %v7319
        %v7321 = vpop.f32.mrf.mxu0
        %v7322 = vadd.f32 %v7233, %v7321
        %7323 = vmatmul.bf16.gmra.mxu0 %v5140
        %v7324 = vpop.f32.mrf.mxu0
        %v7325 = vadd.f32 %v7236, %v7324
        %v7326 = vpop.f32.mrf.mxu0
        %v7327 = vadd.f32 %v7238, %v7326
        %7328 = vmatmul.bf16.gmra.mxu0 %v5142
        %v7329 = vpop.f32.mrf.mxu0
        %v7330 = vadd.f32 %v7241, %v7329
        %v7331 = vpop.f32.mrf.mxu0
        %v7332 = vadd.f32 %v7243, %v7331
        %7333 = vmatmul.bf16.gmra.mxu0 %v5144
        %v7334 = vpop.f32.mrf.mxu0
        %v7335 = vadd.f32 %v7246, %v7334
        %v7336 = vpop.f32.mrf.mxu0
        %v7337 = vadd.f32 %v7248, %v7336
        %7338 = vmatmul.bf16.gmra.mxu0 %v5146
        %v7339 = vpop.f32.mrf.mxu0
        %v7340 = vadd.f32 %v7251, %v7339
        %v7341 = vpop.f32.mrf.mxu0
        %v7342 = vadd.f32 %v7253, %v7341
        %7343 = vmatmul.bf16.gmra.mxu0 %v5148
        %v7344 = vpop.f32.mrf.mxu0
        %v7345 = vadd.f32 %v7256, %v7344
        %v7346 = vpop.f32.mrf.mxu0
        %v7347 = vadd.f32 %v7258, %v7346
        %7348 = vmatmul.bf16.gmra.mxu0 %v5150
        %v7349 = vpop.f32.mrf.mxu0
        %v7350 = vadd.f32 %v7261, %v7349
        %v7351 = vpop.f32.mrf.mxu0
        %v7352 = vadd.f32 %v7263, %v7351
        %7353 = vmatmul.bf16.gmra.mxu0 %v5152
        %v7354 = vpop.f32.mrf.mxu0
        %v7355 = vadd.f32 %v7266, %v7354
        %v7356 = vpop.f32.mrf.mxu0
        %v7357 = vadd.f32 %v7268, %v7356
        %7358 = vmatmul.bf16.gmra.mxu0 %v5154
        %v7359 = vpop.f32.mrf.mxu0
        %v7360 = vadd.f32 %v7271, %v7359
        %v7361 = vpop.f32.mrf.mxu0
        %v7362 = vadd.f32 %v7273, %v7361
        %7363 = vmatmul.bf16.gmra.mxu0 %v5156
        %v7364 = vpop.f32.mrf.mxu0
        %v7365 = vadd.f32 %v7276, %v7364
        %v7366 = vpop.f32.mrf.mxu0
        %v7367 = vadd.f32 %v7278, %v7366
        %7368 = vmatmul.bf16.gmra.mxu0 %v5158
        %v7369 = vpop.f32.mrf.mxu0
        %v7370 = vadd.f32 %v7281, %v7369
        %v7371 = vpop.f32.mrf.mxu0
        %v7372 = vadd.f32 %v7283, %v7371
        %7373 = vmatmul.bf16.gmra.mxu0 %v5160
        %v7374 = vpop.f32.mrf.mxu0
        %v7375 = vadd.f32 %v7286, %v7374
        %v7376 = vpop.f32.mrf.mxu0
        %v7377 = vadd.f32 %v7288, %v7376
        %7378 = vmatmul.bf16.gmra.mxu0 %v5162
        %v7379 = vpop.f32.mrf.mxu0
        %v7380 = vadd.f32 %v7291, %v7379
        %v7381 = vpop.f32.mrf.mxu0
        %v7382 = vadd.f32 %v7293, %v7381
        %7383 = vmatmul.bf16.gmra.mxu0 %v5164
        %v7384 = vpop.f32.mrf.mxu0
        %v7385 = vadd.f32 %v7296, %v7384
        %v7386 = vpop.f32.mrf.mxu0
        %v7387 = vadd.f32 %v7298, %v7386
        %7388 = vmatmul.bf16.gmra.mxu0 %v5166
        %v7389 = vpop.f32.mrf.mxu0
        %v7390 = vadd.f32 %v7301, %v7389
        %v7391 = vpop.f32.mrf.mxu0
        %v7392 = vadd.f32 %v7303, %v7391
        %7393 = vmatmul.bf16.gmra.mxu0 %v5168
        %v7394 = vpop.f32.mrf.mxu0
        %v7395 = vadd.f32 %v7306, %v7394
        %v7396 = vpop.f32.mrf.mxu0
        %v7397 = vadd.f32 %v7308, %v7396
        %7398 = vdwg.mxu0
        %v7399 = vmax.f32 %v6608, 0.0
        %v7400 = vmax.f32 %v7320, 0.0
        %v7401 = vmax.f32 %v6610, 0.0
        %v7402 = vmax.f32 %v7322, 0.0
        %v7403 = vmax.f32 %v6613, 0.0
        %v7404 = vmax.f32 %v7325, 0.0
        %v7405 = vmax.f32 %v6615, 0.0
        %v7406 = vmax.f32 %v7327, 0.0
        %v7407 = vmax.f32 %v6618, 0.0
        %v7408 = vmax.f32 %v7330, 0.0
        %v7409 = vmax.f32 %v6620, 0.0
        %v7410 = vmax.f32 %v7332, 0.0
        %v7411 = vmax.f32 %v6623, 0.0
        %v7412 = vmax.f32 %v7335, 0.0
        %v7413 = vmax.f32 %v6625, 0.0
        %v7414 = vmax.f32 %v7337, 0.0
        %v7415 = vmax.f32 %v6628, 0.0
        %v7416 = vmax.f32 %v7340, 0.0
        %v7417 = vmax.f32 %v6630, 0.0
        %v7418 = vmax.f32 %v7342, 0.0
        %v7419 = vmax.f32 %v6633, 0.0
        %v7420 = vmax.f32 %v7345, 0.0
        %v7421 = vmax.f32 %v6635, 0.0
        %v7422 = vmax.f32 %v7347, 0.0
        %v7423 = vmax.f32 %v6638, 0.0
        %v7424 = vmax.f32 %v7350, 0.0
        %v7425 = vmax.f32 %v6640, 0.0
        %v7426 = vmax.f32 %v7352, 0.0
        %v7427 = vmax.f32 %v6643, 0.0
        %v7428 = vmax.f32 %v7355, 0.0
        %v7429 = vmax.f32 %v6645, 0.0
        %v7430 = vmax.f32 %v7357, 0.0
        %v7431 = vmax.f32 %v6648, 0.0
        %v7432 = vmax.f32 %v7360, 0.0
        %v7433 = vmax.f32 %v6650, 0.0
        %v7434 = vmax.f32 %v7362, 0.0
        %v7435 = vmax.f32 %v6653, 0.0
        %v7436 = vmax.f32 %v7365, 0.0
        %v7437 = vmax.f32 %v6655, 0.0
        %v7438 = vmax.f32 %v7367, 0.0
        %v7439 = vmax.f32 %v6658, 0.0
        %v7440 = vmax.f32 %v7370, 0.0
        %v7441 = vmax.f32 %v6660, 0.0
        %v7442 = vmax.f32 %v7372, 0.0
        %v7443 = vmax.f32 %v6663, 0.0
        %v7444 = vmax.f32 %v7375, 0.0
        %v7445 = vmax.f32 %v6665, 0.0
        %v7446 = vmax.f32 %v7377, 0.0
        %v7447 = vmax.f32 %v6668, 0.0
        %v7448 = vmax.f32 %v7380, 0.0
        %v7449 = vmax.f32 %v6670, 0.0
        %v7450 = vmax.f32 %v7382, 0.0
        %v7451 = vmax.f32 %v6673, 0.0
        %v7452 = vmax.f32 %v7385, 0.0
        %v7453 = vmax.f32 %v6675, 0.0
        %v7454 = vmax.f32 %v7387, 0.0
        %v7455 = vmax.f32 %v6678, 0.0
        %v7456 = vmax.f32 %v7390, 0.0
        %v7457 = vmax.f32 %v6680, 0.0
        %v7458 = vmax.f32 %v7392, 0.0
        %v7459 = vmax.f32 %v6683, 0.0
        %v7460 = vmax.f32 %v7395, 0.0
        %v7461 = vmax.f32 %v6685, 0.0
        %v7462 = vmax.f32 %v7397, 0.0
        %7463 = vst [vmem:[%s447] sm:$0xff] %v7399
        %7464 = vst [vmem:[%s447 + $0x8] sm:$0xff] %v7400
        %7465 = vst [vmem:[%s447 + $0x10] sm:$0xff] %v7401
        %7466 = vst [vmem:[%s447 + $0x18] sm:$0xff] %v7402
        %7467 = vst [vmem:[%s447 + $0x20] sm:$0xff] %v7403
        %7468 = vst [vmem:[%s447 + $0x28] sm:$0xff] %v7404
        %7469 = vst [vmem:[%s447 + $0x30] sm:$0xff] %v7405
        %7470 = vst [vmem:[%s447 + $0x38] sm:$0xff] %v7406
        %7471 = vst [vmem:[%s447 + $0x40] sm:$0xff] %v7407
        %7472 = vst [vmem:[%s447 + $0x48] sm:$0xff] %v7408
        %7473 = vst [vmem:[%s447 + $0x50] sm:$0xff] %v7409
        %7474 = vst [vmem:[%s447 + $0x58] sm:$0xff] %v7410
        %7475 = vst [vmem:[%s447 + $0x60] sm:$0xff] %v7411
        %7476 = vst [vmem:[%s447 + $0x68] sm:$0xff] %v7412
        %7477 = vst [vmem:[%s447 + $0x70] sm:$0xff] %v7413
        %7478 = vst [vmem:[%s447 + $0x78] sm:$0xff] %v7414
        %7479 = vst [vmem:[%s447 + $0x80] sm:$0xff] %v7415
        %7480 = vst [vmem:[%s447 + $0x88] sm:$0xff] %v7416
        %7481 = vst [vmem:[%s447 + $0x90] sm:$0xff] %v7417
        %7482 = vst [vmem:[%s447 + $0x98] sm:$0xff] %v7418
        %7483 = vst [vmem:[%s447 + $0xa0] sm:$0xff] %v7419
        %7484 = vst [vmem:[%s447 + $0xa8] sm:$0xff] %v7420
        %7485 = vst [vmem:[%s447 + $0xb0] sm:$0xff] %v7421
        %7486 = vst [vmem:[%s447 + $0xb8] sm:$0xff] %v7422
        %7487 = vst [vmem:[%s447 + $0xc0] sm:$0xff] %v7423
        %7488 = vst [vmem:[%s447 + $0xc8] sm:$0xff] %v7424
        %7489 = vst [vmem:[%s447 + $0xd0] sm:$0xff] %v7425
        %7490 = vst [vmem:[%s447 + $0xd8] sm:$0xff] %v7426
        %7491 = vst [vmem:[%s447 + $0xe0] sm:$0xff] %v7427
        %7492 = vst [vmem:[%s447 + $0xe8] sm:$0xff] %v7428
        %7493 = vst [vmem:[%s447 + $0xf0] sm:$0xff] %v7429
        %7494 = vst [vmem:[%s447 + $0xf8] sm:$0xff] %v7430
        %7495 = vst [vmem:[%s447 + $0x100] sm:$0xff] %v7431
        %7496 = vst [vmem:[%s447 + $0x108] sm:$0xff] %v7432
        %7497 = vst [vmem:[%s447 + $0x110] sm:$0xff] %v7433
        %7498 = vst [vmem:[%s447 + $0x118] sm:$0xff] %v7434
        %7499 = vst [vmem:[%s447 + $0x120] sm:$0xff] %v7435
        %7500 = vst [vmem:[%s447 + $0x128] sm:$0xff] %v7436
        %7501 = vst [vmem:[%s447 + $0x130] sm:$0xff] %v7437
        %7502 = vst [vmem:[%s447 + $0x138] sm:$0xff] %v7438
        %7503 = vst [vmem:[%s447 + $0x140] sm:$0xff] %v7439
        %7504 = vst [vmem:[%s447 + $0x148] sm:$0xff] %v7440
        %7505 = vst [vmem:[%s447 + $0x150] sm:$0xff] %v7441
        %7506 = vst [vmem:[%s447 + $0x158] sm:$0xff] %v7442
        %7507 = vst [vmem:[%s447 + $0x160] sm:$0xff] %v7443
        %7508 = vst [vmem:[%s447 + $0x168] sm:$0xff] %v7444
        %7509 = vst [vmem:[%s447 + $0x170] sm:$0xff] %v7445
        %7510 = vst [vmem:[%s447 + $0x178] sm:$0xff] %v7446
        %7511 = vst [vmem:[%s447 + $0x180] sm:$0xff] %v7447
        %7512 = vst [vmem:[%s447 + $0x188] sm:$0xff] %v7448
        %7513 = vst [vmem:[%s447 + $0x190] sm:$0xff] %v7449
        %7514 = vst [vmem:[%s447 + $0x198] sm:$0xff] %v7450
        %7515 = vst [vmem:[%s447 + $0x1a0] sm:$0xff] %v7451
        %7516 = vst [vmem:[%s447 + $0x1a8] sm:$0xff] %v7452
        %7517 = vst [vmem:[%s447 + $0x1b0] sm:$0xff] %v7453
        %7518 = vst [vmem:[%s447 + $0x1b8] sm:$0xff] %v7454
        %7519 = vst [vmem:[%s447 + $0x1c0] sm:$0xff] %v7455
        %7520 = vst [vmem:[%s447 + $0x1c8] sm:$0xff] %v7456
        %7521 = vst [vmem:[%s447 + $0x1d0] sm:$0xff] %v7457
        %7522 = vst [vmem:[%s447 + $0x1d8] sm:$0xff] %v7458
        %7523 = vst [vmem:[%s447 + $0x1e0] sm:$0xff] %v7459
        %7524 = vst [vmem:[%s447 + $0x1e8] sm:$0xff] %v7460
        %7525 = vst [vmem:[%s447 + $0x1f0] sm:$0xff] %v7461
        %7526 = vst [vmem:[%s447 + $0x1f8] sm:$0xff] %v7462
        %s7527 = sand.u32 %s289, 1
        %s7528 = scalar_lea.sflag [#allocation3], %s7527
        %s7529 = sand.u32 %s289, 1
        %s7530 = smul.addr %s7529, 512
        %s7531 = scalar_lea.vmem [#allocation2], %s7530
        // Predicated region
        $region65: #{aspp_forward.1} parent=63 // pred_check
          %p7532 = pneg %p299
        $region66: #{aspp_forward.1} parent=63 // pred_check_branch
          %7534 = sbr.rel (%p7532) target = $region68
        $region67: #{aspp_forward.1} parent=63 // pred_region
          %s7535 = smul.u32 32, %s25
          %7537 = vsyncadd %s7528, 0
          %s7538 = smul.addr %s7535, 2
          %s7539 = smul.addr %s7538, 8
          %s7540 = scalar_lea.hbm %s11, %s7539
          %s7541 = sshll.u32 %s7531, 4
          %s7542 = int_to_ptr.vmem [resolvable:$true] %s7541
          %s7543 = sshll.u32 %s7540, 4
          %s7544 = int_to_ptr.hbm [resolvable:$true] %s7543
          %7549 = dma.vmem_to_hbm [thread:$0]  %s7542, 8192, %s7544, %s7528, 256, 256, 16
        $region68: #{aspp_forward.1} parent=63 // pred_fallthru
          _
      $region64: #{aspp_forward.1} parent=5 // pred_fallthru
        _
      %p7550 = scmp.le.s32.totalorder 2, %s20
      // Predicated region
      $region69: #{aspp_forward.1} parent=5 // pred_check
        %p7551 = pneg %p7550
      $region70: #{aspp_forward.1} parent=5 // pred_check_branch
        %7553 = sbr.rel (%p7551) target = $region72
      $region71: #{aspp_forward.1} parent=5 // pred_region
        %s7554 = ssub.s32 %s20, 2
        // Predicated region
        $region73: #{aspp_forward.1} parent=71 // pred_check
          %p7555 = pneg %p305
        $region74: #{aspp_forward.1} parent=71 // pred_check_branch
          %7557 = sbr.rel (%p7555) target = $region76
        $region75: #{aspp_forward.1} parent=71 // pred_region
          %s7558 = sand.u32 %s290, 1
          %s7559 = scalar_lea.sflag [#allocation3], %s7558
          %s7560 = sand.u32 %s290, 1
          %s7561 = smul.addr %s7560, 512
          %s7562 = scalar_lea.vmem [#allocation2], %s7561
          %7564 = dma.done %s7559, 8192
        $region76: #{aspp_forward.1} parent=71 // pred_fallthru
          _
      $region72: #{aspp_forward.1} parent=5 // pred_fallthru
        _
    $region6: #{aspp_forward.1} parent=1 // loop_footer
      %s24 = sadd.s32 1, %s20
    $region7: #{aspp_forward.1} parent=1 // loop_footer_branch
      %19 = sbr.rel target = $region3
    $region8: #{aspp_forward.1} parent=1 // loop_exit
      _
    %7565 = vsyncpa [#allocation3], 1
    %s7566 = scalar_lea.sflag [#allocation3], 1
    %7567 = vsyncpa %s7566, 1

</llo_original>
